<compile_context>
chip_gen: v7x
topology: tpu7x:2x2x1
jax: 0.10.0
libtpu: 0.0.40
codegen_flags: <defaults>
</compile_context>

<pallas_src>
import functools

import jax
import jax.numpy as jnp
from jax.experimental import pallas as pl
from jax.experimental.pallas import tpu as pltpu

# ----------------------------- problem sizes -----------------------------
DIM_OUT = 8                      # y_train.shape[1]
DIM_IN = 16                      # X_train.shape[2] - dim_out
D_LONG = DIM_IN - DIM_OUT        # long-feature width
D_FEAT = DIM_IN + DIM_OUT        # total feature width of x
D_CAT = DIM_OUT + DIM_OUT        # concat width (short hidden + long hidden)
INITIAL_COEFF_VALUE = 0.5        # args.initial_coeff_value

N_SHORT_STEPS = 4                # Euler steps for short_feature_ode
N_ODE_STEPS = 8                  # RK4 steps for the main odefunc (t0=0 -> t1=1)

BLOCK_B_MAX = 512                # batch lanes per grid step (lane-dense, VMEM-safe)


# ------------------------------ Pallas kernel -----------------------------
def input_block2_kernel(
    x_ref,                        # (F_PACK, blk) fused slab, batch on lanes
    ws_ref, bs_ref,               # short_feature_ode neural-ODE weights (transposed / column)
    wl1_ref, bl1_ref,             # long_feature_func layer 1
    wl2_ref, bl2_ref,             # long_feature_func layer 2
    wo1_ref, bo1_ref,             # odefunc layer 1
    wo2_ref, bo2_ref,             # odefunc layer 2
    coeff_ref, pbias_ref,         # price coefficient / bias (DIM_OUT, 1)
    out_ref,                      # (DIM_OUT, blk)
    *, seq_len, apply_price,
):
    f32 = jnp.float32
    blk = out_ref.shape[1]

    # ---- in-kernel slicing of the packed slab (static, sublane-aligned) ----
    # rows [0, S*DIM_OUT)      : short sequence, timestep-major
    # rows [S*DIM_OUT, +D_LONG): long features at t=0
    # rows [.., +DIM_OUT)      : price at t=0
    off_long = seq_len * DIM_OUT
    off_price = off_long + D_LONG
    long0 = x_ref[off_long:off_long + D_LONG, :]          # (D_LONG, blk)
    price = x_ref[off_price:off_price + DIM_OUT, :]       # (DIM_OUT, blk)

    # ---- hoisted bias broadcasts (reused across all unrolled iterations) ----
    bs_b = jnp.broadcast_to(bs_ref[...], (DIM_OUT, blk))
    bl1_b = jnp.broadcast_to(bl1_ref[...], (DIM_OUT, blk))
    bl2_b = jnp.broadcast_to(bl2_ref[...], (DIM_OUT, blk))
    bo1_b = jnp.broadcast_to(bo1_ref[...], (D_CAT, blk))
    bo2_b = jnp.broadcast_to(bo2_ref[...], (D_CAT, blk))

    ws = ws_ref[...]                             # (DIM_OUT, DIM_OUT) already transposed
    wl1 = wl1_ref[...]
    wl2 = wl2_ref[...]
    wo1 = wo1_ref[...]                           # (D_CAT, D_CAT)
    wo2 = wo2_ref[...]

    # ---- short_feature_ode: sequence mean pooling (sublane-slice sum) + Euler ODE ----
    h_s = x_ref[0:DIM_OUT, :]
    for s in range(1, seq_len):                  # static trip count -> unrolled VPU adds
        h_s = h_s + x_ref[s * DIM_OUT:(s + 1) * DIM_OUT, :]
    h_s = h_s * (1.0 / seq_len)                  # (DIM_OUT, blk)

    dts = 1.0 / N_SHORT_STEPS
    for _ in range(N_SHORT_STEPS):               # static trip count -> unrolled
        h_s = h_s + dts * jnp.tanh(
            jnp.dot(ws, h_s, preferred_element_type=f32) + bs_b)

    # ---- long_feature_func: two tanh FC layers ----
    h_l = jnp.tanh(jnp.dot(wl1, long0, preferred_element_type=f32) + bl1_b)
    h_l = jnp.tanh(jnp.dot(wl2, h_l, preferred_element_type=f32) + bl2_b)

    # ---- concat [short, long] along the sublane axis (free vreg stacking) ----
    h = jnp.concatenate([h_s, h_l], axis=0)      # (D_CAT, blk)

    # ---- main ODE: fixed-step RK4 from t=0 to t=1 of a 2-layer tanh MLP ----
    def odefunc(hh):
        z = jnp.tanh(jnp.dot(wo1, hh, preferred_element_type=f32) + bo1_b)
        return jnp.dot(wo2, z, preferred_element_type=f32) + bo2_b

    dt = 1.0 / N_ODE_STEPS
    for _ in range(N_ODE_STEPS):
        k1 = odefunc(h)
        k2 = odefunc(h + (0.5 * dt) * k1)
        k3 = odefunc(h + (0.5 * dt) * k2)
        k4 = odefunc(h + dt * k3)
        h = h + (dt / 6.0) * (k1 + 2.0 * k2 + 2.0 * k3 + k4)

    # ---- final slice (+ optional price correction) ----
    final = h[0:DIM_OUT, :]
    if apply_price:                              # static Python flag (closure)
        final = final - (coeff_ref[...] * price + pbias_ref[...])
    out_ref[...] = final


# ------------------------------- wrapper ----------------------------------
def _round_up(v, m):
    return ((v + m - 1) // m) * m


def input_block2(x, params, apply_price=True):
    """Mirrors InputBlock2.forward slicing semantics, then runs the fused kernel."""
    (ws, bs, wl1, bl1, wl2, bl2, wo1, bo1, wo2, bo2, coeff, pbias) = params
    x = jnp.asarray(x, jnp.float32)
    if x.ndim == 2:                              # 2-D path: unsqueeze to S=1
        x = x[:, None, :]

    B, S, F = x.shape
    assert F == D_FEAT

    # ---- pack exactly the consumed data into one lane-dense (F_PACK, B) slab ----
    #   short sequence (all S steps), long features @ t=0, price @ t=0
    short_t = jnp.transpose(x[:, :, :DIM_OUT], (1, 2, 0)).reshape(S * DIM_OUT, B)
    long_t = jnp.transpose(x[:, 0, DIM_OUT:DIM_IN])          # (D_LONG, B)
    price_t = jnp.transpose(x[:, 0, DIM_IN:])                 # (DIM_OUT, B)
    packed = jnp.concatenate([short_t, long_t, price_t], axis=0)   # (F_PACK, B)
    f_pack = S * DIM_OUT + D_LONG + DIM_OUT

    # pad B to a lane-friendly block multiple (batch rides the 128-lane axis)
    Bp = _round_up(max(B, 1), 128)
    block_b = min(BLOCK_B_MAX, Bp)
    Bp = _round_up(Bp, block_b)
    if Bp != B:
        packed = jnp.pad(packed, ((0, 0), (0, Bp - B)))

    # tiny parameter re-layout (one-time plumbing): weights transposed, biases as columns
    wsT, wl1T, wl2T, wo1T, wo2T = (jnp.transpose(w).astype(jnp.float32)
                                   for w in (ws, wl1, wl2, wo1, wo2))
    col = lambda v: jnp.reshape(v, (-1, 1)).astype(jnp.float32)
    bs_c, bl1_c, bl2_c, bo1_c, bo2_c = map(col, (bs, bl1, bl2, bo1, bo2))
    coeff_c, pbias_c = col(coeff), col(pbias)

    small_ops = (wsT, bs_c, wl1T, bl1_c, wl2T, bl2_c,
                 wo1T, bo1_c, wo2T, bo2_c, coeff_c, pbias_c)

    def const_spec(shape):
        return pl.BlockSpec(shape, lambda i: (0,) * len(shape))   # VMEM-resident across steps

    grid = (Bp // block_b,)
    in_specs = ([pl.BlockSpec((f_pack, block_b), lambda i: (0, i))]
                + [const_spec(op.shape) for op in small_ops])

    out = pl.pallas_call(
        functools.partial(input_block2_kernel, seq_len=S, apply_price=apply_price),
        out_shape=jax.ShapeDtypeStruct((DIM_OUT, Bp), jnp.float32),
        grid_spec=pltpu.PrefetchScalarGridSpec(
            num_scalar_prefetch=0,
            grid=grid,
            in_specs=in_specs,
            out_specs=pl.BlockSpec((DIM_OUT, block_b), lambda i: (0, i)),
        ),
        compiler_params=pltpu.CompilerParams(
            dimension_semantics=("parallel",)),   # batch axis shards across TCs (v7x)
    )(packed, *small_ops)

    return jnp.transpose(out[:, :B])             # back to (B, DIM_OUT)


# ------------------------- pure-JAX reference ------------------------------
def input_block2_ref(x, params, apply_price=True):
    (ws, bs, wl1, bl1, wl2, bl2, wo1, bo1, wo2, bo2, coeff, pbias) = params
    x = x.astype(jnp.float32)
    if x.ndim == 2:
        x = x[:, None, :]
    price = x[:, 0, DIM_IN:]
    short_seq = x[:, :, :DIM_OUT]
    long0 = x[:, 0, DIM_OUT:DIM_IN]

    h_s = jnp.mean(short_seq, axis=1)
    dts = 1.0 / N_SHORT_STEPS
    for _ in range(N_SHORT_STEPS):
        h_s = h_s + dts * jnp.tanh(h_s @ ws + bs)

    h_l = jnp.tanh(long0 @ wl1 + bl1)
    h_l = jnp.tanh(h_l @ wl2 + bl2)
    h = jnp.concatenate([h_s, h_l], axis=1)

    def odefunc(hh):
        return jnp.tanh(hh @ wo1 + bo1) @ wo2 + bo2

    dt = 1.0 / N_ODE_STEPS
    for _ in range(N_ODE_STEPS):
        k1 = odefunc(h)
        k2 = odefunc(h + 0.5 * dt * k1)
        k3 = odefunc(h + 0.5 * dt * k2)
        k4 = odefunc(h + dt * k3)
        h = h + (dt / 6.0) * (k1 + 2.0 * k2 + 2.0 * k3 + k4)

    final = h[:, :DIM_OUT]
    if apply_price:
        final = final - (coeff * price + pbias)
    return final


# ------------------------------- main --------------------------------------
def make_params(key):
    ks = jax.random.split(key, 8)
    scale = 0.2

    def w(k, shape):
        return (scale * jax.random.normal(k, shape)).astype(jnp.float32)

    ws = w(ks[0], (DIM_OUT, DIM_OUT))
    bs = jnp.zeros((1, DIM_OUT), jnp.float32)
    wl1 = w(ks[1], (D_LONG, DIM_OUT))
    bl1 = jnp.zeros((1, DIM_OUT), jnp.float32)
    wl2 = w(ks[2], (DIM_OUT, DIM_OUT))
    bl2 = jnp.zeros((1, DIM_OUT), jnp.float32)
    wo1 = w(ks[3], (D_CAT, D_CAT))
    bo1 = jnp.zeros((1, D_CAT), jnp.float32)
    wo2 = w(ks[4], (D_CAT, D_CAT))
    bo2 = jnp.zeros((1, D_CAT), jnp.float32)
    coeff = jnp.full((1, DIM_OUT), INITIAL_COEFF_VALUE, jnp.float32)  # nn.Parameter(ones*init)
    pbias = jnp.zeros((1, DIM_OUT), jnp.float32)                      # nn.Parameter(zeros)
    return (ws, bs, wl1, bl1, wl2, bl2, wo1, bo1, wo2, bo2, coeff, pbias)


if __name__ == "__main__":
    key = jax.random.PRNGKey(0)
    kx, kp = jax.random.split(key)

    B, S = 4, 8
    x = jax.random.normal(kx, (B, S, D_FEAT), dtype=jnp.float32)
    params = make_params(kp)

    # apply_price=True path (3-D input)
    out = jax.block_until_ready(input_block2(x, params, apply_price=True))
    ref = input_block2_ref(x, params, apply_price=True)
    assert out.shape == (B, DIM_OUT)
    assert jnp.allclose(out, ref, atol=1e-3, rtol=1e-3), "mismatch (apply_price=True)"

    # apply_price=False path (no correction at all, matching PyTorch)
    out_np = jax.block_until_ready(input_block2(x, params, apply_price=False))
    ref_np = input_block2_ref(x, params, apply_price=False)
    assert jnp.allclose(out_np, ref_np, atol=1e-3, rtol=1e-3), "mismatch (apply_price=False)"

    # 2-D input path (PyTorch len(x.shape)==2 branch, S=1)
    x2 = jax.random.normal(jax.random.PRNGKey(1), (B, D_FEAT), dtype=jnp.float32)
    out2 = jax.block_until_ready(input_block2(x2, params, apply_price=True))
    ref2 = input_block2_ref(x2, params, apply_price=True)
    assert jnp.allclose(out2, ref2, atol=1e-3, rtol=1e-3), "mismatch (2-D input)"

    print("KERNEL_OK")
</pallas_src>

<mosaic_0001>
module attributes {stable_mosaic.version = 11 : i64} {
  func.func @input_block2_kernel(%arg0: i32, %arg1: memref<80x128xf32, #tpu.memory_space<vmem>>, %arg2: memref<8x8xf32, #tpu.memory_space<vmem>>, %arg3: memref<8x1xf32, #tpu.memory_space<vmem>>, %arg4: memref<8x8xf32, #tpu.memory_space<vmem>>, %arg5: memref<8x1xf32, #tpu.memory_space<vmem>>, %arg6: memref<8x8xf32, #tpu.memory_space<vmem>>, %arg7: memref<8x1xf32, #tpu.memory_space<vmem>>, %arg8: memref<16x16xf32, #tpu.memory_space<vmem>>, %arg9: memref<16x1xf32, #tpu.memory_space<vmem>>, %arg10: memref<16x16xf32, #tpu.memory_space<vmem>>, %arg11: memref<16x1xf32, #tpu.memory_space<vmem>>, %arg12: memref<8x1xf32, #tpu.memory_space<vmem>>, %arg13: memref<8x1xf32, #tpu.memory_space<vmem>>, %arg14: memref<8x128xf32, #tpu.memory_space<vmem>>) attributes {dimension_semantics = [#tpu.dimension_semantics<parallel>], iteration_bounds = array<i64: 1>, scalar_prefetch = 0 : i64, scratch_operands = 0 : i64, tpu.core_type = #tpu.core_type<tc>, window_params = [{transform_indices = @transform_0, window_bounds = array<i64: 80, 128>}, {pipeline_mode = #tpu.pipeline_mode<synchronous>, transform_indices = @transform_1, window_bounds = array<i64: 8, 8>}, {pipeline_mode = #tpu.pipeline_mode<synchronous>, transform_indices = @transform_2, window_bounds = array<i64: 8, 1>}, {pipeline_mode = #tpu.pipeline_mode<synchronous>, transform_indices = @transform_3, window_bounds = array<i64: 8, 8>}, {pipeline_mode = #tpu.pipeline_mode<synchronous>, transform_indices = @transform_4, window_bounds = array<i64: 8, 1>}, {pipeline_mode = #tpu.pipeline_mode<synchronous>, transform_indices = @transform_5, window_bounds = array<i64: 8, 8>}, {pipeline_mode = #tpu.pipeline_mode<synchronous>, transform_indices = @transform_6, window_bounds = array<i64: 8, 1>}, {pipeline_mode = #tpu.pipeline_mode<synchronous>, transform_indices = @transform_7, window_bounds = array<i64: 16, 16>}, {pipeline_mode = #tpu.pipeline_mode<synchronous>, transform_indices = @transform_8, window_bounds = array<i64: 16, 1>}, {pipeline_mode = #tpu.pipeline_mode<synchronous>, transform_indices = @transform_9, window_bounds = array<i64: 16, 16>}, {pipeline_mode = #tpu.pipeline_mode<synchronous>, transform_indices = @transform_10, window_bounds = array<i64: 16, 1>}, {pipeline_mode = #tpu.pipeline_mode<synchronous>, transform_indices = @transform_11, window_bounds = array<i64: 8, 1>}, {pipeline_mode = #tpu.pipeline_mode<synchronous>, transform_indices = @transform_12, window_bounds = array<i64: 8, 1>}, {transform_indices = @transform_13, window_bounds = array<i64: 8, 128>}]} {
    %c64 = arith.constant 64 : index
    %c0 = arith.constant 0 : index
    %0 = vector.load %arg1[%c64, %c0] : memref<80x128xf32, #tpu.memory_space<vmem>>, vector<8x128xf32>
    %c72 = arith.constant 72 : index
    %c0_0 = arith.constant 0 : index
    %1 = vector.load %arg1[%c72, %c0_0] : memref<80x128xf32, #tpu.memory_space<vmem>>, vector<8x128xf32>
    %c0_1 = arith.constant 0 : index
    %c0_2 = arith.constant 0 : index
    %2 = vector.load %arg3[%c0_1, %c0_2] : memref<8x1xf32, #tpu.memory_space<vmem>>, vector<8x1xf32>
    %3 = vector.shape_cast %2 : vector<8x1xf32> to vector<8x1xf32>
    %4 = vector.broadcast %3 : vector<8x1xf32> to vector<8x128xf32>
    %c0_3 = arith.constant 0 : index
    %c0_4 = arith.constant 0 : index
    %5 = vector.load %arg5[%c0_3, %c0_4] : memref<8x1xf32, #tpu.memory_space<vmem>>, vector<8x1xf32>
    %6 = vector.shape_cast %5 : vector<8x1xf32> to vector<8x1xf32>
    %7 = vector.broadcast %6 : vector<8x1xf32> to vector<8x128xf32>
    %c0_5 = arith.constant 0 : index
    %c0_6 = arith.constant 0 : index
    %8 = vector.load %arg7[%c0_5, %c0_6] : memref<8x1xf32, #tpu.memory_space<vmem>>, vector<8x1xf32>
    %9 = vector.shape_cast %8 : vector<8x1xf32> to vector<8x1xf32>
    %10 = vector.broadcast %9 : vector<8x1xf32> to vector<8x128xf32>
    %c0_7 = arith.constant 0 : index
    %c0_8 = arith.constant 0 : index
    %11 = vector.load %arg9[%c0_7, %c0_8] : memref<16x1xf32, #tpu.memory_space<vmem>>, vector<16x1xf32>
    %12 = vector.shape_cast %11 : vector<16x1xf32> to vector<16x1xf32>
    %13 = vector.broadcast %12 : vector<16x1xf32> to vector<16x128xf32>
    %c0_9 = arith.constant 0 : index
    %c0_10 = arith.constant 0 : index
    %14 = vector.load %arg11[%c0_9, %c0_10] : memref<16x1xf32, #tpu.memory_space<vmem>>, vector<16x1xf32>
    %15 = vector.shape_cast %14 : vector<16x1xf32> to vector<16x1xf32>
    %16 = vector.broadcast %15 : vector<16x1xf32> to vector<16x128xf32>
    %c0_11 = arith.constant 0 : index
    %c0_12 = arith.constant 0 : index
    %17 = vector.load %arg2[%c0_11, %c0_12] : memref<8x8xf32, #tpu.memory_space<vmem>>, vector<8x8xf32>
    %c0_13 = arith.constant 0 : index
    %c0_14 = arith.constant 0 : index
    %18 = vector.load %arg4[%c0_13, %c0_14] : memref<8x8xf32, #tpu.memory_space<vmem>>, vector<8x8xf32>
    %c0_15 = arith.constant 0 : index
    %c0_16 = arith.constant 0 : index
    %19 = vector.load %arg6[%c0_15, %c0_16] : memref<8x8xf32, #tpu.memory_space<vmem>>, vector<8x8xf32>
    %c0_17 = arith.constant 0 : index
    %c0_18 = arith.constant 0 : index
    %20 = vector.load %arg8[%c0_17, %c0_18] : memref<16x16xf32, #tpu.memory_space<vmem>>, vector<16x16xf32>
    %c0_19 = arith.constant 0 : index
    %c0_20 = arith.constant 0 : index
    %21 = vector.load %arg10[%c0_19, %c0_20] : memref<16x16xf32, #tpu.memory_space<vmem>>, vector<16x16xf32>
    %c0_21 = arith.constant 0 : index
    %c0_22 = arith.constant 0 : index
    %22 = vector.load %arg1[%c0_21, %c0_22] : memref<80x128xf32, #tpu.memory_space<vmem>>, vector<8x128xf32>
    %c8 = arith.constant 8 : index
    %c0_23 = arith.constant 0 : index
    %23 = vector.load %arg1[%c8, %c0_23] : memref<80x128xf32, #tpu.memory_space<vmem>>, vector<8x128xf32>
    %24 = arith.addf %22, %23 : vector<8x128xf32>
    %c16 = arith.constant 16 : index
    %c0_24 = arith.constant 0 : index
    %25 = vector.load %arg1[%c16, %c0_24] : memref<80x128xf32, #tpu.memory_space<vmem>>, vector<8x128xf32>
    %26 = arith.addf %24, %25 : vector<8x128xf32>
    %c24 = arith.constant 24 : index
    %c0_25 = arith.constant 0 : index
    %27 = vector.load %arg1[%c24, %c0_25] : memref<80x128xf32, #tpu.memory_space<vmem>>, vector<8x128xf32>
    %28 = arith.addf %26, %27 : vector<8x128xf32>
    %c32 = arith.constant 32 : index
    %c0_26 = arith.constant 0 : index
    %29 = vector.load %arg1[%c32, %c0_26] : memref<80x128xf32, #tpu.memory_space<vmem>>, vector<8x128xf32>
    %30 = arith.addf %28, %29 : vector<8x128xf32>
    %c40 = arith.constant 40 : index
    %c0_27 = arith.constant 0 : index
    %31 = vector.load %arg1[%c40, %c0_27] : memref<80x128xf32, #tpu.memory_space<vmem>>, vector<8x128xf32>
    %32 = arith.addf %30, %31 : vector<8x128xf32>
    %c48 = arith.constant 48 : index
    %c0_28 = arith.constant 0 : index
    %33 = vector.load %arg1[%c48, %c0_28] : memref<80x128xf32, #tpu.memory_space<vmem>>, vector<8x128xf32>
    %34 = arith.addf %32, %33 : vector<8x128xf32>
    %c56 = arith.constant 56 : index
    %c0_29 = arith.constant 0 : index
    %35 = vector.load %arg1[%c56, %c0_29] : memref<80x128xf32, #tpu.memory_space<vmem>>, vector<8x128xf32>
    %36 = arith.addf %34, %35 : vector<8x128xf32>
    %cst = arith.constant 1.250000e-01 : f32
    %37 = vector.broadcast %cst : f32 to vector<8x128xf32>
    %38 = arith.mulf %36, %37 : vector<8x128xf32>
    %cst_30 = arith.constant dense<0.000000e+00> : vector<8x128xf32>
    %39 = tpu.matmul %17, %38, %cst_30 {dimension_numbers = #tpu.dot_dimension_numbers<[1], [0], [0], [1], [0, 0, 1, 1], [], []>} : vector<8x8xf32>, vector<8x128xf32>, vector<8x128xf32> -> vector<8x128xf32>
    %40 = arith.addf %39, %4 : vector<8x128xf32>
    %41 = math.tanh %40 : vector<8x128xf32>
    %cst_31 = arith.constant 2.500000e-01 : f32
    %42 = vector.broadcast %cst_31 : f32 to vector<8x128xf32>
    %43 = arith.mulf %42, %41 : vector<8x128xf32>
    %44 = arith.addf %38, %43 : vector<8x128xf32>
    %cst_32 = arith.constant dense<0.000000e+00> : vector<8x128xf32>
    %45 = tpu.matmul %17, %44, %cst_32 {dimension_numbers = #tpu.dot_dimension_numbers<[1], [0], [0], [1], [0, 0, 1, 1], [], []>} : vector<8x8xf32>, vector<8x128xf32>, vector<8x128xf32> -> vector<8x128xf32>
    %46 = arith.addf %45, %4 : vector<8x128xf32>
    %47 = math.tanh %46 : vector<8x128xf32>
    %cst_33 = arith.constant 2.500000e-01 : f32
    %48 = vector.broadcast %cst_33 : f32 to vector<8x128xf32>
    %49 = arith.mulf %48, %47 : vector<8x128xf32>
    %50 = arith.addf %44, %49 : vector<8x128xf32>
    %cst_34 = arith.constant dense<0.000000e+00> : vector<8x128xf32>
    %51 = tpu.matmul %17, %50, %cst_34 {dimension_numbers = #tpu.dot_dimension_numbers<[1], [0], [0], [1], [0, 0, 1, 1], [], []>} : vector<8x8xf32>, vector<8x128xf32>, vector<8x128xf32> -> vector<8x128xf32>
    %52 = arith.addf %51, %4 : vector<8x128xf32>
    %53 = math.tanh %52 : vector<8x128xf32>
    %cst_35 = arith.constant 2.500000e-01 : f32
    %54 = vector.broadcast %cst_35 : f32 to vector<8x128xf32>
    %55 = arith.mulf %54, %53 : vector<8x128xf32>
    %56 = arith.addf %50, %55 : vector<8x128xf32>
    %cst_36 = arith.constant dense<0.000000e+00> : vector<8x128xf32>
    %57 = tpu.matmul %17, %56, %cst_36 {dimension_numbers = #tpu.dot_dimension_numbers<[1], [0], [0], [1], [0, 0, 1, 1], [], []>} : vector<8x8xf32>, vector<8x128xf32>, vector<8x128xf32> -> vector<8x128xf32>
    %58 = arith.addf %57, %4 : vector<8x128xf32>
    %59 = math.tanh %58 : vector<8x128xf32>
    %cst_37 = arith.constant 2.500000e-01 : f32
    %60 = vector.broadcast %cst_37 : f32 to vector<8x128xf32>
    %61 = arith.mulf %60, %59 : vector<8x128xf32>
    %62 = arith.addf %56, %61 : vector<8x128xf32>
    %cst_38 = arith.constant dense<0.000000e+00> : vector<8x128xf32>
    %63 = tpu.matmul %18, %0, %cst_38 {dimension_numbers = #tpu.dot_dimension_numbers<[1], [0], [0], [1], [0, 0, 1, 1], [], []>} : vector<8x8xf32>, vector<8x128xf32>, vector<8x128xf32> -> vector<8x128xf32>
    %64 = arith.addf %63, %7 : vector<8x128xf32>
    %65 = math.tanh %64 : vector<8x128xf32>
    %cst_39 = arith.constant dense<0.000000e+00> : vector<8x128xf32>
    %66 = tpu.matmul %19, %65, %cst_39 {dimension_numbers = #tpu.dot_dimension_numbers<[1], [0], [0], [1], [0, 0, 1, 1], [], []>} : vector<8x8xf32>, vector<8x128xf32>, vector<8x128xf32> -> vector<8x128xf32>
    %67 = arith.addf %66, %10 : vector<8x128xf32>
    %68 = math.tanh %67 : vector<8x128xf32>
    %69 = tpu.concatenate %62, %68 in 0 : vector<8x128xf32>, vector<8x128xf32> -> vector<16x128xf32>
    %cst_40 = arith.constant dense<0.000000e+00> : vector<16x128xf32>
    %70 = tpu.matmul %20, %69, %cst_40 {dimension_numbers = #tpu.dot_dimension_numbers<[1], [0], [0], [1], [0, 0, 1, 1], [], []>} : vector<16x16xf32>, vector<16x128xf32>, vector<16x128xf32> -> vector<16x128xf32>
    %71 = arith.addf %70, %13 : vector<16x128xf32>
    %72 = math.tanh %71 : vector<16x128xf32>
    %cst_41 = arith.constant dense<0.000000e+00> : vector<16x128xf32>
    %73 = tpu.matmul %21, %72, %cst_41 {dimension_numbers = #tpu.dot_dimension_numbers<[1], [0], [0], [1], [0, 0, 1, 1], [], []>} : vector<16x16xf32>, vector<16x128xf32>, vector<16x128xf32> -> vector<16x128xf32>
    %74 = arith.addf %73, %16 : vector<16x128xf32>
    %cst_42 = arith.constant 6.250000e-02 : f32
    %75 = vector.broadcast %cst_42 : f32 to vector<16x128xf32>
    %76 = arith.mulf %75, %74 : vector<16x128xf32>
    %77 = arith.addf %69, %76 : vector<16x128xf32>
    %cst_43 = arith.constant dense<0.000000e+00> : vector<16x128xf32>
    %78 = tpu.matmul %20, %77, %cst_43 {dimension_numbers = #tpu.dot_dimension_numbers<[1], [0], [0], [1], [0, 0, 1, 1], [], []>} : vector<16x16xf32>, vector<16x128xf32>, vector<16x128xf32> -> vector<16x128xf32>
    %79 = arith.addf %78, %13 : vector<16x128xf32>
    %80 = math.tanh %79 : vector<16x128xf32>
    %cst_44 = arith.constant dense<0.000000e+00> : vector<16x128xf32>
    %81 = tpu.matmul %21, %80, %cst_44 {dimension_numbers = #tpu.dot_dimension_numbers<[1], [0], [0], [1], [0, 0, 1, 1], [], []>} : vector<16x16xf32>, vector<16x128xf32>, vector<16x128xf32> -> vector<16x128xf32>
    %82 = arith.addf %81, %16 : vector<16x128xf32>
    %cst_45 = arith.constant 6.250000e-02 : f32
    %83 = vector.broadcast %cst_45 : f32 to vector<16x128xf32>
    %84 = arith.mulf %83, %82 : vector<16x128xf32>
    %85 = arith.addf %69, %84 : vector<16x128xf32>
    %cst_46 = arith.constant dense<0.000000e+00> : vector<16x128xf32>
    %86 = tpu.matmul %20, %85, %cst_46 {dimension_numbers = #tpu.dot_dimension_numbers<[1], [0], [0], [1], [0, 0, 1, 1], [], []>} : vector<16x16xf32>, vector<16x128xf32>, vector<16x128xf32> -> vector<16x128xf32>
    %87 = arith.addf %86, %13 : vector<16x128xf32>
    %88 = math.tanh %87 : vector<16x128xf32>
    %cst_47 = arith.constant dense<0.000000e+00> : vector<16x128xf32>
    %89 = tpu.matmul %21, %88, %cst_47 {dimension_numbers = #tpu.dot_dimension_numbers<[1], [0], [0], [1], [0, 0, 1, 1], [], []>} : vector<16x16xf32>, vector<16x128xf32>, vector<16x128xf32> -> vector<16x128xf32>
    %90 = arith.addf %89, %16 : vector<16x128xf32>
    %cst_48 = arith.constant 1.250000e-01 : f32
    %91 = vector.broadcast %cst_48 : f32 to vector<16x128xf32>
    %92 = arith.mulf %91, %90 : vector<16x128xf32>
    %93 = arith.addf %69, %92 : vector<16x128xf32>
    %cst_49 = arith.constant dense<0.000000e+00> : vector<16x128xf32>
    %94 = tpu.matmul %20, %93, %cst_49 {dimension_numbers = #tpu.dot_dimension_numbers<[1], [0], [0], [1], [0, 0, 1, 1], [], []>} : vector<16x16xf32>, vector<16x128xf32>, vector<16x128xf32> -> vector<16x128xf32>
    %95 = arith.addf %94, %13 : vector<16x128xf32>
    %96 = math.tanh %95 : vector<16x128xf32>
    %cst_50 = arith.constant dense<0.000000e+00> : vector<16x128xf32>
    %97 = tpu.matmul %21, %96, %cst_50 {dimension_numbers = #tpu.dot_dimension_numbers<[1], [0], [0], [1], [0, 0, 1, 1], [], []>} : vector<16x16xf32>, vector<16x128xf32>, vector<16x128xf32> -> vector<16x128xf32>
    %98 = arith.addf %97, %16 : vector<16x128xf32>
    %cst_51 = arith.constant 2.000000e+00 : f32
    %99 = vector.broadcast %cst_51 : f32 to vector<16x128xf32>
    %100 = arith.mulf %99, %82 : vector<16x128xf32>
    %101 = arith.addf %74, %100 : vector<16x128xf32>
    %cst_52 = arith.constant 2.000000e+00 : f32
    %102 = vector.broadcast %cst_52 : f32 to vector<16x128xf32>
    %103 = arith.mulf %102, %90 : vector<16x128xf32>
    %104 = arith.addf %101, %103 : vector<16x128xf32>
    %105 = arith.addf %104, %98 : vector<16x128xf32>
    %cst_53 = arith.constant 0.020833334 : f32
    %106 = vector.broadcast %cst_53 : f32 to vector<16x128xf32>
    %107 = arith.mulf %106, %105 : vector<16x128xf32>
    %108 = arith.addf %69, %107 : vector<16x128xf32>
    %cst_54 = arith.constant dense<0.000000e+00> : vector<16x128xf32>
    %109 = tpu.matmul %20, %108, %cst_54 {dimension_numbers = #tpu.dot_dimension_numbers<[1], [0], [0], [1], [0, 0, 1, 1], [], []>} : vector<16x16xf32>, vector<16x128xf32>, vector<16x128xf32> -> vector<16x128xf32>
    %110 = arith.addf %109, %13 : vector<16x128xf32>
    %111 = math.tanh %110 : vector<16x128xf32>
    %cst_55 = arith.constant dense<0.000000e+00> : vector<16x128xf32>
    %112 = tpu.matmul %21, %111, %cst_55 {dimension_numbers = #tpu.dot_dimension_numbers<[1], [0], [0], [1], [0, 0, 1, 1], [], []>} : vector<16x16xf32>, vector<16x128xf32>, vector<16x128xf32> -> vector<16x128xf32>
    %113 = arith.addf %112, %16 : vector<16x128xf32>
    %cst_56 = arith.constant 6.250000e-02 : f32
    %114 = vector.broadcast %cst_56 : f32 to vector<16x128xf32>
    %115 = arith.mulf %114, %113 : vector<16x128xf32>
    %116 = arith.addf %108, %115 : vector<16x128xf32>
    %cst_57 = arith.constant dense<0.000000e+00> : vector<16x128xf32>
    %117 = tpu.matmul %20, %116, %cst_57 {dimension_numbers = #tpu.dot_dimension_numbers<[1], [0], [0], [1], [0, 0, 1, 1], [], []>} : vector<16x16xf32>, vector<16x128xf32>, vector<16x128xf32> -> vector<16x128xf32>
    %118 = arith.addf %117, %13 : vector<16x128xf32>
    %119 = math.tanh %118 : vector<16x128xf32>
    %cst_58 = arith.constant dense<0.000000e+00> : vector<16x128xf32>
    %120 = tpu.matmul %21, %119, %cst_58 {dimension_numbers = #tpu.dot_dimension_numbers<[1], [0], [0], [1], [0, 0, 1, 1], [], []>} : vector<16x16xf32>, vector<16x128xf32>, vector<16x128xf32> -> vector<16x128xf32>
    %121 = arith.addf %120, %16 : vector<16x128xf32>
    %cst_59 = arith.constant 6.250000e-02 : f32
    %122 = vector.broadcast %cst_59 : f32 to vector<16x128xf32>
    %123 = arith.mulf %122, %121 : vector<16x128xf32>
    %124 = arith.addf %108, %123 : vector<16x128xf32>
    %cst_60 = arith.constant dense<0.000000e+00> : vector<16x128xf32>
    %125 = tpu.matmul %20, %124, %cst_60 {dimension_numbers = #tpu.dot_dimension_numbers<[1], [0], [0], [1], [0, 0, 1, 1], [], []>} : vector<16x16xf32>, vector<16x128xf32>, vector<16x128xf32> -> vector<16x128xf32>
    %126 = arith.addf %125, %13 : vector<16x128xf32>
    %127 = math.tanh %126 : vector<16x128xf32>
    %cst_61 = arith.constant dense<0.000000e+00> : vector<16x128xf32>
    %128 = tpu.matmul %21, %127, %cst_61 {dimension_numbers = #tpu.dot_dimension_numbers<[1], [0], [0], [1], [0, 0, 1, 1], [], []>} : vector<16x16xf32>, vector<16x128xf32>, vector<16x128xf32> -> vector<16x128xf32>
    %129 = arith.addf %128, %16 : vector<16x128xf32>
    %cst_62 = arith.constant 1.250000e-01 : f32
    %130 = vector.broadcast %cst_62 : f32 to vector<16x128xf32>
    %131 = arith.mulf %130, %129 : vector<16x128xf32>
    %132 = arith.addf %108, %131 : vector<16x128xf32>
    %cst_63 = arith.constant dense<0.000000e+00> : vector<16x128xf32>
    %133 = tpu.matmul %20, %132, %cst_63 {dimension_numbers = #tpu.dot_dimension_numbers<[1], [0], [0], [1], [0, 0, 1, 1], [], []>} : vector<16x16xf32>, vector<16x128xf32>, vector<16x128xf32> -> vector<16x128xf32>
    %134 = arith.addf %133, %13 : vector<16x128xf32>
    %135 = math.tanh %134 : vector<16x128xf32>
    %cst_64 = arith.constant dense<0.000000e+00> : vector<16x128xf32>
    %136 = tpu.matmul %21, %135, %cst_64 {dimension_numbers = #tpu.dot_dimension_numbers<[1], [0], [0], [1], [0, 0, 1, 1], [], []>} : vector<16x16xf32>, vector<16x128xf32>, vector<16x128xf32> -> vector<16x128xf32>
    %137 = arith.addf %136, %16 : vector<16x128xf32>
    %cst_65 = arith.constant 2.000000e+00 : f32
    %138 = vector.broadcast %cst_65 : f32 to vector<16x128xf32>
    %139 = arith.mulf %138, %121 : vector<16x128xf32>
    %140 = arith.addf %113, %139 : vector<16x128xf32>
    %cst_66 = arith.constant 2.000000e+00 : f32
    %141 = vector.broadcast %cst_66 : f32 to vector<16x128xf32>
    %142 = arith.mulf %141, %129 : vector<16x128xf32>
    %143 = arith.addf %140, %142 : vector<16x128xf32>
    %144 = arith.addf %143, %137 : vector<16x128xf32>
    %cst_67 = arith.constant 0.020833334 : f32
    %145 = vector.broadcast %cst_67 : f32 to vector<16x128xf32>
    %146 = arith.mulf %145, %144 : vector<16x128xf32>
    %147 = arith.addf %108, %146 : vector<16x128xf32>
    %cst_68 = arith.constant dense<0.000000e+00> : vector<16x128xf32>
    %148 = tpu.matmul %20, %147, %cst_68 {dimension_numbers = #tpu.dot_dimension_numbers<[1], [0], [0], [1], [0, 0, 1, 1], [], []>} : vector<16x16xf32>, vector<16x128xf32>, vector<16x128xf32> -> vector<16x128xf32>
    %149 = arith.addf %148, %13 : vector<16x128xf32>
    %150 = math.tanh %149 : vector<16x128xf32>
    %cst_69 = arith.constant dense<0.000000e+00> : vector<16x128xf32>
    %151 = tpu.matmul %21, %150, %cst_69 {dimension_numbers = #tpu.dot_dimension_numbers<[1], [0], [0], [1], [0, 0, 1, 1], [], []>} : vector<16x16xf32>, vector<16x128xf32>, vector<16x128xf32> -> vector<16x128xf32>
    %152 = arith.addf %151, %16 : vector<16x128xf32>
    %cst_70 = arith.constant 6.250000e-02 : f32
    %153 = vector.broadcast %cst_70 : f32 to vector<16x128xf32>
    %154 = arith.mulf %153, %152 : vector<16x128xf32>
    %155 = arith.addf %147, %154 : vector<16x128xf32>
    %cst_71 = arith.constant dense<0.000000e+00> : vector<16x128xf32>
    %156 = tpu.matmul %20, %155, %cst_71 {dimension_numbers = #tpu.dot_dimension_numbers<[1], [0], [0], [1], [0, 0, 1, 1], [], []>} : vector<16x16xf32>, vector<16x128xf32>, vector<16x128xf32> -> vector<16x128xf32>
    %157 = arith.addf %156, %13 : vector<16x128xf32>
    %158 = math.tanh %157 : vector<16x128xf32>
    %cst_72 = arith.constant dense<0.000000e+00> : vector<16x128xf32>
    %159 = tpu.matmul %21, %158, %cst_72 {dimension_numbers = #tpu.dot_dimension_numbers<[1], [0], [0], [1], [0, 0, 1, 1], [], []>} : vector<16x16xf32>, vector<16x128xf32>, vector<16x128xf32> -> vector<16x128xf32>
    %160 = arith.addf %159, %16 : vector<16x128xf32>
    %cst_73 = arith.constant 6.250000e-02 : f32
    %161 = vector.broadcast %cst_73 : f32 to vector<16x128xf32>
    %162 = arith.mulf %161, %160 : vector<16x128xf32>
    %163 = arith.addf %147, %162 : vector<16x128xf32>
    %cst_74 = arith.constant dense<0.000000e+00> : vector<16x128xf32>
    %164 = tpu.matmul %20, %163, %cst_74 {dimension_numbers = #tpu.dot_dimension_numbers<[1], [0], [0], [1], [0, 0, 1, 1], [], []>} : vector<16x16xf32>, vector<16x128xf32>, vector<16x128xf32> -> vector<16x128xf32>
    %165 = arith.addf %164, %13 : vector<16x128xf32>
    %166 = math.tanh %165 : vector<16x128xf32>
    %cst_75 = arith.constant dense<0.000000e+00> : vector<16x128xf32>
    %167 = tpu.matmul %21, %166, %cst_75 {dimension_numbers = #tpu.dot_dimension_numbers<[1], [0], [0], [1], [0, 0, 1, 1], [], []>} : vector<16x16xf32>, vector<16x128xf32>, vector<16x128xf32> -> vector<16x128xf32>
    %168 = arith.addf %167, %16 : vector<16x128xf32>
    %cst_76 = arith.constant 1.250000e-01 : f32
    %169 = vector.broadcast %cst_76 : f32 to vector<16x128xf32>
    %170 = arith.mulf %169, %168 : vector<16x128xf32>
    %171 = arith.addf %147, %170 : vector<16x128xf32>
    %cst_77 = arith.constant dense<0.000000e+00> : vector<16x128xf32>
    %172 = tpu.matmul %20, %171, %cst_77 {dimension_numbers = #tpu.dot_dimension_numbers<[1], [0], [0], [1], [0, 0, 1, 1], [], []>} : vector<16x16xf32>, vector<16x128xf32>, vector<16x128xf32> -> vector<16x128xf32>
    %173 = arith.addf %172, %13 : vector<16x128xf32>
    %174 = math.tanh %173 : vector<16x128xf32>
    %cst_78 = arith.constant dense<0.000000e+00> : vector<16x128xf32>
    %175 = tpu.matmul %21, %174, %cst_78 {dimension_numbers = #tpu.dot_dimension_numbers<[1], [0], [0], [1], [0, 0, 1, 1], [], []>} : vector<16x16xf32>, vector<16x128xf32>, vector<16x128xf32> -> vector<16x128xf32>
    %176 = arith.addf %175, %16 : vector<16x128xf32>
    %cst_79 = arith.constant 2.000000e+00 : f32
    %177 = vector.broadcast %cst_79 : f32 to vector<16x128xf32>
    %178 = arith.mulf %177, %160 : vector<16x128xf32>
    %179 = arith.addf %152, %178 : vector<16x128xf32>
    %cst_80 = arith.constant 2.000000e+00 : f32
    %180 = vector.broadcast %cst_80 : f32 to vector<16x128xf32>
    %181 = arith.mulf %180, %168 : vector<16x128xf32>
    %182 = arith.addf %179, %181 : vector<16x128xf32>
    %183 = arith.addf %182, %176 : vector<16x128xf32>
    %cst_81 = arith.constant 0.020833334 : f32
    %184 = vector.broadcast %cst_81 : f32 to vector<16x128xf32>
    %185 = arith.mulf %184, %183 : vector<16x128xf32>
    %186 = arith.addf %147, %185 : vector<16x128xf32>
    %cst_82 = arith.constant dense<0.000000e+00> : vector<16x128xf32>
    %187 = tpu.matmul %20, %186, %cst_82 {dimension_numbers = #tpu.dot_dimension_numbers<[1], [0], [0], [1], [0, 0, 1, 1], [], []>} : vector<16x16xf32>, vector<16x128xf32>, vector<16x128xf32> -> vector<16x128xf32>
    %188 = arith.addf %187, %13 : vector<16x128xf32>
    %189 = math.tanh %188 : vector<16x128xf32>
    %cst_83 = arith.constant dense<0.000000e+00> : vector<16x128xf32>
    %190 = tpu.matmul %21, %189, %cst_83 {dimension_numbers = #tpu.dot_dimension_numbers<[1], [0], [0], [1], [0, 0, 1, 1], [], []>} : vector<16x16xf32>, vector<16x128xf32>, vector<16x128xf32> -> vector<16x128xf32>
    %191 = arith.addf %190, %16 : vector<16x128xf32>
    %cst_84 = arith.constant 6.250000e-02 : f32
    %192 = vector.broadcast %cst_84 : f32 to vector<16x128xf32>
    %193 = arith.mulf %192, %191 : vector<16x128xf32>
    %194 = arith.addf %186, %193 : vector<16x128xf32>
    %cst_85 = arith.constant dense<0.000000e+00> : vector<16x128xf32>
    %195 = tpu.matmul %20, %194, %cst_85 {dimension_numbers = #tpu.dot_dimension_numbers<[1], [0], [0], [1], [0, 0, 1, 1], [], []>} : vector<16x16xf32>, vector<16x128xf32>, vector<16x128xf32> -> vector<16x128xf32>
    %196 = arith.addf %195, %13 : vector<16x128xf32>
    %197 = math.tanh %196 : vector<16x128xf32>
    %cst_86 = arith.constant dense<0.000000e+00> : vector<16x128xf32>
    %198 = tpu.matmul %21, %197, %cst_86 {dimension_numbers = #tpu.dot_dimension_numbers<[1], [0], [0], [1], [0, 0, 1, 1], [], []>} : vector<16x16xf32>, vector<16x128xf32>, vector<16x128xf32> -> vector<16x128xf32>
    %199 = arith.addf %198, %16 : vector<16x128xf32>
    %cst_87 = arith.constant 6.250000e-02 : f32
    %200 = vector.broadcast %cst_87 : f32 to vector<16x128xf32>
    %201 = arith.mulf %200, %199 : vector<16x128xf32>
    %202 = arith.addf %186, %201 : vector<16x128xf32>
    %cst_88 = arith.constant dense<0.000000e+00> : vector<16x128xf32>
    %203 = tpu.matmul %20, %202, %cst_88 {dimension_numbers = #tpu.dot_dimension_numbers<[1], [0], [0], [1], [0, 0, 1, 1], [], []>} : vector<16x16xf32>, vector<16x128xf32>, vector<16x128xf32> -> vector<16x128xf32>
    %204 = arith.addf %203, %13 : vector<16x128xf32>
    %205 = math.tanh %204 : vector<16x128xf32>
    %cst_89 = arith.constant dense<0.000000e+00> : vector<16x128xf32>
    %206 = tpu.matmul %21, %205, %cst_89 {dimension_numbers = #tpu.dot_dimension_numbers<[1], [0], [0], [1], [0, 0, 1, 1], [], []>} : vector<16x16xf32>, vector<16x128xf32>, vector<16x128xf32> -> vector<16x128xf32>
    %207 = arith.addf %206, %16 : vector<16x128xf32>
    %cst_90 = arith.constant 1.250000e-01 : f32
    %208 = vector.broadcast %cst_90 : f32 to vector<16x128xf32>
    %209 = arith.mulf %208, %207 : vector<16x128xf32>
    %210 = arith.addf %186, %209 : vector<16x128xf32>
    %cst_91 = arith.constant dense<0.000000e+00> : vector<16x128xf32>
    %211 = tpu.matmul %20, %210, %cst_91 {dimension_numbers = #tpu.dot_dimension_numbers<[1], [0], [0], [1], [0, 0, 1, 1], [], []>} : vector<16x16xf32>, vector<16x128xf32>, vector<16x128xf32> -> vector<16x128xf32>
    %212 = arith.addf %211, %13 : vector<16x128xf32>
    %213 = math.tanh %212 : vector<16x128xf32>
    %cst_92 = arith.constant dense<0.000000e+00> : vector<16x128xf32>
    %214 = tpu.matmul %21, %213, %cst_92 {dimension_numbers = #tpu.dot_dimension_numbers<[1], [0], [0], [1], [0, 0, 1, 1], [], []>} : vector<16x16xf32>, vector<16x128xf32>, vector<16x128xf32> -> vector<16x128xf32>
    %215 = arith.addf %214, %16 : vector<16x128xf32>
    %cst_93 = arith.constant 2.000000e+00 : f32
    %216 = vector.broadcast %cst_93 : f32 to vector<16x128xf32>
    %217 = arith.mulf %216, %199 : vector<16x128xf32>
    %218 = arith.addf %191, %217 : vector<16x128xf32>
    %cst_94 = arith.constant 2.000000e+00 : f32
    %219 = vector.broadcast %cst_94 : f32 to vector<16x128xf32>
    %220 = arith.mulf %219, %207 : vector<16x128xf32>
    %221 = arith.addf %218, %220 : vector<16x128xf32>
    %222 = arith.addf %221, %215 : vector<16x128xf32>
    %cst_95 = arith.constant 0.020833334 : f32
    %223 = vector.broadcast %cst_95 : f32 to vector<16x128xf32>
    %224 = arith.mulf %223, %222 : vector<16x128xf32>
    %225 = arith.addf %186, %224 : vector<16x128xf32>
    %cst_96 = arith.constant dense<0.000000e+00> : vector<16x128xf32>
    %226 = tpu.matmul %20, %225, %cst_96 {dimension_numbers = #tpu.dot_dimension_numbers<[1], [0], [0], [1], [0, 0, 1, 1], [], []>} : vector<16x16xf32>, vector<16x128xf32>, vector<16x128xf32> -> vector<16x128xf32>
    %227 = arith.addf %226, %13 : vector<16x128xf32>
    %228 = math.tanh %227 : vector<16x128xf32>
    %cst_97 = arith.constant dense<0.000000e+00> : vector<16x128xf32>
    %229 = tpu.matmul %21, %228, %cst_97 {dimension_numbers = #tpu.dot_dimension_numbers<[1], [0], [0], [1], [0, 0, 1, 1], [], []>} : vector<16x16xf32>, vector<16x128xf32>, vector<16x128xf32> -> vector<16x128xf32>
    %230 = arith.addf %229, %16 : vector<16x128xf32>
    %cst_98 = arith.constant 6.250000e-02 : f32
    %231 = vector.broadcast %cst_98 : f32 to vector<16x128xf32>
    %232 = arith.mulf %231, %230 : vector<16x128xf32>
    %233 = arith.addf %225, %232 : vector<16x128xf32>
    %cst_99 = arith.constant dense<0.000000e+00> : vector<16x128xf32>
    %234 = tpu.matmul %20, %233, %cst_99 {dimension_numbers = #tpu.dot_dimension_numbers<[1], [0], [0], [1], [0, 0, 1, 1], [], []>} : vector<16x16xf32>, vector<16x128xf32>, vector<16x128xf32> -> vector<16x128xf32>
    %235 = arith.addf %234, %13 : vector<16x128xf32>
    %236 = math.tanh %235 : vector<16x128xf32>
    %cst_100 = arith.constant dense<0.000000e+00> : vector<16x128xf32>
    %237 = tpu.matmul %21, %236, %cst_100 {dimension_numbers = #tpu.dot_dimension_numbers<[1], [0], [0], [1], [0, 0, 1, 1], [], []>} : vector<16x16xf32>, vector<16x128xf32>, vector<16x128xf32> -> vector<16x128xf32>
    %238 = arith.addf %237, %16 : vector<16x128xf32>
    %cst_101 = arith.constant 6.250000e-02 : f32
    %239 = vector.broadcast %cst_101 : f32 to vector<16x128xf32>
    %240 = arith.mulf %239, %238 : vector<16x128xf32>
    %241 = arith.addf %225, %240 : vector<16x128xf32>
    %cst_102 = arith.constant dense<0.000000e+00> : vector<16x128xf32>
    %242 = tpu.matmul %20, %241, %cst_102 {dimension_numbers = #tpu.dot_dimension_numbers<[1], [0], [0], [1], [0, 0, 1, 1], [], []>} : vector<16x16xf32>, vector<16x128xf32>, vector<16x128xf32> -> vector<16x128xf32>
    %243 = arith.addf %242, %13 : vector<16x128xf32>
    %244 = math.tanh %243 : vector<16x128xf32>
    %cst_103 = arith.constant dense<0.000000e+00> : vector<16x128xf32>
    %245 = tpu.matmul %21, %244, %cst_103 {dimension_numbers = #tpu.dot_dimension_numbers<[1], [0], [0], [1], [0, 0, 1, 1], [], []>} : vector<16x16xf32>, vector<16x128xf32>, vector<16x128xf32> -> vector<16x128xf32>
    %246 = arith.addf %245, %16 : vector<16x128xf32>
    %cst_104 = arith.constant 1.250000e-01 : f32
    %247 = vector.broadcast %cst_104 : f32 to vector<16x128xf32>
    %248 = arith.mulf %247, %246 : vector<16x128xf32>
    %249 = arith.addf %225, %248 : vector<16x128xf32>
    %cst_105 = arith.constant dense<0.000000e+00> : vector<16x128xf32>
    %250 = tpu.matmul %20, %249, %cst_105 {dimension_numbers = #tpu.dot_dimension_numbers<[1], [0], [0], [1], [0, 0, 1, 1], [], []>} : vector<16x16xf32>, vector<16x128xf32>, vector<16x128xf32> -> vector<16x128xf32>
    %251 = arith.addf %250, %13 : vector<16x128xf32>
    %252 = math.tanh %251 : vector<16x128xf32>
    %cst_106 = arith.constant dense<0.000000e+00> : vector<16x128xf32>
    %253 = tpu.matmul %21, %252, %cst_106 {dimension_numbers = #tpu.dot_dimension_numbers<[1], [0], [0], [1], [0, 0, 1, 1], [], []>} : vector<16x16xf32>, vector<16x128xf32>, vector<16x128xf32> -> vector<16x128xf32>
    %254 = arith.addf %253, %16 : vector<16x128xf32>
    %cst_107 = arith.constant 2.000000e+00 : f32
    %255 = vector.broadcast %cst_107 : f32 to vector<16x128xf32>
    %256 = arith.mulf %255, %238 : vector<16x128xf32>
    %257 = arith.addf %230, %256 : vector<16x128xf32>
    %cst_108 = arith.constant 2.000000e+00 : f32
    %258 = vector.broadcast %cst_108 : f32 to vector<16x128xf32>
    %259 = arith.mulf %258, %246 : vector<16x128xf32>
    %260 = arith.addf %257, %259 : vector<16x128xf32>
    %261 = arith.addf %260, %254 : vector<16x128xf32>
    %cst_109 = arith.constant 0.020833334 : f32
    %262 = vector.broadcast %cst_109 : f32 to vector<16x128xf32>
    %263 = arith.mulf %262, %261 : vector<16x128xf32>
    %264 = arith.addf %225, %263 : vector<16x128xf32>
    %cst_110 = arith.constant dense<0.000000e+00> : vector<16x128xf32>
    %265 = tpu.matmul %20, %264, %cst_110 {dimension_numbers = #tpu.dot_dimension_numbers<[1], [0], [0], [1], [0, 0, 1, 1], [], []>} : vector<16x16xf32>, vector<16x128xf32>, vector<16x128xf32> -> vector<16x128xf32>
    %266 = arith.addf %265, %13 : vector<16x128xf32>
    %267 = math.tanh %266 : vector<16x128xf32>
    %cst_111 = arith.constant dense<0.000000e+00> : vector<16x128xf32>
    %268 = tpu.matmul %21, %267, %cst_111 {dimension_numbers = #tpu.dot_dimension_numbers<[1], [0], [0], [1], [0, 0, 1, 1], [], []>} : vector<16x16xf32>, vector<16x128xf32>, vector<16x128xf32> -> vector<16x128xf32>
    %269 = arith.addf %268, %16 : vector<16x128xf32>
    %cst_112 = arith.constant 6.250000e-02 : f32
    %270 = vector.broadcast %cst_112 : f32 to vector<16x128xf32>
    %271 = arith.mulf %270, %269 : vector<16x128xf32>
    %272 = arith.addf %264, %271 : vector<16x128xf32>
    %cst_113 = arith.constant dense<0.000000e+00> : vector<16x128xf32>
    %273 = tpu.matmul %20, %272, %cst_113 {dimension_numbers = #tpu.dot_dimension_numbers<[1], [0], [0], [1], [0, 0, 1, 1], [], []>} : vector<16x16xf32>, vector<16x128xf32>, vector<16x128xf32> -> vector<16x128xf32>
    %274 = arith.addf %273, %13 : vector<16x128xf32>
    %275 = math.tanh %274 : vector<16x128xf32>
    %cst_114 = arith.constant dense<0.000000e+00> : vector<16x128xf32>
    %276 = tpu.matmul %21, %275, %cst_114 {dimension_numbers = #tpu.dot_dimension_numbers<[1], [0], [0], [1], [0, 0, 1, 1], [], []>} : vector<16x16xf32>, vector<16x128xf32>, vector<16x128xf32> -> vector<16x128xf32>
    %277 = arith.addf %276, %16 : vector<16x128xf32>
    %cst_115 = arith.constant 6.250000e-02 : f32
    %278 = vector.broadcast %cst_115 : f32 to vector<16x128xf32>
    %279 = arith.mulf %278, %277 : vector<16x128xf32>
    %280 = arith.addf %264, %279 : vector<16x128xf32>
    %cst_116 = arith.constant dense<0.000000e+00> : vector<16x128xf32>
    %281 = tpu.matmul %20, %280, %cst_116 {dimension_numbers = #tpu.dot_dimension_numbers<[1], [0], [0], [1], [0, 0, 1, 1], [], []>} : vector<16x16xf32>, vector<16x128xf32>, vector<16x128xf32> -> vector<16x128xf32>
    %282 = arith.addf %281, %13 : vector<16x128xf32>
    %283 = math.tanh %282 : vector<16x128xf32>
    %cst_117 = arith.constant dense<0.000000e+00> : vector<16x128xf32>
    %284 = tpu.matmul %21, %283, %cst_117 {dimension_numbers = #tpu.dot_dimension_numbers<[1], [0], [0], [1], [0, 0, 1, 1], [], []>} : vector<16x16xf32>, vector<16x128xf32>, vector<16x128xf32> -> vector<16x128xf32>
    %285 = arith.addf %284, %16 : vector<16x128xf32>
    %cst_118 = arith.constant 1.250000e-01 : f32
    %286 = vector.broadcast %cst_118 : f32 to vector<16x128xf32>
    %287 = arith.mulf %286, %285 : vector<16x128xf32>
    %288 = arith.addf %264, %287 : vector<16x128xf32>
    %cst_119 = arith.constant dense<0.000000e+00> : vector<16x128xf32>
    %289 = tpu.matmul %20, %288, %cst_119 {dimension_numbers = #tpu.dot_dimension_numbers<[1], [0], [0], [1], [0, 0, 1, 1], [], []>} : vector<16x16xf32>, vector<16x128xf32>, vector<16x128xf32> -> vector<16x128xf32>
    %290 = arith.addf %289, %13 : vector<16x128xf32>
    %291 = math.tanh %290 : vector<16x128xf32>
    %cst_120 = arith.constant dense<0.000000e+00> : vector<16x128xf32>
    %292 = tpu.matmul %21, %291, %cst_120 {dimension_numbers = #tpu.dot_dimension_numbers<[1], [0], [0], [1], [0, 0, 1, 1], [], []>} : vector<16x16xf32>, vector<16x128xf32>, vector<16x128xf32> -> vector<16x128xf32>
    %293 = arith.addf %292, %16 : vector<16x128xf32>
    %cst_121 = arith.constant 2.000000e+00 : f32
    %294 = vector.broadcast %cst_121 : f32 to vector<16x128xf32>
    %295 = arith.mulf %294, %277 : vector<16x128xf32>
    %296 = arith.addf %269, %295 : vector<16x128xf32>
    %cst_122 = arith.constant 2.000000e+00 : f32
    %297 = vector.broadcast %cst_122 : f32 to vector<16x128xf32>
    %298 = arith.mulf %297, %285 : vector<16x128xf32>
    %299 = arith.addf %296, %298 : vector<16x128xf32>
    %300 = arith.addf %299, %293 : vector<16x128xf32>
    %cst_123 = arith.constant 0.020833334 : f32
    %301 = vector.broadcast %cst_123 : f32 to vector<16x128xf32>
    %302 = arith.mulf %301, %300 : vector<16x128xf32>
    %303 = arith.addf %264, %302 : vector<16x128xf32>
    %cst_124 = arith.constant dense<0.000000e+00> : vector<16x128xf32>
    %304 = tpu.matmul %20, %303, %cst_124 {dimension_numbers = #tpu.dot_dimension_numbers<[1], [0], [0], [1], [0, 0, 1, 1], [], []>} : vector<16x16xf32>, vector<16x128xf32>, vector<16x128xf32> -> vector<16x128xf32>
    %305 = arith.addf %304, %13 : vector<16x128xf32>
    %306 = math.tanh %305 : vector<16x128xf32>
    %cst_125 = arith.constant dense<0.000000e+00> : vector<16x128xf32>
    %307 = tpu.matmul %21, %306, %cst_125 {dimension_numbers = #tpu.dot_dimension_numbers<[1], [0], [0], [1], [0, 0, 1, 1], [], []>} : vector<16x16xf32>, vector<16x128xf32>, vector<16x128xf32> -> vector<16x128xf32>
    %308 = arith.addf %307, %16 : vector<16x128xf32>
    %cst_126 = arith.constant 6.250000e-02 : f32
    %309 = vector.broadcast %cst_126 : f32 to vector<16x128xf32>
    %310 = arith.mulf %309, %308 : vector<16x128xf32>
    %311 = arith.addf %303, %310 : vector<16x128xf32>
    %cst_127 = arith.constant dense<0.000000e+00> : vector<16x128xf32>
    %312 = tpu.matmul %20, %311, %cst_127 {dimension_numbers = #tpu.dot_dimension_numbers<[1], [0], [0], [1], [0, 0, 1, 1], [], []>} : vector<16x16xf32>, vector<16x128xf32>, vector<16x128xf32> -> vector<16x128xf32>
    %313 = arith.addf %312, %13 : vector<16x128xf32>
    %314 = math.tanh %313 : vector<16x128xf32>
    %cst_128 = arith.constant dense<0.000000e+00> : vector<16x128xf32>
    %315 = tpu.matmul %21, %314, %cst_128 {dimension_numbers = #tpu.dot_dimension_numbers<[1], [0], [0], [1], [0, 0, 1, 1], [], []>} : vector<16x16xf32>, vector<16x128xf32>, vector<16x128xf32> -> vector<16x128xf32>
    %316 = arith.addf %315, %16 : vector<16x128xf32>
    %cst_129 = arith.constant 6.250000e-02 : f32
    %317 = vector.broadcast %cst_129 : f32 to vector<16x128xf32>
    %318 = arith.mulf %317, %316 : vector<16x128xf32>
    %319 = arith.addf %303, %318 : vector<16x128xf32>
    %cst_130 = arith.constant dense<0.000000e+00> : vector<16x128xf32>
    %320 = tpu.matmul %20, %319, %cst_130 {dimension_numbers = #tpu.dot_dimension_numbers<[1], [0], [0], [1], [0, 0, 1, 1], [], []>} : vector<16x16xf32>, vector<16x128xf32>, vector<16x128xf32> -> vector<16x128xf32>
    %321 = arith.addf %320, %13 : vector<16x128xf32>
    %322 = math.tanh %321 : vector<16x128xf32>
    %cst_131 = arith.constant dense<0.000000e+00> : vector<16x128xf32>
    %323 = tpu.matmul %21, %322, %cst_131 {dimension_numbers = #tpu.dot_dimension_numbers<[1], [0], [0], [1], [0, 0, 1, 1], [], []>} : vector<16x16xf32>, vector<16x128xf32>, vector<16x128xf32> -> vector<16x128xf32>
    %324 = arith.addf %323, %16 : vector<16x128xf32>
    %cst_132 = arith.constant 1.250000e-01 : f32
    %325 = vector.broadcast %cst_132 : f32 to vector<16x128xf32>
    %326 = arith.mulf %325, %324 : vector<16x128xf32>
    %327 = arith.addf %303, %326 : vector<16x128xf32>
    %cst_133 = arith.constant dense<0.000000e+00> : vector<16x128xf32>
    %328 = tpu.matmul %20, %327, %cst_133 {dimension_numbers = #tpu.dot_dimension_numbers<[1], [0], [0], [1], [0, 0, 1, 1], [], []>} : vector<16x16xf32>, vector<16x128xf32>, vector<16x128xf32> -> vector<16x128xf32>
    %329 = arith.addf %328, %13 : vector<16x128xf32>
    %330 = math.tanh %329 : vector<16x128xf32>
    %cst_134 = arith.constant dense<0.000000e+00> : vector<16x128xf32>
    %331 = tpu.matmul %21, %330, %cst_134 {dimension_numbers = #tpu.dot_dimension_numbers<[1], [0], [0], [1], [0, 0, 1, 1], [], []>} : vector<16x16xf32>, vector<16x128xf32>, vector<16x128xf32> -> vector<16x128xf32>
    %332 = arith.addf %331, %16 : vector<16x128xf32>
    %cst_135 = arith.constant 2.000000e+00 : f32
    %333 = vector.broadcast %cst_135 : f32 to vector<16x128xf32>
    %334 = arith.mulf %333, %316 : vector<16x128xf32>
    %335 = arith.addf %308, %334 : vector<16x128xf32>
    %cst_136 = arith.constant 2.000000e+00 : f32
    %336 = vector.broadcast %cst_136 : f32 to vector<16x128xf32>
    %337 = arith.mulf %336, %324 : vector<16x128xf32>
    %338 = arith.addf %335, %337 : vector<16x128xf32>
    %339 = arith.addf %338, %332 : vector<16x128xf32>
    %cst_137 = arith.constant 0.020833334 : f32
    %340 = vector.broadcast %cst_137 : f32 to vector<16x128xf32>
    %341 = arith.mulf %340, %339 : vector<16x128xf32>
    %342 = arith.addf %303, %341 : vector<16x128xf32>
    %cst_138 = arith.constant dense<0.000000e+00> : vector<16x128xf32>
    %343 = tpu.matmul %20, %342, %cst_138 {dimension_numbers = #tpu.dot_dimension_numbers<[1], [0], [0], [1], [0, 0, 1, 1], [], []>} : vector<16x16xf32>, vector<16x128xf32>, vector<16x128xf32> -> vector<16x128xf32>
    %344 = arith.addf %343, %13 : vector<16x128xf32>
    %345 = math.tanh %344 : vector<16x128xf32>
    %cst_139 = arith.constant dense<0.000000e+00> : vector<16x128xf32>
    %346 = tpu.matmul %21, %345, %cst_139 {dimension_numbers = #tpu.dot_dimension_numbers<[1], [0], [0], [1], [0, 0, 1, 1], [], []>} : vector<16x16xf32>, vector<16x128xf32>, vector<16x128xf32> -> vector<16x128xf32>
    %347 = arith.addf %346, %16 : vector<16x128xf32>
    %cst_140 = arith.constant 6.250000e-02 : f32
    %348 = vector.broadcast %cst_140 : f32 to vector<16x128xf32>
    %349 = arith.mulf %348, %347 : vector<16x128xf32>
    %350 = arith.addf %342, %349 : vector<16x128xf32>
    %cst_141 = arith.constant dense<0.000000e+00> : vector<16x128xf32>
    %351 = tpu.matmul %20, %350, %cst_141 {dimension_numbers = #tpu.dot_dimension_numbers<[1], [0], [0], [1], [0, 0, 1, 1], [], []>} : vector<16x16xf32>, vector<16x128xf32>, vector<16x128xf32> -> vector<16x128xf32>
    %352 = arith.addf %351, %13 : vector<16x128xf32>
    %353 = math.tanh %352 : vector<16x128xf32>
    %cst_142 = arith.constant dense<0.000000e+00> : vector<16x128xf32>
    %354 = tpu.matmul %21, %353, %cst_142 {dimension_numbers = #tpu.dot_dimension_numbers<[1], [0], [0], [1], [0, 0, 1, 1], [], []>} : vector<16x16xf32>, vector<16x128xf32>, vector<16x128xf32> -> vector<16x128xf32>
    %355 = arith.addf %354, %16 : vector<16x128xf32>
    %cst_143 = arith.constant 6.250000e-02 : f32
    %356 = vector.broadcast %cst_143 : f32 to vector<16x128xf32>
    %357 = arith.mulf %356, %355 : vector<16x128xf32>
    %358 = arith.addf %342, %357 : vector<16x128xf32>
    %cst_144 = arith.constant dense<0.000000e+00> : vector<16x128xf32>
    %359 = tpu.matmul %20, %358, %cst_144 {dimension_numbers = #tpu.dot_dimension_numbers<[1], [0], [0], [1], [0, 0, 1, 1], [], []>} : vector<16x16xf32>, vector<16x128xf32>, vector<16x128xf32> -> vector<16x128xf32>
    %360 = arith.addf %359, %13 : vector<16x128xf32>
    %361 = math.tanh %360 : vector<16x128xf32>
    %cst_145 = arith.constant dense<0.000000e+00> : vector<16x128xf32>
    %362 = tpu.matmul %21, %361, %cst_145 {dimension_numbers = #tpu.dot_dimension_numbers<[1], [0], [0], [1], [0, 0, 1, 1], [], []>} : vector<16x16xf32>, vector<16x128xf32>, vector<16x128xf32> -> vector<16x128xf32>
    %363 = arith.addf %362, %16 : vector<16x128xf32>
    %cst_146 = arith.constant 1.250000e-01 : f32
    %364 = vector.broadcast %cst_146 : f32 to vector<16x128xf32>
    %365 = arith.mulf %364, %363 : vector<16x128xf32>
    %366 = arith.addf %342, %365 : vector<16x128xf32>
    %cst_147 = arith.constant dense<0.000000e+00> : vector<16x128xf32>
    %367 = tpu.matmul %20, %366, %cst_147 {dimension_numbers = #tpu.dot_dimension_numbers<[1], [0], [0], [1], [0, 0, 1, 1], [], []>} : vector<16x16xf32>, vector<16x128xf32>, vector<16x128xf32> -> vector<16x128xf32>
    %368 = arith.addf %367, %13 : vector<16x128xf32>
    %369 = math.tanh %368 : vector<16x128xf32>
    %cst_148 = arith.constant dense<0.000000e+00> : vector<16x128xf32>
    %370 = tpu.matmul %21, %369, %cst_148 {dimension_numbers = #tpu.dot_dimension_numbers<[1], [0], [0], [1], [0, 0, 1, 1], [], []>} : vector<16x16xf32>, vector<16x128xf32>, vector<16x128xf32> -> vector<16x128xf32>
    %371 = arith.addf %370, %16 : vector<16x128xf32>
    %cst_149 = arith.constant 2.000000e+00 : f32
    %372 = vector.broadcast %cst_149 : f32 to vector<16x128xf32>
    %373 = arith.mulf %372, %355 : vector<16x128xf32>
    %374 = arith.addf %347, %373 : vector<16x128xf32>
    %cst_150 = arith.constant 2.000000e+00 : f32
    %375 = vector.broadcast %cst_150 : f32 to vector<16x128xf32>
    %376 = arith.mulf %375, %363 : vector<16x128xf32>
    %377 = arith.addf %374, %376 : vector<16x128xf32>
    %378 = arith.addf %377, %371 : vector<16x128xf32>
    %cst_151 = arith.constant 0.020833334 : f32
    %379 = vector.broadcast %cst_151 : f32 to vector<16x128xf32>
    %380 = arith.mulf %379, %378 : vector<16x128xf32>
    %381 = arith.addf %342, %380 : vector<16x128xf32>
    %382 = vector.extract_strided_slice %381 {offsets = [0, 0], sizes = [8, 128], strides = [1, 1]} : vector<16x128xf32> to vector<8x128xf32>
    %c0_152 = arith.constant 0 : index
    %c0_153 = arith.constant 0 : index
    %383 = vector.load %arg12[%c0_152, %c0_153] : memref<8x1xf32, #tpu.memory_space<vmem>>, vector<8x1xf32>
    %384 = vector.broadcast %383 : vector<8x1xf32> to vector<8x128xf32>
    %385 = arith.mulf %384, %1 : vector<8x128xf32>
    %c0_154 = arith.constant 0 : index
    %c0_155 = arith.constant 0 : index
    %386 = vector.load %arg13[%c0_154, %c0_155] : memref<8x1xf32, #tpu.memory_space<vmem>>, vector<8x1xf32>
    %387 = vector.broadcast %386 : vector<8x1xf32> to vector<8x128xf32>
    %388 = arith.addf %385, %387 : vector<8x128xf32>
    %389 = arith.subf %382, %388 : vector<8x128xf32>
    %c0_156 = arith.constant 0 : index
    %c0_157 = arith.constant 0 : index
    %390 = vector.load %arg14[%c0_156, %c0_157] : memref<8x128xf32, #tpu.memory_space<vmem>>, vector<8x128xf32>
    tpu.vector_store %arg14[%c0_156, %c0_157], %389 {strides = array<i32>} : memref<8x128xf32, #tpu.memory_space<vmem>>, vector<8x128xf32>,
    return
  }
  func.func @transform_0(%arg0: i32) -> (i32, i32) {
    %c0_i32 = arith.constant 0 : i32
    %c0_i32_0 = arith.constant 0 : i32
    return %c0_i32, %arg0 : i32, i32
  }
  func.func @transform_1(%arg0: i32) -> (i32, i32) {
    %c0_i32 = arith.constant 0 : i32
    %c0_i32_0 = arith.constant 0 : i32
    %c0_i32_1 = arith.constant 0 : i32
    return %c0_i32, %c0_i32_0 : i32, i32
  }
  func.func @transform_2(%arg0: i32) -> (i32, i32) {
    %c0_i32 = arith.constant 0 : i32
    %c0_i32_0 = arith.constant 0 : i32
    %c0_i32_1 = arith.constant 0 : i32
    return %c0_i32, %c0_i32_0 : i32, i32
  }
  func.func @transform_3(%arg0: i32) -> (i32, i32) {
    %c0_i32 = arith.constant 0 : i32
    %c0_i32_0 = arith.constant 0 : i32
    %c0_i32_1 = arith.constant 0 : i32
    return %c0_i32, %c0_i32_0 : i32, i32
  }
  func.func @transform_4(%arg0: i32) -> (i32, i32) {
    %c0_i32 = arith.constant 0 : i32
    %c0_i32_0 = arith.constant 0 : i32
    %c0_i32_1 = arith.constant 0 : i32
    return %c0_i32, %c0_i32_0 : i32, i32
  }
  func.func @transform_5(%arg0: i32) -> (i32, i32) {
    %c0_i32 = arith.constant 0 : i32
    %c0_i32_0 = arith.constant 0 : i32
    %c0_i32_1 = arith.constant 0 : i32
    return %c0_i32, %c0_i32_0 : i32, i32
  }
  func.func @transform_6(%arg0: i32) -> (i32, i32) {
    %c0_i32 = arith.constant 0 : i32
    %c0_i32_0 = arith.constant 0 : i32
    %c0_i32_1 = arith.constant 0 : i32
    return %c0_i32, %c0_i32_0 : i32, i32
  }
  func.func @transform_7(%arg0: i32) -> (i32, i32) {
    %c0_i32 = arith.constant 0 : i32
    %c0_i32_0 = arith.constant 0 : i32
    %c0_i32_1 = arith.constant 0 : i32
    return %c0_i32, %c0_i32_0 : i32, i32
  }
  func.func @transform_8(%arg0: i32) -> (i32, i32) {
    %c0_i32 = arith.constant 0 : i32
    %c0_i32_0 = arith.constant 0 : i32
    %c0_i32_1 = arith.constant 0 : i32
    return %c0_i32, %c0_i32_0 : i32, i32
  }
  func.func @transform_9(%arg0: i32) -> (i32, i32) {
    %c0_i32 = arith.constant 0 : i32
    %c0_i32_0 = arith.constant 0 : i32
    %c0_i32_1 = arith.constant 0 : i32
    return %c0_i32, %c0_i32_0 : i32, i32
  }
  func.func @transform_10(%arg0: i32) -> (i32, i32) {
    %c0_i32 = arith.constant 0 : i32
    %c0_i32_0 = arith.constant 0 : i32
    %c0_i32_1 = arith.constant 0 : i32
    return %c0_i32, %c0_i32_0 : i32, i32
  }
  func.func @transform_11(%arg0: i32) -> (i32, i32) {
    %c0_i32 = arith.constant 0 : i32
    %c0_i32_0 = arith.constant 0 : i32
    %c0_i32_1 = arith.constant 0 : i32
    return %c0_i32, %c0_i32_0 : i32, i32
  }
  func.func @transform_12(%arg0: i32) -> (i32, i32) {
    %c0_i32 = arith.constant 0 : i32
    %c0_i32_0 = arith.constant 0 : i32
    %c0_i32_1 = arith.constant 0 : i32
    return %c0_i32, %c0_i32_0 : i32, i32
  }
  func.func @transform_13(%arg0: i32) -> (i32, i32) {
    %c0_i32 = arith.constant 0 : i32
    %c0_i32_0 = arith.constant 0 : i32
    return %c0_i32, %arg0 : i32, i32
  }
}

</mosaic_0001>

<llo_original>
// kernel: tpu_custom_call.1
$region0: #{tpu_custom_call.1}
  #allocation0 [shape = 'u32[]', space=smem, size = 0x4, offset = 0x4, fixed_abs, tag = 'smem constant byte address 0x4 - core index']
  #allocation1 [shape = 'u32[144,128]{1,0:T(1,128)}', space=vmem, size = 0x12000, scoped, tag = 'internal scratch']
  %s0 = inlined_call_operand.hbm [shape: f32[80,128], index: 0, kind: input, shape index: {}]
  %s1 = inlined_call_operand.vmem [shape: f32[8,8], index: 1, kind: input, shape index: {}]
  %s2 = inlined_call_operand.vmem [shape: f32[8,1], index: 2, kind: input, shape index: {}]
  %s3 = inlined_call_operand.vmem [shape: f32[8,8], index: 3, kind: input, shape index: {}]
  %s4 = inlined_call_operand.vmem [shape: f32[8,1], index: 4, kind: input, shape index: {}]
  %s5 = inlined_call_operand.vmem [shape: f32[8,8], index: 5, kind: input, shape index: {}]
  %s6 = inlined_call_operand.vmem [shape: f32[8,1], index: 6, kind: input, shape index: {}]
  %s7 = inlined_call_operand.vmem [shape: f32[16,16], index: 7, kind: input, shape index: {}]
  %s8 = inlined_call_operand.vmem [shape: f32[16,1], index: 8, kind: input, shape index: {}]
  %s9 = inlined_call_operand.vmem [shape: f32[16,16], index: 9, kind: input, shape index: {}]
  %s10 = inlined_call_operand.vmem [shape: f32[16,1], index: 10, kind: input, shape index: {}]
  %s11 = inlined_call_operand.vmem [shape: f32[8,1], index: 11, kind: input, shape index: {}]
  %s12 = inlined_call_operand.vmem [shape: f32[8,1], index: 12, kind: input, shape index: {}]
  %s13 = inlined_call_operand.hbm [shape: f32[8,128], index: 13, kind: output, shape index: {}]
  %s14 = sld [smem:[#allocation0]]
  $region66: #{tpu_custom_call.1} parent=0
    _
  %s16 = ssub.s32 1, %s14
  %s17 = scalar_select 0, %s16, %s14
  $region1: #{tpu_custom_call.1} parent=0
    #allocation2 [shape = 'u8[40960]{0}', space=vmem, size = 0xa000, scoped, tag = 'input window, operand 0, single buffered']
    #allocation3 [shape = 's32[1]{0}', space=sflag, size = 0x4, scoped, tag = 'scoped memory for tpu_custom_call.1']
    #allocation4 [shape = 's32[1]{0}', space=sflag, size = 0x4, scoped, tag = 'scoped memory for tpu_custom_call.1']
    #allocation5 [shape = 'u8[4096]{0}', space=vmem, size = 0x1000, scoped, tag = 'output window, operand 0, single buffered']
    %18 = vsyncpa [#allocation3], 0
    %19 = vsyncpa [#allocation4], 0
    // Predicated region
    $region2: #{tpu_custom_call.1} parent=1 // pred_check
      _
    $region3: #{tpu_custom_call.1} parent=1 // pred_check_branch
      %21 = sbr.rel (0) target = $region5
    $region4: #{tpu_custom_call.1} parent=1 // pred_region
      %s23 = ssub.s32 1280, 1280
      %24 = vsyncadd [#allocation3], %s23
      %s25 = sshll.u32 [#allocation2], 4
      %s26 = int_to_ptr.vmem [resolvable:$true] %s25
      %31 = dma.hbm_to_vmem [thread:$0]  %s0, 1280, %s26, [#allocation3], 128, 128, 8
    $region5: #{tpu_custom_call.1} parent=1 // pred_fallthru
      _
    // Predicated region
    $region6: #{tpu_custom_call.1} parent=1 // pred_check
      _
    $region7: #{tpu_custom_call.1} parent=1 // pred_check_branch
      %33 = sbr.rel (0) target = $region9
    $region8: #{tpu_custom_call.1} parent=1 // pred_region
      _
    $region9: #{tpu_custom_call.1} parent=1 // pred_fallthru
      _
    // Predicated region
    $region10: #{tpu_custom_call.1} parent=1 // pred_check
      _
    $region11: #{tpu_custom_call.1} parent=1 // pred_check_branch
      %35 = sbr.rel (0) target = $region13
    $region12: #{tpu_custom_call.1} parent=1 // pred_region
      _
    $region13: #{tpu_custom_call.1} parent=1 // pred_fallthru
      _
    // Predicated region
    $region14: #{tpu_custom_call.1} parent=1 // pred_check
      _
    $region15: #{tpu_custom_call.1} parent=1 // pred_check_branch
      %37 = sbr.rel (0) target = $region17
    $region16: #{tpu_custom_call.1} parent=1 // pred_region
      _
    $region17: #{tpu_custom_call.1} parent=1 // pred_fallthru
      _
    // Predicated region
    $region18: #{tpu_custom_call.1} parent=1 // pred_check
      _
    $region19: #{tpu_custom_call.1} parent=1 // pred_check_branch
      %39 = sbr.rel (0) target = $region21
    $region20: #{tpu_custom_call.1} parent=1 // pred_region
      _
    $region21: #{tpu_custom_call.1} parent=1 // pred_fallthru
      _
    // Predicated region
    $region22: #{tpu_custom_call.1} parent=1 // pred_check
      _
    $region23: #{tpu_custom_call.1} parent=1 // pred_check_branch
      %41 = sbr.rel (0) target = $region25
    $region24: #{tpu_custom_call.1} parent=1 // pred_region
      _
    $region25: #{tpu_custom_call.1} parent=1 // pred_fallthru
      _
    // Predicated region
    $region26: #{tpu_custom_call.1} parent=1 // pred_check
      _
    $region27: #{tpu_custom_call.1} parent=1 // pred_check_branch
      %43 = sbr.rel (0) target = $region29
    $region28: #{tpu_custom_call.1} parent=1 // pred_region
      _
    $region29: #{tpu_custom_call.1} parent=1 // pred_fallthru
      _
    // Predicated region
    $region30: #{tpu_custom_call.1} parent=1 // pred_check
      _
    $region31: #{tpu_custom_call.1} parent=1 // pred_check_branch
      %45 = sbr.rel (0) target = $region33
    $region32: #{tpu_custom_call.1} parent=1 // pred_region
      _
    $region33: #{tpu_custom_call.1} parent=1 // pred_fallthru
      _
    // Predicated region
    $region34: #{tpu_custom_call.1} parent=1 // pred_check
      _
    $region35: #{tpu_custom_call.1} parent=1 // pred_check_branch
      %47 = sbr.rel (0) target = $region37
    $region36: #{tpu_custom_call.1} parent=1 // pred_region
      _
    $region37: #{tpu_custom_call.1} parent=1 // pred_fallthru
      _
    // Predicated region
    $region38: #{tpu_custom_call.1} parent=1 // pred_check
      _
    $region39: #{tpu_custom_call.1} parent=1 // pred_check_branch
      %49 = sbr.rel (0) target = $region41
    $region40: #{tpu_custom_call.1} parent=1 // pred_region
      _
    $region41: #{tpu_custom_call.1} parent=1 // pred_fallthru
      _
    // Predicated region
    $region42: #{tpu_custom_call.1} parent=1 // pred_check
      _
    $region43: #{tpu_custom_call.1} parent=1 // pred_check_branch
      %51 = sbr.rel (0) target = $region45
    $region44: #{tpu_custom_call.1} parent=1 // pred_region
      _
    $region45: #{tpu_custom_call.1} parent=1 // pred_fallthru
      _
    // Predicated region
    $region46: #{tpu_custom_call.1} parent=1 // pred_check
      _
    $region47: #{tpu_custom_call.1} parent=1 // pred_check_branch
      %53 = sbr.rel (0) target = $region49
    $region48: #{tpu_custom_call.1} parent=1 // pred_region
      _
    $region49: #{tpu_custom_call.1} parent=1 // pred_fallthru
      _
    // Predicated region
    $region50: #{tpu_custom_call.1} parent=1 // pred_check
      _
    $region51: #{tpu_custom_call.1} parent=1 // pred_check_branch
      %55 = sbr.rel (0) target = $region53
    $region52: #{tpu_custom_call.1} parent=1 // pred_region
      _
    $region53: #{tpu_custom_call.1} parent=1 // pred_fallthru
      _
    // Predicated region
    $region54: #{tpu_custom_call.1} parent=1 // pred_check
      _
    $region55: #{tpu_custom_call.1} parent=1 // pred_check_branch
      %57 = sbr.rel (0) target = $region57
    $region56: #{tpu_custom_call.1} parent=1 // pred_region
      %58 = dma.done [#allocation3], 1280
    $region57: #{tpu_custom_call.1} parent=1 // pred_fallthru
      _
    %v59 = vld [vmem:[#allocation2 + $0x40] sm:$0xff]
    %v60 = vld [vmem:[#allocation2 + $0x48] sm:$0xff]
    %v61 = vld [vmem:[%s2] sm:$0xff]
    %63 = vset.pattern.permute.xlu0 0
    %64 = vperm.xlu0 %63, %v61
    %v65 = vpop.permute.xlu0 %64
    %v67 = vld [vmem:[%s4] sm:$0xff]
    %69 = vset.pattern.permute.xlu0 0
    %70 = vperm.xlu0 %69, %v67
    %v71 = vpop.permute.xlu0 %70
    %v73 = vld [vmem:[%s6] sm:$0xff]
    %75 = vset.pattern.permute.xlu0 0
    %76 = vperm.xlu0 %75, %v73
    %v77 = vpop.permute.xlu0 %76
    %v79 = vld [vmem:[%s8] sm:$0xff]
    %v80 = vld [vmem:[%s8 + $0x8] sm:$0xff]
    %82 = vset.pattern.permute.xlu0 0
    %83 = vperm.xlu0 %82, %v79
    %v84 = vpop.permute.xlu0 %83
    %87 = vset.pattern.permute.xlu0 0
    %88 = vperm.xlu0 %87, %v80
    %v89 = vpop.permute.xlu0 %88
    %v91 = vld [vmem:[%s10] sm:$0xff]
    %v92 = vld [vmem:[%s10 + $0x8] sm:$0xff]
    %94 = vset.pattern.permute.xlu0 0
    %95 = vperm.xlu0 %94, %v91
    %v96 = vpop.permute.xlu0 %95
    %99 = vset.pattern.permute.xlu0 0
    %100 = vperm.xlu0 %99, %v92
    %v101 = vpop.permute.xlu0 %100
    %v103 = vld [vmem:[%s1] sm:$0xff]
    %v104 = vld [vmem:[%s3] sm:$0xff]
    %v105 = vld [vmem:[%s5] sm:$0xff]
    %v106 = vld [vmem:[%s7] sm:$0xff]
    %v107 = vld [vmem:[%s7 + $0x8] sm:$0xff]
    %v108 = vld [vmem:[%s9] sm:$0xff]
    %v109 = vld [vmem:[%s9 + $0x8] sm:$0xff]
    %v110 = vld [vmem:[#allocation2] sm:$0xff]
    %v111 = vld [vmem:[#allocation2 + $0x8] sm:$0xff]
    %v112 = vadd.f32 %v110, %v111
    %v113 = vld [vmem:[#allocation2 + $0x10] sm:$0xff]
    %v114 = vadd.f32 %v112, %v113
    %v115 = vld [vmem:[#allocation2 + $0x18] sm:$0xff]
    %v116 = vadd.f32 %v114, %v115
    %v117 = vld [vmem:[#allocation2 + $0x20] sm:$0xff]
    %v118 = vadd.f32 %v116, %v117
    %v119 = vld [vmem:[#allocation2 + $0x28] sm:$0xff]
    %v120 = vadd.f32 %v118, %v119
    %v121 = vld [vmem:[#allocation2 + $0x30] sm:$0xff]
    %v122 = vadd.f32 %v120, %v121
    %v123 = vld [vmem:[#allocation2 + $0x38] sm:$0xff]
    %v124 = vadd.f32 %v122, %v123
    %v125 = vmul.f32 %v124, 0.125
    %vm126 = vcmask 64512
    %v128 = vsel %vm126, %v103, 0
    %130 = vmatprep.subr.mxu0 0.0
    %131 = vmatpush1.msra.mxu0 %v125
    %132 = vmatprep.subr.mxu0 0.0
    %133 = vmatpush1.msra.mxu0 0.0
    %134 = vmatprep.subr.mxu0 0.0
    %135 = vmatpush1.msra.mxu0 0.0
    %136 = vmatprep.subr.mxu0 0.0
    %137 = vmatpush1.msra.mxu0 0.0
    %138 = vmatprep.subr.mxu0 0.0
    %139 = vmatpush1.msra.mxu0 0.0
    %140 = vmatprep.subr.mxu0 0.0
    %141 = vmatpush1.msra.mxu0 0.0
    %142 = vmatprep.subr.mxu0 0.0
    %143 = vmatpush1.msra.mxu0 0.0
    %144 = vmatprep.subr.mxu0 0.0
    %145 = vmatpush1.msra.mxu0 0.0
    %146 = vmatprep.subr.mxu0 0.0
    %147 = vmatpush1.msra.mxu0 0.0
    %148 = vmatprep.subr.mxu0 0.0
    %149 = vmatpush1.msra.mxu0 0.0
    %150 = vmatprep.subr.mxu0 0.0
    %151 = vmatpush1.msra.mxu0 0.0
    %152 = vmatprep.subr.mxu0 0.0
    %153 = vmatpush1.msra.mxu0 0.0
    %154 = vmatprep.subr.mxu0 0.0
    %155 = vmatpush1.msra.mxu0 0.0
    %156 = vmatprep.subr.mxu0 0.0
    %157 = vmatpush1.msra.mxu0 0.0
    %158 = vmatprep.subr.mxu0 0.0
    %159 = vmatpush1.msra.mxu0 0.0
    %160 = vmatprep.subr.mxu0 0.0
    %161 = vmatpush1.msra.mxu0 0.0
    %162 = vmatprep.subr.mxu0 0.0
    %163 = vmatpush1.msra.mxu0 0.0
    %164 = vmatprep.subr.mxu0 0.0
    %165 = vmatpush1.msra.mxu0 0.0
    %166 = vmatprep.subr.mxu0 0.0
    %167 = vmatpush1.msra.mxu0 0.0
    %168 = vmatprep.subr.mxu0 0.0
    %169 = vmatpush1.msra.mxu0 0.0
    %170 = vmatprep.subr.mxu0 0.0
    %171 = vmatpush1.msra.mxu0 0.0
    %172 = vmatprep.subr.mxu0 0.0
    %173 = vmatpush1.msra.mxu0 0.0
    %174 = vmatprep.subr.mxu0 0.0
    %175 = vmatpush1.msra.mxu0 0.0
    %176 = vmatprep.subr.mxu0 0.0
    %177 = vmatpush1.msra.mxu0 0.0
    %178 = vmatprep.subr.mxu0 0.0
    %179 = vmatpush1.msra.mxu0 0.0
    %180 = vmatprep.subr.mxu0 0.0
    %181 = vmatpush1.msra.mxu0 0.0
    %182 = vmatprep.subr.mxu0 0.0
    %183 = vmatpush1.msra.mxu0 0.0
    %184 = vmatprep.subr.mxu0 0.0
    %185 = vmatpush1.msra.mxu0 0.0
    %186 = vmatprep.subr.mxu0 0.0
    %187 = vmatpush1.msra.mxu0 0.0
    %188 = vmatprep.subr.mxu0 0.0
    %189 = vmatpush1.msra.mxu0 0.0
    %190 = vmatprep.subr.mxu0 0.0
    %191 = vmatpush1.msra.mxu0 0.0
    %192 = vmatprep.subr.mxu0 0.0
    %193 = vmatpush1.msra.mxu0 0.0
    %194 = vmatprep.mubr.f32.mxu0 0.0
    %195 = vmatmul.mubr.f32.gmra.mrb[0].mxu0 %v128
    %v196 = vpop.f32.mrb[0].mxu0
    %v197 = vadd.f32 %v65, %v196
    %v198 = vpop.f32.mrb[0].mxu0
    %199 = vdwg.mxu0
    %v200 = vtanh.pop %v197
    %v201 = vmul.f32 %v200, 0.25
    %v202 = vadd.f32 %v125, %v201
    %203 = vmatprep.subr.mxu0 0.0
    %204 = vmatpush1.msra.mxu0 %v202
    %205 = vmatprep.subr.mxu0 0.0
    %206 = vmatpush1.msra.mxu0 0.0
    %207 = vmatprep.subr.mxu0 0.0
    %208 = vmatpush1.msra.mxu0 0.0
    %209 = vmatprep.subr.mxu0 0.0
    %210 = vmatpush1.msra.mxu0 0.0
    %211 = vmatprep.subr.mxu0 0.0
    %212 = vmatpush1.msra.mxu0 0.0
    %213 = vmatprep.subr.mxu0 0.0
    %214 = vmatpush1.msra.mxu0 0.0
    %215 = vmatprep.subr.mxu0 0.0
    %216 = vmatpush1.msra.mxu0 0.0
    %217 = vmatprep.subr.mxu0 0.0
    %218 = vmatpush1.msra.mxu0 0.0
    %219 = vmatprep.subr.mxu0 0.0
    %220 = vmatpush1.msra.mxu0 0.0
    %221 = vmatprep.subr.mxu0 0.0
    %222 = vmatpush1.msra.mxu0 0.0
    %223 = vmatprep.subr.mxu0 0.0
    %224 = vmatpush1.msra.mxu0 0.0
    %225 = vmatprep.subr.mxu0 0.0
    %226 = vmatpush1.msra.mxu0 0.0
    %227 = vmatprep.subr.mxu0 0.0
    %228 = vmatpush1.msra.mxu0 0.0
    %229 = vmatprep.subr.mxu0 0.0
    %230 = vmatpush1.msra.mxu0 0.0
    %231 = vmatprep.subr.mxu0 0.0
    %232 = vmatpush1.msra.mxu0 0.0
    %233 = vmatprep.subr.mxu0 0.0
    %234 = vmatpush1.msra.mxu0 0.0
    %235 = vmatprep.subr.mxu0 0.0
    %236 = vmatpush1.msra.mxu0 0.0
    %237 = vmatprep.subr.mxu0 0.0
    %238 = vmatpush1.msra.mxu0 0.0
    %239 = vmatprep.subr.mxu0 0.0
    %240 = vmatpush1.msra.mxu0 0.0
    %241 = vmatprep.subr.mxu0 0.0
    %242 = vmatpush1.msra.mxu0 0.0
    %243 = vmatprep.subr.mxu0 0.0
    %244 = vmatpush1.msra.mxu0 0.0
    %245 = vmatprep.subr.mxu0 0.0
    %246 = vmatpush1.msra.mxu0 0.0
    %247 = vmatprep.subr.mxu0 0.0
    %248 = vmatpush1.msra.mxu0 0.0
    %249 = vmatprep.subr.mxu0 0.0
    %250 = vmatpush1.msra.mxu0 0.0
    %251 = vmatprep.subr.mxu0 0.0
    %252 = vmatpush1.msra.mxu0 0.0
    %253 = vmatprep.subr.mxu0 0.0
    %254 = vmatpush1.msra.mxu0 0.0
    %255 = vmatprep.subr.mxu0 0.0
    %256 = vmatpush1.msra.mxu0 0.0
    %257 = vmatprep.subr.mxu0 0.0
    %258 = vmatpush1.msra.mxu0 0.0
    %259 = vmatprep.subr.mxu0 0.0
    %260 = vmatpush1.msra.mxu0 0.0
    %261 = vmatprep.subr.mxu0 0.0
    %262 = vmatpush1.msra.mxu0 0.0
    %263 = vmatprep.subr.mxu0 0.0
    %264 = vmatpush1.msra.mxu0 0.0
    %265 = vmatprep.subr.mxu0 0.0
    %266 = vmatpush1.msra.mxu0 0.0
    %267 = vmatprep.mubr.f32.mxu0 0.0
    %268 = vmatmul.mubr.f32.gmra.mrb[0].mxu0 %v128
    %v269 = vpop.f32.mrb[0].mxu0
    %v270 = vadd.f32 %v65, %v269
    %v271 = vpop.f32.mrb[0].mxu0
    %272 = vdwg.mxu0
    %v273 = vtanh.pop %v270
    %v274 = vmul.f32 %v273, 0.25
    %v275 = vadd.f32 %v202, %v274
    %276 = vmatprep.subr.mxu0 0.0
    %277 = vmatpush1.msra.mxu0 %v275
    %278 = vmatprep.subr.mxu0 0.0
    %279 = vmatpush1.msra.mxu0 0.0
    %280 = vmatprep.subr.mxu0 0.0
    %281 = vmatpush1.msra.mxu0 0.0
    %282 = vmatprep.subr.mxu0 0.0
    %283 = vmatpush1.msra.mxu0 0.0
    %284 = vmatprep.subr.mxu0 0.0
    %285 = vmatpush1.msra.mxu0 0.0
    %286 = vmatprep.subr.mxu0 0.0
    %287 = vmatpush1.msra.mxu0 0.0
    %288 = vmatprep.subr.mxu0 0.0
    %289 = vmatpush1.msra.mxu0 0.0
    %290 = vmatprep.subr.mxu0 0.0
    %291 = vmatpush1.msra.mxu0 0.0
    %292 = vmatprep.subr.mxu0 0.0
    %293 = vmatpush1.msra.mxu0 0.0
    %294 = vmatprep.subr.mxu0 0.0
    %295 = vmatpush1.msra.mxu0 0.0
    %296 = vmatprep.subr.mxu0 0.0
    %297 = vmatpush1.msra.mxu0 0.0
    %298 = vmatprep.subr.mxu0 0.0
    %299 = vmatpush1.msra.mxu0 0.0
    %300 = vmatprep.subr.mxu0 0.0
    %301 = vmatpush1.msra.mxu0 0.0
    %302 = vmatprep.subr.mxu0 0.0
    %303 = vmatpush1.msra.mxu0 0.0
    %304 = vmatprep.subr.mxu0 0.0
    %305 = vmatpush1.msra.mxu0 0.0
    %306 = vmatprep.subr.mxu0 0.0
    %307 = vmatpush1.msra.mxu0 0.0
    %308 = vmatprep.subr.mxu0 0.0
    %309 = vmatpush1.msra.mxu0 0.0
    %310 = vmatprep.subr.mxu0 0.0
    %311 = vmatpush1.msra.mxu0 0.0
    %312 = vmatprep.subr.mxu0 0.0
    %313 = vmatpush1.msra.mxu0 0.0
    %314 = vmatprep.subr.mxu0 0.0
    %315 = vmatpush1.msra.mxu0 0.0
    %316 = vmatprep.subr.mxu0 0.0
    %317 = vmatpush1.msra.mxu0 0.0
    %318 = vmatprep.subr.mxu0 0.0
    %319 = vmatpush1.msra.mxu0 0.0
    %320 = vmatprep.subr.mxu0 0.0
    %321 = vmatpush1.msra.mxu0 0.0
    %322 = vmatprep.subr.mxu0 0.0
    %323 = vmatpush1.msra.mxu0 0.0
    %324 = vmatprep.subr.mxu0 0.0
    %325 = vmatpush1.msra.mxu0 0.0
    %326 = vmatprep.subr.mxu0 0.0
    %327 = vmatpush1.msra.mxu0 0.0
    %328 = vmatprep.subr.mxu0 0.0
    %329 = vmatpush1.msra.mxu0 0.0
    %330 = vmatprep.subr.mxu0 0.0
    %331 = vmatpush1.msra.mxu0 0.0
    %332 = vmatprep.subr.mxu0 0.0
    %333 = vmatpush1.msra.mxu0 0.0
    %334 = vmatprep.subr.mxu0 0.0
    %335 = vmatpush1.msra.mxu0 0.0
    %336 = vmatprep.subr.mxu0 0.0
    %337 = vmatpush1.msra.mxu0 0.0
    %338 = vmatprep.subr.mxu0 0.0
    %339 = vmatpush1.msra.mxu0 0.0
    %340 = vmatprep.mubr.f32.mxu0 0.0
    %341 = vmatmul.mubr.f32.gmra.mrb[0].mxu0 %v128
    %v342 = vpop.f32.mrb[0].mxu0
    %v343 = vadd.f32 %v65, %v342
    %v344 = vpop.f32.mrb[0].mxu0
    %345 = vdwg.mxu0
    %v346 = vtanh.pop %v343
    %v347 = vmul.f32 %v346, 0.25
    %v348 = vadd.f32 %v275, %v347
    %349 = vmatprep.subr.mxu0 0.0
    %350 = vmatpush1.msra.mxu0 %v348
    %351 = vmatprep.subr.mxu0 0.0
    %352 = vmatpush1.msra.mxu0 0.0
    %353 = vmatprep.subr.mxu0 0.0
    %354 = vmatpush1.msra.mxu0 0.0
    %355 = vmatprep.subr.mxu0 0.0
    %356 = vmatpush1.msra.mxu0 0.0
    %357 = vmatprep.subr.mxu0 0.0
    %358 = vmatpush1.msra.mxu0 0.0
    %359 = vmatprep.subr.mxu0 0.0
    %360 = vmatpush1.msra.mxu0 0.0
    %361 = vmatprep.subr.mxu0 0.0
    %362 = vmatpush1.msra.mxu0 0.0
    %363 = vmatprep.subr.mxu0 0.0
    %364 = vmatpush1.msra.mxu0 0.0
    %365 = vmatprep.subr.mxu0 0.0
    %366 = vmatpush1.msra.mxu0 0.0
    %367 = vmatprep.subr.mxu0 0.0
    %368 = vmatpush1.msra.mxu0 0.0
    %369 = vmatprep.subr.mxu0 0.0
    %370 = vmatpush1.msra.mxu0 0.0
    %371 = vmatprep.subr.mxu0 0.0
    %372 = vmatpush1.msra.mxu0 0.0
    %373 = vmatprep.subr.mxu0 0.0
    %374 = vmatpush1.msra.mxu0 0.0
    %375 = vmatprep.subr.mxu0 0.0
    %376 = vmatpush1.msra.mxu0 0.0
    %377 = vmatprep.subr.mxu0 0.0
    %378 = vmatpush1.msra.mxu0 0.0
    %379 = vmatprep.subr.mxu0 0.0
    %380 = vmatpush1.msra.mxu0 0.0
    %381 = vmatprep.subr.mxu0 0.0
    %382 = vmatpush1.msra.mxu0 0.0
    %383 = vmatprep.subr.mxu0 0.0
    %384 = vmatpush1.msra.mxu0 0.0
    %385 = vmatprep.subr.mxu0 0.0
    %386 = vmatpush1.msra.mxu0 0.0
    %387 = vmatprep.subr.mxu0 0.0
    %388 = vmatpush1.msra.mxu0 0.0
    %389 = vmatprep.subr.mxu0 0.0
    %390 = vmatpush1.msra.mxu0 0.0
    %391 = vmatprep.subr.mxu0 0.0
    %392 = vmatpush1.msra.mxu0 0.0
    %393 = vmatprep.subr.mxu0 0.0
    %394 = vmatpush1.msra.mxu0 0.0
    %395 = vmatprep.subr.mxu0 0.0
    %396 = vmatpush1.msra.mxu0 0.0
    %397 = vmatprep.subr.mxu0 0.0
    %398 = vmatpush1.msra.mxu0 0.0
    %399 = vmatprep.subr.mxu0 0.0
    %400 = vmatpush1.msra.mxu0 0.0
    %401 = vmatprep.subr.mxu0 0.0
    %402 = vmatpush1.msra.mxu0 0.0
    %403 = vmatprep.subr.mxu0 0.0
    %404 = vmatpush1.msra.mxu0 0.0
    %405 = vmatprep.subr.mxu0 0.0
    %406 = vmatpush1.msra.mxu0 0.0
    %407 = vmatprep.subr.mxu0 0.0
    %408 = vmatpush1.msra.mxu0 0.0
    %409 = vmatprep.subr.mxu0 0.0
    %410 = vmatpush1.msra.mxu0 0.0
    %411 = vmatprep.subr.mxu0 0.0
    %412 = vmatpush1.msra.mxu0 0.0
    %413 = vmatprep.mubr.f32.mxu0 0.0
    %414 = vmatmul.mubr.f32.gmra.mrb[0].mxu0 %v128
    %v415 = vpop.f32.mrb[0].mxu0
    %v416 = vadd.f32 %v65, %v415
    %v417 = vpop.f32.mrb[0].mxu0
    %418 = vdwg.mxu0
    %v419 = vtanh.pop %v416
    %v420 = vmul.f32 %v419, 0.25
    %v421 = vadd.f32 %v348, %v420
    %v423 = vsel %vm126, %v104, 0
    %425 = vmatprep.subr.mxu0 0.0
    %426 = vmatpush1.msra.mxu0 %v59
    %427 = vmatprep.subr.mxu0 0.0
    %428 = vmatpush1.msra.mxu0 0.0
    %429 = vmatprep.subr.mxu0 0.0
    %430 = vmatpush1.msra.mxu0 0.0
    %431 = vmatprep.subr.mxu0 0.0
    %432 = vmatpush1.msra.mxu0 0.0
    %433 = vmatprep.subr.mxu0 0.0
    %434 = vmatpush1.msra.mxu0 0.0
    %435 = vmatprep.subr.mxu0 0.0
    %436 = vmatpush1.msra.mxu0 0.0
    %437 = vmatprep.subr.mxu0 0.0
    %438 = vmatpush1.msra.mxu0 0.0
    %439 = vmatprep.subr.mxu0 0.0
    %440 = vmatpush1.msra.mxu0 0.0
    %441 = vmatprep.subr.mxu0 0.0
    %442 = vmatpush1.msra.mxu0 0.0
    %443 = vmatprep.subr.mxu0 0.0
    %444 = vmatpush1.msra.mxu0 0.0
    %445 = vmatprep.subr.mxu0 0.0
    %446 = vmatpush1.msra.mxu0 0.0
    %447 = vmatprep.subr.mxu0 0.0
    %448 = vmatpush1.msra.mxu0 0.0
    %449 = vmatprep.subr.mxu0 0.0
    %450 = vmatpush1.msra.mxu0 0.0
    %451 = vmatprep.subr.mxu0 0.0
    %452 = vmatpush1.msra.mxu0 0.0
    %453 = vmatprep.subr.mxu0 0.0
    %454 = vmatpush1.msra.mxu0 0.0
    %455 = vmatprep.subr.mxu0 0.0
    %456 = vmatpush1.msra.mxu0 0.0
    %457 = vmatprep.subr.mxu0 0.0
    %458 = vmatpush1.msra.mxu0 0.0
    %459 = vmatprep.subr.mxu0 0.0
    %460 = vmatpush1.msra.mxu0 0.0
    %461 = vmatprep.subr.mxu0 0.0
    %462 = vmatpush1.msra.mxu0 0.0
    %463 = vmatprep.subr.mxu0 0.0
    %464 = vmatpush1.msra.mxu0 0.0
    %465 = vmatprep.subr.mxu0 0.0
    %466 = vmatpush1.msra.mxu0 0.0
    %467 = vmatprep.subr.mxu0 0.0
    %468 = vmatpush1.msra.mxu0 0.0
    %469 = vmatprep.subr.mxu0 0.0
    %470 = vmatpush1.msra.mxu0 0.0
    %471 = vmatprep.subr.mxu0 0.0
    %472 = vmatpush1.msra.mxu0 0.0
    %473 = vmatprep.subr.mxu0 0.0
    %474 = vmatpush1.msra.mxu0 0.0
    %475 = vmatprep.subr.mxu0 0.0
    %476 = vmatpush1.msra.mxu0 0.0
    %477 = vmatprep.subr.mxu0 0.0
    %478 = vmatpush1.msra.mxu0 0.0
    %479 = vmatprep.subr.mxu0 0.0
    %480 = vmatpush1.msra.mxu0 0.0
    %481 = vmatprep.subr.mxu0 0.0
    %482 = vmatpush1.msra.mxu0 0.0
    %483 = vmatprep.subr.mxu0 0.0
    %484 = vmatpush1.msra.mxu0 0.0
    %485 = vmatprep.subr.mxu0 0.0
    %486 = vmatpush1.msra.mxu0 0.0
    %487 = vmatprep.subr.mxu0 0.0
    %488 = vmatpush1.msra.mxu0 0.0
    %489 = vmatprep.mubr.f32.mxu0 0.0
    %490 = vmatmul.mubr.f32.gmra.mrb[0].mxu0 %v423
    %v491 = vpop.f32.mrb[0].mxu0
    %v492 = vadd.f32 %v71, %v491
    %v493 = vpop.f32.mrb[0].mxu0
    %494 = vdwg.mxu0
    %v495 = vtanh.pop %v492
    %v497 = vsel %vm126, %v105, 0
    %499 = vmatprep.subr.mxu0 0.0
    %500 = vmatpush1.msra.mxu0 %v495
    %501 = vmatprep.subr.mxu0 0.0
    %502 = vmatpush1.msra.mxu0 0.0
    %503 = vmatprep.subr.mxu0 0.0
    %504 = vmatpush1.msra.mxu0 0.0
    %505 = vmatprep.subr.mxu0 0.0
    %506 = vmatpush1.msra.mxu0 0.0
    %507 = vmatprep.subr.mxu0 0.0
    %508 = vmatpush1.msra.mxu0 0.0
    %509 = vmatprep.subr.mxu0 0.0
    %510 = vmatpush1.msra.mxu0 0.0
    %511 = vmatprep.subr.mxu0 0.0
    %512 = vmatpush1.msra.mxu0 0.0
    %513 = vmatprep.subr.mxu0 0.0
    %514 = vmatpush1.msra.mxu0 0.0
    %515 = vmatprep.subr.mxu0 0.0
    %516 = vmatpush1.msra.mxu0 0.0
    %517 = vmatprep.subr.mxu0 0.0
    %518 = vmatpush1.msra.mxu0 0.0
    %519 = vmatprep.subr.mxu0 0.0
    %520 = vmatpush1.msra.mxu0 0.0
    %521 = vmatprep.subr.mxu0 0.0
    %522 = vmatpush1.msra.mxu0 0.0
    %523 = vmatprep.subr.mxu0 0.0
    %524 = vmatpush1.msra.mxu0 0.0
    %525 = vmatprep.subr.mxu0 0.0
    %526 = vmatpush1.msra.mxu0 0.0
    %527 = vmatprep.subr.mxu0 0.0
    %528 = vmatpush1.msra.mxu0 0.0
    %529 = vmatprep.subr.mxu0 0.0
    %530 = vmatpush1.msra.mxu0 0.0
    %531 = vmatprep.subr.mxu0 0.0
    %532 = vmatpush1.msra.mxu0 0.0
    %533 = vmatprep.subr.mxu0 0.0
    %534 = vmatpush1.msra.mxu0 0.0
    %535 = vmatprep.subr.mxu0 0.0
    %536 = vmatpush1.msra.mxu0 0.0
    %537 = vmatprep.subr.mxu0 0.0
    %538 = vmatpush1.msra.mxu0 0.0
    %539 = vmatprep.subr.mxu0 0.0
    %540 = vmatpush1.msra.mxu0 0.0
    %541 = vmatprep.subr.mxu0 0.0
    %542 = vmatpush1.msra.mxu0 0.0
    %543 = vmatprep.subr.mxu0 0.0
    %544 = vmatpush1.msra.mxu0 0.0
    %545 = vmatprep.subr.mxu0 0.0
    %546 = vmatpush1.msra.mxu0 0.0
    %547 = vmatprep.subr.mxu0 0.0
    %548 = vmatpush1.msra.mxu0 0.0
    %549 = vmatprep.subr.mxu0 0.0
    %550 = vmatpush1.msra.mxu0 0.0
    %551 = vmatprep.subr.mxu0 0.0
    %552 = vmatpush1.msra.mxu0 0.0
    %553 = vmatprep.subr.mxu0 0.0
    %554 = vmatpush1.msra.mxu0 0.0
    %555 = vmatprep.subr.mxu0 0.0
    %556 = vmatpush1.msra.mxu0 0.0
    %557 = vmatprep.subr.mxu0 0.0
    %558 = vmatpush1.msra.mxu0 0.0
    %559 = vmatprep.subr.mxu0 0.0
    %560 = vmatpush1.msra.mxu0 0.0
    %561 = vmatprep.subr.mxu0 0.0
    %562 = vmatpush1.msra.mxu0 0.0
    %563 = vmatprep.mubr.f32.mxu0 0.0
    %564 = vmatmul.mubr.f32.gmra.mrb[0].mxu0 %v497
    %v565 = vpop.f32.mrb[0].mxu0
    %v566 = vadd.f32 %v77, %v565
    %v567 = vpop.f32.mrb[0].mxu0
    %568 = vdwg.mxu0
    %v569 = vtanh.pop %v566
    %vm570 = vcmask 130048
    %v572 = vsel %vm570, %v106, 0
    %v575 = vsel %vm570, %v107, 0
    %577 = vmatprep.subr.mxu0 0.0
    %578 = vmatpush1.msra.mxu0 %v421
    %579 = vmatprep.subr.mxu0 0.0
    %580 = vmatpush1.msra.mxu0 %v569
    %581 = vmatprep.subr.mxu0 0.0
    %582 = vmatpush1.msra.mxu0 0.0
    %583 = vmatprep.subr.mxu0 0.0
    %584 = vmatpush1.msra.mxu0 0.0
    %585 = vmatprep.subr.mxu0 0.0
    %586 = vmatpush1.msra.mxu0 0.0
    %587 = vmatprep.subr.mxu0 0.0
    %588 = vmatpush1.msra.mxu0 0.0
    %589 = vmatprep.subr.mxu0 0.0
    %590 = vmatpush1.msra.mxu0 0.0
    %591 = vmatprep.subr.mxu0 0.0
    %592 = vmatpush1.msra.mxu0 0.0
    %593 = vmatprep.subr.mxu0 0.0
    %594 = vmatpush1.msra.mxu0 0.0
    %595 = vmatprep.subr.mxu0 0.0
    %596 = vmatpush1.msra.mxu0 0.0
    %597 = vmatprep.subr.mxu0 0.0
    %598 = vmatpush1.msra.mxu0 0.0
    %599 = vmatprep.subr.mxu0 0.0
    %600 = vmatpush1.msra.mxu0 0.0
    %601 = vmatprep.subr.mxu0 0.0
    %602 = vmatpush1.msra.mxu0 0.0
    %603 = vmatprep.subr.mxu0 0.0
    %604 = vmatpush1.msra.mxu0 0.0
    %605 = vmatprep.subr.mxu0 0.0
    %606 = vmatpush1.msra.mxu0 0.0
    %607 = vmatprep.subr.mxu0 0.0
    %608 = vmatpush1.msra.mxu0 0.0
    %609 = vmatprep.subr.mxu0 0.0
    %610 = vmatpush1.msra.mxu0 0.0
    %611 = vmatprep.subr.mxu0 0.0
    %612 = vmatpush1.msra.mxu0 0.0
    %613 = vmatprep.subr.mxu0 0.0
    %614 = vmatpush1.msra.mxu0 0.0
    %615 = vmatprep.subr.mxu0 0.0
    %616 = vmatpush1.msra.mxu0 0.0
    %617 = vmatprep.subr.mxu0 0.0
    %618 = vmatpush1.msra.mxu0 0.0
    %619 = vmatprep.subr.mxu0 0.0
    %620 = vmatpush1.msra.mxu0 0.0
    %621 = vmatprep.subr.mxu0 0.0
    %622 = vmatpush1.msra.mxu0 0.0
    %623 = vmatprep.subr.mxu0 0.0
    %624 = vmatpush1.msra.mxu0 0.0
    %625 = vmatprep.subr.mxu0 0.0
    %626 = vmatpush1.msra.mxu0 0.0
    %627 = vmatprep.subr.mxu0 0.0
    %628 = vmatpush1.msra.mxu0 0.0
    %629 = vmatprep.subr.mxu0 0.0
    %630 = vmatpush1.msra.mxu0 0.0
    %631 = vmatprep.subr.mxu0 0.0
    %632 = vmatpush1.msra.mxu0 0.0
    %633 = vmatprep.subr.mxu0 0.0
    %634 = vmatpush1.msra.mxu0 0.0
    %635 = vmatprep.subr.mxu0 0.0
    %636 = vmatpush1.msra.mxu0 0.0
    %637 = vmatprep.subr.mxu0 0.0
    %638 = vmatpush1.msra.mxu0 0.0
    %639 = vmatprep.subr.mxu0 0.0
    %640 = vmatpush1.msra.mxu0 0.0
    %641 = vmatprep.mubr.f32.mxu0 0.0
    %642 = vmatmul.mubr.f32.gmra.mrb[0].mxu0 %v572
    %v643 = vpop.f32.mrb[0].mxu0
    %v644 = vadd.f32 %v84, %v643
    %v645 = vpop.f32.mrb[0].mxu0
    %646 = vmatprep.mubr.f32.mxu0 0.0
    %647 = vmatmul.mubr.f32.gmra.mrb[0].mxu0 %v575
    %v648 = vpop.f32.mrb[0].mxu0
    %v649 = vadd.f32 %v89, %v648
    %v650 = vpop.f32.mrb[0].mxu0
    %651 = vdwg.mxu0
    %v652 = vtanh.pop %v644
    %v653 = vtanh.pop %v649
    %v655 = vsel %vm570, %v108, 0
    %v658 = vsel %vm570, %v109, 0
    %660 = vmatprep.subr.mxu0 0.0
    %661 = vmatpush1.msra.mxu0 %v652
    %662 = vmatprep.subr.mxu0 0.0
    %663 = vmatpush1.msra.mxu0 %v653
    %664 = vmatprep.subr.mxu0 0.0
    %665 = vmatpush1.msra.mxu0 0.0
    %666 = vmatprep.subr.mxu0 0.0
    %667 = vmatpush1.msra.mxu0 0.0
    %668 = vmatprep.subr.mxu0 0.0
    %669 = vmatpush1.msra.mxu0 0.0
    %670 = vmatprep.subr.mxu0 0.0
    %671 = vmatpush1.msra.mxu0 0.0
    %672 = vmatprep.subr.mxu0 0.0
    %673 = vmatpush1.msra.mxu0 0.0
    %674 = vmatprep.subr.mxu0 0.0
    %675 = vmatpush1.msra.mxu0 0.0
    %676 = vmatprep.subr.mxu0 0.0
    %677 = vmatpush1.msra.mxu0 0.0
    %678 = vmatprep.subr.mxu0 0.0
    %679 = vmatpush1.msra.mxu0 0.0
    %680 = vmatprep.subr.mxu0 0.0
    %681 = vmatpush1.msra.mxu0 0.0
    %682 = vmatprep.subr.mxu0 0.0
    %683 = vmatpush1.msra.mxu0 0.0
    %684 = vmatprep.subr.mxu0 0.0
    %685 = vmatpush1.msra.mxu0 0.0
    %686 = vmatprep.subr.mxu0 0.0
    %687 = vmatpush1.msra.mxu0 0.0
    %688 = vmatprep.subr.mxu0 0.0
    %689 = vmatpush1.msra.mxu0 0.0
    %690 = vmatprep.subr.mxu0 0.0
    %691 = vmatpush1.msra.mxu0 0.0
    %692 = vmatprep.subr.mxu0 0.0
    %693 = vmatpush1.msra.mxu0 0.0
    %694 = vmatprep.subr.mxu0 0.0
    %695 = vmatpush1.msra.mxu0 0.0
    %696 = vmatprep.subr.mxu0 0.0
    %697 = vmatpush1.msra.mxu0 0.0
    %698 = vmatprep.subr.mxu0 0.0
    %699 = vmatpush1.msra.mxu0 0.0
    %700 = vmatprep.subr.mxu0 0.0
    %701 = vmatpush1.msra.mxu0 0.0
    %702 = vmatprep.subr.mxu0 0.0
    %703 = vmatpush1.msra.mxu0 0.0
    %704 = vmatprep.subr.mxu0 0.0
    %705 = vmatpush1.msra.mxu0 0.0
    %706 = vmatprep.subr.mxu0 0.0
    %707 = vmatpush1.msra.mxu0 0.0
    %708 = vmatprep.subr.mxu0 0.0
    %709 = vmatpush1.msra.mxu0 0.0
    %710 = vmatprep.subr.mxu0 0.0
    %711 = vmatpush1.msra.mxu0 0.0
    %712 = vmatprep.subr.mxu0 0.0
    %713 = vmatpush1.msra.mxu0 0.0
    %714 = vmatprep.subr.mxu0 0.0
    %715 = vmatpush1.msra.mxu0 0.0
    %716 = vmatprep.subr.mxu0 0.0
    %717 = vmatpush1.msra.mxu0 0.0
    %718 = vmatprep.subr.mxu0 0.0
    %719 = vmatpush1.msra.mxu0 0.0
    %720 = vmatprep.subr.mxu0 0.0
    %721 = vmatpush1.msra.mxu0 0.0
    %722 = vmatprep.subr.mxu0 0.0
    %723 = vmatpush1.msra.mxu0 0.0
    %724 = vmatprep.mubr.f32.mxu0 0.0
    %725 = vmatmul.mubr.f32.gmra.mrb[0].mxu0 %v655
    %v726 = vpop.f32.mrb[0].mxu0
    %v727 = vadd.f32 %v96, %v726
    %v728 = vpop.f32.mrb[0].mxu0
    %729 = vmatprep.mubr.f32.mxu0 0.0
    %730 = vmatmul.mubr.f32.gmra.mrb[0].mxu0 %v658
    %v731 = vpop.f32.mrb[0].mxu0
    %v732 = vadd.f32 %v101, %v731
    %v733 = vpop.f32.mrb[0].mxu0
    %734 = vdwg.mxu0
    %v735 = vmul.f32 %v727, 0.0625
    %v736 = vmul.f32 %v732, 0.0625
    %v737 = vadd.f32 %v421, %v735
    %v738 = vadd.f32 %v569, %v736
    %739 = vmatprep.subr.mxu0 0.0
    %740 = vmatpush1.msra.mxu0 %v737
    %741 = vmatprep.subr.mxu0 0.0
    %742 = vmatpush1.msra.mxu0 %v738
    %743 = vmatprep.subr.mxu0 0.0
    %744 = vmatpush1.msra.mxu0 0.0
    %745 = vmatprep.subr.mxu0 0.0
    %746 = vmatpush1.msra.mxu0 0.0
    %747 = vmatprep.subr.mxu0 0.0
    %748 = vmatpush1.msra.mxu0 0.0
    %749 = vmatprep.subr.mxu0 0.0
    %750 = vmatpush1.msra.mxu0 0.0
    %751 = vmatprep.subr.mxu0 0.0
    %752 = vmatpush1.msra.mxu0 0.0
    %753 = vmatprep.subr.mxu0 0.0
    %754 = vmatpush1.msra.mxu0 0.0
    %755 = vmatprep.subr.mxu0 0.0
    %756 = vmatpush1.msra.mxu0 0.0
    %757 = vmatprep.subr.mxu0 0.0
    %758 = vmatpush1.msra.mxu0 0.0
    %759 = vmatprep.subr.mxu0 0.0
    %760 = vmatpush1.msra.mxu0 0.0
    %761 = vmatprep.subr.mxu0 0.0
    %762 = vmatpush1.msra.mxu0 0.0
    %763 = vmatprep.subr.mxu0 0.0
    %764 = vmatpush1.msra.mxu0 0.0
    %765 = vmatprep.subr.mxu0 0.0
    %766 = vmatpush1.msra.mxu0 0.0
    %767 = vmatprep.subr.mxu0 0.0
    %768 = vmatpush1.msra.mxu0 0.0
    %769 = vmatprep.subr.mxu0 0.0
    %770 = vmatpush1.msra.mxu0 0.0
    %771 = vmatprep.subr.mxu0 0.0
    %772 = vmatpush1.msra.mxu0 0.0
    %773 = vmatprep.subr.mxu0 0.0
    %774 = vmatpush1.msra.mxu0 0.0
    %775 = vmatprep.subr.mxu0 0.0
    %776 = vmatpush1.msra.mxu0 0.0
    %777 = vmatprep.subr.mxu0 0.0
    %778 = vmatpush1.msra.mxu0 0.0
    %779 = vmatprep.subr.mxu0 0.0
    %780 = vmatpush1.msra.mxu0 0.0
    %781 = vmatprep.subr.mxu0 0.0
    %782 = vmatpush1.msra.mxu0 0.0
    %783 = vmatprep.subr.mxu0 0.0
    %784 = vmatpush1.msra.mxu0 0.0
    %785 = vmatprep.subr.mxu0 0.0
    %786 = vmatpush1.msra.mxu0 0.0
    %787 = vmatprep.subr.mxu0 0.0
    %788 = vmatpush1.msra.mxu0 0.0
    %789 = vmatprep.subr.mxu0 0.0
    %790 = vmatpush1.msra.mxu0 0.0
    %791 = vmatprep.subr.mxu0 0.0
    %792 = vmatpush1.msra.mxu0 0.0
    %793 = vmatprep.subr.mxu0 0.0
    %794 = vmatpush1.msra.mxu0 0.0
    %795 = vmatprep.subr.mxu0 0.0
    %796 = vmatpush1.msra.mxu0 0.0
    %797 = vmatprep.subr.mxu0 0.0
    %798 = vmatpush1.msra.mxu0 0.0
    %799 = vmatprep.subr.mxu0 0.0
    %800 = vmatpush1.msra.mxu0 0.0
    %801 = vmatprep.subr.mxu0 0.0
    %802 = vmatpush1.msra.mxu0 0.0
    %803 = vmatprep.mubr.f32.mxu0 0.0
    %804 = vmatmul.mubr.f32.gmra.mrb[0].mxu0 %v572
    %v805 = vpop.f32.mrb[0].mxu0
    %v806 = vadd.f32 %v84, %v805
    %v807 = vpop.f32.mrb[0].mxu0
    %808 = vmatprep.mubr.f32.mxu0 0.0
    %809 = vmatmul.mubr.f32.gmra.mrb[0].mxu0 %v575
    %v810 = vpop.f32.mrb[0].mxu0
    %v811 = vadd.f32 %v89, %v810
    %v812 = vpop.f32.mrb[0].mxu0
    %813 = vdwg.mxu0
    %v814 = vtanh.pop %v806
    %v815 = vtanh.pop %v811
    %816 = vmatprep.subr.mxu0 0.0
    %817 = vmatpush1.msra.mxu0 %v814
    %818 = vmatprep.subr.mxu0 0.0
    %819 = vmatpush1.msra.mxu0 %v815
    %820 = vmatprep.subr.mxu0 0.0
    %821 = vmatpush1.msra.mxu0 0.0
    %822 = vmatprep.subr.mxu0 0.0
    %823 = vmatpush1.msra.mxu0 0.0
    %824 = vmatprep.subr.mxu0 0.0
    %825 = vmatpush1.msra.mxu0 0.0
    %826 = vmatprep.subr.mxu0 0.0
    %827 = vmatpush1.msra.mxu0 0.0
    %828 = vmatprep.subr.mxu0 0.0
    %829 = vmatpush1.msra.mxu0 0.0
    %830 = vmatprep.subr.mxu0 0.0
    %831 = vmatpush1.msra.mxu0 0.0
    %832 = vmatprep.subr.mxu0 0.0
    %833 = vmatpush1.msra.mxu0 0.0
    %834 = vmatprep.subr.mxu0 0.0
    %835 = vmatpush1.msra.mxu0 0.0
    %836 = vmatprep.subr.mxu0 0.0
    %837 = vmatpush1.msra.mxu0 0.0
    %838 = vmatprep.subr.mxu0 0.0
    %839 = vmatpush1.msra.mxu0 0.0
    %840 = vmatprep.subr.mxu0 0.0
    %841 = vmatpush1.msra.mxu0 0.0
    %842 = vmatprep.subr.mxu0 0.0
    %843 = vmatpush1.msra.mxu0 0.0
    %844 = vmatprep.subr.mxu0 0.0
    %845 = vmatpush1.msra.mxu0 0.0
    %846 = vmatprep.subr.mxu0 0.0
    %847 = vmatpush1.msra.mxu0 0.0
    %848 = vmatprep.subr.mxu0 0.0
    %849 = vmatpush1.msra.mxu0 0.0
    %850 = vmatprep.subr.mxu0 0.0
    %851 = vmatpush1.msra.mxu0 0.0
    %852 = vmatprep.subr.mxu0 0.0
    %853 = vmatpush1.msra.mxu0 0.0
    %854 = vmatprep.subr.mxu0 0.0
    %855 = vmatpush1.msra.mxu0 0.0
    %856 = vmatprep.subr.mxu0 0.0
    %857 = vmatpush1.msra.mxu0 0.0
    %858 = vmatprep.subr.mxu0 0.0
    %859 = vmatpush1.msra.mxu0 0.0
    %860 = vmatprep.subr.mxu0 0.0
    %861 = vmatpush1.msra.mxu0 0.0
    %862 = vmatprep.subr.mxu0 0.0
    %863 = vmatpush1.msra.mxu0 0.0
    %864 = vmatprep.subr.mxu0 0.0
    %865 = vmatpush1.msra.mxu0 0.0
    %866 = vmatprep.subr.mxu0 0.0
    %867 = vmatpush1.msra.mxu0 0.0
    %868 = vmatprep.subr.mxu0 0.0
    %869 = vmatpush1.msra.mxu0 0.0
    %870 = vmatprep.subr.mxu0 0.0
    %871 = vmatpush1.msra.mxu0 0.0
    %872 = vmatprep.subr.mxu0 0.0
    %873 = vmatpush1.msra.mxu0 0.0
    %874 = vmatprep.subr.mxu0 0.0
    %875 = vmatpush1.msra.mxu0 0.0
    %876 = vmatprep.subr.mxu0 0.0
    %877 = vmatpush1.msra.mxu0 0.0
    %878 = vmatprep.subr.mxu0 0.0
    %879 = vmatpush1.msra.mxu0 0.0
    %880 = vmatprep.mubr.f32.mxu0 0.0
    %881 = vmatmul.mubr.f32.gmra.mrb[0].mxu0 %v655
    %v882 = vpop.f32.mrb[0].mxu0
    %v883 = vadd.f32 %v96, %v882
    %v884 = vpop.f32.mrb[0].mxu0
    %885 = vmatprep.mubr.f32.mxu0 0.0
    %886 = vmatmul.mubr.f32.gmra.mrb[0].mxu0 %v658
    %v887 = vpop.f32.mrb[0].mxu0
    %v888 = vadd.f32 %v101, %v887
    %v889 = vpop.f32.mrb[0].mxu0
    %890 = vdwg.mxu0
    %v891 = vmul.f32 %v883, 0.0625
    %v892 = vmul.f32 %v888, 0.0625
    %v893 = vadd.f32 %v421, %v891
    %v894 = vadd.f32 %v569, %v892
    %895 = vmatprep.subr.mxu0 0.0
    %896 = vmatpush1.msra.mxu0 %v893
    %897 = vmatprep.subr.mxu0 0.0
    %898 = vmatpush1.msra.mxu0 %v894
    %899 = vmatprep.subr.mxu0 0.0
    %900 = vmatpush1.msra.mxu0 0.0
    %901 = vmatprep.subr.mxu0 0.0
    %902 = vmatpush1.msra.mxu0 0.0
    %903 = vmatprep.subr.mxu0 0.0
    %904 = vmatpush1.msra.mxu0 0.0
    %905 = vmatprep.subr.mxu0 0.0
    %906 = vmatpush1.msra.mxu0 0.0
    %907 = vmatprep.subr.mxu0 0.0
    %908 = vmatpush1.msra.mxu0 0.0
    %909 = vmatprep.subr.mxu0 0.0
    %910 = vmatpush1.msra.mxu0 0.0
    %911 = vmatprep.subr.mxu0 0.0
    %912 = vmatpush1.msra.mxu0 0.0
    %913 = vmatprep.subr.mxu0 0.0
    %914 = vmatpush1.msra.mxu0 0.0
    %915 = vmatprep.subr.mxu0 0.0
    %916 = vmatpush1.msra.mxu0 0.0
    %917 = vmatprep.subr.mxu0 0.0
    %918 = vmatpush1.msra.mxu0 0.0
    %919 = vmatprep.subr.mxu0 0.0
    %920 = vmatpush1.msra.mxu0 0.0
    %921 = vmatprep.subr.mxu0 0.0
    %922 = vmatpush1.msra.mxu0 0.0
    %923 = vmatprep.subr.mxu0 0.0
    %924 = vmatpush1.msra.mxu0 0.0
    %925 = vmatprep.subr.mxu0 0.0
    %926 = vmatpush1.msra.mxu0 0.0
    %927 = vmatprep.subr.mxu0 0.0
    %928 = vmatpush1.msra.mxu0 0.0
    %929 = vmatprep.subr.mxu0 0.0
    %930 = vmatpush1.msra.mxu0 0.0
    %931 = vmatprep.subr.mxu0 0.0
    %932 = vmatpush1.msra.mxu0 0.0
    %933 = vmatprep.subr.mxu0 0.0
    %934 = vmatpush1.msra.mxu0 0.0
    %935 = vmatprep.subr.mxu0 0.0
    %936 = vmatpush1.msra.mxu0 0.0
    %937 = vmatprep.subr.mxu0 0.0
    %938 = vmatpush1.msra.mxu0 0.0
    %939 = vmatprep.subr.mxu0 0.0
    %940 = vmatpush1.msra.mxu0 0.0
    %941 = vmatprep.subr.mxu0 0.0
    %942 = vmatpush1.msra.mxu0 0.0
    %943 = vmatprep.subr.mxu0 0.0
    %944 = vmatpush1.msra.mxu0 0.0
    %945 = vmatprep.subr.mxu0 0.0
    %946 = vmatpush1.msra.mxu0 0.0
    %947 = vmatprep.subr.mxu0 0.0
    %948 = vmatpush1.msra.mxu0 0.0
    %949 = vmatprep.subr.mxu0 0.0
    %950 = vmatpush1.msra.mxu0 0.0
    %951 = vmatprep.subr.mxu0 0.0
    %952 = vmatpush1.msra.mxu0 0.0
    %953 = vmatprep.subr.mxu0 0.0
    %954 = vmatpush1.msra.mxu0 0.0
    %955 = vmatprep.subr.mxu0 0.0
    %956 = vmatpush1.msra.mxu0 0.0
    %957 = vmatprep.subr.mxu0 0.0
    %958 = vmatpush1.msra.mxu0 0.0
    %959 = vmatprep.mubr.f32.mxu0 0.0
    %960 = vmatmul.mubr.f32.gmra.mrb[0].mxu0 %v572
    %v961 = vpop.f32.mrb[0].mxu0
    %v962 = vadd.f32 %v84, %v961
    %v963 = vpop.f32.mrb[0].mxu0
    %964 = vmatprep.mubr.f32.mxu0 0.0
    %965 = vmatmul.mubr.f32.gmra.mrb[0].mxu0 %v575
    %v966 = vpop.f32.mrb[0].mxu0
    %v967 = vadd.f32 %v89, %v966
    %v968 = vpop.f32.mrb[0].mxu0
    %969 = vdwg.mxu0
    %v970 = vtanh.pop %v962
    %v971 = vtanh.pop %v967
    %972 = vmatprep.subr.mxu0 0.0
    %973 = vmatpush1.msra.mxu0 %v970
    %974 = vmatprep.subr.mxu0 0.0
    %975 = vmatpush1.msra.mxu0 %v971
    %976 = vmatprep.subr.mxu0 0.0
    %977 = vmatpush1.msra.mxu0 0.0
    %978 = vmatprep.subr.mxu0 0.0
    %979 = vmatpush1.msra.mxu0 0.0
    %980 = vmatprep.subr.mxu0 0.0
    %981 = vmatpush1.msra.mxu0 0.0
    %982 = vmatprep.subr.mxu0 0.0
    %983 = vmatpush1.msra.mxu0 0.0
    %984 = vmatprep.subr.mxu0 0.0
    %985 = vmatpush1.msra.mxu0 0.0
    %986 = vmatprep.subr.mxu0 0.0
    %987 = vmatpush1.msra.mxu0 0.0
    %988 = vmatprep.subr.mxu0 0.0
    %989 = vmatpush1.msra.mxu0 0.0
    %990 = vmatprep.subr.mxu0 0.0
    %991 = vmatpush1.msra.mxu0 0.0
    %992 = vmatprep.subr.mxu0 0.0
    %993 = vmatpush1.msra.mxu0 0.0
    %994 = vmatprep.subr.mxu0 0.0
    %995 = vmatpush1.msra.mxu0 0.0
    %996 = vmatprep.subr.mxu0 0.0
    %997 = vmatpush1.msra.mxu0 0.0
    %998 = vmatprep.subr.mxu0 0.0
    %999 = vmatpush1.msra.mxu0 0.0
    %1000 = vmatprep.subr.mxu0 0.0
    %1001 = vmatpush1.msra.mxu0 0.0
    %1002 = vmatprep.subr.mxu0 0.0
    %1003 = vmatpush1.msra.mxu0 0.0
    %1004 = vmatprep.subr.mxu0 0.0
    %1005 = vmatpush1.msra.mxu0 0.0
    %1006 = vmatprep.subr.mxu0 0.0
    %1007 = vmatpush1.msra.mxu0 0.0
    %1008 = vmatprep.subr.mxu0 0.0
    %1009 = vmatpush1.msra.mxu0 0.0
    %1010 = vmatprep.subr.mxu0 0.0
    %1011 = vmatpush1.msra.mxu0 0.0
    %1012 = vmatprep.subr.mxu0 0.0
    %1013 = vmatpush1.msra.mxu0 0.0
    %1014 = vmatprep.subr.mxu0 0.0
    %1015 = vmatpush1.msra.mxu0 0.0
    %1016 = vmatprep.subr.mxu0 0.0
    %1017 = vmatpush1.msra.mxu0 0.0
    %1018 = vmatprep.subr.mxu0 0.0
    %1019 = vmatpush1.msra.mxu0 0.0
    %1020 = vmatprep.subr.mxu0 0.0
    %1021 = vmatpush1.msra.mxu0 0.0
    %1022 = vmatprep.subr.mxu0 0.0
    %1023 = vmatpush1.msra.mxu0 0.0
    %1024 = vmatprep.subr.mxu0 0.0
    %1025 = vmatpush1.msra.mxu0 0.0
    %1026 = vmatprep.subr.mxu0 0.0
    %1027 = vmatpush1.msra.mxu0 0.0
    %1028 = vmatprep.subr.mxu0 0.0
    %1029 = vmatpush1.msra.mxu0 0.0
    %1030 = vmatprep.subr.mxu0 0.0
    %1031 = vmatpush1.msra.mxu0 0.0
    %1032 = vmatprep.subr.mxu0 0.0
    %1033 = vmatpush1.msra.mxu0 0.0
    %1034 = vmatprep.subr.mxu0 0.0
    %1035 = vmatpush1.msra.mxu0 0.0
    %1036 = vmatprep.mubr.f32.mxu0 0.0
    %1037 = vmatmul.mubr.f32.gmra.mrb[0].mxu0 %v655
    %v1038 = vpop.f32.mrb[0].mxu0
    %v1039 = vadd.f32 %v96, %v1038
    %v1040 = vpop.f32.mrb[0].mxu0
    %1041 = vmatprep.mubr.f32.mxu0 0.0
    %1042 = vmatmul.mubr.f32.gmra.mrb[0].mxu0 %v658
    %v1043 = vpop.f32.mrb[0].mxu0
    %v1044 = vadd.f32 %v101, %v1043
    %v1045 = vpop.f32.mrb[0].mxu0
    %1046 = vdwg.mxu0
    %v1047 = vmul.f32 %v1039, 0.125
    %v1048 = vmul.f32 %v1044, 0.125
    %v1049 = vadd.f32 %v421, %v1047
    %v1050 = vadd.f32 %v569, %v1048
    %1051 = vmatprep.subr.mxu0 0.0
    %1052 = vmatpush1.msra.mxu0 %v1049
    %1053 = vmatprep.subr.mxu0 0.0
    %1054 = vmatpush1.msra.mxu0 %v1050
    %1055 = vmatprep.subr.mxu0 0.0
    %1056 = vmatpush1.msra.mxu0 0.0
    %1057 = vmatprep.subr.mxu0 0.0
    %1058 = vmatpush1.msra.mxu0 0.0
    %1059 = vmatprep.subr.mxu0 0.0
    %1060 = vmatpush1.msra.mxu0 0.0
    %1061 = vmatprep.subr.mxu0 0.0
    %1062 = vmatpush1.msra.mxu0 0.0
    %1063 = vmatprep.subr.mxu0 0.0
    %1064 = vmatpush1.msra.mxu0 0.0
    %1065 = vmatprep.subr.mxu0 0.0
    %1066 = vmatpush1.msra.mxu0 0.0
    %1067 = vmatprep.subr.mxu0 0.0
    %1068 = vmatpush1.msra.mxu0 0.0
    %1069 = vmatprep.subr.mxu0 0.0
    %1070 = vmatpush1.msra.mxu0 0.0
    %1071 = vmatprep.subr.mxu0 0.0
    %1072 = vmatpush1.msra.mxu0 0.0
    %1073 = vmatprep.subr.mxu0 0.0
    %1074 = vmatpush1.msra.mxu0 0.0
    %1075 = vmatprep.subr.mxu0 0.0
    %1076 = vmatpush1.msra.mxu0 0.0
    %1077 = vmatprep.subr.mxu0 0.0
    %1078 = vmatpush1.msra.mxu0 0.0
    %1079 = vmatprep.subr.mxu0 0.0
    %1080 = vmatpush1.msra.mxu0 0.0
    %1081 = vmatprep.subr.mxu0 0.0
    %1082 = vmatpush1.msra.mxu0 0.0
    %1083 = vmatprep.subr.mxu0 0.0
    %1084 = vmatpush1.msra.mxu0 0.0
    %1085 = vmatprep.subr.mxu0 0.0
    %1086 = vmatpush1.msra.mxu0 0.0
    %1087 = vmatprep.subr.mxu0 0.0
    %1088 = vmatpush1.msra.mxu0 0.0
    %1089 = vmatprep.subr.mxu0 0.0
    %1090 = vmatpush1.msra.mxu0 0.0
    %1091 = vmatprep.subr.mxu0 0.0
    %1092 = vmatpush1.msra.mxu0 0.0
    %1093 = vmatprep.subr.mxu0 0.0
    %1094 = vmatpush1.msra.mxu0 0.0
    %1095 = vmatprep.subr.mxu0 0.0
    %1096 = vmatpush1.msra.mxu0 0.0
    %1097 = vmatprep.subr.mxu0 0.0
    %1098 = vmatpush1.msra.mxu0 0.0
    %1099 = vmatprep.subr.mxu0 0.0
    %1100 = vmatpush1.msra.mxu0 0.0
    %1101 = vmatprep.subr.mxu0 0.0
    %1102 = vmatpush1.msra.mxu0 0.0
    %1103 = vmatprep.subr.mxu0 0.0
    %1104 = vmatpush1.msra.mxu0 0.0
    %1105 = vmatprep.subr.mxu0 0.0
    %1106 = vmatpush1.msra.mxu0 0.0
    %1107 = vmatprep.subr.mxu0 0.0
    %1108 = vmatpush1.msra.mxu0 0.0
    %1109 = vmatprep.subr.mxu0 0.0
    %1110 = vmatpush1.msra.mxu0 0.0
    %1111 = vmatprep.subr.mxu0 0.0
    %1112 = vmatpush1.msra.mxu0 0.0
    %1113 = vmatprep.subr.mxu0 0.0
    %1114 = vmatpush1.msra.mxu0 0.0
    %1115 = vmatprep.mubr.f32.mxu0 0.0
    %1116 = vmatmul.mubr.f32.gmra.mrb[0].mxu0 %v572
    %v1117 = vpop.f32.mrb[0].mxu0
    %v1118 = vadd.f32 %v84, %v1117
    %v1119 = vpop.f32.mrb[0].mxu0
    %1120 = vmatprep.mubr.f32.mxu0 0.0
    %1121 = vmatmul.mubr.f32.gmra.mrb[0].mxu0 %v575
    %v1122 = vpop.f32.mrb[0].mxu0
    %v1123 = vadd.f32 %v89, %v1122
    %v1124 = vpop.f32.mrb[0].mxu0
    %1125 = vdwg.mxu0
    %v1126 = vtanh.pop %v1118
    %v1127 = vtanh.pop %v1123
    %1128 = vmatprep.subr.mxu0 0.0
    %1129 = vmatpush1.msra.mxu0 %v1126
    %1130 = vmatprep.subr.mxu0 0.0
    %1131 = vmatpush1.msra.mxu0 %v1127
    %1132 = vmatprep.subr.mxu0 0.0
    %1133 = vmatpush1.msra.mxu0 0.0
    %1134 = vmatprep.subr.mxu0 0.0
    %1135 = vmatpush1.msra.mxu0 0.0
    %1136 = vmatprep.subr.mxu0 0.0
    %1137 = vmatpush1.msra.mxu0 0.0
    %1138 = vmatprep.subr.mxu0 0.0
    %1139 = vmatpush1.msra.mxu0 0.0
    %1140 = vmatprep.subr.mxu0 0.0
    %1141 = vmatpush1.msra.mxu0 0.0
    %1142 = vmatprep.subr.mxu0 0.0
    %1143 = vmatpush1.msra.mxu0 0.0
    %1144 = vmatprep.subr.mxu0 0.0
    %1145 = vmatpush1.msra.mxu0 0.0
    %1146 = vmatprep.subr.mxu0 0.0
    %1147 = vmatpush1.msra.mxu0 0.0
    %1148 = vmatprep.subr.mxu0 0.0
    %1149 = vmatpush1.msra.mxu0 0.0
    %1150 = vmatprep.subr.mxu0 0.0
    %1151 = vmatpush1.msra.mxu0 0.0
    %1152 = vmatprep.subr.mxu0 0.0
    %1153 = vmatpush1.msra.mxu0 0.0
    %1154 = vmatprep.subr.mxu0 0.0
    %1155 = vmatpush1.msra.mxu0 0.0
    %1156 = vmatprep.subr.mxu0 0.0
    %1157 = vmatpush1.msra.mxu0 0.0
    %1158 = vmatprep.subr.mxu0 0.0
    %1159 = vmatpush1.msra.mxu0 0.0
    %1160 = vmatprep.subr.mxu0 0.0
    %1161 = vmatpush1.msra.mxu0 0.0
    %1162 = vmatprep.subr.mxu0 0.0
    %1163 = vmatpush1.msra.mxu0 0.0
    %1164 = vmatprep.subr.mxu0 0.0
    %1165 = vmatpush1.msra.mxu0 0.0
    %1166 = vmatprep.subr.mxu0 0.0
    %1167 = vmatpush1.msra.mxu0 0.0
    %1168 = vmatprep.subr.mxu0 0.0
    %1169 = vmatpush1.msra.mxu0 0.0
    %1170 = vmatprep.subr.mxu0 0.0
    %1171 = vmatpush1.msra.mxu0 0.0
    %1172 = vmatprep.subr.mxu0 0.0
    %1173 = vmatpush1.msra.mxu0 0.0
    %1174 = vmatprep.subr.mxu0 0.0
    %1175 = vmatpush1.msra.mxu0 0.0
    %1176 = vmatprep.subr.mxu0 0.0
    %1177 = vmatpush1.msra.mxu0 0.0
    %1178 = vmatprep.subr.mxu0 0.0
    %1179 = vmatpush1.msra.mxu0 0.0
    %1180 = vmatprep.subr.mxu0 0.0
    %1181 = vmatpush1.msra.mxu0 0.0
    %1182 = vmatprep.subr.mxu0 0.0
    %1183 = vmatpush1.msra.mxu0 0.0
    %1184 = vmatprep.subr.mxu0 0.0
    %1185 = vmatpush1.msra.mxu0 0.0
    %1186 = vmatprep.subr.mxu0 0.0
    %1187 = vmatpush1.msra.mxu0 0.0
    %1188 = vmatprep.subr.mxu0 0.0
    %1189 = vmatpush1.msra.mxu0 0.0
    %1190 = vmatprep.subr.mxu0 0.0
    %1191 = vmatpush1.msra.mxu0 0.0
    %1192 = vmatprep.mubr.f32.mxu0 0.0
    %1193 = vmatmul.mubr.f32.gmra.mrb[0].mxu0 %v655
    %v1194 = vpop.f32.mrb[0].mxu0
    %v1195 = vadd.f32 %v96, %v1194
    %v1196 = vpop.f32.mrb[0].mxu0
    %1197 = vmatprep.mubr.f32.mxu0 0.0
    %1198 = vmatmul.mubr.f32.gmra.mrb[0].mxu0 %v658
    %v1199 = vpop.f32.mrb[0].mxu0
    %v1200 = vadd.f32 %v101, %v1199
    %v1201 = vpop.f32.mrb[0].mxu0
    %1202 = vdwg.mxu0
    %v1203 = vmul.f32 %v883, 2.0
    %v1204 = vmul.f32 %v888, 2.0
    %v1205 = vadd.f32 %v727, %v1203
    %v1206 = vadd.f32 %v732, %v1204
    %v1207 = vmul.f32 %v1039, 2.0
    %v1208 = vmul.f32 %v1044, 2.0
    %v1209 = vadd.f32 %v1205, %v1207
    %v1210 = vadd.f32 %v1206, %v1208
    %v1211 = vadd.f32 %v1209, %v1195
    %v1212 = vadd.f32 %v1210, %v1200
    %v1213 = vmul.f32 %v1211, 0.020833334
    %v1214 = vmul.f32 %v1212, 0.020833334
    %v1215 = vadd.f32 %v421, %v1213
    %v1216 = vadd.f32 %v569, %v1214
    %1217 = vmatprep.subr.mxu0 0.0
    %1218 = vmatpush1.msra.mxu0 %v1215
    %1219 = vmatprep.subr.mxu0 0.0
    %1220 = vmatpush1.msra.mxu0 %v1216
    %1221 = vmatprep.subr.mxu0 0.0
    %1222 = vmatpush1.msra.mxu0 0.0
    %1223 = vmatprep.subr.mxu0 0.0
    %1224 = vmatpush1.msra.mxu0 0.0
    %1225 = vmatprep.subr.mxu0 0.0
    %1226 = vmatpush1.msra.mxu0 0.0
    %1227 = vmatprep.subr.mxu0 0.0
    %1228 = vmatpush1.msra.mxu0 0.0
    %1229 = vmatprep.subr.mxu0 0.0
    %1230 = vmatpush1.msra.mxu0 0.0
    %1231 = vmatprep.subr.mxu0 0.0
    %1232 = vmatpush1.msra.mxu0 0.0
    %1233 = vmatprep.subr.mxu0 0.0
    %1234 = vmatpush1.msra.mxu0 0.0
    %1235 = vmatprep.subr.mxu0 0.0
    %1236 = vmatpush1.msra.mxu0 0.0
    %1237 = vmatprep.subr.mxu0 0.0
    %1238 = vmatpush1.msra.mxu0 0.0
    %1239 = vmatprep.subr.mxu0 0.0
    %1240 = vmatpush1.msra.mxu0 0.0
    %1241 = vmatprep.subr.mxu0 0.0
    %1242 = vmatpush1.msra.mxu0 0.0
    %1243 = vmatprep.subr.mxu0 0.0
    %1244 = vmatpush1.msra.mxu0 0.0
    %1245 = vmatprep.subr.mxu0 0.0
    %1246 = vmatpush1.msra.mxu0 0.0
    %1247 = vmatprep.subr.mxu0 0.0
    %1248 = vmatpush1.msra.mxu0 0.0
    %1249 = vmatprep.subr.mxu0 0.0
    %1250 = vmatpush1.msra.mxu0 0.0
    %1251 = vmatprep.subr.mxu0 0.0
    %1252 = vmatpush1.msra.mxu0 0.0
    %1253 = vmatprep.subr.mxu0 0.0
    %1254 = vmatpush1.msra.mxu0 0.0
    %1255 = vmatprep.subr.mxu0 0.0
    %1256 = vmatpush1.msra.mxu0 0.0
    %1257 = vmatprep.subr.mxu0 0.0
    %1258 = vmatpush1.msra.mxu0 0.0
    %1259 = vmatprep.subr.mxu0 0.0
    %1260 = vmatpush1.msra.mxu0 0.0
    %1261 = vmatprep.subr.mxu0 0.0
    %1262 = vmatpush1.msra.mxu0 0.0
    %1263 = vmatprep.subr.mxu0 0.0
    %1264 = vmatpush1.msra.mxu0 0.0
    %1265 = vmatprep.subr.mxu0 0.0
    %1266 = vmatpush1.msra.mxu0 0.0
    %1267 = vmatprep.subr.mxu0 0.0
    %1268 = vmatpush1.msra.mxu0 0.0
    %1269 = vmatprep.subr.mxu0 0.0
    %1270 = vmatpush1.msra.mxu0 0.0
    %1271 = vmatprep.subr.mxu0 0.0
    %1272 = vmatpush1.msra.mxu0 0.0
    %1273 = vmatprep.subr.mxu0 0.0
    %1274 = vmatpush1.msra.mxu0 0.0
    %1275 = vmatprep.subr.mxu0 0.0
    %1276 = vmatpush1.msra.mxu0 0.0
    %1277 = vmatprep.subr.mxu0 0.0
    %1278 = vmatpush1.msra.mxu0 0.0
    %1279 = vmatprep.subr.mxu0 0.0
    %1280 = vmatpush1.msra.mxu0 0.0
    %1281 = vmatprep.mubr.f32.mxu0 0.0
    %1282 = vmatmul.mubr.f32.gmra.mrb[0].mxu0 %v572
    %v1283 = vpop.f32.mrb[0].mxu0
    %v1284 = vadd.f32 %v84, %v1283
    %v1285 = vpop.f32.mrb[0].mxu0
    %1286 = vmatprep.mubr.f32.mxu0 0.0
    %1287 = vmatmul.mubr.f32.gmra.mrb[0].mxu0 %v575
    %v1288 = vpop.f32.mrb[0].mxu0
    %v1289 = vadd.f32 %v89, %v1288
    %v1290 = vpop.f32.mrb[0].mxu0
    %1291 = vdwg.mxu0
    %v1292 = vtanh.pop %v1284
    %v1293 = vtanh.pop %v1289
    %1294 = vmatprep.subr.mxu0 0.0
    %1295 = vmatpush1.msra.mxu0 %v1292
    %1296 = vmatprep.subr.mxu0 0.0
    %1297 = vmatpush1.msra.mxu0 %v1293
    %1298 = vmatprep.subr.mxu0 0.0
    %1299 = vmatpush1.msra.mxu0 0.0
    %1300 = vmatprep.subr.mxu0 0.0
    %1301 = vmatpush1.msra.mxu0 0.0
    %1302 = vmatprep.subr.mxu0 0.0
    %1303 = vmatpush1.msra.mxu0 0.0
    %1304 = vmatprep.subr.mxu0 0.0
    %1305 = vmatpush1.msra.mxu0 0.0
    %1306 = vmatprep.subr.mxu0 0.0
    %1307 = vmatpush1.msra.mxu0 0.0
    %1308 = vmatprep.subr.mxu0 0.0
    %1309 = vmatpush1.msra.mxu0 0.0
    %1310 = vmatprep.subr.mxu0 0.0
    %1311 = vmatpush1.msra.mxu0 0.0
    %1312 = vmatprep.subr.mxu0 0.0
    %1313 = vmatpush1.msra.mxu0 0.0
    %1314 = vmatprep.subr.mxu0 0.0
    %1315 = vmatpush1.msra.mxu0 0.0
    %1316 = vmatprep.subr.mxu0 0.0
    %1317 = vmatpush1.msra.mxu0 0.0
    %1318 = vmatprep.subr.mxu0 0.0
    %1319 = vmatpush1.msra.mxu0 0.0
    %1320 = vmatprep.subr.mxu0 0.0
    %1321 = vmatpush1.msra.mxu0 0.0
    %1322 = vmatprep.subr.mxu0 0.0
    %1323 = vmatpush1.msra.mxu0 0.0
    %1324 = vmatprep.subr.mxu0 0.0
    %1325 = vmatpush1.msra.mxu0 0.0
    %1326 = vmatprep.subr.mxu0 0.0
    %1327 = vmatpush1.msra.mxu0 0.0
    %1328 = vmatprep.subr.mxu0 0.0
    %1329 = vmatpush1.msra.mxu0 0.0
    %1330 = vmatprep.subr.mxu0 0.0
    %1331 = vmatpush1.msra.mxu0 0.0
    %1332 = vmatprep.subr.mxu0 0.0
    %1333 = vmatpush1.msra.mxu0 0.0
    %1334 = vmatprep.subr.mxu0 0.0
    %1335 = vmatpush1.msra.mxu0 0.0
    %1336 = vmatprep.subr.mxu0 0.0
    %1337 = vmatpush1.msra.mxu0 0.0
    %1338 = vmatprep.subr.mxu0 0.0
    %1339 = vmatpush1.msra.mxu0 0.0
    %1340 = vmatprep.subr.mxu0 0.0
    %1341 = vmatpush1.msra.mxu0 0.0
    %1342 = vmatprep.subr.mxu0 0.0
    %1343 = vmatpush1.msra.mxu0 0.0
    %1344 = vmatprep.subr.mxu0 0.0
    %1345 = vmatpush1.msra.mxu0 0.0
    %1346 = vmatprep.subr.mxu0 0.0
    %1347 = vmatpush1.msra.mxu0 0.0
    %1348 = vmatprep.subr.mxu0 0.0
    %1349 = vmatpush1.msra.mxu0 0.0
    %1350 = vmatprep.subr.mxu0 0.0
    %1351 = vmatpush1.msra.mxu0 0.0
    %1352 = vmatprep.subr.mxu0 0.0
    %1353 = vmatpush1.msra.mxu0 0.0
    %1354 = vmatprep.subr.mxu0 0.0
    %1355 = vmatpush1.msra.mxu0 0.0
    %1356 = vmatprep.subr.mxu0 0.0
    %1357 = vmatpush1.msra.mxu0 0.0
    %1358 = vmatprep.mubr.f32.mxu0 0.0
    %1359 = vmatmul.mubr.f32.gmra.mrb[0].mxu0 %v655
    %v1360 = vpop.f32.mrb[0].mxu0
    %v1361 = vadd.f32 %v96, %v1360
    %v1362 = vpop.f32.mrb[0].mxu0
    %1363 = vmatprep.mubr.f32.mxu0 0.0
    %1364 = vmatmul.mubr.f32.gmra.mrb[0].mxu0 %v658
    %v1365 = vpop.f32.mrb[0].mxu0
    %v1366 = vadd.f32 %v101, %v1365
    %v1367 = vpop.f32.mrb[0].mxu0
    %1368 = vdwg.mxu0
    %v1369 = vmul.f32 %v1361, 0.0625
    %v1370 = vmul.f32 %v1366, 0.0625
    %v1371 = vadd.f32 %v1215, %v1369
    %v1372 = vadd.f32 %v1216, %v1370
    %1373 = vmatprep.subr.mxu0 0.0
    %1374 = vmatpush1.msra.mxu0 %v1371
    %1375 = vmatprep.subr.mxu0 0.0
    %1376 = vmatpush1.msra.mxu0 %v1372
    %1377 = vmatprep.subr.mxu0 0.0
    %1378 = vmatpush1.msra.mxu0 0.0
    %1379 = vmatprep.subr.mxu0 0.0
    %1380 = vmatpush1.msra.mxu0 0.0
    %1381 = vmatprep.subr.mxu0 0.0
    %1382 = vmatpush1.msra.mxu0 0.0
    %1383 = vmatprep.subr.mxu0 0.0
    %1384 = vmatpush1.msra.mxu0 0.0
    %1385 = vmatprep.subr.mxu0 0.0
    %1386 = vmatpush1.msra.mxu0 0.0
    %1387 = vmatprep.subr.mxu0 0.0
    %1388 = vmatpush1.msra.mxu0 0.0
    %1389 = vmatprep.subr.mxu0 0.0
    %1390 = vmatpush1.msra.mxu0 0.0
    %1391 = vmatprep.subr.mxu0 0.0
    %1392 = vmatpush1.msra.mxu0 0.0
    %1393 = vmatprep.subr.mxu0 0.0
    %1394 = vmatpush1.msra.mxu0 0.0
    %1395 = vmatprep.subr.mxu0 0.0
    %1396 = vmatpush1.msra.mxu0 0.0
    %1397 = vmatprep.subr.mxu0 0.0
    %1398 = vmatpush1.msra.mxu0 0.0
    %1399 = vmatprep.subr.mxu0 0.0
    %1400 = vmatpush1.msra.mxu0 0.0
    %1401 = vmatprep.subr.mxu0 0.0
    %1402 = vmatpush1.msra.mxu0 0.0
    %1403 = vmatprep.subr.mxu0 0.0
    %1404 = vmatpush1.msra.mxu0 0.0
    %1405 = vmatprep.subr.mxu0 0.0
    %1406 = vmatpush1.msra.mxu0 0.0
    %1407 = vmatprep.subr.mxu0 0.0
    %1408 = vmatpush1.msra.mxu0 0.0
    %1409 = vmatprep.subr.mxu0 0.0
    %1410 = vmatpush1.msra.mxu0 0.0
    %1411 = vmatprep.subr.mxu0 0.0
    %1412 = vmatpush1.msra.mxu0 0.0
    %1413 = vmatprep.subr.mxu0 0.0
    %1414 = vmatpush1.msra.mxu0 0.0
    %1415 = vmatprep.subr.mxu0 0.0
    %1416 = vmatpush1.msra.mxu0 0.0
    %1417 = vmatprep.subr.mxu0 0.0
    %1418 = vmatpush1.msra.mxu0 0.0
    %1419 = vmatprep.subr.mxu0 0.0
    %1420 = vmatpush1.msra.mxu0 0.0
    %1421 = vmatprep.subr.mxu0 0.0
    %1422 = vmatpush1.msra.mxu0 0.0
    %1423 = vmatprep.subr.mxu0 0.0
    %1424 = vmatpush1.msra.mxu0 0.0
    %1425 = vmatprep.subr.mxu0 0.0
    %1426 = vmatpush1.msra.mxu0 0.0
    %1427 = vmatprep.subr.mxu0 0.0
    %1428 = vmatpush1.msra.mxu0 0.0
    %1429 = vmatprep.subr.mxu0 0.0
    %1430 = vmatpush1.msra.mxu0 0.0
    %1431 = vmatprep.subr.mxu0 0.0
    %1432 = vmatpush1.msra.mxu0 0.0
    %1433 = vmatprep.subr.mxu0 0.0
    %1434 = vmatpush1.msra.mxu0 0.0
    %1435 = vmatprep.subr.mxu0 0.0
    %1436 = vmatpush1.msra.mxu0 0.0
    %1437 = vmatprep.mubr.f32.mxu0 0.0
    %1438 = vmatmul.mubr.f32.gmra.mrb[0].mxu0 %v572
    %v1439 = vpop.f32.mrb[0].mxu0
    %v1440 = vadd.f32 %v84, %v1439
    %v1441 = vpop.f32.mrb[0].mxu0
    %1442 = vmatprep.mubr.f32.mxu0 0.0
    %1443 = vmatmul.mubr.f32.gmra.mrb[0].mxu0 %v575
    %v1444 = vpop.f32.mrb[0].mxu0
    %v1445 = vadd.f32 %v89, %v1444
    %v1446 = vpop.f32.mrb[0].mxu0
    %1447 = vdwg.mxu0
    %v1448 = vtanh.pop %v1440
    %v1449 = vtanh.pop %v1445
    %1450 = vmatprep.subr.mxu0 0.0
    %1451 = vmatpush1.msra.mxu0 %v1448
    %1452 = vmatprep.subr.mxu0 0.0
    %1453 = vmatpush1.msra.mxu0 %v1449
    %1454 = vmatprep.subr.mxu0 0.0
    %1455 = vmatpush1.msra.mxu0 0.0
    %1456 = vmatprep.subr.mxu0 0.0
    %1457 = vmatpush1.msra.mxu0 0.0
    %1458 = vmatprep.subr.mxu0 0.0
    %1459 = vmatpush1.msra.mxu0 0.0
    %1460 = vmatprep.subr.mxu0 0.0
    %1461 = vmatpush1.msra.mxu0 0.0
    %1462 = vmatprep.subr.mxu0 0.0
    %1463 = vmatpush1.msra.mxu0 0.0
    %1464 = vmatprep.subr.mxu0 0.0
    %1465 = vmatpush1.msra.mxu0 0.0
    %1466 = vmatprep.subr.mxu0 0.0
    %1467 = vmatpush1.msra.mxu0 0.0
    %1468 = vmatprep.subr.mxu0 0.0
    %1469 = vmatpush1.msra.mxu0 0.0
    %1470 = vmatprep.subr.mxu0 0.0
    %1471 = vmatpush1.msra.mxu0 0.0
    %1472 = vmatprep.subr.mxu0 0.0
    %1473 = vmatpush1.msra.mxu0 0.0
    %1474 = vmatprep.subr.mxu0 0.0
    %1475 = vmatpush1.msra.mxu0 0.0
    %1476 = vmatprep.subr.mxu0 0.0
    %1477 = vmatpush1.msra.mxu0 0.0
    %1478 = vmatprep.subr.mxu0 0.0
    %1479 = vmatpush1.msra.mxu0 0.0
    %1480 = vmatprep.subr.mxu0 0.0
    %1481 = vmatpush1.msra.mxu0 0.0
    %1482 = vmatprep.subr.mxu0 0.0
    %1483 = vmatpush1.msra.mxu0 0.0
    %1484 = vmatprep.subr.mxu0 0.0
    %1485 = vmatpush1.msra.mxu0 0.0
    %1486 = vmatprep.subr.mxu0 0.0
    %1487 = vmatpush1.msra.mxu0 0.0
    %1488 = vmatprep.subr.mxu0 0.0
    %1489 = vmatpush1.msra.mxu0 0.0
    %1490 = vmatprep.subr.mxu0 0.0
    %1491 = vmatpush1.msra.mxu0 0.0
    %1492 = vmatprep.subr.mxu0 0.0
    %1493 = vmatpush1.msra.mxu0 0.0
    %1494 = vmatprep.subr.mxu0 0.0
    %1495 = vmatpush1.msra.mxu0 0.0
    %1496 = vmatprep.subr.mxu0 0.0
    %1497 = vmatpush1.msra.mxu0 0.0
    %1498 = vmatprep.subr.mxu0 0.0
    %1499 = vmatpush1.msra.mxu0 0.0
    %1500 = vmatprep.subr.mxu0 0.0
    %1501 = vmatpush1.msra.mxu0 0.0
    %1502 = vmatprep.subr.mxu0 0.0
    %1503 = vmatpush1.msra.mxu0 0.0
    %1504 = vmatprep.subr.mxu0 0.0
    %1505 = vmatpush1.msra.mxu0 0.0
    %1506 = vmatprep.subr.mxu0 0.0
    %1507 = vmatpush1.msra.mxu0 0.0
    %1508 = vmatprep.subr.mxu0 0.0
    %1509 = vmatpush1.msra.mxu0 0.0
    %1510 = vmatprep.subr.mxu0 0.0
    %1511 = vmatpush1.msra.mxu0 0.0
    %1512 = vmatprep.subr.mxu0 0.0
    %1513 = vmatpush1.msra.mxu0 0.0
    %1514 = vmatprep.mubr.f32.mxu0 0.0
    %1515 = vmatmul.mubr.f32.gmra.mrb[0].mxu0 %v655
    %v1516 = vpop.f32.mrb[0].mxu0
    %v1517 = vadd.f32 %v96, %v1516
    %v1518 = vpop.f32.mrb[0].mxu0
    %1519 = vmatprep.mubr.f32.mxu0 0.0
    %1520 = vmatmul.mubr.f32.gmra.mrb[0].mxu0 %v658
    %v1521 = vpop.f32.mrb[0].mxu0
    %v1522 = vadd.f32 %v101, %v1521
    %v1523 = vpop.f32.mrb[0].mxu0
    %1524 = vdwg.mxu0
    %v1525 = vmul.f32 %v1517, 0.0625
    %v1526 = vmul.f32 %v1522, 0.0625
    %v1527 = vadd.f32 %v1215, %v1525
    %v1528 = vadd.f32 %v1216, %v1526
    %1529 = vmatprep.subr.mxu0 0.0
    %1530 = vmatpush1.msra.mxu0 %v1527
    %1531 = vmatprep.subr.mxu0 0.0
    %1532 = vmatpush1.msra.mxu0 %v1528
    %1533 = vmatprep.subr.mxu0 0.0
    %1534 = vmatpush1.msra.mxu0 0.0
    %1535 = vmatprep.subr.mxu0 0.0
    %1536 = vmatpush1.msra.mxu0 0.0
    %1537 = vmatprep.subr.mxu0 0.0
    %1538 = vmatpush1.msra.mxu0 0.0
    %1539 = vmatprep.subr.mxu0 0.0
    %1540 = vmatpush1.msra.mxu0 0.0
    %1541 = vmatprep.subr.mxu0 0.0
    %1542 = vmatpush1.msra.mxu0 0.0
    %1543 = vmatprep.subr.mxu0 0.0
    %1544 = vmatpush1.msra.mxu0 0.0
    %1545 = vmatprep.subr.mxu0 0.0
    %1546 = vmatpush1.msra.mxu0 0.0
    %1547 = vmatprep.subr.mxu0 0.0
    %1548 = vmatpush1.msra.mxu0 0.0
    %1549 = vmatprep.subr.mxu0 0.0
    %1550 = vmatpush1.msra.mxu0 0.0
    %1551 = vmatprep.subr.mxu0 0.0
    %1552 = vmatpush1.msra.mxu0 0.0
    %1553 = vmatprep.subr.mxu0 0.0
    %1554 = vmatpush1.msra.mxu0 0.0
    %1555 = vmatprep.subr.mxu0 0.0
    %1556 = vmatpush1.msra.mxu0 0.0
    %1557 = vmatprep.subr.mxu0 0.0
    %1558 = vmatpush1.msra.mxu0 0.0
    %1559 = vmatprep.subr.mxu0 0.0
    %1560 = vmatpush1.msra.mxu0 0.0
    %1561 = vmatprep.subr.mxu0 0.0
    %1562 = vmatpush1.msra.mxu0 0.0
    %1563 = vmatprep.subr.mxu0 0.0
    %1564 = vmatpush1.msra.mxu0 0.0
    %1565 = vmatprep.subr.mxu0 0.0
    %1566 = vmatpush1.msra.mxu0 0.0
    %1567 = vmatprep.subr.mxu0 0.0
    %1568 = vmatpush1.msra.mxu0 0.0
    %1569 = vmatprep.subr.mxu0 0.0
    %1570 = vmatpush1.msra.mxu0 0.0
    %1571 = vmatprep.subr.mxu0 0.0
    %1572 = vmatpush1.msra.mxu0 0.0
    %1573 = vmatprep.subr.mxu0 0.0
    %1574 = vmatpush1.msra.mxu0 0.0
    %1575 = vmatprep.subr.mxu0 0.0
    %1576 = vmatpush1.msra.mxu0 0.0
    %1577 = vmatprep.subr.mxu0 0.0
    %1578 = vmatpush1.msra.mxu0 0.0
    %1579 = vmatprep.subr.mxu0 0.0
    %1580 = vmatpush1.msra.mxu0 0.0
    %1581 = vmatprep.subr.mxu0 0.0
    %1582 = vmatpush1.msra.mxu0 0.0
    %1583 = vmatprep.subr.mxu0 0.0
    %1584 = vmatpush1.msra.mxu0 0.0
    %1585 = vmatprep.subr.mxu0 0.0
    %1586 = vmatpush1.msra.mxu0 0.0
    %1587 = vmatprep.subr.mxu0 0.0
    %1588 = vmatpush1.msra.mxu0 0.0
    %1589 = vmatprep.subr.mxu0 0.0
    %1590 = vmatpush1.msra.mxu0 0.0
    %1591 = vmatprep.subr.mxu0 0.0
    %1592 = vmatpush1.msra.mxu0 0.0
    %1593 = vmatprep.mubr.f32.mxu0 0.0
    %1594 = vmatmul.mubr.f32.gmra.mrb[0].mxu0 %v572
    %v1595 = vpop.f32.mrb[0].mxu0
    %v1596 = vadd.f32 %v84, %v1595
    %v1597 = vpop.f32.mrb[0].mxu0
    %1598 = vmatprep.mubr.f32.mxu0 0.0
    %1599 = vmatmul.mubr.f32.gmra.mrb[0].mxu0 %v575
    %v1600 = vpop.f32.mrb[0].mxu0
    %v1601 = vadd.f32 %v89, %v1600
    %v1602 = vpop.f32.mrb[0].mxu0
    %1603 = vdwg.mxu0
    %v1604 = vtanh.pop %v1596
    %v1605 = vtanh.pop %v1601
    %1606 = vmatprep.subr.mxu0 0.0
    %1607 = vmatpush1.msra.mxu0 %v1604
    %1608 = vmatprep.subr.mxu0 0.0
    %1609 = vmatpush1.msra.mxu0 %v1605
    %1610 = vmatprep.subr.mxu0 0.0
    %1611 = vmatpush1.msra.mxu0 0.0
    %1612 = vmatprep.subr.mxu0 0.0
    %1613 = vmatpush1.msra.mxu0 0.0
    %1614 = vmatprep.subr.mxu0 0.0
    %1615 = vmatpush1.msra.mxu0 0.0
    %1616 = vmatprep.subr.mxu0 0.0
    %1617 = vmatpush1.msra.mxu0 0.0
    %1618 = vmatprep.subr.mxu0 0.0
    %1619 = vmatpush1.msra.mxu0 0.0
    %1620 = vmatprep.subr.mxu0 0.0
    %1621 = vmatpush1.msra.mxu0 0.0
    %1622 = vmatprep.subr.mxu0 0.0
    %1623 = vmatpush1.msra.mxu0 0.0
    %1624 = vmatprep.subr.mxu0 0.0
    %1625 = vmatpush1.msra.mxu0 0.0
    %1626 = vmatprep.subr.mxu0 0.0
    %1627 = vmatpush1.msra.mxu0 0.0
    %1628 = vmatprep.subr.mxu0 0.0
    %1629 = vmatpush1.msra.mxu0 0.0
    %1630 = vmatprep.subr.mxu0 0.0
    %1631 = vmatpush1.msra.mxu0 0.0
    %1632 = vmatprep.subr.mxu0 0.0
    %1633 = vmatpush1.msra.mxu0 0.0
    %1634 = vmatprep.subr.mxu0 0.0
    %1635 = vmatpush1.msra.mxu0 0.0
    %1636 = vmatprep.subr.mxu0 0.0
    %1637 = vmatpush1.msra.mxu0 0.0
    %1638 = vmatprep.subr.mxu0 0.0
    %1639 = vmatpush1.msra.mxu0 0.0
    %1640 = vmatprep.subr.mxu0 0.0
    %1641 = vmatpush1.msra.mxu0 0.0
    %1642 = vmatprep.subr.mxu0 0.0
    %1643 = vmatpush1.msra.mxu0 0.0
    %1644 = vmatprep.subr.mxu0 0.0
    %1645 = vmatpush1.msra.mxu0 0.0
    %1646 = vmatprep.subr.mxu0 0.0
    %1647 = vmatpush1.msra.mxu0 0.0
    %1648 = vmatprep.subr.mxu0 0.0
    %1649 = vmatpush1.msra.mxu0 0.0
    %1650 = vmatprep.subr.mxu0 0.0
    %1651 = vmatpush1.msra.mxu0 0.0
    %1652 = vmatprep.subr.mxu0 0.0
    %1653 = vmatpush1.msra.mxu0 0.0
    %1654 = vmatprep.subr.mxu0 0.0
    %1655 = vmatpush1.msra.mxu0 0.0
    %1656 = vmatprep.subr.mxu0 0.0
    %1657 = vmatpush1.msra.mxu0 0.0
    %1658 = vmatprep.subr.mxu0 0.0
    %1659 = vmatpush1.msra.mxu0 0.0
    %1660 = vmatprep.subr.mxu0 0.0
    %1661 = vmatpush1.msra.mxu0 0.0
    %1662 = vmatprep.subr.mxu0 0.0
    %1663 = vmatpush1.msra.mxu0 0.0
    %1664 = vmatprep.subr.mxu0 0.0
    %1665 = vmatpush1.msra.mxu0 0.0
    %1666 = vmatprep.subr.mxu0 0.0
    %1667 = vmatpush1.msra.mxu0 0.0
    %1668 = vmatprep.subr.mxu0 0.0
    %1669 = vmatpush1.msra.mxu0 0.0
    %1670 = vmatprep.mubr.f32.mxu0 0.0
    %1671 = vmatmul.mubr.f32.gmra.mrb[0].mxu0 %v655
    %v1672 = vpop.f32.mrb[0].mxu0
    %v1673 = vadd.f32 %v96, %v1672
    %v1674 = vpop.f32.mrb[0].mxu0
    %1675 = vmatprep.mubr.f32.mxu0 0.0
    %1676 = vmatmul.mubr.f32.gmra.mrb[0].mxu0 %v658
    %v1677 = vpop.f32.mrb[0].mxu0
    %v1678 = vadd.f32 %v101, %v1677
    %v1679 = vpop.f32.mrb[0].mxu0
    %1680 = vdwg.mxu0
    %v1681 = vmul.f32 %v1673, 0.125
    %v1682 = vmul.f32 %v1678, 0.125
    %v1683 = vadd.f32 %v1215, %v1681
    %v1684 = vadd.f32 %v1216, %v1682
    %1685 = vmatprep.subr.mxu0 0.0
    %1686 = vmatpush1.msra.mxu0 %v1683
    %1687 = vmatprep.subr.mxu0 0.0
    %1688 = vmatpush1.msra.mxu0 %v1684
    %1689 = vmatprep.subr.mxu0 0.0
    %1690 = vmatpush1.msra.mxu0 0.0
    %1691 = vmatprep.subr.mxu0 0.0
    %1692 = vmatpush1.msra.mxu0 0.0
    %1693 = vmatprep.subr.mxu0 0.0
    %1694 = vmatpush1.msra.mxu0 0.0
    %1695 = vmatprep.subr.mxu0 0.0
    %1696 = vmatpush1.msra.mxu0 0.0
    %1697 = vmatprep.subr.mxu0 0.0
    %1698 = vmatpush1.msra.mxu0 0.0
    %1699 = vmatprep.subr.mxu0 0.0
    %1700 = vmatpush1.msra.mxu0 0.0
    %1701 = vmatprep.subr.mxu0 0.0
    %1702 = vmatpush1.msra.mxu0 0.0
    %1703 = vmatprep.subr.mxu0 0.0
    %1704 = vmatpush1.msra.mxu0 0.0
    %1705 = vmatprep.subr.mxu0 0.0
    %1706 = vmatpush1.msra.mxu0 0.0
    %1707 = vmatprep.subr.mxu0 0.0
    %1708 = vmatpush1.msra.mxu0 0.0
    %1709 = vmatprep.subr.mxu0 0.0
    %1710 = vmatpush1.msra.mxu0 0.0
    %1711 = vmatprep.subr.mxu0 0.0
    %1712 = vmatpush1.msra.mxu0 0.0
    %1713 = vmatprep.subr.mxu0 0.0
    %1714 = vmatpush1.msra.mxu0 0.0
    %1715 = vmatprep.subr.mxu0 0.0
    %1716 = vmatpush1.msra.mxu0 0.0
    %1717 = vmatprep.subr.mxu0 0.0
    %1718 = vmatpush1.msra.mxu0 0.0
    %1719 = vmatprep.subr.mxu0 0.0
    %1720 = vmatpush1.msra.mxu0 0.0
    %1721 = vmatprep.subr.mxu0 0.0
    %1722 = vmatpush1.msra.mxu0 0.0
    %1723 = vmatprep.subr.mxu0 0.0
    %1724 = vmatpush1.msra.mxu0 0.0
    %1725 = vmatprep.subr.mxu0 0.0
    %1726 = vmatpush1.msra.mxu0 0.0
    %1727 = vmatprep.subr.mxu0 0.0
    %1728 = vmatpush1.msra.mxu0 0.0
    %1729 = vmatprep.subr.mxu0 0.0
    %1730 = vmatpush1.msra.mxu0 0.0
    %1731 = vmatprep.subr.mxu0 0.0
    %1732 = vmatpush1.msra.mxu0 0.0
    %1733 = vmatprep.subr.mxu0 0.0
    %1734 = vmatpush1.msra.mxu0 0.0
    %1735 = vmatprep.subr.mxu0 0.0
    %1736 = vmatpush1.msra.mxu0 0.0
    %1737 = vmatprep.subr.mxu0 0.0
    %1738 = vmatpush1.msra.mxu0 0.0
    %1739 = vmatprep.subr.mxu0 0.0
    %1740 = vmatpush1.msra.mxu0 0.0
    %1741 = vmatprep.subr.mxu0 0.0
    %1742 = vmatpush1.msra.mxu0 0.0
    %1743 = vmatprep.subr.mxu0 0.0
    %1744 = vmatpush1.msra.mxu0 0.0
    %1745 = vmatprep.subr.mxu0 0.0
    %1746 = vmatpush1.msra.mxu0 0.0
    %1747 = vmatprep.subr.mxu0 0.0
    %1748 = vmatpush1.msra.mxu0 0.0
    %1749 = vmatprep.mubr.f32.mxu0 0.0
    %1750 = vmatmul.mubr.f32.gmra.mrb[0].mxu0 %v572
    %v1751 = vpop.f32.mrb[0].mxu0
    %v1752 = vadd.f32 %v84, %v1751
    %v1753 = vpop.f32.mrb[0].mxu0
    %1754 = vmatprep.mubr.f32.mxu0 0.0
    %1755 = vmatmul.mubr.f32.gmra.mrb[0].mxu0 %v575
    %v1756 = vpop.f32.mrb[0].mxu0
    %v1757 = vadd.f32 %v89, %v1756
    %v1758 = vpop.f32.mrb[0].mxu0
    %1759 = vdwg.mxu0
    %v1760 = vtanh.pop %v1752
    %v1761 = vtanh.pop %v1757
    %1762 = vmatprep.subr.mxu0 0.0
    %1763 = vmatpush1.msra.mxu0 %v1760
    %1764 = vmatprep.subr.mxu0 0.0
    %1765 = vmatpush1.msra.mxu0 %v1761
    %1766 = vmatprep.subr.mxu0 0.0
    %1767 = vmatpush1.msra.mxu0 0.0
    %1768 = vmatprep.subr.mxu0 0.0
    %1769 = vmatpush1.msra.mxu0 0.0
    %1770 = vmatprep.subr.mxu0 0.0
    %1771 = vmatpush1.msra.mxu0 0.0
    %1772 = vmatprep.subr.mxu0 0.0
    %1773 = vmatpush1.msra.mxu0 0.0
    %1774 = vmatprep.subr.mxu0 0.0
    %1775 = vmatpush1.msra.mxu0 0.0
    %1776 = vmatprep.subr.mxu0 0.0
    %1777 = vmatpush1.msra.mxu0 0.0
    %1778 = vmatprep.subr.mxu0 0.0
    %1779 = vmatpush1.msra.mxu0 0.0
    %1780 = vmatprep.subr.mxu0 0.0
    %1781 = vmatpush1.msra.mxu0 0.0
    %1782 = vmatprep.subr.mxu0 0.0
    %1783 = vmatpush1.msra.mxu0 0.0
    %1784 = vmatprep.subr.mxu0 0.0
    %1785 = vmatpush1.msra.mxu0 0.0
    %1786 = vmatprep.subr.mxu0 0.0
    %1787 = vmatpush1.msra.mxu0 0.0
    %1788 = vmatprep.subr.mxu0 0.0
    %1789 = vmatpush1.msra.mxu0 0.0
    %1790 = vmatprep.subr.mxu0 0.0
    %1791 = vmatpush1.msra.mxu0 0.0
    %1792 = vmatprep.subr.mxu0 0.0
    %1793 = vmatpush1.msra.mxu0 0.0
    %1794 = vmatprep.subr.mxu0 0.0
    %1795 = vmatpush1.msra.mxu0 0.0
    %1796 = vmatprep.subr.mxu0 0.0
    %1797 = vmatpush1.msra.mxu0 0.0
    %1798 = vmatprep.subr.mxu0 0.0
    %1799 = vmatpush1.msra.mxu0 0.0
    %1800 = vmatprep.subr.mxu0 0.0
    %1801 = vmatpush1.msra.mxu0 0.0
    %1802 = vmatprep.subr.mxu0 0.0
    %1803 = vmatpush1.msra.mxu0 0.0
    %1804 = vmatprep.subr.mxu0 0.0
    %1805 = vmatpush1.msra.mxu0 0.0
    %1806 = vmatprep.subr.mxu0 0.0
    %1807 = vmatpush1.msra.mxu0 0.0
    %1808 = vmatprep.subr.mxu0 0.0
    %1809 = vmatpush1.msra.mxu0 0.0
    %1810 = vmatprep.subr.mxu0 0.0
    %1811 = vmatpush1.msra.mxu0 0.0
    %1812 = vmatprep.subr.mxu0 0.0
    %1813 = vmatpush1.msra.mxu0 0.0
    %1814 = vmatprep.subr.mxu0 0.0
    %1815 = vmatpush1.msra.mxu0 0.0
    %1816 = vmatprep.subr.mxu0 0.0
    %1817 = vmatpush1.msra.mxu0 0.0
    %1818 = vmatprep.subr.mxu0 0.0
    %1819 = vmatpush1.msra.mxu0 0.0
    %1820 = vmatprep.subr.mxu0 0.0
    %1821 = vmatpush1.msra.mxu0 0.0
    %1822 = vmatprep.subr.mxu0 0.0
    %1823 = vmatpush1.msra.mxu0 0.0
    %1824 = vmatprep.subr.mxu0 0.0
    %1825 = vmatpush1.msra.mxu0 0.0
    %1826 = vmatprep.mubr.f32.mxu0 0.0
    %1827 = vmatmul.mubr.f32.gmra.mrb[0].mxu0 %v655
    %v1828 = vpop.f32.mrb[0].mxu0
    %v1829 = vadd.f32 %v96, %v1828
    %v1830 = vpop.f32.mrb[0].mxu0
    %1831 = vmatprep.mubr.f32.mxu0 0.0
    %1832 = vmatmul.mubr.f32.gmra.mrb[0].mxu0 %v658
    %v1833 = vpop.f32.mrb[0].mxu0
    %v1834 = vadd.f32 %v101, %v1833
    %v1835 = vpop.f32.mrb[0].mxu0
    %1836 = vdwg.mxu0
    %v1837 = vmul.f32 %v1517, 2.0
    %v1838 = vmul.f32 %v1522, 2.0
    %v1839 = vadd.f32 %v1361, %v1837
    %v1840 = vadd.f32 %v1366, %v1838
    %v1841 = vmul.f32 %v1673, 2.0
    %v1842 = vmul.f32 %v1678, 2.0
    %v1843 = vadd.f32 %v1839, %v1841
    %v1844 = vadd.f32 %v1840, %v1842
    %v1845 = vadd.f32 %v1843, %v1829
    %v1846 = vadd.f32 %v1844, %v1834
    %v1847 = vmul.f32 %v1845, 0.020833334
    %v1848 = vmul.f32 %v1846, 0.020833334
    %v1849 = vadd.f32 %v1215, %v1847
    %v1850 = vadd.f32 %v1216, %v1848
    %1851 = vmatprep.subr.mxu0 0.0
    %1852 = vmatpush1.msra.mxu0 %v1849
    %1853 = vmatprep.subr.mxu0 0.0
    %1854 = vmatpush1.msra.mxu0 %v1850
    %1855 = vmatprep.subr.mxu0 0.0
    %1856 = vmatpush1.msra.mxu0 0.0
    %1857 = vmatprep.subr.mxu0 0.0
    %1858 = vmatpush1.msra.mxu0 0.0
    %1859 = vmatprep.subr.mxu0 0.0
    %1860 = vmatpush1.msra.mxu0 0.0
    %1861 = vmatprep.subr.mxu0 0.0
    %1862 = vmatpush1.msra.mxu0 0.0
    %1863 = vmatprep.subr.mxu0 0.0
    %1864 = vmatpush1.msra.mxu0 0.0
    %1865 = vmatprep.subr.mxu0 0.0
    %1866 = vmatpush1.msra.mxu0 0.0
    %1867 = vmatprep.subr.mxu0 0.0
    %1868 = vmatpush1.msra.mxu0 0.0
    %1869 = vmatprep.subr.mxu0 0.0
    %1870 = vmatpush1.msra.mxu0 0.0
    %1871 = vmatprep.subr.mxu0 0.0
    %1872 = vmatpush1.msra.mxu0 0.0
    %1873 = vmatprep.subr.mxu0 0.0
    %1874 = vmatpush1.msra.mxu0 0.0
    %1875 = vmatprep.subr.mxu0 0.0
    %1876 = vmatpush1.msra.mxu0 0.0
    %1877 = vmatprep.subr.mxu0 0.0
    %1878 = vmatpush1.msra.mxu0 0.0
    %1879 = vmatprep.subr.mxu0 0.0
    %1880 = vmatpush1.msra.mxu0 0.0
    %1881 = vmatprep.subr.mxu0 0.0
    %1882 = vmatpush1.msra.mxu0 0.0
    %1883 = vmatprep.subr.mxu0 0.0
    %1884 = vmatpush1.msra.mxu0 0.0
    %1885 = vmatprep.subr.mxu0 0.0
    %1886 = vmatpush1.msra.mxu0 0.0
    %1887 = vmatprep.subr.mxu0 0.0
    %1888 = vmatpush1.msra.mxu0 0.0
    %1889 = vmatprep.subr.mxu0 0.0
    %1890 = vmatpush1.msra.mxu0 0.0
    %1891 = vmatprep.subr.mxu0 0.0
    %1892 = vmatpush1.msra.mxu0 0.0
    %1893 = vmatprep.subr.mxu0 0.0
    %1894 = vmatpush1.msra.mxu0 0.0
    %1895 = vmatprep.subr.mxu0 0.0
    %1896 = vmatpush1.msra.mxu0 0.0
    %1897 = vmatprep.subr.mxu0 0.0
    %1898 = vmatpush1.msra.mxu0 0.0
    %1899 = vmatprep.subr.mxu0 0.0
    %1900 = vmatpush1.msra.mxu0 0.0
    %1901 = vmatprep.subr.mxu0 0.0
    %1902 = vmatpush1.msra.mxu0 0.0
    %1903 = vmatprep.subr.mxu0 0.0
    %1904 = vmatpush1.msra.mxu0 0.0
    %1905 = vmatprep.subr.mxu0 0.0
    %1906 = vmatpush1.msra.mxu0 0.0
    %1907 = vmatprep.subr.mxu0 0.0
    %1908 = vmatpush1.msra.mxu0 0.0
    %1909 = vmatprep.subr.mxu0 0.0
    %1910 = vmatpush1.msra.mxu0 0.0
    %1911 = vmatprep.subr.mxu0 0.0
    %1912 = vmatpush1.msra.mxu0 0.0
    %1913 = vmatprep.subr.mxu0 0.0
    %1914 = vmatpush1.msra.mxu0 0.0
    %1915 = vmatprep.mubr.f32.mxu0 0.0
    %1916 = vmatmul.mubr.f32.gmra.mrb[0].mxu0 %v572
    %v1917 = vpop.f32.mrb[0].mxu0
    %v1918 = vadd.f32 %v84, %v1917
    %v1919 = vpop.f32.mrb[0].mxu0
    %1920 = vmatprep.mubr.f32.mxu0 0.0
    %1921 = vmatmul.mubr.f32.gmra.mrb[0].mxu0 %v575
    %v1922 = vpop.f32.mrb[0].mxu0
    %v1923 = vadd.f32 %v89, %v1922
    %v1924 = vpop.f32.mrb[0].mxu0
    %1925 = vdwg.mxu0
    %v1926 = vtanh.pop %v1918
    %v1927 = vtanh.pop %v1923
    %1928 = vmatprep.subr.mxu0 0.0
    %1929 = vmatpush1.msra.mxu0 %v1926
    %1930 = vmatprep.subr.mxu0 0.0
    %1931 = vmatpush1.msra.mxu0 %v1927
    %1932 = vmatprep.subr.mxu0 0.0
    %1933 = vmatpush1.msra.mxu0 0.0
    %1934 = vmatprep.subr.mxu0 0.0
    %1935 = vmatpush1.msra.mxu0 0.0
    %1936 = vmatprep.subr.mxu0 0.0
    %1937 = vmatpush1.msra.mxu0 0.0
    %1938 = vmatprep.subr.mxu0 0.0
    %1939 = vmatpush1.msra.mxu0 0.0
    %1940 = vmatprep.subr.mxu0 0.0
    %1941 = vmatpush1.msra.mxu0 0.0
    %1942 = vmatprep.subr.mxu0 0.0
    %1943 = vmatpush1.msra.mxu0 0.0
    %1944 = vmatprep.subr.mxu0 0.0
    %1945 = vmatpush1.msra.mxu0 0.0
    %1946 = vmatprep.subr.mxu0 0.0
    %1947 = vmatpush1.msra.mxu0 0.0
    %1948 = vmatprep.subr.mxu0 0.0
    %1949 = vmatpush1.msra.mxu0 0.0
    %1950 = vmatprep.subr.mxu0 0.0
    %1951 = vmatpush1.msra.mxu0 0.0
    %1952 = vmatprep.subr.mxu0 0.0
    %1953 = vmatpush1.msra.mxu0 0.0
    %1954 = vmatprep.subr.mxu0 0.0
    %1955 = vmatpush1.msra.mxu0 0.0
    %1956 = vmatprep.subr.mxu0 0.0
    %1957 = vmatpush1.msra.mxu0 0.0
    %1958 = vmatprep.subr.mxu0 0.0
    %1959 = vmatpush1.msra.mxu0 0.0
    %1960 = vmatprep.subr.mxu0 0.0
    %1961 = vmatpush1.msra.mxu0 0.0
    %1962 = vmatprep.subr.mxu0 0.0
    %1963 = vmatpush1.msra.mxu0 0.0
    %1964 = vmatprep.subr.mxu0 0.0
    %1965 = vmatpush1.msra.mxu0 0.0
    %1966 = vmatprep.subr.mxu0 0.0
    %1967 = vmatpush1.msra.mxu0 0.0
    %1968 = vmatprep.subr.mxu0 0.0
    %1969 = vmatpush1.msra.mxu0 0.0
    %1970 = vmatprep.subr.mxu0 0.0
    %1971 = vmatpush1.msra.mxu0 0.0
    %1972 = vmatprep.subr.mxu0 0.0
    %1973 = vmatpush1.msra.mxu0 0.0
    %1974 = vmatprep.subr.mxu0 0.0
    %1975 = vmatpush1.msra.mxu0 0.0
    %1976 = vmatprep.subr.mxu0 0.0
    %1977 = vmatpush1.msra.mxu0 0.0
    %1978 = vmatprep.subr.mxu0 0.0
    %1979 = vmatpush1.msra.mxu0 0.0
    %1980 = vmatprep.subr.mxu0 0.0
    %1981 = vmatpush1.msra.mxu0 0.0
    %1982 = vmatprep.subr.mxu0 0.0
    %1983 = vmatpush1.msra.mxu0 0.0
    %1984 = vmatprep.subr.mxu0 0.0
    %1985 = vmatpush1.msra.mxu0 0.0
    %1986 = vmatprep.subr.mxu0 0.0
    %1987 = vmatpush1.msra.mxu0 0.0
    %1988 = vmatprep.subr.mxu0 0.0
    %1989 = vmatpush1.msra.mxu0 0.0
    %1990 = vmatprep.subr.mxu0 0.0
    %1991 = vmatpush1.msra.mxu0 0.0
    %1992 = vmatprep.mubr.f32.mxu0 0.0
    %1993 = vmatmul.mubr.f32.gmra.mrb[0].mxu0 %v655
    %v1994 = vpop.f32.mrb[0].mxu0
    %v1995 = vadd.f32 %v96, %v1994
    %v1996 = vpop.f32.mrb[0].mxu0
    %1997 = vmatprep.mubr.f32.mxu0 0.0
    %1998 = vmatmul.mubr.f32.gmra.mrb[0].mxu0 %v658
    %v1999 = vpop.f32.mrb[0].mxu0
    %v2000 = vadd.f32 %v101, %v1999
    %v2001 = vpop.f32.mrb[0].mxu0
    %2002 = vdwg.mxu0
    %v2003 = vmul.f32 %v1995, 0.0625
    %v2004 = vmul.f32 %v2000, 0.0625
    %v2005 = vadd.f32 %v1849, %v2003
    %v2006 = vadd.f32 %v1850, %v2004
    %2007 = vmatprep.subr.mxu0 0.0
    %2008 = vmatpush1.msra.mxu0 %v2005
    %2009 = vmatprep.subr.mxu0 0.0
    %2010 = vmatpush1.msra.mxu0 %v2006
    %2011 = vmatprep.subr.mxu0 0.0
    %2012 = vmatpush1.msra.mxu0 0.0
    %2013 = vmatprep.subr.mxu0 0.0
    %2014 = vmatpush1.msra.mxu0 0.0
    %2015 = vmatprep.subr.mxu0 0.0
    %2016 = vmatpush1.msra.mxu0 0.0
    %2017 = vmatprep.subr.mxu0 0.0
    %2018 = vmatpush1.msra.mxu0 0.0
    %2019 = vmatprep.subr.mxu0 0.0
    %2020 = vmatpush1.msra.mxu0 0.0
    %2021 = vmatprep.subr.mxu0 0.0
    %2022 = vmatpush1.msra.mxu0 0.0
    %2023 = vmatprep.subr.mxu0 0.0
    %2024 = vmatpush1.msra.mxu0 0.0
    %2025 = vmatprep.subr.mxu0 0.0
    %2026 = vmatpush1.msra.mxu0 0.0
    %2027 = vmatprep.subr.mxu0 0.0
    %2028 = vmatpush1.msra.mxu0 0.0
    %2029 = vmatprep.subr.mxu0 0.0
    %2030 = vmatpush1.msra.mxu0 0.0
    %2031 = vmatprep.subr.mxu0 0.0
    %2032 = vmatpush1.msra.mxu0 0.0
    %2033 = vmatprep.subr.mxu0 0.0
    %2034 = vmatpush1.msra.mxu0 0.0
    %2035 = vmatprep.subr.mxu0 0.0
    %2036 = vmatpush1.msra.mxu0 0.0
    %2037 = vmatprep.subr.mxu0 0.0
    %2038 = vmatpush1.msra.mxu0 0.0
    %2039 = vmatprep.subr.mxu0 0.0
    %2040 = vmatpush1.msra.mxu0 0.0
    %2041 = vmatprep.subr.mxu0 0.0
    %2042 = vmatpush1.msra.mxu0 0.0
    %2043 = vmatprep.subr.mxu0 0.0
    %2044 = vmatpush1.msra.mxu0 0.0
    %2045 = vmatprep.subr.mxu0 0.0
    %2046 = vmatpush1.msra.mxu0 0.0
    %2047 = vmatprep.subr.mxu0 0.0
    %2048 = vmatpush1.msra.mxu0 0.0
    %2049 = vmatprep.subr.mxu0 0.0
    %2050 = vmatpush1.msra.mxu0 0.0
    %2051 = vmatprep.subr.mxu0 0.0
    %2052 = vmatpush1.msra.mxu0 0.0
    %2053 = vmatprep.subr.mxu0 0.0
    %2054 = vmatpush1.msra.mxu0 0.0
    %2055 = vmatprep.subr.mxu0 0.0
    %2056 = vmatpush1.msra.mxu0 0.0
    %2057 = vmatprep.subr.mxu0 0.0
    %2058 = vmatpush1.msra.mxu0 0.0
    %2059 = vmatprep.subr.mxu0 0.0
    %2060 = vmatpush1.msra.mxu0 0.0
    %2061 = vmatprep.subr.mxu0 0.0
    %2062 = vmatpush1.msra.mxu0 0.0
    %2063 = vmatprep.subr.mxu0 0.0
    %2064 = vmatpush1.msra.mxu0 0.0
    %2065 = vmatprep.subr.mxu0 0.0
    %2066 = vmatpush1.msra.mxu0 0.0
    %2067 = vmatprep.subr.mxu0 0.0
    %2068 = vmatpush1.msra.mxu0 0.0
    %2069 = vmatprep.subr.mxu0 0.0
    %2070 = vmatpush1.msra.mxu0 0.0
    %2071 = vmatprep.mubr.f32.mxu0 0.0
    %2072 = vmatmul.mubr.f32.gmra.mrb[0].mxu0 %v572
    %v2073 = vpop.f32.mrb[0].mxu0
    %v2074 = vadd.f32 %v84, %v2073
    %v2075 = vpop.f32.mrb[0].mxu0
    %2076 = vmatprep.mubr.f32.mxu0 0.0
    %2077 = vmatmul.mubr.f32.gmra.mrb[0].mxu0 %v575
    %v2078 = vpop.f32.mrb[0].mxu0
    %v2079 = vadd.f32 %v89, %v2078
    %v2080 = vpop.f32.mrb[0].mxu0
    %2081 = vdwg.mxu0
    %v2082 = vtanh.pop %v2074
    %v2083 = vtanh.pop %v2079
    %2084 = vmatprep.subr.mxu0 0.0
    %2085 = vmatpush1.msra.mxu0 %v2082
    %2086 = vmatprep.subr.mxu0 0.0
    %2087 = vmatpush1.msra.mxu0 %v2083
    %2088 = vmatprep.subr.mxu0 0.0
    %2089 = vmatpush1.msra.mxu0 0.0
    %2090 = vmatprep.subr.mxu0 0.0
    %2091 = vmatpush1.msra.mxu0 0.0
    %2092 = vmatprep.subr.mxu0 0.0
    %2093 = vmatpush1.msra.mxu0 0.0
    %2094 = vmatprep.subr.mxu0 0.0
    %2095 = vmatpush1.msra.mxu0 0.0
    %2096 = vmatprep.subr.mxu0 0.0
    %2097 = vmatpush1.msra.mxu0 0.0
    %2098 = vmatprep.subr.mxu0 0.0
    %2099 = vmatpush1.msra.mxu0 0.0
    %2100 = vmatprep.subr.mxu0 0.0
    %2101 = vmatpush1.msra.mxu0 0.0
    %2102 = vmatprep.subr.mxu0 0.0
    %2103 = vmatpush1.msra.mxu0 0.0
    %2104 = vmatprep.subr.mxu0 0.0
    %2105 = vmatpush1.msra.mxu0 0.0
    %2106 = vmatprep.subr.mxu0 0.0
    %2107 = vmatpush1.msra.mxu0 0.0
    %2108 = vmatprep.subr.mxu0 0.0
    %2109 = vmatpush1.msra.mxu0 0.0
    %2110 = vmatprep.subr.mxu0 0.0
    %2111 = vmatpush1.msra.mxu0 0.0
    %2112 = vmatprep.subr.mxu0 0.0
    %2113 = vmatpush1.msra.mxu0 0.0
    %2114 = vmatprep.subr.mxu0 0.0
    %2115 = vmatpush1.msra.mxu0 0.0
    %2116 = vmatprep.subr.mxu0 0.0
    %2117 = vmatpush1.msra.mxu0 0.0
    %2118 = vmatprep.subr.mxu0 0.0
    %2119 = vmatpush1.msra.mxu0 0.0
    %2120 = vmatprep.subr.mxu0 0.0
    %2121 = vmatpush1.msra.mxu0 0.0
    %2122 = vmatprep.subr.mxu0 0.0
    %2123 = vmatpush1.msra.mxu0 0.0
    %2124 = vmatprep.subr.mxu0 0.0
    %2125 = vmatpush1.msra.mxu0 0.0
    %2126 = vmatprep.subr.mxu0 0.0
    %2127 = vmatpush1.msra.mxu0 0.0
    %2128 = vmatprep.subr.mxu0 0.0
    %2129 = vmatpush1.msra.mxu0 0.0
    %2130 = vmatprep.subr.mxu0 0.0
    %2131 = vmatpush1.msra.mxu0 0.0
    %2132 = vmatprep.subr.mxu0 0.0
    %2133 = vmatpush1.msra.mxu0 0.0
    %2134 = vmatprep.subr.mxu0 0.0
    %2135 = vmatpush1.msra.mxu0 0.0
    %2136 = vmatprep.subr.mxu0 0.0
    %2137 = vmatpush1.msra.mxu0 0.0
    %2138 = vmatprep.subr.mxu0 0.0
    %2139 = vmatpush1.msra.mxu0 0.0
    %2140 = vmatprep.subr.mxu0 0.0
    %2141 = vmatpush1.msra.mxu0 0.0
    %2142 = vmatprep.subr.mxu0 0.0
    %2143 = vmatpush1.msra.mxu0 0.0
    %2144 = vmatprep.subr.mxu0 0.0
    %2145 = vmatpush1.msra.mxu0 0.0
    %2146 = vmatprep.subr.mxu0 0.0
    %2147 = vmatpush1.msra.mxu0 0.0
    %2148 = vmatprep.mubr.f32.mxu0 0.0
    %2149 = vmatmul.mubr.f32.gmra.mrb[0].mxu0 %v655
    %v2150 = vpop.f32.mrb[0].mxu0
    %v2151 = vadd.f32 %v96, %v2150
    %v2152 = vpop.f32.mrb[0].mxu0
    %2153 = vmatprep.mubr.f32.mxu0 0.0
    %2154 = vmatmul.mubr.f32.gmra.mrb[0].mxu0 %v658
    %v2155 = vpop.f32.mrb[0].mxu0
    %v2156 = vadd.f32 %v101, %v2155
    %v2157 = vpop.f32.mrb[0].mxu0
    %2158 = vdwg.mxu0
    %v2159 = vmul.f32 %v2151, 0.0625
    %v2160 = vmul.f32 %v2156, 0.0625
    %v2161 = vadd.f32 %v1849, %v2159
    %v2162 = vadd.f32 %v1850, %v2160
    %2163 = vmatprep.subr.mxu0 0.0
    %2164 = vmatpush1.msra.mxu0 %v2161
    %2165 = vmatprep.subr.mxu0 0.0
    %2166 = vmatpush1.msra.mxu0 %v2162
    %2167 = vmatprep.subr.mxu0 0.0
    %2168 = vmatpush1.msra.mxu0 0.0
    %2169 = vmatprep.subr.mxu0 0.0
    %2170 = vmatpush1.msra.mxu0 0.0
    %2171 = vmatprep.subr.mxu0 0.0
    %2172 = vmatpush1.msra.mxu0 0.0
    %2173 = vmatprep.subr.mxu0 0.0
    %2174 = vmatpush1.msra.mxu0 0.0
    %2175 = vmatprep.subr.mxu0 0.0
    %2176 = vmatpush1.msra.mxu0 0.0
    %2177 = vmatprep.subr.mxu0 0.0
    %2178 = vmatpush1.msra.mxu0 0.0
    %2179 = vmatprep.subr.mxu0 0.0
    %2180 = vmatpush1.msra.mxu0 0.0
    %2181 = vmatprep.subr.mxu0 0.0
    %2182 = vmatpush1.msra.mxu0 0.0
    %2183 = vmatprep.subr.mxu0 0.0
    %2184 = vmatpush1.msra.mxu0 0.0
    %2185 = vmatprep.subr.mxu0 0.0
    %2186 = vmatpush1.msra.mxu0 0.0
    %2187 = vmatprep.subr.mxu0 0.0
    %2188 = vmatpush1.msra.mxu0 0.0
    %2189 = vmatprep.subr.mxu0 0.0
    %2190 = vmatpush1.msra.mxu0 0.0
    %2191 = vmatprep.subr.mxu0 0.0
    %2192 = vmatpush1.msra.mxu0 0.0
    %2193 = vmatprep.subr.mxu0 0.0
    %2194 = vmatpush1.msra.mxu0 0.0
    %2195 = vmatprep.subr.mxu0 0.0
    %2196 = vmatpush1.msra.mxu0 0.0
    %2197 = vmatprep.subr.mxu0 0.0
    %2198 = vmatpush1.msra.mxu0 0.0
    %2199 = vmatprep.subr.mxu0 0.0
    %2200 = vmatpush1.msra.mxu0 0.0
    %2201 = vmatprep.subr.mxu0 0.0
    %2202 = vmatpush1.msra.mxu0 0.0
    %2203 = vmatprep.subr.mxu0 0.0
    %2204 = vmatpush1.msra.mxu0 0.0
    %2205 = vmatprep.subr.mxu0 0.0
    %2206 = vmatpush1.msra.mxu0 0.0
    %2207 = vmatprep.subr.mxu0 0.0
    %2208 = vmatpush1.msra.mxu0 0.0
    %2209 = vmatprep.subr.mxu0 0.0
    %2210 = vmatpush1.msra.mxu0 0.0
    %2211 = vmatprep.subr.mxu0 0.0
    %2212 = vmatpush1.msra.mxu0 0.0
    %2213 = vmatprep.subr.mxu0 0.0
    %2214 = vmatpush1.msra.mxu0 0.0
    %2215 = vmatprep.subr.mxu0 0.0
    %2216 = vmatpush1.msra.mxu0 0.0
    %2217 = vmatprep.subr.mxu0 0.0
    %2218 = vmatpush1.msra.mxu0 0.0
    %2219 = vmatprep.subr.mxu0 0.0
    %2220 = vmatpush1.msra.mxu0 0.0
    %2221 = vmatprep.subr.mxu0 0.0
    %2222 = vmatpush1.msra.mxu0 0.0
    %2223 = vmatprep.subr.mxu0 0.0
    %2224 = vmatpush1.msra.mxu0 0.0
    %2225 = vmatprep.subr.mxu0 0.0
    %2226 = vmatpush1.msra.mxu0 0.0
    %2227 = vmatprep.mubr.f32.mxu0 0.0
    %2228 = vmatmul.mubr.f32.gmra.mrb[0].mxu0 %v572
    %v2229 = vpop.f32.mrb[0].mxu0
    %v2230 = vadd.f32 %v84, %v2229
    %v2231 = vpop.f32.mrb[0].mxu0
    %2232 = vmatprep.mubr.f32.mxu0 0.0
    %2233 = vmatmul.mubr.f32.gmra.mrb[0].mxu0 %v575
    %v2234 = vpop.f32.mrb[0].mxu0
    %v2235 = vadd.f32 %v89, %v2234
    %v2236 = vpop.f32.mrb[0].mxu0
    %2237 = vdwg.mxu0
    %v2238 = vtanh.pop %v2230
    %v2239 = vtanh.pop %v2235
    %2240 = vmatprep.subr.mxu0 0.0
    %2241 = vmatpush1.msra.mxu0 %v2238
    %2242 = vmatprep.subr.mxu0 0.0
    %2243 = vmatpush1.msra.mxu0 %v2239
    %2244 = vmatprep.subr.mxu0 0.0
    %2245 = vmatpush1.msra.mxu0 0.0
    %2246 = vmatprep.subr.mxu0 0.0
    %2247 = vmatpush1.msra.mxu0 0.0
    %2248 = vmatprep.subr.mxu0 0.0
    %2249 = vmatpush1.msra.mxu0 0.0
    %2250 = vmatprep.subr.mxu0 0.0
    %2251 = vmatpush1.msra.mxu0 0.0
    %2252 = vmatprep.subr.mxu0 0.0
    %2253 = vmatpush1.msra.mxu0 0.0
    %2254 = vmatprep.subr.mxu0 0.0
    %2255 = vmatpush1.msra.mxu0 0.0
    %2256 = vmatprep.subr.mxu0 0.0
    %2257 = vmatpush1.msra.mxu0 0.0
    %2258 = vmatprep.subr.mxu0 0.0
    %2259 = vmatpush1.msra.mxu0 0.0
    %2260 = vmatprep.subr.mxu0 0.0
    %2261 = vmatpush1.msra.mxu0 0.0
    %2262 = vmatprep.subr.mxu0 0.0
    %2263 = vmatpush1.msra.mxu0 0.0
    %2264 = vmatprep.subr.mxu0 0.0
    %2265 = vmatpush1.msra.mxu0 0.0
    %2266 = vmatprep.subr.mxu0 0.0
    %2267 = vmatpush1.msra.mxu0 0.0
    %2268 = vmatprep.subr.mxu0 0.0
    %2269 = vmatpush1.msra.mxu0 0.0
    %2270 = vmatprep.subr.mxu0 0.0
    %2271 = vmatpush1.msra.mxu0 0.0
    %2272 = vmatprep.subr.mxu0 0.0
    %2273 = vmatpush1.msra.mxu0 0.0
    %2274 = vmatprep.subr.mxu0 0.0
    %2275 = vmatpush1.msra.mxu0 0.0
    %2276 = vmatprep.subr.mxu0 0.0
    %2277 = vmatpush1.msra.mxu0 0.0
    %2278 = vmatprep.subr.mxu0 0.0
    %2279 = vmatpush1.msra.mxu0 0.0
    %2280 = vmatprep.subr.mxu0 0.0
    %2281 = vmatpush1.msra.mxu0 0.0
    %2282 = vmatprep.subr.mxu0 0.0
    %2283 = vmatpush1.msra.mxu0 0.0
    %2284 = vmatprep.subr.mxu0 0.0
    %2285 = vmatpush1.msra.mxu0 0.0
    %2286 = vmatprep.subr.mxu0 0.0
    %2287 = vmatpush1.msra.mxu0 0.0
    %2288 = vmatprep.subr.mxu0 0.0
    %2289 = vmatpush1.msra.mxu0 0.0
    %2290 = vmatprep.subr.mxu0 0.0
    %2291 = vmatpush1.msra.mxu0 0.0
    %2292 = vmatprep.subr.mxu0 0.0
    %2293 = vmatpush1.msra.mxu0 0.0
    %2294 = vmatprep.subr.mxu0 0.0
    %2295 = vmatpush1.msra.mxu0 0.0
    %2296 = vmatprep.subr.mxu0 0.0
    %2297 = vmatpush1.msra.mxu0 0.0
    %2298 = vmatprep.subr.mxu0 0.0
    %2299 = vmatpush1.msra.mxu0 0.0
    %2300 = vmatprep.subr.mxu0 0.0
    %2301 = vmatpush1.msra.mxu0 0.0
    %2302 = vmatprep.subr.mxu0 0.0
    %2303 = vmatpush1.msra.mxu0 0.0
    %2304 = vmatprep.mubr.f32.mxu0 0.0
    %2305 = vmatmul.mubr.f32.gmra.mrb[0].mxu0 %v655
    %v2306 = vpop.f32.mrb[0].mxu0
    %v2307 = vadd.f32 %v96, %v2306
    %v2308 = vpop.f32.mrb[0].mxu0
    %2309 = vmatprep.mubr.f32.mxu0 0.0
    %2310 = vmatmul.mubr.f32.gmra.mrb[0].mxu0 %v658
    %v2311 = vpop.f32.mrb[0].mxu0
    %v2312 = vadd.f32 %v101, %v2311
    %v2313 = vpop.f32.mrb[0].mxu0
    %2314 = vdwg.mxu0
    %v2315 = vmul.f32 %v2307, 0.125
    %v2316 = vmul.f32 %v2312, 0.125
    %v2317 = vadd.f32 %v1849, %v2315
    %v2318 = vadd.f32 %v1850, %v2316
    %2319 = vmatprep.subr.mxu0 0.0
    %2320 = vmatpush1.msra.mxu0 %v2317
    %2321 = vmatprep.subr.mxu0 0.0
    %2322 = vmatpush1.msra.mxu0 %v2318
    %2323 = vmatprep.subr.mxu0 0.0
    %2324 = vmatpush1.msra.mxu0 0.0
    %2325 = vmatprep.subr.mxu0 0.0
    %2326 = vmatpush1.msra.mxu0 0.0
    %2327 = vmatprep.subr.mxu0 0.0
    %2328 = vmatpush1.msra.mxu0 0.0
    %2329 = vmatprep.subr.mxu0 0.0
    %2330 = vmatpush1.msra.mxu0 0.0
    %2331 = vmatprep.subr.mxu0 0.0
    %2332 = vmatpush1.msra.mxu0 0.0
    %2333 = vmatprep.subr.mxu0 0.0
    %2334 = vmatpush1.msra.mxu0 0.0
    %2335 = vmatprep.subr.mxu0 0.0
    %2336 = vmatpush1.msra.mxu0 0.0
    %2337 = vmatprep.subr.mxu0 0.0
    %2338 = vmatpush1.msra.mxu0 0.0
    %2339 = vmatprep.subr.mxu0 0.0
    %2340 = vmatpush1.msra.mxu0 0.0
    %2341 = vmatprep.subr.mxu0 0.0
    %2342 = vmatpush1.msra.mxu0 0.0
    %2343 = vmatprep.subr.mxu0 0.0
    %2344 = vmatpush1.msra.mxu0 0.0
    %2345 = vmatprep.subr.mxu0 0.0
    %2346 = vmatpush1.msra.mxu0 0.0
    %2347 = vmatprep.subr.mxu0 0.0
    %2348 = vmatpush1.msra.mxu0 0.0
    %2349 = vmatprep.subr.mxu0 0.0
    %2350 = vmatpush1.msra.mxu0 0.0
    %2351 = vmatprep.subr.mxu0 0.0
    %2352 = vmatpush1.msra.mxu0 0.0
    %2353 = vmatprep.subr.mxu0 0.0
    %2354 = vmatpush1.msra.mxu0 0.0
    %2355 = vmatprep.subr.mxu0 0.0
    %2356 = vmatpush1.msra.mxu0 0.0
    %2357 = vmatprep.subr.mxu0 0.0
    %2358 = vmatpush1.msra.mxu0 0.0
    %2359 = vmatprep.subr.mxu0 0.0
    %2360 = vmatpush1.msra.mxu0 0.0
    %2361 = vmatprep.subr.mxu0 0.0
    %2362 = vmatpush1.msra.mxu0 0.0
    %2363 = vmatprep.subr.mxu0 0.0
    %2364 = vmatpush1.msra.mxu0 0.0
    %2365 = vmatprep.subr.mxu0 0.0
    %2366 = vmatpush1.msra.mxu0 0.0
    %2367 = vmatprep.subr.mxu0 0.0
    %2368 = vmatpush1.msra.mxu0 0.0
    %2369 = vmatprep.subr.mxu0 0.0
    %2370 = vmatpush1.msra.mxu0 0.0
    %2371 = vmatprep.subr.mxu0 0.0
    %2372 = vmatpush1.msra.mxu0 0.0
    %2373 = vmatprep.subr.mxu0 0.0
    %2374 = vmatpush1.msra.mxu0 0.0
    %2375 = vmatprep.subr.mxu0 0.0
    %2376 = vmatpush1.msra.mxu0 0.0
    %2377 = vmatprep.subr.mxu0 0.0
    %2378 = vmatpush1.msra.mxu0 0.0
    %2379 = vmatprep.subr.mxu0 0.0
    %2380 = vmatpush1.msra.mxu0 0.0
    %2381 = vmatprep.subr.mxu0 0.0
    %2382 = vmatpush1.msra.mxu0 0.0
    %2383 = vmatprep.mubr.f32.mxu0 0.0
    %2384 = vmatmul.mubr.f32.gmra.mrb[0].mxu0 %v572
    %v2385 = vpop.f32.mrb[0].mxu0
    %v2386 = vadd.f32 %v84, %v2385
    %v2387 = vpop.f32.mrb[0].mxu0
    %2388 = vmatprep.mubr.f32.mxu0 0.0
    %2389 = vmatmul.mubr.f32.gmra.mrb[0].mxu0 %v575
    %v2390 = vpop.f32.mrb[0].mxu0
    %v2391 = vadd.f32 %v89, %v2390
    %v2392 = vpop.f32.mrb[0].mxu0
    %2393 = vdwg.mxu0
    %v2394 = vtanh.pop %v2386
    %v2395 = vtanh.pop %v2391
    %2396 = vmatprep.subr.mxu0 0.0
    %2397 = vmatpush1.msra.mxu0 %v2394
    %2398 = vmatprep.subr.mxu0 0.0
    %2399 = vmatpush1.msra.mxu0 %v2395
    %2400 = vmatprep.subr.mxu0 0.0
    %2401 = vmatpush1.msra.mxu0 0.0
    %2402 = vmatprep.subr.mxu0 0.0
    %2403 = vmatpush1.msra.mxu0 0.0
    %2404 = vmatprep.subr.mxu0 0.0
    %2405 = vmatpush1.msra.mxu0 0.0
    %2406 = vmatprep.subr.mxu0 0.0
    %2407 = vmatpush1.msra.mxu0 0.0
    %2408 = vmatprep.subr.mxu0 0.0
    %2409 = vmatpush1.msra.mxu0 0.0
    %2410 = vmatprep.subr.mxu0 0.0
    %2411 = vmatpush1.msra.mxu0 0.0
    %2412 = vmatprep.subr.mxu0 0.0
    %2413 = vmatpush1.msra.mxu0 0.0
    %2414 = vmatprep.subr.mxu0 0.0
    %2415 = vmatpush1.msra.mxu0 0.0
    %2416 = vmatprep.subr.mxu0 0.0
    %2417 = vmatpush1.msra.mxu0 0.0
    %2418 = vmatprep.subr.mxu0 0.0
    %2419 = vmatpush1.msra.mxu0 0.0
    %2420 = vmatprep.subr.mxu0 0.0
    %2421 = vmatpush1.msra.mxu0 0.0
    %2422 = vmatprep.subr.mxu0 0.0
    %2423 = vmatpush1.msra.mxu0 0.0
    %2424 = vmatprep.subr.mxu0 0.0
    %2425 = vmatpush1.msra.mxu0 0.0
    %2426 = vmatprep.subr.mxu0 0.0
    %2427 = vmatpush1.msra.mxu0 0.0
    %2428 = vmatprep.subr.mxu0 0.0
    %2429 = vmatpush1.msra.mxu0 0.0
    %2430 = vmatprep.subr.mxu0 0.0
    %2431 = vmatpush1.msra.mxu0 0.0
    %2432 = vmatprep.subr.mxu0 0.0
    %2433 = vmatpush1.msra.mxu0 0.0
    %2434 = vmatprep.subr.mxu0 0.0
    %2435 = vmatpush1.msra.mxu0 0.0
    %2436 = vmatprep.subr.mxu0 0.0
    %2437 = vmatpush1.msra.mxu0 0.0
    %2438 = vmatprep.subr.mxu0 0.0
    %2439 = vmatpush1.msra.mxu0 0.0
    %2440 = vmatprep.subr.mxu0 0.0
    %2441 = vmatpush1.msra.mxu0 0.0
    %2442 = vmatprep.subr.mxu0 0.0
    %2443 = vmatpush1.msra.mxu0 0.0
    %2444 = vmatprep.subr.mxu0 0.0
    %2445 = vmatpush1.msra.mxu0 0.0
    %2446 = vmatprep.subr.mxu0 0.0
    %2447 = vmatpush1.msra.mxu0 0.0
    %2448 = vmatprep.subr.mxu0 0.0
    %2449 = vmatpush1.msra.mxu0 0.0
    %2450 = vmatprep.subr.mxu0 0.0
    %2451 = vmatpush1.msra.mxu0 0.0
    %2452 = vmatprep.subr.mxu0 0.0
    %2453 = vmatpush1.msra.mxu0 0.0
    %2454 = vmatprep.subr.mxu0 0.0
    %2455 = vmatpush1.msra.mxu0 0.0
    %2456 = vmatprep.subr.mxu0 0.0
    %2457 = vmatpush1.msra.mxu0 0.0
    %2458 = vmatprep.subr.mxu0 0.0
    %2459 = vmatpush1.msra.mxu0 0.0
    %2460 = vmatprep.mubr.f32.mxu0 0.0
    %2461 = vmatmul.mubr.f32.gmra.mrb[0].mxu0 %v655
    %v2462 = vpop.f32.mrb[0].mxu0
    %v2463 = vadd.f32 %v96, %v2462
    %v2464 = vpop.f32.mrb[0].mxu0
    %2465 = vmatprep.mubr.f32.mxu0 0.0
    %2466 = vmatmul.mubr.f32.gmra.mrb[0].mxu0 %v658
    %v2467 = vpop.f32.mrb[0].mxu0
    %v2468 = vadd.f32 %v101, %v2467
    %v2469 = vpop.f32.mrb[0].mxu0
    %2470 = vdwg.mxu0
    %v2471 = vmul.f32 %v2151, 2.0
    %v2472 = vmul.f32 %v2156, 2.0
    %v2473 = vadd.f32 %v1995, %v2471
    %v2474 = vadd.f32 %v2000, %v2472
    %v2475 = vmul.f32 %v2307, 2.0
    %v2476 = vmul.f32 %v2312, 2.0
    %v2477 = vadd.f32 %v2473, %v2475
    %v2478 = vadd.f32 %v2474, %v2476
    %v2479 = vadd.f32 %v2477, %v2463
    %v2480 = vadd.f32 %v2478, %v2468
    %v2481 = vmul.f32 %v2479, 0.020833334
    %v2482 = vmul.f32 %v2480, 0.020833334
    %v2483 = vadd.f32 %v1849, %v2481
    %v2484 = vadd.f32 %v1850, %v2482
    %2485 = vmatprep.subr.mxu0 0.0
    %2486 = vmatpush1.msra.mxu0 %v2483
    %2487 = vmatprep.subr.mxu0 0.0
    %2488 = vmatpush1.msra.mxu0 %v2484
    %2489 = vmatprep.subr.mxu0 0.0
    %2490 = vmatpush1.msra.mxu0 0.0
    %2491 = vmatprep.subr.mxu0 0.0
    %2492 = vmatpush1.msra.mxu0 0.0
    %2493 = vmatprep.subr.mxu0 0.0
    %2494 = vmatpush1.msra.mxu0 0.0
    %2495 = vmatprep.subr.mxu0 0.0
    %2496 = vmatpush1.msra.mxu0 0.0
    %2497 = vmatprep.subr.mxu0 0.0
    %2498 = vmatpush1.msra.mxu0 0.0
    %2499 = vmatprep.subr.mxu0 0.0
    %2500 = vmatpush1.msra.mxu0 0.0
    %2501 = vmatprep.subr.mxu0 0.0
    %2502 = vmatpush1.msra.mxu0 0.0
    %2503 = vmatprep.subr.mxu0 0.0
    %2504 = vmatpush1.msra.mxu0 0.0
    %2505 = vmatprep.subr.mxu0 0.0
    %2506 = vmatpush1.msra.mxu0 0.0
    %2507 = vmatprep.subr.mxu0 0.0
    %2508 = vmatpush1.msra.mxu0 0.0
    %2509 = vmatprep.subr.mxu0 0.0
    %2510 = vmatpush1.msra.mxu0 0.0
    %2511 = vmatprep.subr.mxu0 0.0
    %2512 = vmatpush1.msra.mxu0 0.0
    %2513 = vmatprep.subr.mxu0 0.0
    %2514 = vmatpush1.msra.mxu0 0.0
    %2515 = vmatprep.subr.mxu0 0.0
    %2516 = vmatpush1.msra.mxu0 0.0
    %2517 = vmatprep.subr.mxu0 0.0
    %2518 = vmatpush1.msra.mxu0 0.0
    %2519 = vmatprep.subr.mxu0 0.0
    %2520 = vmatpush1.msra.mxu0 0.0
    %2521 = vmatprep.subr.mxu0 0.0
    %2522 = vmatpush1.msra.mxu0 0.0
    %2523 = vmatprep.subr.mxu0 0.0
    %2524 = vmatpush1.msra.mxu0 0.0
    %2525 = vmatprep.subr.mxu0 0.0
    %2526 = vmatpush1.msra.mxu0 0.0
    %2527 = vmatprep.subr.mxu0 0.0
    %2528 = vmatpush1.msra.mxu0 0.0
    %2529 = vmatprep.subr.mxu0 0.0
    %2530 = vmatpush1.msra.mxu0 0.0
    %2531 = vmatprep.subr.mxu0 0.0
    %2532 = vmatpush1.msra.mxu0 0.0
    %2533 = vmatprep.subr.mxu0 0.0
    %2534 = vmatpush1.msra.mxu0 0.0
    %2535 = vmatprep.subr.mxu0 0.0
    %2536 = vmatpush1.msra.mxu0 0.0
    %2537 = vmatprep.subr.mxu0 0.0
    %2538 = vmatpush1.msra.mxu0 0.0
    %2539 = vmatprep.subr.mxu0 0.0
    %2540 = vmatpush1.msra.mxu0 0.0
    %2541 = vmatprep.subr.mxu0 0.0
    %2542 = vmatpush1.msra.mxu0 0.0
    %2543 = vmatprep.subr.mxu0 0.0
    %2544 = vmatpush1.msra.mxu0 0.0
    %2545 = vmatprep.subr.mxu0 0.0
    %2546 = vmatpush1.msra.mxu0 0.0
    %2547 = vmatprep.subr.mxu0 0.0
    %2548 = vmatpush1.msra.mxu0 0.0
    %2549 = vmatprep.mubr.f32.mxu0 0.0
    %2550 = vmatmul.mubr.f32.gmra.mrb[0].mxu0 %v572
    %v2551 = vpop.f32.mrb[0].mxu0
    %v2552 = vadd.f32 %v84, %v2551
    %v2553 = vpop.f32.mrb[0].mxu0
    %2554 = vmatprep.mubr.f32.mxu0 0.0
    %2555 = vmatmul.mubr.f32.gmra.mrb[0].mxu0 %v575
    %v2556 = vpop.f32.mrb[0].mxu0
    %v2557 = vadd.f32 %v89, %v2556
    %v2558 = vpop.f32.mrb[0].mxu0
    %2559 = vdwg.mxu0
    %v2560 = vtanh.pop %v2552
    %v2561 = vtanh.pop %v2557
    %2562 = vmatprep.subr.mxu0 0.0
    %2563 = vmatpush1.msra.mxu0 %v2560
    %2564 = vmatprep.subr.mxu0 0.0
    %2565 = vmatpush1.msra.mxu0 %v2561
    %2566 = vmatprep.subr.mxu0 0.0
    %2567 = vmatpush1.msra.mxu0 0.0
    %2568 = vmatprep.subr.mxu0 0.0
    %2569 = vmatpush1.msra.mxu0 0.0
    %2570 = vmatprep.subr.mxu0 0.0
    %2571 = vmatpush1.msra.mxu0 0.0
    %2572 = vmatprep.subr.mxu0 0.0
    %2573 = vmatpush1.msra.mxu0 0.0
    %2574 = vmatprep.subr.mxu0 0.0
    %2575 = vmatpush1.msra.mxu0 0.0
    %2576 = vmatprep.subr.mxu0 0.0
    %2577 = vmatpush1.msra.mxu0 0.0
    %2578 = vmatprep.subr.mxu0 0.0
    %2579 = vmatpush1.msra.mxu0 0.0
    %2580 = vmatprep.subr.mxu0 0.0
    %2581 = vmatpush1.msra.mxu0 0.0
    %2582 = vmatprep.subr.mxu0 0.0
    %2583 = vmatpush1.msra.mxu0 0.0
    %2584 = vmatprep.subr.mxu0 0.0
    %2585 = vmatpush1.msra.mxu0 0.0
    %2586 = vmatprep.subr.mxu0 0.0
    %2587 = vmatpush1.msra.mxu0 0.0
    %2588 = vmatprep.subr.mxu0 0.0
    %2589 = vmatpush1.msra.mxu0 0.0
    %2590 = vmatprep.subr.mxu0 0.0
    %2591 = vmatpush1.msra.mxu0 0.0
    %2592 = vmatprep.subr.mxu0 0.0
    %2593 = vmatpush1.msra.mxu0 0.0
    %2594 = vmatprep.subr.mxu0 0.0
    %2595 = vmatpush1.msra.mxu0 0.0
    %2596 = vmatprep.subr.mxu0 0.0
    %2597 = vmatpush1.msra.mxu0 0.0
    %2598 = vmatprep.subr.mxu0 0.0
    %2599 = vmatpush1.msra.mxu0 0.0
    %2600 = vmatprep.subr.mxu0 0.0
    %2601 = vmatpush1.msra.mxu0 0.0
    %2602 = vmatprep.subr.mxu0 0.0
    %2603 = vmatpush1.msra.mxu0 0.0
    %2604 = vmatprep.subr.mxu0 0.0
    %2605 = vmatpush1.msra.mxu0 0.0
    %2606 = vmatprep.subr.mxu0 0.0
    %2607 = vmatpush1.msra.mxu0 0.0
    %2608 = vmatprep.subr.mxu0 0.0
    %2609 = vmatpush1.msra.mxu0 0.0
    %2610 = vmatprep.subr.mxu0 0.0
    %2611 = vmatpush1.msra.mxu0 0.0
    %2612 = vmatprep.subr.mxu0 0.0
    %2613 = vmatpush1.msra.mxu0 0.0
    %2614 = vmatprep.subr.mxu0 0.0
    %2615 = vmatpush1.msra.mxu0 0.0
    %2616 = vmatprep.subr.mxu0 0.0
    %2617 = vmatpush1.msra.mxu0 0.0
    %2618 = vmatprep.subr.mxu0 0.0
    %2619 = vmatpush1.msra.mxu0 0.0
    %2620 = vmatprep.subr.mxu0 0.0
    %2621 = vmatpush1.msra.mxu0 0.0
    %2622 = vmatprep.subr.mxu0 0.0
    %2623 = vmatpush1.msra.mxu0 0.0
    %2624 = vmatprep.subr.mxu0 0.0
    %2625 = vmatpush1.msra.mxu0 0.0
    %2626 = vmatprep.mubr.f32.mxu0 0.0
    %2627 = vmatmul.mubr.f32.gmra.mrb[0].mxu0 %v655
    %v2628 = vpop.f32.mrb[0].mxu0
    %v2629 = vadd.f32 %v96, %v2628
    %v2630 = vpop.f32.mrb[0].mxu0
    %2631 = vmatprep.mubr.f32.mxu0 0.0
    %2632 = vmatmul.mubr.f32.gmra.mrb[0].mxu0 %v658
    %v2633 = vpop.f32.mrb[0].mxu0
    %v2634 = vadd.f32 %v101, %v2633
    %v2635 = vpop.f32.mrb[0].mxu0
    %2636 = vdwg.mxu0
    %v2637 = vmul.f32 %v2629, 0.0625
    %v2638 = vmul.f32 %v2634, 0.0625
    %v2639 = vadd.f32 %v2483, %v2637
    %v2640 = vadd.f32 %v2484, %v2638
    %2641 = vmatprep.subr.mxu0 0.0
    %2642 = vmatpush1.msra.mxu0 %v2639
    %2643 = vmatprep.subr.mxu0 0.0
    %2644 = vmatpush1.msra.mxu0 %v2640
    %2645 = vmatprep.subr.mxu0 0.0
    %2646 = vmatpush1.msra.mxu0 0.0
    %2647 = vmatprep.subr.mxu0 0.0
    %2648 = vmatpush1.msra.mxu0 0.0
    %2649 = vmatprep.subr.mxu0 0.0
    %2650 = vmatpush1.msra.mxu0 0.0
    %2651 = vmatprep.subr.mxu0 0.0
    %2652 = vmatpush1.msra.mxu0 0.0
    %2653 = vmatprep.subr.mxu0 0.0
    %2654 = vmatpush1.msra.mxu0 0.0
    %2655 = vmatprep.subr.mxu0 0.0
    %2656 = vmatpush1.msra.mxu0 0.0
    %2657 = vmatprep.subr.mxu0 0.0
    %2658 = vmatpush1.msra.mxu0 0.0
    %2659 = vmatprep.subr.mxu0 0.0
    %2660 = vmatpush1.msra.mxu0 0.0
    %2661 = vmatprep.subr.mxu0 0.0
    %2662 = vmatpush1.msra.mxu0 0.0
    %2663 = vmatprep.subr.mxu0 0.0
    %2664 = vmatpush1.msra.mxu0 0.0
    %2665 = vmatprep.subr.mxu0 0.0
    %2666 = vmatpush1.msra.mxu0 0.0
    %2667 = vmatprep.subr.mxu0 0.0
    %2668 = vmatpush1.msra.mxu0 0.0
    %2669 = vmatprep.subr.mxu0 0.0
    %2670 = vmatpush1.msra.mxu0 0.0
    %2671 = vmatprep.subr.mxu0 0.0
    %2672 = vmatpush1.msra.mxu0 0.0
    %2673 = vmatprep.subr.mxu0 0.0
    %2674 = vmatpush1.msra.mxu0 0.0
    %2675 = vmatprep.subr.mxu0 0.0
    %2676 = vmatpush1.msra.mxu0 0.0
    %2677 = vmatprep.subr.mxu0 0.0
    %2678 = vmatpush1.msra.mxu0 0.0
    %2679 = vmatprep.subr.mxu0 0.0
    %2680 = vmatpush1.msra.mxu0 0.0
    %2681 = vmatprep.subr.mxu0 0.0
    %2682 = vmatpush1.msra.mxu0 0.0
    %2683 = vmatprep.subr.mxu0 0.0
    %2684 = vmatpush1.msra.mxu0 0.0
    %2685 = vmatprep.subr.mxu0 0.0
    %2686 = vmatpush1.msra.mxu0 0.0
    %2687 = vmatprep.subr.mxu0 0.0
    %2688 = vmatpush1.msra.mxu0 0.0
    %2689 = vmatprep.subr.mxu0 0.0
    %2690 = vmatpush1.msra.mxu0 0.0
    %2691 = vmatprep.subr.mxu0 0.0
    %2692 = vmatpush1.msra.mxu0 0.0
    %2693 = vmatprep.subr.mxu0 0.0
    %2694 = vmatpush1.msra.mxu0 0.0
    %2695 = vmatprep.subr.mxu0 0.0
    %2696 = vmatpush1.msra.mxu0 0.0
    %2697 = vmatprep.subr.mxu0 0.0
    %2698 = vmatpush1.msra.mxu0 0.0
    %2699 = vmatprep.subr.mxu0 0.0
    %2700 = vmatpush1.msra.mxu0 0.0
    %2701 = vmatprep.subr.mxu0 0.0
    %2702 = vmatpush1.msra.mxu0 0.0
    %2703 = vmatprep.subr.mxu0 0.0
    %2704 = vmatpush1.msra.mxu0 0.0
    %2705 = vmatprep.mubr.f32.mxu0 0.0
    %2706 = vmatmul.mubr.f32.gmra.mrb[0].mxu0 %v572
    %v2707 = vpop.f32.mrb[0].mxu0
    %v2708 = vadd.f32 %v84, %v2707
    %v2709 = vpop.f32.mrb[0].mxu0
    %2710 = vmatprep.mubr.f32.mxu0 0.0
    %2711 = vmatmul.mubr.f32.gmra.mrb[0].mxu0 %v575
    %v2712 = vpop.f32.mrb[0].mxu0
    %v2713 = vadd.f32 %v89, %v2712
    %v2714 = vpop.f32.mrb[0].mxu0
    %2715 = vdwg.mxu0
    %v2716 = vtanh.pop %v2708
    %v2717 = vtanh.pop %v2713
    %2718 = vmatprep.subr.mxu0 0.0
    %2719 = vmatpush1.msra.mxu0 %v2716
    %2720 = vmatprep.subr.mxu0 0.0
    %2721 = vmatpush1.msra.mxu0 %v2717
    %2722 = vmatprep.subr.mxu0 0.0
    %2723 = vmatpush1.msra.mxu0 0.0
    %2724 = vmatprep.subr.mxu0 0.0
    %2725 = vmatpush1.msra.mxu0 0.0
    %2726 = vmatprep.subr.mxu0 0.0
    %2727 = vmatpush1.msra.mxu0 0.0
    %2728 = vmatprep.subr.mxu0 0.0
    %2729 = vmatpush1.msra.mxu0 0.0
    %2730 = vmatprep.subr.mxu0 0.0
    %2731 = vmatpush1.msra.mxu0 0.0
    %2732 = vmatprep.subr.mxu0 0.0
    %2733 = vmatpush1.msra.mxu0 0.0
    %2734 = vmatprep.subr.mxu0 0.0
    %2735 = vmatpush1.msra.mxu0 0.0
    %2736 = vmatprep.subr.mxu0 0.0
    %2737 = vmatpush1.msra.mxu0 0.0
    %2738 = vmatprep.subr.mxu0 0.0
    %2739 = vmatpush1.msra.mxu0 0.0
    %2740 = vmatprep.subr.mxu0 0.0
    %2741 = vmatpush1.msra.mxu0 0.0
    %2742 = vmatprep.subr.mxu0 0.0
    %2743 = vmatpush1.msra.mxu0 0.0
    %2744 = vmatprep.subr.mxu0 0.0
    %2745 = vmatpush1.msra.mxu0 0.0
    %2746 = vmatprep.subr.mxu0 0.0
    %2747 = vmatpush1.msra.mxu0 0.0
    %2748 = vmatprep.subr.mxu0 0.0
    %2749 = vmatpush1.msra.mxu0 0.0
    %2750 = vmatprep.subr.mxu0 0.0
    %2751 = vmatpush1.msra.mxu0 0.0
    %2752 = vmatprep.subr.mxu0 0.0
    %2753 = vmatpush1.msra.mxu0 0.0
    %2754 = vmatprep.subr.mxu0 0.0
    %2755 = vmatpush1.msra.mxu0 0.0
    %2756 = vmatprep.subr.mxu0 0.0
    %2757 = vmatpush1.msra.mxu0 0.0
    %2758 = vmatprep.subr.mxu0 0.0
    %2759 = vmatpush1.msra.mxu0 0.0
    %2760 = vmatprep.subr.mxu0 0.0
    %2761 = vmatpush1.msra.mxu0 0.0
    %2762 = vmatprep.subr.mxu0 0.0
    %2763 = vmatpush1.msra.mxu0 0.0
    %2764 = vmatprep.subr.mxu0 0.0
    %2765 = vmatpush1.msra.mxu0 0.0
    %2766 = vmatprep.subr.mxu0 0.0
    %2767 = vmatpush1.msra.mxu0 0.0
    %2768 = vmatprep.subr.mxu0 0.0
    %2769 = vmatpush1.msra.mxu0 0.0
    %2770 = vmatprep.subr.mxu0 0.0
    %2771 = vmatpush1.msra.mxu0 0.0
    %2772 = vmatprep.subr.mxu0 0.0
    %2773 = vmatpush1.msra.mxu0 0.0
    %2774 = vmatprep.subr.mxu0 0.0
    %2775 = vmatpush1.msra.mxu0 0.0
    %2776 = vmatprep.subr.mxu0 0.0
    %2777 = vmatpush1.msra.mxu0 0.0
    %2778 = vmatprep.subr.mxu0 0.0
    %2779 = vmatpush1.msra.mxu0 0.0
    %2780 = vmatprep.subr.mxu0 0.0
    %2781 = vmatpush1.msra.mxu0 0.0
    %2782 = vmatprep.mubr.f32.mxu0 0.0
    %2783 = vmatmul.mubr.f32.gmra.mrb[0].mxu0 %v655
    %v2784 = vpop.f32.mrb[0].mxu0
    %v2785 = vadd.f32 %v96, %v2784
    %v2786 = vpop.f32.mrb[0].mxu0
    %2787 = vmatprep.mubr.f32.mxu0 0.0
    %2788 = vmatmul.mubr.f32.gmra.mrb[0].mxu0 %v658
    %v2789 = vpop.f32.mrb[0].mxu0
    %v2790 = vadd.f32 %v101, %v2789
    %v2791 = vpop.f32.mrb[0].mxu0
    %2792 = vdwg.mxu0
    %v2793 = vmul.f32 %v2785, 0.0625
    %v2794 = vmul.f32 %v2790, 0.0625
    %v2795 = vadd.f32 %v2483, %v2793
    %v2796 = vadd.f32 %v2484, %v2794
    %2797 = vmatprep.subr.mxu0 0.0
    %2798 = vmatpush1.msra.mxu0 %v2795
    %2799 = vmatprep.subr.mxu0 0.0
    %2800 = vmatpush1.msra.mxu0 %v2796
    %2801 = vmatprep.subr.mxu0 0.0
    %2802 = vmatpush1.msra.mxu0 0.0
    %2803 = vmatprep.subr.mxu0 0.0
    %2804 = vmatpush1.msra.mxu0 0.0
    %2805 = vmatprep.subr.mxu0 0.0
    %2806 = vmatpush1.msra.mxu0 0.0
    %2807 = vmatprep.subr.mxu0 0.0
    %2808 = vmatpush1.msra.mxu0 0.0
    %2809 = vmatprep.subr.mxu0 0.0
    %2810 = vmatpush1.msra.mxu0 0.0
    %2811 = vmatprep.subr.mxu0 0.0
    %2812 = vmatpush1.msra.mxu0 0.0
    %2813 = vmatprep.subr.mxu0 0.0
    %2814 = vmatpush1.msra.mxu0 0.0
    %2815 = vmatprep.subr.mxu0 0.0
    %2816 = vmatpush1.msra.mxu0 0.0
    %2817 = vmatprep.subr.mxu0 0.0
    %2818 = vmatpush1.msra.mxu0 0.0
    %2819 = vmatprep.subr.mxu0 0.0
    %2820 = vmatpush1.msra.mxu0 0.0
    %2821 = vmatprep.subr.mxu0 0.0
    %2822 = vmatpush1.msra.mxu0 0.0
    %2823 = vmatprep.subr.mxu0 0.0
    %2824 = vmatpush1.msra.mxu0 0.0
    %2825 = vmatprep.subr.mxu0 0.0
    %2826 = vmatpush1.msra.mxu0 0.0
    %2827 = vmatprep.subr.mxu0 0.0
    %2828 = vmatpush1.msra.mxu0 0.0
    %2829 = vmatprep.subr.mxu0 0.0
    %2830 = vmatpush1.msra.mxu0 0.0
    %2831 = vmatprep.subr.mxu0 0.0
    %2832 = vmatpush1.msra.mxu0 0.0
    %2833 = vmatprep.subr.mxu0 0.0
    %2834 = vmatpush1.msra.mxu0 0.0
    %2835 = vmatprep.subr.mxu0 0.0
    %2836 = vmatpush1.msra.mxu0 0.0
    %2837 = vmatprep.subr.mxu0 0.0
    %2838 = vmatpush1.msra.mxu0 0.0
    %2839 = vmatprep.subr.mxu0 0.0
    %2840 = vmatpush1.msra.mxu0 0.0
    %2841 = vmatprep.subr.mxu0 0.0
    %2842 = vmatpush1.msra.mxu0 0.0
    %2843 = vmatprep.subr.mxu0 0.0
    %2844 = vmatpush1.msra.mxu0 0.0
    %2845 = vmatprep.subr.mxu0 0.0
    %2846 = vmatpush1.msra.mxu0 0.0
    %2847 = vmatprep.subr.mxu0 0.0
    %2848 = vmatpush1.msra.mxu0 0.0
    %2849 = vmatprep.subr.mxu0 0.0
    %2850 = vmatpush1.msra.mxu0 0.0
    %2851 = vmatprep.subr.mxu0 0.0
    %2852 = vmatpush1.msra.mxu0 0.0
    %2853 = vmatprep.subr.mxu0 0.0
    %2854 = vmatpush1.msra.mxu0 0.0
    %2855 = vmatprep.subr.mxu0 0.0
    %2856 = vmatpush1.msra.mxu0 0.0
    %2857 = vmatprep.subr.mxu0 0.0
    %2858 = vmatpush1.msra.mxu0 0.0
    %2859 = vmatprep.subr.mxu0 0.0
    %2860 = vmatpush1.msra.mxu0 0.0
    %2861 = vmatprep.mubr.f32.mxu0 0.0
    %2862 = vmatmul.mubr.f32.gmra.mrb[0].mxu0 %v572
    %v2863 = vpop.f32.mrb[0].mxu0
    %v2864 = vadd.f32 %v84, %v2863
    %v2865 = vpop.f32.mrb[0].mxu0
    %2866 = vmatprep.mubr.f32.mxu0 0.0
    %2867 = vmatmul.mubr.f32.gmra.mrb[0].mxu0 %v575
    %v2868 = vpop.f32.mrb[0].mxu0
    %v2869 = vadd.f32 %v89, %v2868
    %v2870 = vpop.f32.mrb[0].mxu0
    %2871 = vdwg.mxu0
    %v2872 = vtanh.pop %v2864
    %v2873 = vtanh.pop %v2869
    %2874 = vmatprep.subr.mxu0 0.0
    %2875 = vmatpush1.msra.mxu0 %v2872
    %2876 = vmatprep.subr.mxu0 0.0
    %2877 = vmatpush1.msra.mxu0 %v2873
    %2878 = vmatprep.subr.mxu0 0.0
    %2879 = vmatpush1.msra.mxu0 0.0
    %2880 = vmatprep.subr.mxu0 0.0
    %2881 = vmatpush1.msra.mxu0 0.0
    %2882 = vmatprep.subr.mxu0 0.0
    %2883 = vmatpush1.msra.mxu0 0.0
    %2884 = vmatprep.subr.mxu0 0.0
    %2885 = vmatpush1.msra.mxu0 0.0
    %2886 = vmatprep.subr.mxu0 0.0
    %2887 = vmatpush1.msra.mxu0 0.0
    %2888 = vmatprep.subr.mxu0 0.0
    %2889 = vmatpush1.msra.mxu0 0.0
    %2890 = vmatprep.subr.mxu0 0.0
    %2891 = vmatpush1.msra.mxu0 0.0
    %2892 = vmatprep.subr.mxu0 0.0
    %2893 = vmatpush1.msra.mxu0 0.0
    %2894 = vmatprep.subr.mxu0 0.0
    %2895 = vmatpush1.msra.mxu0 0.0
    %2896 = vmatprep.subr.mxu0 0.0
    %2897 = vmatpush1.msra.mxu0 0.0
    %2898 = vmatprep.subr.mxu0 0.0
    %2899 = vmatpush1.msra.mxu0 0.0
    %2900 = vmatprep.subr.mxu0 0.0
    %2901 = vmatpush1.msra.mxu0 0.0
    %2902 = vmatprep.subr.mxu0 0.0
    %2903 = vmatpush1.msra.mxu0 0.0
    %2904 = vmatprep.subr.mxu0 0.0
    %2905 = vmatpush1.msra.mxu0 0.0
    %2906 = vmatprep.subr.mxu0 0.0
    %2907 = vmatpush1.msra.mxu0 0.0
    %2908 = vmatprep.subr.mxu0 0.0
    %2909 = vmatpush1.msra.mxu0 0.0
    %2910 = vmatprep.subr.mxu0 0.0
    %2911 = vmatpush1.msra.mxu0 0.0
    %2912 = vmatprep.subr.mxu0 0.0
    %2913 = vmatpush1.msra.mxu0 0.0
    %2914 = vmatprep.subr.mxu0 0.0
    %2915 = vmatpush1.msra.mxu0 0.0
    %2916 = vmatprep.subr.mxu0 0.0
    %2917 = vmatpush1.msra.mxu0 0.0
    %2918 = vmatprep.subr.mxu0 0.0
    %2919 = vmatpush1.msra.mxu0 0.0
    %2920 = vmatprep.subr.mxu0 0.0
    %2921 = vmatpush1.msra.mxu0 0.0
    %2922 = vmatprep.subr.mxu0 0.0
    %2923 = vmatpush1.msra.mxu0 0.0
    %2924 = vmatprep.subr.mxu0 0.0
    %2925 = vmatpush1.msra.mxu0 0.0
    %2926 = vmatprep.subr.mxu0 0.0
    %2927 = vmatpush1.msra.mxu0 0.0
    %2928 = vmatprep.subr.mxu0 0.0
    %2929 = vmatpush1.msra.mxu0 0.0
    %2930 = vmatprep.subr.mxu0 0.0
    %2931 = vmatpush1.msra.mxu0 0.0
    %2932 = vmatprep.subr.mxu0 0.0
    %2933 = vmatpush1.msra.mxu0 0.0
    %2934 = vmatprep.subr.mxu0 0.0
    %2935 = vmatpush1.msra.mxu0 0.0
    %2936 = vmatprep.subr.mxu0 0.0
    %2937 = vmatpush1.msra.mxu0 0.0
    %2938 = vmatprep.mubr.f32.mxu0 0.0
    %2939 = vmatmul.mubr.f32.gmra.mrb[0].mxu0 %v655
    %v2940 = vpop.f32.mrb[0].mxu0
    %v2941 = vadd.f32 %v96, %v2940
    %v2942 = vpop.f32.mrb[0].mxu0
    %2943 = vmatprep.mubr.f32.mxu0 0.0
    %2944 = vmatmul.mubr.f32.gmra.mrb[0].mxu0 %v658
    %v2945 = vpop.f32.mrb[0].mxu0
    %v2946 = vadd.f32 %v101, %v2945
    %v2947 = vpop.f32.mrb[0].mxu0
    %2948 = vdwg.mxu0
    %v2949 = vmul.f32 %v2941, 0.125
    %v2950 = vmul.f32 %v2946, 0.125
    %v2951 = vadd.f32 %v2483, %v2949
    %v2952 = vadd.f32 %v2484, %v2950
    %2953 = vmatprep.subr.mxu0 0.0
    %2954 = vmatpush1.msra.mxu0 %v2951
    %2955 = vmatprep.subr.mxu0 0.0
    %2956 = vmatpush1.msra.mxu0 %v2952
    %2957 = vmatprep.subr.mxu0 0.0
    %2958 = vmatpush1.msra.mxu0 0.0
    %2959 = vmatprep.subr.mxu0 0.0
    %2960 = vmatpush1.msra.mxu0 0.0
    %2961 = vmatprep.subr.mxu0 0.0
    %2962 = vmatpush1.msra.mxu0 0.0
    %2963 = vmatprep.subr.mxu0 0.0
    %2964 = vmatpush1.msra.mxu0 0.0
    %2965 = vmatprep.subr.mxu0 0.0
    %2966 = vmatpush1.msra.mxu0 0.0
    %2967 = vmatprep.subr.mxu0 0.0
    %2968 = vmatpush1.msra.mxu0 0.0
    %2969 = vmatprep.subr.mxu0 0.0
    %2970 = vmatpush1.msra.mxu0 0.0
    %2971 = vmatprep.subr.mxu0 0.0
    %2972 = vmatpush1.msra.mxu0 0.0
    %2973 = vmatprep.subr.mxu0 0.0
    %2974 = vmatpush1.msra.mxu0 0.0
    %2975 = vmatprep.subr.mxu0 0.0
    %2976 = vmatpush1.msra.mxu0 0.0
    %2977 = vmatprep.subr.mxu0 0.0
    %2978 = vmatpush1.msra.mxu0 0.0
    %2979 = vmatprep.subr.mxu0 0.0
    %2980 = vmatpush1.msra.mxu0 0.0
    %2981 = vmatprep.subr.mxu0 0.0
    %2982 = vmatpush1.msra.mxu0 0.0
    %2983 = vmatprep.subr.mxu0 0.0
    %2984 = vmatpush1.msra.mxu0 0.0
    %2985 = vmatprep.subr.mxu0 0.0
    %2986 = vmatpush1.msra.mxu0 0.0
    %2987 = vmatprep.subr.mxu0 0.0
    %2988 = vmatpush1.msra.mxu0 0.0
    %2989 = vmatprep.subr.mxu0 0.0
    %2990 = vmatpush1.msra.mxu0 0.0
    %2991 = vmatprep.subr.mxu0 0.0
    %2992 = vmatpush1.msra.mxu0 0.0
    %2993 = vmatprep.subr.mxu0 0.0
    %2994 = vmatpush1.msra.mxu0 0.0
    %2995 = vmatprep.subr.mxu0 0.0
    %2996 = vmatpush1.msra.mxu0 0.0
    %2997 = vmatprep.subr.mxu0 0.0
    %2998 = vmatpush1.msra.mxu0 0.0
    %2999 = vmatprep.subr.mxu0 0.0
    %3000 = vmatpush1.msra.mxu0 0.0
    %3001 = vmatprep.subr.mxu0 0.0
    %3002 = vmatpush1.msra.mxu0 0.0
    %3003 = vmatprep.subr.mxu0 0.0
    %3004 = vmatpush1.msra.mxu0 0.0
    %3005 = vmatprep.subr.mxu0 0.0
    %3006 = vmatpush1.msra.mxu0 0.0
    %3007 = vmatprep.subr.mxu0 0.0
    %3008 = vmatpush1.msra.mxu0 0.0
    %3009 = vmatprep.subr.mxu0 0.0
    %3010 = vmatpush1.msra.mxu0 0.0
    %3011 = vmatprep.subr.mxu0 0.0
    %3012 = vmatpush1.msra.mxu0 0.0
    %3013 = vmatprep.subr.mxu0 0.0
    %3014 = vmatpush1.msra.mxu0 0.0
    %3015 = vmatprep.subr.mxu0 0.0
    %3016 = vmatpush1.msra.mxu0 0.0
    %3017 = vmatprep.mubr.f32.mxu0 0.0
    %3018 = vmatmul.mubr.f32.gmra.mrb[0].mxu0 %v572
    %v3019 = vpop.f32.mrb[0].mxu0
    %v3020 = vadd.f32 %v84, %v3019
    %v3021 = vpop.f32.mrb[0].mxu0
    %3022 = vmatprep.mubr.f32.mxu0 0.0
    %3023 = vmatmul.mubr.f32.gmra.mrb[0].mxu0 %v575
    %v3024 = vpop.f32.mrb[0].mxu0
    %v3025 = vadd.f32 %v89, %v3024
    %v3026 = vpop.f32.mrb[0].mxu0
    %3027 = vdwg.mxu0
    %v3028 = vtanh.pop %v3020
    %v3029 = vtanh.pop %v3025
    %3030 = vmatprep.subr.mxu0 0.0
    %3031 = vmatpush1.msra.mxu0 %v3028
    %3032 = vmatprep.subr.mxu0 0.0
    %3033 = vmatpush1.msra.mxu0 %v3029
    %3034 = vmatprep.subr.mxu0 0.0
    %3035 = vmatpush1.msra.mxu0 0.0
    %3036 = vmatprep.subr.mxu0 0.0
    %3037 = vmatpush1.msra.mxu0 0.0
    %3038 = vmatprep.subr.mxu0 0.0
    %3039 = vmatpush1.msra.mxu0 0.0
    %3040 = vmatprep.subr.mxu0 0.0
    %3041 = vmatpush1.msra.mxu0 0.0
    %3042 = vmatprep.subr.mxu0 0.0
    %3043 = vmatpush1.msra.mxu0 0.0
    %3044 = vmatprep.subr.mxu0 0.0
    %3045 = vmatpush1.msra.mxu0 0.0
    %3046 = vmatprep.subr.mxu0 0.0
    %3047 = vmatpush1.msra.mxu0 0.0
    %3048 = vmatprep.subr.mxu0 0.0
    %3049 = vmatpush1.msra.mxu0 0.0
    %3050 = vmatprep.subr.mxu0 0.0
    %3051 = vmatpush1.msra.mxu0 0.0
    %3052 = vmatprep.subr.mxu0 0.0
    %3053 = vmatpush1.msra.mxu0 0.0
    %3054 = vmatprep.subr.mxu0 0.0
    %3055 = vmatpush1.msra.mxu0 0.0
    %3056 = vmatprep.subr.mxu0 0.0
    %3057 = vmatpush1.msra.mxu0 0.0
    %3058 = vmatprep.subr.mxu0 0.0
    %3059 = vmatpush1.msra.mxu0 0.0
    %3060 = vmatprep.subr.mxu0 0.0
    %3061 = vmatpush1.msra.mxu0 0.0
    %3062 = vmatprep.subr.mxu0 0.0
    %3063 = vmatpush1.msra.mxu0 0.0
    %3064 = vmatprep.subr.mxu0 0.0
    %3065 = vmatpush1.msra.mxu0 0.0
    %3066 = vmatprep.subr.mxu0 0.0
    %3067 = vmatpush1.msra.mxu0 0.0
    %3068 = vmatprep.subr.mxu0 0.0
    %3069 = vmatpush1.msra.mxu0 0.0
    %3070 = vmatprep.subr.mxu0 0.0
    %3071 = vmatpush1.msra.mxu0 0.0
    %3072 = vmatprep.subr.mxu0 0.0
    %3073 = vmatpush1.msra.mxu0 0.0
    %3074 = vmatprep.subr.mxu0 0.0
    %3075 = vmatpush1.msra.mxu0 0.0
    %3076 = vmatprep.subr.mxu0 0.0
    %3077 = vmatpush1.msra.mxu0 0.0
    %3078 = vmatprep.subr.mxu0 0.0
    %3079 = vmatpush1.msra.mxu0 0.0
    %3080 = vmatprep.subr.mxu0 0.0
    %3081 = vmatpush1.msra.mxu0 0.0
    %3082 = vmatprep.subr.mxu0 0.0
    %3083 = vmatpush1.msra.mxu0 0.0
    %3084 = vmatprep.subr.mxu0 0.0
    %3085 = vmatpush1.msra.mxu0 0.0
    %3086 = vmatprep.subr.mxu0 0.0
    %3087 = vmatpush1.msra.mxu0 0.0
    %3088 = vmatprep.subr.mxu0 0.0
    %3089 = vmatpush1.msra.mxu0 0.0
    %3090 = vmatprep.subr.mxu0 0.0
    %3091 = vmatpush1.msra.mxu0 0.0
    %3092 = vmatprep.subr.mxu0 0.0
    %3093 = vmatpush1.msra.mxu0 0.0
    %3094 = vmatprep.mubr.f32.mxu0 0.0
    %3095 = vmatmul.mubr.f32.gmra.mrb[0].mxu0 %v655
    %v3096 = vpop.f32.mrb[0].mxu0
    %v3097 = vadd.f32 %v96, %v3096
    %v3098 = vpop.f32.mrb[0].mxu0
    %3099 = vmatprep.mubr.f32.mxu0 0.0
    %3100 = vmatmul.mubr.f32.gmra.mrb[0].mxu0 %v658
    %v3101 = vpop.f32.mrb[0].mxu0
    %v3102 = vadd.f32 %v101, %v3101
    %v3103 = vpop.f32.mrb[0].mxu0
    %3104 = vdwg.mxu0
    %v3105 = vmul.f32 %v2785, 2.0
    %v3106 = vmul.f32 %v2790, 2.0
    %v3107 = vadd.f32 %v2629, %v3105
    %v3108 = vadd.f32 %v2634, %v3106
    %v3109 = vmul.f32 %v2941, 2.0
    %v3110 = vmul.f32 %v2946, 2.0
    %v3111 = vadd.f32 %v3107, %v3109
    %v3112 = vadd.f32 %v3108, %v3110
    %v3113 = vadd.f32 %v3111, %v3097
    %v3114 = vadd.f32 %v3112, %v3102
    %v3115 = vmul.f32 %v3113, 0.020833334
    %v3116 = vmul.f32 %v3114, 0.020833334
    %v3117 = vadd.f32 %v2483, %v3115
    %v3118 = vadd.f32 %v2484, %v3116
    %3119 = vmatprep.subr.mxu0 0.0
    %3120 = vmatpush1.msra.mxu0 %v3117
    %3121 = vmatprep.subr.mxu0 0.0
    %3122 = vmatpush1.msra.mxu0 %v3118
    %3123 = vmatprep.subr.mxu0 0.0
    %3124 = vmatpush1.msra.mxu0 0.0
    %3125 = vmatprep.subr.mxu0 0.0
    %3126 = vmatpush1.msra.mxu0 0.0
    %3127 = vmatprep.subr.mxu0 0.0
    %3128 = vmatpush1.msra.mxu0 0.0
    %3129 = vmatprep.subr.mxu0 0.0
    %3130 = vmatpush1.msra.mxu0 0.0
    %3131 = vmatprep.subr.mxu0 0.0
    %3132 = vmatpush1.msra.mxu0 0.0
    %3133 = vmatprep.subr.mxu0 0.0
    %3134 = vmatpush1.msra.mxu0 0.0
    %3135 = vmatprep.subr.mxu0 0.0
    %3136 = vmatpush1.msra.mxu0 0.0
    %3137 = vmatprep.subr.mxu0 0.0
    %3138 = vmatpush1.msra.mxu0 0.0
    %3139 = vmatprep.subr.mxu0 0.0
    %3140 = vmatpush1.msra.mxu0 0.0
    %3141 = vmatprep.subr.mxu0 0.0
    %3142 = vmatpush1.msra.mxu0 0.0
    %3143 = vmatprep.subr.mxu0 0.0
    %3144 = vmatpush1.msra.mxu0 0.0
    %3145 = vmatprep.subr.mxu0 0.0
    %3146 = vmatpush1.msra.mxu0 0.0
    %3147 = vmatprep.subr.mxu0 0.0
    %3148 = vmatpush1.msra.mxu0 0.0
    %3149 = vmatprep.subr.mxu0 0.0
    %3150 = vmatpush1.msra.mxu0 0.0
    %3151 = vmatprep.subr.mxu0 0.0
    %3152 = vmatpush1.msra.mxu0 0.0
    %3153 = vmatprep.subr.mxu0 0.0
    %3154 = vmatpush1.msra.mxu0 0.0
    %3155 = vmatprep.subr.mxu0 0.0
    %3156 = vmatpush1.msra.mxu0 0.0
    %3157 = vmatprep.subr.mxu0 0.0
    %3158 = vmatpush1.msra.mxu0 0.0
    %3159 = vmatprep.subr.mxu0 0.0
    %3160 = vmatpush1.msra.mxu0 0.0
    %3161 = vmatprep.subr.mxu0 0.0
    %3162 = vmatpush1.msra.mxu0 0.0
    %3163 = vmatprep.subr.mxu0 0.0
    %3164 = vmatpush1.msra.mxu0 0.0
    %3165 = vmatprep.subr.mxu0 0.0
    %3166 = vmatpush1.msra.mxu0 0.0
    %3167 = vmatprep.subr.mxu0 0.0
    %3168 = vmatpush1.msra.mxu0 0.0
    %3169 = vmatprep.subr.mxu0 0.0
    %3170 = vmatpush1.msra.mxu0 0.0
    %3171 = vmatprep.subr.mxu0 0.0
    %3172 = vmatpush1.msra.mxu0 0.0
    %3173 = vmatprep.subr.mxu0 0.0
    %3174 = vmatpush1.msra.mxu0 0.0
    %3175 = vmatprep.subr.mxu0 0.0
    %3176 = vmatpush1.msra.mxu0 0.0
    %3177 = vmatprep.subr.mxu0 0.0
    %3178 = vmatpush1.msra.mxu0 0.0
    %3179 = vmatprep.subr.mxu0 0.0
    %3180 = vmatpush1.msra.mxu0 0.0
    %3181 = vmatprep.subr.mxu0 0.0
    %3182 = vmatpush1.msra.mxu0 0.0
    %3183 = vmatprep.mubr.f32.mxu0 0.0
    %3184 = vmatmul.mubr.f32.gmra.mrb[0].mxu0 %v572
    %v3185 = vpop.f32.mrb[0].mxu0
    %v3186 = vadd.f32 %v84, %v3185
    %v3187 = vpop.f32.mrb[0].mxu0
    %3188 = vmatprep.mubr.f32.mxu0 0.0
    %3189 = vmatmul.mubr.f32.gmra.mrb[0].mxu0 %v575
    %v3190 = vpop.f32.mrb[0].mxu0
    %v3191 = vadd.f32 %v89, %v3190
    %v3192 = vpop.f32.mrb[0].mxu0
    %3193 = vdwg.mxu0
    %v3194 = vtanh.pop %v3186
    %v3195 = vtanh.pop %v3191
    %3196 = vmatprep.subr.mxu0 0.0
    %3197 = vmatpush1.msra.mxu0 %v3194
    %3198 = vmatprep.subr.mxu0 0.0
    %3199 = vmatpush1.msra.mxu0 %v3195
    %3200 = vmatprep.subr.mxu0 0.0
    %3201 = vmatpush1.msra.mxu0 0.0
    %3202 = vmatprep.subr.mxu0 0.0
    %3203 = vmatpush1.msra.mxu0 0.0
    %3204 = vmatprep.subr.mxu0 0.0
    %3205 = vmatpush1.msra.mxu0 0.0
    %3206 = vmatprep.subr.mxu0 0.0
    %3207 = vmatpush1.msra.mxu0 0.0
    %3208 = vmatprep.subr.mxu0 0.0
    %3209 = vmatpush1.msra.mxu0 0.0
    %3210 = vmatprep.subr.mxu0 0.0
    %3211 = vmatpush1.msra.mxu0 0.0
    %3212 = vmatprep.subr.mxu0 0.0
    %3213 = vmatpush1.msra.mxu0 0.0
    %3214 = vmatprep.subr.mxu0 0.0
    %3215 = vmatpush1.msra.mxu0 0.0
    %3216 = vmatprep.subr.mxu0 0.0
    %3217 = vmatpush1.msra.mxu0 0.0
    %3218 = vmatprep.subr.mxu0 0.0
    %3219 = vmatpush1.msra.mxu0 0.0
    %3220 = vmatprep.subr.mxu0 0.0
    %3221 = vmatpush1.msra.mxu0 0.0
    %3222 = vmatprep.subr.mxu0 0.0
    %3223 = vmatpush1.msra.mxu0 0.0
    %3224 = vmatprep.subr.mxu0 0.0
    %3225 = vmatpush1.msra.mxu0 0.0
    %3226 = vmatprep.subr.mxu0 0.0
    %3227 = vmatpush1.msra.mxu0 0.0
    %3228 = vmatprep.subr.mxu0 0.0
    %3229 = vmatpush1.msra.mxu0 0.0
    %3230 = vmatprep.subr.mxu0 0.0
    %3231 = vmatpush1.msra.mxu0 0.0
    %3232 = vmatprep.subr.mxu0 0.0
    %3233 = vmatpush1.msra.mxu0 0.0
    %3234 = vmatprep.subr.mxu0 0.0
    %3235 = vmatpush1.msra.mxu0 0.0
    %3236 = vmatprep.subr.mxu0 0.0
    %3237 = vmatpush1.msra.mxu0 0.0
    %3238 = vmatprep.subr.mxu0 0.0
    %3239 = vmatpush1.msra.mxu0 0.0
    %3240 = vmatprep.subr.mxu0 0.0
    %3241 = vmatpush1.msra.mxu0 0.0
    %3242 = vmatprep.subr.mxu0 0.0
    %3243 = vmatpush1.msra.mxu0 0.0
    %3244 = vmatprep.subr.mxu0 0.0
    %3245 = vmatpush1.msra.mxu0 0.0
    %3246 = vmatprep.subr.mxu0 0.0
    %3247 = vmatpush1.msra.mxu0 0.0
    %3248 = vmatprep.subr.mxu0 0.0
    %3249 = vmatpush1.msra.mxu0 0.0
    %3250 = vmatprep.subr.mxu0 0.0
    %3251 = vmatpush1.msra.mxu0 0.0
    %3252 = vmatprep.subr.mxu0 0.0
    %3253 = vmatpush1.msra.mxu0 0.0
    %3254 = vmatprep.subr.mxu0 0.0
    %3255 = vmatpush1.msra.mxu0 0.0
    %3256 = vmatprep.subr.mxu0 0.0
    %3257 = vmatpush1.msra.mxu0 0.0
    %3258 = vmatprep.subr.mxu0 0.0
    %3259 = vmatpush1.msra.mxu0 0.0
    %3260 = vmatprep.mubr.f32.mxu0 0.0
    %3261 = vmatmul.mubr.f32.gmra.mrb[0].mxu0 %v655
    %v3262 = vpop.f32.mrb[0].mxu0
    %v3263 = vadd.f32 %v96, %v3262
    %v3264 = vpop.f32.mrb[0].mxu0
    %3265 = vmatprep.mubr.f32.mxu0 0.0
    %3266 = vmatmul.mubr.f32.gmra.mrb[0].mxu0 %v658
    %v3267 = vpop.f32.mrb[0].mxu0
    %v3268 = vadd.f32 %v101, %v3267
    %v3269 = vpop.f32.mrb[0].mxu0
    %3270 = vdwg.mxu0
    %v3271 = vmul.f32 %v3263, 0.0625
    %v3272 = vmul.f32 %v3268, 0.0625
    %v3273 = vadd.f32 %v3117, %v3271
    %v3274 = vadd.f32 %v3118, %v3272
    %3275 = vmatprep.subr.mxu0 0.0
    %3276 = vmatpush1.msra.mxu0 %v3273
    %3277 = vmatprep.subr.mxu0 0.0
    %3278 = vmatpush1.msra.mxu0 %v3274
    %3279 = vmatprep.subr.mxu0 0.0
    %3280 = vmatpush1.msra.mxu0 0.0
    %3281 = vmatprep.subr.mxu0 0.0
    %3282 = vmatpush1.msra.mxu0 0.0
    %3283 = vmatprep.subr.mxu0 0.0
    %3284 = vmatpush1.msra.mxu0 0.0
    %3285 = vmatprep.subr.mxu0 0.0
    %3286 = vmatpush1.msra.mxu0 0.0
    %3287 = vmatprep.subr.mxu0 0.0
    %3288 = vmatpush1.msra.mxu0 0.0
    %3289 = vmatprep.subr.mxu0 0.0
    %3290 = vmatpush1.msra.mxu0 0.0
    %3291 = vmatprep.subr.mxu0 0.0
    %3292 = vmatpush1.msra.mxu0 0.0
    %3293 = vmatprep.subr.mxu0 0.0
    %3294 = vmatpush1.msra.mxu0 0.0
    %3295 = vmatprep.subr.mxu0 0.0
    %3296 = vmatpush1.msra.mxu0 0.0
    %3297 = vmatprep.subr.mxu0 0.0
    %3298 = vmatpush1.msra.mxu0 0.0
    %3299 = vmatprep.subr.mxu0 0.0
    %3300 = vmatpush1.msra.mxu0 0.0
    %3301 = vmatprep.subr.mxu0 0.0
    %3302 = vmatpush1.msra.mxu0 0.0
    %3303 = vmatprep.subr.mxu0 0.0
    %3304 = vmatpush1.msra.mxu0 0.0
    %3305 = vmatprep.subr.mxu0 0.0
    %3306 = vmatpush1.msra.mxu0 0.0
    %3307 = vmatprep.subr.mxu0 0.0
    %3308 = vmatpush1.msra.mxu0 0.0
    %3309 = vmatprep.subr.mxu0 0.0
    %3310 = vmatpush1.msra.mxu0 0.0
    %3311 = vmatprep.subr.mxu0 0.0
    %3312 = vmatpush1.msra.mxu0 0.0
    %3313 = vmatprep.subr.mxu0 0.0
    %3314 = vmatpush1.msra.mxu0 0.0
    %3315 = vmatprep.subr.mxu0 0.0
    %3316 = vmatpush1.msra.mxu0 0.0
    %3317 = vmatprep.subr.mxu0 0.0
    %3318 = vmatpush1.msra.mxu0 0.0
    %3319 = vmatprep.subr.mxu0 0.0
    %3320 = vmatpush1.msra.mxu0 0.0
    %3321 = vmatprep.subr.mxu0 0.0
    %3322 = vmatpush1.msra.mxu0 0.0
    %3323 = vmatprep.subr.mxu0 0.0
    %3324 = vmatpush1.msra.mxu0 0.0
    %3325 = vmatprep.subr.mxu0 0.0
    %3326 = vmatpush1.msra.mxu0 0.0
    %3327 = vmatprep.subr.mxu0 0.0
    %3328 = vmatpush1.msra.mxu0 0.0
    %3329 = vmatprep.subr.mxu0 0.0
    %3330 = vmatpush1.msra.mxu0 0.0
    %3331 = vmatprep.subr.mxu0 0.0
    %3332 = vmatpush1.msra.mxu0 0.0
    %3333 = vmatprep.subr.mxu0 0.0
    %3334 = vmatpush1.msra.mxu0 0.0
    %3335 = vmatprep.subr.mxu0 0.0
    %3336 = vmatpush1.msra.mxu0 0.0
    %3337 = vmatprep.subr.mxu0 0.0
    %3338 = vmatpush1.msra.mxu0 0.0
    %3339 = vmatprep.mubr.f32.mxu0 0.0
    %3340 = vmatmul.mubr.f32.gmra.mrb[0].mxu0 %v572
    %v3341 = vpop.f32.mrb[0].mxu0
    %v3342 = vadd.f32 %v84, %v3341
    %v3343 = vpop.f32.mrb[0].mxu0
    %3344 = vmatprep.mubr.f32.mxu0 0.0
    %3345 = vmatmul.mubr.f32.gmra.mrb[0].mxu0 %v575
    %v3346 = vpop.f32.mrb[0].mxu0
    %v3347 = vadd.f32 %v89, %v3346
    %v3348 = vpop.f32.mrb[0].mxu0
    %3349 = vdwg.mxu0
    %v3350 = vtanh.pop %v3342
    %v3351 = vtanh.pop %v3347
    %3352 = vmatprep.subr.mxu0 0.0
    %3353 = vmatpush1.msra.mxu0 %v3350
    %3354 = vmatprep.subr.mxu0 0.0
    %3355 = vmatpush1.msra.mxu0 %v3351
    %3356 = vmatprep.subr.mxu0 0.0
    %3357 = vmatpush1.msra.mxu0 0.0
    %3358 = vmatprep.subr.mxu0 0.0
    %3359 = vmatpush1.msra.mxu0 0.0
    %3360 = vmatprep.subr.mxu0 0.0
    %3361 = vmatpush1.msra.mxu0 0.0
    %3362 = vmatprep.subr.mxu0 0.0
    %3363 = vmatpush1.msra.mxu0 0.0
    %3364 = vmatprep.subr.mxu0 0.0
    %3365 = vmatpush1.msra.mxu0 0.0
    %3366 = vmatprep.subr.mxu0 0.0
    %3367 = vmatpush1.msra.mxu0 0.0
    %3368 = vmatprep.subr.mxu0 0.0
    %3369 = vmatpush1.msra.mxu0 0.0
    %3370 = vmatprep.subr.mxu0 0.0
    %3371 = vmatpush1.msra.mxu0 0.0
    %3372 = vmatprep.subr.mxu0 0.0
    %3373 = vmatpush1.msra.mxu0 0.0
    %3374 = vmatprep.subr.mxu0 0.0
    %3375 = vmatpush1.msra.mxu0 0.0
    %3376 = vmatprep.subr.mxu0 0.0
    %3377 = vmatpush1.msra.mxu0 0.0
    %3378 = vmatprep.subr.mxu0 0.0
    %3379 = vmatpush1.msra.mxu0 0.0
    %3380 = vmatprep.subr.mxu0 0.0
    %3381 = vmatpush1.msra.mxu0 0.0
    %3382 = vmatprep.subr.mxu0 0.0
    %3383 = vmatpush1.msra.mxu0 0.0
    %3384 = vmatprep.subr.mxu0 0.0
    %3385 = vmatpush1.msra.mxu0 0.0
    %3386 = vmatprep.subr.mxu0 0.0
    %3387 = vmatpush1.msra.mxu0 0.0
    %3388 = vmatprep.subr.mxu0 0.0
    %3389 = vmatpush1.msra.mxu0 0.0
    %3390 = vmatprep.subr.mxu0 0.0
    %3391 = vmatpush1.msra.mxu0 0.0
    %3392 = vmatprep.subr.mxu0 0.0
    %3393 = vmatpush1.msra.mxu0 0.0
    %3394 = vmatprep.subr.mxu0 0.0
    %3395 = vmatpush1.msra.mxu0 0.0
    %3396 = vmatprep.subr.mxu0 0.0
    %3397 = vmatpush1.msra.mxu0 0.0
    %3398 = vmatprep.subr.mxu0 0.0
    %3399 = vmatpush1.msra.mxu0 0.0
    %3400 = vmatprep.subr.mxu0 0.0
    %3401 = vmatpush1.msra.mxu0 0.0
    %3402 = vmatprep.subr.mxu0 0.0
    %3403 = vmatpush1.msra.mxu0 0.0
    %3404 = vmatprep.subr.mxu0 0.0
    %3405 = vmatpush1.msra.mxu0 0.0
    %3406 = vmatprep.subr.mxu0 0.0
    %3407 = vmatpush1.msra.mxu0 0.0
    %3408 = vmatprep.subr.mxu0 0.0
    %3409 = vmatpush1.msra.mxu0 0.0
    %3410 = vmatprep.subr.mxu0 0.0
    %3411 = vmatpush1.msra.mxu0 0.0
    %3412 = vmatprep.subr.mxu0 0.0
    %3413 = vmatpush1.msra.mxu0 0.0
    %3414 = vmatprep.subr.mxu0 0.0
    %3415 = vmatpush1.msra.mxu0 0.0
    %3416 = vmatprep.mubr.f32.mxu0 0.0
    %3417 = vmatmul.mubr.f32.gmra.mrb[0].mxu0 %v655
    %v3418 = vpop.f32.mrb[0].mxu0
    %v3419 = vadd.f32 %v96, %v3418
    %v3420 = vpop.f32.mrb[0].mxu0
    %3421 = vmatprep.mubr.f32.mxu0 0.0
    %3422 = vmatmul.mubr.f32.gmra.mrb[0].mxu0 %v658
    %v3423 = vpop.f32.mrb[0].mxu0
    %v3424 = vadd.f32 %v101, %v3423
    %v3425 = vpop.f32.mrb[0].mxu0
    %3426 = vdwg.mxu0
    %v3427 = vmul.f32 %v3419, 0.0625
    %v3428 = vmul.f32 %v3424, 0.0625
    %v3429 = vadd.f32 %v3117, %v3427
    %v3430 = vadd.f32 %v3118, %v3428
    %3431 = vmatprep.subr.mxu0 0.0
    %3432 = vmatpush1.msra.mxu0 %v3429
    %3433 = vmatprep.subr.mxu0 0.0
    %3434 = vmatpush1.msra.mxu0 %v3430
    %3435 = vmatprep.subr.mxu0 0.0
    %3436 = vmatpush1.msra.mxu0 0.0
    %3437 = vmatprep.subr.mxu0 0.0
    %3438 = vmatpush1.msra.mxu0 0.0
    %3439 = vmatprep.subr.mxu0 0.0
    %3440 = vmatpush1.msra.mxu0 0.0
    %3441 = vmatprep.subr.mxu0 0.0
    %3442 = vmatpush1.msra.mxu0 0.0
    %3443 = vmatprep.subr.mxu0 0.0
    %3444 = vmatpush1.msra.mxu0 0.0
    %3445 = vmatprep.subr.mxu0 0.0
    %3446 = vmatpush1.msra.mxu0 0.0
    %3447 = vmatprep.subr.mxu0 0.0
    %3448 = vmatpush1.msra.mxu0 0.0
    %3449 = vmatprep.subr.mxu0 0.0
    %3450 = vmatpush1.msra.mxu0 0.0
    %3451 = vmatprep.subr.mxu0 0.0
    %3452 = vmatpush1.msra.mxu0 0.0
    %3453 = vmatprep.subr.mxu0 0.0
    %3454 = vmatpush1.msra.mxu0 0.0
    %3455 = vmatprep.subr.mxu0 0.0
    %3456 = vmatpush1.msra.mxu0 0.0
    %3457 = vmatprep.subr.mxu0 0.0
    %3458 = vmatpush1.msra.mxu0 0.0
    %3459 = vmatprep.subr.mxu0 0.0
    %3460 = vmatpush1.msra.mxu0 0.0
    %3461 = vmatprep.subr.mxu0 0.0
    %3462 = vmatpush1.msra.mxu0 0.0
    %3463 = vmatprep.subr.mxu0 0.0
    %3464 = vmatpush1.msra.mxu0 0.0
    %3465 = vmatprep.subr.mxu0 0.0
    %3466 = vmatpush1.msra.mxu0 0.0
    %3467 = vmatprep.subr.mxu0 0.0
    %3468 = vmatpush1.msra.mxu0 0.0
    %3469 = vmatprep.subr.mxu0 0.0
    %3470 = vmatpush1.msra.mxu0 0.0
    %3471 = vmatprep.subr.mxu0 0.0
    %3472 = vmatpush1.msra.mxu0 0.0
    %3473 = vmatprep.subr.mxu0 0.0
    %3474 = vmatpush1.msra.mxu0 0.0
    %3475 = vmatprep.subr.mxu0 0.0
    %3476 = vmatpush1.msra.mxu0 0.0
    %3477 = vmatprep.subr.mxu0 0.0
    %3478 = vmatpush1.msra.mxu0 0.0
    %3479 = vmatprep.subr.mxu0 0.0
    %3480 = vmatpush1.msra.mxu0 0.0
    %3481 = vmatprep.subr.mxu0 0.0
    %3482 = vmatpush1.msra.mxu0 0.0
    %3483 = vmatprep.subr.mxu0 0.0
    %3484 = vmatpush1.msra.mxu0 0.0
    %3485 = vmatprep.subr.mxu0 0.0
    %3486 = vmatpush1.msra.mxu0 0.0
    %3487 = vmatprep.subr.mxu0 0.0
    %3488 = vmatpush1.msra.mxu0 0.0
    %3489 = vmatprep.subr.mxu0 0.0
    %3490 = vmatpush1.msra.mxu0 0.0
    %3491 = vmatprep.subr.mxu0 0.0
    %3492 = vmatpush1.msra.mxu0 0.0
    %3493 = vmatprep.subr.mxu0 0.0
    %3494 = vmatpush1.msra.mxu0 0.0
    %3495 = vmatprep.mubr.f32.mxu0 0.0
    %3496 = vmatmul.mubr.f32.gmra.mrb[0].mxu0 %v572
    %v3497 = vpop.f32.mrb[0].mxu0
    %v3498 = vadd.f32 %v84, %v3497
    %v3499 = vpop.f32.mrb[0].mxu0
    %3500 = vmatprep.mubr.f32.mxu0 0.0
    %3501 = vmatmul.mubr.f32.gmra.mrb[0].mxu0 %v575
    %v3502 = vpop.f32.mrb[0].mxu0
    %v3503 = vadd.f32 %v89, %v3502
    %v3504 = vpop.f32.mrb[0].mxu0
    %3505 = vdwg.mxu0
    %v3506 = vtanh.pop %v3498
    %v3507 = vtanh.pop %v3503
    %3508 = vmatprep.subr.mxu0 0.0
    %3509 = vmatpush1.msra.mxu0 %v3506
    %3510 = vmatprep.subr.mxu0 0.0
    %3511 = vmatpush1.msra.mxu0 %v3507
    %3512 = vmatprep.subr.mxu0 0.0
    %3513 = vmatpush1.msra.mxu0 0.0
    %3514 = vmatprep.subr.mxu0 0.0
    %3515 = vmatpush1.msra.mxu0 0.0
    %3516 = vmatprep.subr.mxu0 0.0
    %3517 = vmatpush1.msra.mxu0 0.0
    %3518 = vmatprep.subr.mxu0 0.0
    %3519 = vmatpush1.msra.mxu0 0.0
    %3520 = vmatprep.subr.mxu0 0.0
    %3521 = vmatpush1.msra.mxu0 0.0
    %3522 = vmatprep.subr.mxu0 0.0
    %3523 = vmatpush1.msra.mxu0 0.0
    %3524 = vmatprep.subr.mxu0 0.0
    %3525 = vmatpush1.msra.mxu0 0.0
    %3526 = vmatprep.subr.mxu0 0.0
    %3527 = vmatpush1.msra.mxu0 0.0
    %3528 = vmatprep.subr.mxu0 0.0
    %3529 = vmatpush1.msra.mxu0 0.0
    %3530 = vmatprep.subr.mxu0 0.0
    %3531 = vmatpush1.msra.mxu0 0.0
    %3532 = vmatprep.subr.mxu0 0.0
    %3533 = vmatpush1.msra.mxu0 0.0
    %3534 = vmatprep.subr.mxu0 0.0
    %3535 = vmatpush1.msra.mxu0 0.0
    %3536 = vmatprep.subr.mxu0 0.0
    %3537 = vmatpush1.msra.mxu0 0.0
    %3538 = vmatprep.subr.mxu0 0.0
    %3539 = vmatpush1.msra.mxu0 0.0
    %3540 = vmatprep.subr.mxu0 0.0
    %3541 = vmatpush1.msra.mxu0 0.0
    %3542 = vmatprep.subr.mxu0 0.0
    %3543 = vmatpush1.msra.mxu0 0.0
    %3544 = vmatprep.subr.mxu0 0.0
    %3545 = vmatpush1.msra.mxu0 0.0
    %3546 = vmatprep.subr.mxu0 0.0
    %3547 = vmatpush1.msra.mxu0 0.0
    %3548 = vmatprep.subr.mxu0 0.0
    %3549 = vmatpush1.msra.mxu0 0.0
    %3550 = vmatprep.subr.mxu0 0.0
    %3551 = vmatpush1.msra.mxu0 0.0
    %3552 = vmatprep.subr.mxu0 0.0
    %3553 = vmatpush1.msra.mxu0 0.0
    %3554 = vmatprep.subr.mxu0 0.0
    %3555 = vmatpush1.msra.mxu0 0.0
    %3556 = vmatprep.subr.mxu0 0.0
    %3557 = vmatpush1.msra.mxu0 0.0
    %3558 = vmatprep.subr.mxu0 0.0
    %3559 = vmatpush1.msra.mxu0 0.0
    %3560 = vmatprep.subr.mxu0 0.0
    %3561 = vmatpush1.msra.mxu0 0.0
    %3562 = vmatprep.subr.mxu0 0.0
    %3563 = vmatpush1.msra.mxu0 0.0
    %3564 = vmatprep.subr.mxu0 0.0
    %3565 = vmatpush1.msra.mxu0 0.0
    %3566 = vmatprep.subr.mxu0 0.0
    %3567 = vmatpush1.msra.mxu0 0.0
    %3568 = vmatprep.subr.mxu0 0.0
    %3569 = vmatpush1.msra.mxu0 0.0
    %3570 = vmatprep.subr.mxu0 0.0
    %3571 = vmatpush1.msra.mxu0 0.0
    %3572 = vmatprep.mubr.f32.mxu0 0.0
    %3573 = vmatmul.mubr.f32.gmra.mrb[0].mxu0 %v655
    %v3574 = vpop.f32.mrb[0].mxu0
    %v3575 = vadd.f32 %v96, %v3574
    %v3576 = vpop.f32.mrb[0].mxu0
    %3577 = vmatprep.mubr.f32.mxu0 0.0
    %3578 = vmatmul.mubr.f32.gmra.mrb[0].mxu0 %v658
    %v3579 = vpop.f32.mrb[0].mxu0
    %v3580 = vadd.f32 %v101, %v3579
    %v3581 = vpop.f32.mrb[0].mxu0
    %3582 = vdwg.mxu0
    %v3583 = vmul.f32 %v3575, 0.125
    %v3584 = vmul.f32 %v3580, 0.125
    %v3585 = vadd.f32 %v3117, %v3583
    %v3586 = vadd.f32 %v3118, %v3584
    %3587 = vmatprep.subr.mxu0 0.0
    %3588 = vmatpush1.msra.mxu0 %v3585
    %3589 = vmatprep.subr.mxu0 0.0
    %3590 = vmatpush1.msra.mxu0 %v3586
    %3591 = vmatprep.subr.mxu0 0.0
    %3592 = vmatpush1.msra.mxu0 0.0
    %3593 = vmatprep.subr.mxu0 0.0
    %3594 = vmatpush1.msra.mxu0 0.0
    %3595 = vmatprep.subr.mxu0 0.0
    %3596 = vmatpush1.msra.mxu0 0.0
    %3597 = vmatprep.subr.mxu0 0.0
    %3598 = vmatpush1.msra.mxu0 0.0
    %3599 = vmatprep.subr.mxu0 0.0
    %3600 = vmatpush1.msra.mxu0 0.0
    %3601 = vmatprep.subr.mxu0 0.0
    %3602 = vmatpush1.msra.mxu0 0.0
    %3603 = vmatprep.subr.mxu0 0.0
    %3604 = vmatpush1.msra.mxu0 0.0
    %3605 = vmatprep.subr.mxu0 0.0
    %3606 = vmatpush1.msra.mxu0 0.0
    %3607 = vmatprep.subr.mxu0 0.0
    %3608 = vmatpush1.msra.mxu0 0.0
    %3609 = vmatprep.subr.mxu0 0.0
    %3610 = vmatpush1.msra.mxu0 0.0
    %3611 = vmatprep.subr.mxu0 0.0
    %3612 = vmatpush1.msra.mxu0 0.0
    %3613 = vmatprep.subr.mxu0 0.0
    %3614 = vmatpush1.msra.mxu0 0.0
    %3615 = vmatprep.subr.mxu0 0.0
    %3616 = vmatpush1.msra.mxu0 0.0
    %3617 = vmatprep.subr.mxu0 0.0
    %3618 = vmatpush1.msra.mxu0 0.0
    %3619 = vmatprep.subr.mxu0 0.0
    %3620 = vmatpush1.msra.mxu0 0.0
    %3621 = vmatprep.subr.mxu0 0.0
    %3622 = vmatpush1.msra.mxu0 0.0
    %3623 = vmatprep.subr.mxu0 0.0
    %3624 = vmatpush1.msra.mxu0 0.0
    %3625 = vmatprep.subr.mxu0 0.0
    %3626 = vmatpush1.msra.mxu0 0.0
    %3627 = vmatprep.subr.mxu0 0.0
    %3628 = vmatpush1.msra.mxu0 0.0
    %3629 = vmatprep.subr.mxu0 0.0
    %3630 = vmatpush1.msra.mxu0 0.0
    %3631 = vmatprep.subr.mxu0 0.0
    %3632 = vmatpush1.msra.mxu0 0.0
    %3633 = vmatprep.subr.mxu0 0.0
    %3634 = vmatpush1.msra.mxu0 0.0
    %3635 = vmatprep.subr.mxu0 0.0
    %3636 = vmatpush1.msra.mxu0 0.0
    %3637 = vmatprep.subr.mxu0 0.0
    %3638 = vmatpush1.msra.mxu0 0.0
    %3639 = vmatprep.subr.mxu0 0.0
    %3640 = vmatpush1.msra.mxu0 0.0
    %3641 = vmatprep.subr.mxu0 0.0
    %3642 = vmatpush1.msra.mxu0 0.0
    %3643 = vmatprep.subr.mxu0 0.0
    %3644 = vmatpush1.msra.mxu0 0.0
    %3645 = vmatprep.subr.mxu0 0.0
    %3646 = vmatpush1.msra.mxu0 0.0
    %3647 = vmatprep.subr.mxu0 0.0
    %3648 = vmatpush1.msra.mxu0 0.0
    %3649 = vmatprep.subr.mxu0 0.0
    %3650 = vmatpush1.msra.mxu0 0.0
    %3651 = vmatprep.mubr.f32.mxu0 0.0
    %3652 = vmatmul.mubr.f32.gmra.mrb[0].mxu0 %v572
    %v3653 = vpop.f32.mrb[0].mxu0
    %v3654 = vadd.f32 %v84, %v3653
    %v3655 = vpop.f32.mrb[0].mxu0
    %3656 = vmatprep.mubr.f32.mxu0 0.0
    %3657 = vmatmul.mubr.f32.gmra.mrb[0].mxu0 %v575
    %v3658 = vpop.f32.mrb[0].mxu0
    %v3659 = vadd.f32 %v89, %v3658
    %v3660 = vpop.f32.mrb[0].mxu0
    %3661 = vdwg.mxu0
    %v3662 = vtanh.pop %v3654
    %v3663 = vtanh.pop %v3659
    %3664 = vmatprep.subr.mxu0 0.0
    %3665 = vmatpush1.msra.mxu0 %v3662
    %3666 = vmatprep.subr.mxu0 0.0
    %3667 = vmatpush1.msra.mxu0 %v3663
    %3668 = vmatprep.subr.mxu0 0.0
    %3669 = vmatpush1.msra.mxu0 0.0
    %3670 = vmatprep.subr.mxu0 0.0
    %3671 = vmatpush1.msra.mxu0 0.0
    %3672 = vmatprep.subr.mxu0 0.0
    %3673 = vmatpush1.msra.mxu0 0.0
    %3674 = vmatprep.subr.mxu0 0.0
    %3675 = vmatpush1.msra.mxu0 0.0
    %3676 = vmatprep.subr.mxu0 0.0
    %3677 = vmatpush1.msra.mxu0 0.0
    %3678 = vmatprep.subr.mxu0 0.0
    %3679 = vmatpush1.msra.mxu0 0.0
    %3680 = vmatprep.subr.mxu0 0.0
    %3681 = vmatpush1.msra.mxu0 0.0
    %3682 = vmatprep.subr.mxu0 0.0
    %3683 = vmatpush1.msra.mxu0 0.0
    %3684 = vmatprep.subr.mxu0 0.0
    %3685 = vmatpush1.msra.mxu0 0.0
    %3686 = vmatprep.subr.mxu0 0.0
    %3687 = vmatpush1.msra.mxu0 0.0
    %3688 = vmatprep.subr.mxu0 0.0
    %3689 = vmatpush1.msra.mxu0 0.0
    %3690 = vmatprep.subr.mxu0 0.0
    %3691 = vmatpush1.msra.mxu0 0.0
    %3692 = vmatprep.subr.mxu0 0.0
    %3693 = vmatpush1.msra.mxu0 0.0
    %3694 = vmatprep.subr.mxu0 0.0
    %3695 = vmatpush1.msra.mxu0 0.0
    %3696 = vmatprep.subr.mxu0 0.0
    %3697 = vmatpush1.msra.mxu0 0.0
    %3698 = vmatprep.subr.mxu0 0.0
    %3699 = vmatpush1.msra.mxu0 0.0
    %3700 = vmatprep.subr.mxu0 0.0
    %3701 = vmatpush1.msra.mxu0 0.0
    %3702 = vmatprep.subr.mxu0 0.0
    %3703 = vmatpush1.msra.mxu0 0.0
    %3704 = vmatprep.subr.mxu0 0.0
    %3705 = vmatpush1.msra.mxu0 0.0
    %3706 = vmatprep.subr.mxu0 0.0
    %3707 = vmatpush1.msra.mxu0 0.0
    %3708 = vmatprep.subr.mxu0 0.0
    %3709 = vmatpush1.msra.mxu0 0.0
    %3710 = vmatprep.subr.mxu0 0.0
    %3711 = vmatpush1.msra.mxu0 0.0
    %3712 = vmatprep.subr.mxu0 0.0
    %3713 = vmatpush1.msra.mxu0 0.0
    %3714 = vmatprep.subr.mxu0 0.0
    %3715 = vmatpush1.msra.mxu0 0.0
    %3716 = vmatprep.subr.mxu0 0.0
    %3717 = vmatpush1.msra.mxu0 0.0
    %3718 = vmatprep.subr.mxu0 0.0
    %3719 = vmatpush1.msra.mxu0 0.0
    %3720 = vmatprep.subr.mxu0 0.0
    %3721 = vmatpush1.msra.mxu0 0.0
    %3722 = vmatprep.subr.mxu0 0.0
    %3723 = vmatpush1.msra.mxu0 0.0
    %3724 = vmatprep.subr.mxu0 0.0
    %3725 = vmatpush1.msra.mxu0 0.0
    %3726 = vmatprep.subr.mxu0 0.0
    %3727 = vmatpush1.msra.mxu0 0.0
    %3728 = vmatprep.mubr.f32.mxu0 0.0
    %3729 = vmatmul.mubr.f32.gmra.mrb[0].mxu0 %v655
    %v3730 = vpop.f32.mrb[0].mxu0
    %v3731 = vadd.f32 %v96, %v3730
    %v3732 = vpop.f32.mrb[0].mxu0
    %3733 = vmatprep.mubr.f32.mxu0 0.0
    %3734 = vmatmul.mubr.f32.gmra.mrb[0].mxu0 %v658
    %v3735 = vpop.f32.mrb[0].mxu0
    %v3736 = vadd.f32 %v101, %v3735
    %v3737 = vpop.f32.mrb[0].mxu0
    %3738 = vdwg.mxu0
    %v3739 = vmul.f32 %v3419, 2.0
    %v3740 = vmul.f32 %v3424, 2.0
    %v3741 = vadd.f32 %v3263, %v3739
    %v3742 = vadd.f32 %v3268, %v3740
    %v3743 = vmul.f32 %v3575, 2.0
    %v3744 = vmul.f32 %v3580, 2.0
    %v3745 = vadd.f32 %v3741, %v3743
    %v3746 = vadd.f32 %v3742, %v3744
    %v3747 = vadd.f32 %v3745, %v3731
    %v3748 = vadd.f32 %v3746, %v3736
    %v3749 = vmul.f32 %v3747, 0.020833334
    %v3750 = vmul.f32 %v3748, 0.020833334
    %v3751 = vadd.f32 %v3117, %v3749
    %v3752 = vadd.f32 %v3118, %v3750
    %3753 = vmatprep.subr.mxu0 0.0
    %3754 = vmatpush1.msra.mxu0 %v3751
    %3755 = vmatprep.subr.mxu0 0.0
    %3756 = vmatpush1.msra.mxu0 %v3752
    %3757 = vmatprep.subr.mxu0 0.0
    %3758 = vmatpush1.msra.mxu0 0.0
    %3759 = vmatprep.subr.mxu0 0.0
    %3760 = vmatpush1.msra.mxu0 0.0
    %3761 = vmatprep.subr.mxu0 0.0
    %3762 = vmatpush1.msra.mxu0 0.0
    %3763 = vmatprep.subr.mxu0 0.0
    %3764 = vmatpush1.msra.mxu0 0.0
    %3765 = vmatprep.subr.mxu0 0.0
    %3766 = vmatpush1.msra.mxu0 0.0
    %3767 = vmatprep.subr.mxu0 0.0
    %3768 = vmatpush1.msra.mxu0 0.0
    %3769 = vmatprep.subr.mxu0 0.0
    %3770 = vmatpush1.msra.mxu0 0.0
    %3771 = vmatprep.subr.mxu0 0.0
    %3772 = vmatpush1.msra.mxu0 0.0
    %3773 = vmatprep.subr.mxu0 0.0
    %3774 = vmatpush1.msra.mxu0 0.0
    %3775 = vmatprep.subr.mxu0 0.0
    %3776 = vmatpush1.msra.mxu0 0.0
    %3777 = vmatprep.subr.mxu0 0.0
    %3778 = vmatpush1.msra.mxu0 0.0
    %3779 = vmatprep.subr.mxu0 0.0
    %3780 = vmatpush1.msra.mxu0 0.0
    %3781 = vmatprep.subr.mxu0 0.0
    %3782 = vmatpush1.msra.mxu0 0.0
    %3783 = vmatprep.subr.mxu0 0.0
    %3784 = vmatpush1.msra.mxu0 0.0
    %3785 = vmatprep.subr.mxu0 0.0
    %3786 = vmatpush1.msra.mxu0 0.0
    %3787 = vmatprep.subr.mxu0 0.0
    %3788 = vmatpush1.msra.mxu0 0.0
    %3789 = vmatprep.subr.mxu0 0.0
    %3790 = vmatpush1.msra.mxu0 0.0
    %3791 = vmatprep.subr.mxu0 0.0
    %3792 = vmatpush1.msra.mxu0 0.0
    %3793 = vmatprep.subr.mxu0 0.0
    %3794 = vmatpush1.msra.mxu0 0.0
    %3795 = vmatprep.subr.mxu0 0.0
    %3796 = vmatpush1.msra.mxu0 0.0
    %3797 = vmatprep.subr.mxu0 0.0
    %3798 = vmatpush1.msra.mxu0 0.0
    %3799 = vmatprep.subr.mxu0 0.0
    %3800 = vmatpush1.msra.mxu0 0.0
    %3801 = vmatprep.subr.mxu0 0.0
    %3802 = vmatpush1.msra.mxu0 0.0
    %3803 = vmatprep.subr.mxu0 0.0
    %3804 = vmatpush1.msra.mxu0 0.0
    %3805 = vmatprep.subr.mxu0 0.0
    %3806 = vmatpush1.msra.mxu0 0.0
    %3807 = vmatprep.subr.mxu0 0.0
    %3808 = vmatpush1.msra.mxu0 0.0
    %3809 = vmatprep.subr.mxu0 0.0
    %3810 = vmatpush1.msra.mxu0 0.0
    %3811 = vmatprep.subr.mxu0 0.0
    %3812 = vmatpush1.msra.mxu0 0.0
    %3813 = vmatprep.subr.mxu0 0.0
    %3814 = vmatpush1.msra.mxu0 0.0
    %3815 = vmatprep.subr.mxu0 0.0
    %3816 = vmatpush1.msra.mxu0 0.0
    %3817 = vmatprep.mubr.f32.mxu0 0.0
    %3818 = vmatmul.mubr.f32.gmra.mrb[0].mxu0 %v572
    %v3819 = vpop.f32.mrb[0].mxu0
    %v3820 = vadd.f32 %v84, %v3819
    %v3821 = vpop.f32.mrb[0].mxu0
    %3822 = vmatprep.mubr.f32.mxu0 0.0
    %3823 = vmatmul.mubr.f32.gmra.mrb[0].mxu0 %v575
    %v3824 = vpop.f32.mrb[0].mxu0
    %v3825 = vadd.f32 %v89, %v3824
    %v3826 = vpop.f32.mrb[0].mxu0
    %3827 = vdwg.mxu0
    %v3828 = vtanh.pop %v3820
    %v3829 = vtanh.pop %v3825
    %3830 = vmatprep.subr.mxu0 0.0
    %3831 = vmatpush1.msra.mxu0 %v3828
    %3832 = vmatprep.subr.mxu0 0.0
    %3833 = vmatpush1.msra.mxu0 %v3829
    %3834 = vmatprep.subr.mxu0 0.0
    %3835 = vmatpush1.msra.mxu0 0.0
    %3836 = vmatprep.subr.mxu0 0.0
    %3837 = vmatpush1.msra.mxu0 0.0
    %3838 = vmatprep.subr.mxu0 0.0
    %3839 = vmatpush1.msra.mxu0 0.0
    %3840 = vmatprep.subr.mxu0 0.0
    %3841 = vmatpush1.msra.mxu0 0.0
    %3842 = vmatprep.subr.mxu0 0.0
    %3843 = vmatpush1.msra.mxu0 0.0
    %3844 = vmatprep.subr.mxu0 0.0
    %3845 = vmatpush1.msra.mxu0 0.0
    %3846 = vmatprep.subr.mxu0 0.0
    %3847 = vmatpush1.msra.mxu0 0.0
    %3848 = vmatprep.subr.mxu0 0.0
    %3849 = vmatpush1.msra.mxu0 0.0
    %3850 = vmatprep.subr.mxu0 0.0
    %3851 = vmatpush1.msra.mxu0 0.0
    %3852 = vmatprep.subr.mxu0 0.0
    %3853 = vmatpush1.msra.mxu0 0.0
    %3854 = vmatprep.subr.mxu0 0.0
    %3855 = vmatpush1.msra.mxu0 0.0
    %3856 = vmatprep.subr.mxu0 0.0
    %3857 = vmatpush1.msra.mxu0 0.0
    %3858 = vmatprep.subr.mxu0 0.0
    %3859 = vmatpush1.msra.mxu0 0.0
    %3860 = vmatprep.subr.mxu0 0.0
    %3861 = vmatpush1.msra.mxu0 0.0
    %3862 = vmatprep.subr.mxu0 0.0
    %3863 = vmatpush1.msra.mxu0 0.0
    %3864 = vmatprep.subr.mxu0 0.0
    %3865 = vmatpush1.msra.mxu0 0.0
    %3866 = vmatprep.subr.mxu0 0.0
    %3867 = vmatpush1.msra.mxu0 0.0
    %3868 = vmatprep.subr.mxu0 0.0
    %3869 = vmatpush1.msra.mxu0 0.0
    %3870 = vmatprep.subr.mxu0 0.0
    %3871 = vmatpush1.msra.mxu0 0.0
    %3872 = vmatprep.subr.mxu0 0.0
    %3873 = vmatpush1.msra.mxu0 0.0
    %3874 = vmatprep.subr.mxu0 0.0
    %3875 = vmatpush1.msra.mxu0 0.0
    %3876 = vmatprep.subr.mxu0 0.0
    %3877 = vmatpush1.msra.mxu0 0.0
    %3878 = vmatprep.subr.mxu0 0.0
    %3879 = vmatpush1.msra.mxu0 0.0
    %3880 = vmatprep.subr.mxu0 0.0
    %3881 = vmatpush1.msra.mxu0 0.0
    %3882 = vmatprep.subr.mxu0 0.0
    %3883 = vmatpush1.msra.mxu0 0.0
    %3884 = vmatprep.subr.mxu0 0.0
    %3885 = vmatpush1.msra.mxu0 0.0
    %3886 = vmatprep.subr.mxu0 0.0
    %3887 = vmatpush1.msra.mxu0 0.0
    %3888 = vmatprep.subr.mxu0 0.0
    %3889 = vmatpush1.msra.mxu0 0.0
    %3890 = vmatprep.subr.mxu0 0.0
    %3891 = vmatpush1.msra.mxu0 0.0
    %3892 = vmatprep.subr.mxu0 0.0
    %3893 = vmatpush1.msra.mxu0 0.0
    %3894 = vmatprep.mubr.f32.mxu0 0.0
    %3895 = vmatmul.mubr.f32.gmra.mrb[0].mxu0 %v655
    %v3896 = vpop.f32.mrb[0].mxu0
    %v3897 = vadd.f32 %v96, %v3896
    %v3898 = vpop.f32.mrb[0].mxu0
    %3899 = vmatprep.mubr.f32.mxu0 0.0
    %3900 = vmatmul.mubr.f32.gmra.mrb[0].mxu0 %v658
    %v3901 = vpop.f32.mrb[0].mxu0
    %v3902 = vadd.f32 %v101, %v3901
    %v3903 = vpop.f32.mrb[0].mxu0
    %3904 = vdwg.mxu0
    %v3905 = vmul.f32 %v3897, 0.0625
    %v3906 = vmul.f32 %v3902, 0.0625
    %v3907 = vadd.f32 %v3751, %v3905
    %v3908 = vadd.f32 %v3752, %v3906
    %3909 = vmatprep.subr.mxu0 0.0
    %3910 = vmatpush1.msra.mxu0 %v3907
    %3911 = vmatprep.subr.mxu0 0.0
    %3912 = vmatpush1.msra.mxu0 %v3908
    %3913 = vmatprep.subr.mxu0 0.0
    %3914 = vmatpush1.msra.mxu0 0.0
    %3915 = vmatprep.subr.mxu0 0.0
    %3916 = vmatpush1.msra.mxu0 0.0
    %3917 = vmatprep.subr.mxu0 0.0
    %3918 = vmatpush1.msra.mxu0 0.0
    %3919 = vmatprep.subr.mxu0 0.0
    %3920 = vmatpush1.msra.mxu0 0.0
    %3921 = vmatprep.subr.mxu0 0.0
    %3922 = vmatpush1.msra.mxu0 0.0
    %3923 = vmatprep.subr.mxu0 0.0
    %3924 = vmatpush1.msra.mxu0 0.0
    %3925 = vmatprep.subr.mxu0 0.0
    %3926 = vmatpush1.msra.mxu0 0.0
    %3927 = vmatprep.subr.mxu0 0.0
    %3928 = vmatpush1.msra.mxu0 0.0
    %3929 = vmatprep.subr.mxu0 0.0
    %3930 = vmatpush1.msra.mxu0 0.0
    %3931 = vmatprep.subr.mxu0 0.0
    %3932 = vmatpush1.msra.mxu0 0.0
    %3933 = vmatprep.subr.mxu0 0.0
    %3934 = vmatpush1.msra.mxu0 0.0
    %3935 = vmatprep.subr.mxu0 0.0
    %3936 = vmatpush1.msra.mxu0 0.0
    %3937 = vmatprep.subr.mxu0 0.0
    %3938 = vmatpush1.msra.mxu0 0.0
    %3939 = vmatprep.subr.mxu0 0.0
    %3940 = vmatpush1.msra.mxu0 0.0
    %3941 = vmatprep.subr.mxu0 0.0
    %3942 = vmatpush1.msra.mxu0 0.0
    %3943 = vmatprep.subr.mxu0 0.0
    %3944 = vmatpush1.msra.mxu0 0.0
    %3945 = vmatprep.subr.mxu0 0.0
    %3946 = vmatpush1.msra.mxu0 0.0
    %3947 = vmatprep.subr.mxu0 0.0
    %3948 = vmatpush1.msra.mxu0 0.0
    %3949 = vmatprep.subr.mxu0 0.0
    %3950 = vmatpush1.msra.mxu0 0.0
    %3951 = vmatprep.subr.mxu0 0.0
    %3952 = vmatpush1.msra.mxu0 0.0
    %3953 = vmatprep.subr.mxu0 0.0
    %3954 = vmatpush1.msra.mxu0 0.0
    %3955 = vmatprep.subr.mxu0 0.0
    %3956 = vmatpush1.msra.mxu0 0.0
    %3957 = vmatprep.subr.mxu0 0.0
    %3958 = vmatpush1.msra.mxu0 0.0
    %3959 = vmatprep.subr.mxu0 0.0
    %3960 = vmatpush1.msra.mxu0 0.0
    %3961 = vmatprep.subr.mxu0 0.0
    %3962 = vmatpush1.msra.mxu0 0.0
    %3963 = vmatprep.subr.mxu0 0.0
    %3964 = vmatpush1.msra.mxu0 0.0
    %3965 = vmatprep.subr.mxu0 0.0
    %3966 = vmatpush1.msra.mxu0 0.0
    %3967 = vmatprep.subr.mxu0 0.0
    %3968 = vmatpush1.msra.mxu0 0.0
    %3969 = vmatprep.subr.mxu0 0.0
    %3970 = vmatpush1.msra.mxu0 0.0
    %3971 = vmatprep.subr.mxu0 0.0
    %3972 = vmatpush1.msra.mxu0 0.0
    %3973 = vmatprep.mubr.f32.mxu0 0.0
    %3974 = vmatmul.mubr.f32.gmra.mrb[0].mxu0 %v572
    %v3975 = vpop.f32.mrb[0].mxu0
    %v3976 = vadd.f32 %v84, %v3975
    %v3977 = vpop.f32.mrb[0].mxu0
    %3978 = vmatprep.mubr.f32.mxu0 0.0
    %3979 = vmatmul.mubr.f32.gmra.mrb[0].mxu0 %v575
    %v3980 = vpop.f32.mrb[0].mxu0
    %v3981 = vadd.f32 %v89, %v3980
    %v3982 = vpop.f32.mrb[0].mxu0
    %3983 = vdwg.mxu0
    %v3984 = vtanh.pop %v3976
    %v3985 = vtanh.pop %v3981
    %3986 = vmatprep.subr.mxu0 0.0
    %3987 = vmatpush1.msra.mxu0 %v3984
    %3988 = vmatprep.subr.mxu0 0.0
    %3989 = vmatpush1.msra.mxu0 %v3985
    %3990 = vmatprep.subr.mxu0 0.0
    %3991 = vmatpush1.msra.mxu0 0.0
    %3992 = vmatprep.subr.mxu0 0.0
    %3993 = vmatpush1.msra.mxu0 0.0
    %3994 = vmatprep.subr.mxu0 0.0
    %3995 = vmatpush1.msra.mxu0 0.0
    %3996 = vmatprep.subr.mxu0 0.0
    %3997 = vmatpush1.msra.mxu0 0.0
    %3998 = vmatprep.subr.mxu0 0.0
    %3999 = vmatpush1.msra.mxu0 0.0
    %4000 = vmatprep.subr.mxu0 0.0
    %4001 = vmatpush1.msra.mxu0 0.0
    %4002 = vmatprep.subr.mxu0 0.0
    %4003 = vmatpush1.msra.mxu0 0.0
    %4004 = vmatprep.subr.mxu0 0.0
    %4005 = vmatpush1.msra.mxu0 0.0
    %4006 = vmatprep.subr.mxu0 0.0
    %4007 = vmatpush1.msra.mxu0 0.0
    %4008 = vmatprep.subr.mxu0 0.0
    %4009 = vmatpush1.msra.mxu0 0.0
    %4010 = vmatprep.subr.mxu0 0.0
    %4011 = vmatpush1.msra.mxu0 0.0
    %4012 = vmatprep.subr.mxu0 0.0
    %4013 = vmatpush1.msra.mxu0 0.0
    %4014 = vmatprep.subr.mxu0 0.0
    %4015 = vmatpush1.msra.mxu0 0.0
    %4016 = vmatprep.subr.mxu0 0.0
    %4017 = vmatpush1.msra.mxu0 0.0
    %4018 = vmatprep.subr.mxu0 0.0
    %4019 = vmatpush1.msra.mxu0 0.0
    %4020 = vmatprep.subr.mxu0 0.0
    %4021 = vmatpush1.msra.mxu0 0.0
    %4022 = vmatprep.subr.mxu0 0.0
    %4023 = vmatpush1.msra.mxu0 0.0
    %4024 = vmatprep.subr.mxu0 0.0
    %4025 = vmatpush1.msra.mxu0 0.0
    %4026 = vmatprep.subr.mxu0 0.0
    %4027 = vmatpush1.msra.mxu0 0.0
    %4028 = vmatprep.subr.mxu0 0.0
    %4029 = vmatpush1.msra.mxu0 0.0
    %4030 = vmatprep.subr.mxu0 0.0
    %4031 = vmatpush1.msra.mxu0 0.0
    %4032 = vmatprep.subr.mxu0 0.0
    %4033 = vmatpush1.msra.mxu0 0.0
    %4034 = vmatprep.subr.mxu0 0.0
    %4035 = vmatpush1.msra.mxu0 0.0
    %4036 = vmatprep.subr.mxu0 0.0
    %4037 = vmatpush1.msra.mxu0 0.0
    %4038 = vmatprep.subr.mxu0 0.0
    %4039 = vmatpush1.msra.mxu0 0.0
    %4040 = vmatprep.subr.mxu0 0.0
    %4041 = vmatpush1.msra.mxu0 0.0
    %4042 = vmatprep.subr.mxu0 0.0
    %4043 = vmatpush1.msra.mxu0 0.0
    %4044 = vmatprep.subr.mxu0 0.0
    %4045 = vmatpush1.msra.mxu0 0.0
    %4046 = vmatprep.subr.mxu0 0.0
    %4047 = vmatpush1.msra.mxu0 0.0
    %4048 = vmatprep.subr.mxu0 0.0
    %4049 = vmatpush1.msra.mxu0 0.0
    %4050 = vmatprep.mubr.f32.mxu0 0.0
    %4051 = vmatmul.mubr.f32.gmra.mrb[0].mxu0 %v655
    %v4052 = vpop.f32.mrb[0].mxu0
    %v4053 = vadd.f32 %v96, %v4052
    %v4054 = vpop.f32.mrb[0].mxu0
    %4055 = vmatprep.mubr.f32.mxu0 0.0
    %4056 = vmatmul.mubr.f32.gmra.mrb[0].mxu0 %v658
    %v4057 = vpop.f32.mrb[0].mxu0
    %v4058 = vadd.f32 %v101, %v4057
    %v4059 = vpop.f32.mrb[0].mxu0
    %4060 = vdwg.mxu0
    %v4061 = vmul.f32 %v4053, 0.0625
    %v4062 = vmul.f32 %v4058, 0.0625
    %v4063 = vadd.f32 %v3751, %v4061
    %v4064 = vadd.f32 %v3752, %v4062
    %4065 = vmatprep.subr.mxu0 0.0
    %4066 = vmatpush1.msra.mxu0 %v4063
    %4067 = vmatprep.subr.mxu0 0.0
    %4068 = vmatpush1.msra.mxu0 %v4064
    %4069 = vmatprep.subr.mxu0 0.0
    %4070 = vmatpush1.msra.mxu0 0.0
    %4071 = vmatprep.subr.mxu0 0.0
    %4072 = vmatpush1.msra.mxu0 0.0
    %4073 = vmatprep.subr.mxu0 0.0
    %4074 = vmatpush1.msra.mxu0 0.0
    %4075 = vmatprep.subr.mxu0 0.0
    %4076 = vmatpush1.msra.mxu0 0.0
    %4077 = vmatprep.subr.mxu0 0.0
    %4078 = vmatpush1.msra.mxu0 0.0
    %4079 = vmatprep.subr.mxu0 0.0
    %4080 = vmatpush1.msra.mxu0 0.0
    %4081 = vmatprep.subr.mxu0 0.0
    %4082 = vmatpush1.msra.mxu0 0.0
    %4083 = vmatprep.subr.mxu0 0.0
    %4084 = vmatpush1.msra.mxu0 0.0
    %4085 = vmatprep.subr.mxu0 0.0
    %4086 = vmatpush1.msra.mxu0 0.0
    %4087 = vmatprep.subr.mxu0 0.0
    %4088 = vmatpush1.msra.mxu0 0.0
    %4089 = vmatprep.subr.mxu0 0.0
    %4090 = vmatpush1.msra.mxu0 0.0
    %4091 = vmatprep.subr.mxu0 0.0
    %4092 = vmatpush1.msra.mxu0 0.0
    %4093 = vmatprep.subr.mxu0 0.0
    %4094 = vmatpush1.msra.mxu0 0.0
    %4095 = vmatprep.subr.mxu0 0.0
    %4096 = vmatpush1.msra.mxu0 0.0
    %4097 = vmatprep.subr.mxu0 0.0
    %4098 = vmatpush1.msra.mxu0 0.0
    %4099 = vmatprep.subr.mxu0 0.0
    %4100 = vmatpush1.msra.mxu0 0.0
    %4101 = vmatprep.subr.mxu0 0.0
    %4102 = vmatpush1.msra.mxu0 0.0
    %4103 = vmatprep.subr.mxu0 0.0
    %4104 = vmatpush1.msra.mxu0 0.0
    %4105 = vmatprep.subr.mxu0 0.0
    %4106 = vmatpush1.msra.mxu0 0.0
    %4107 = vmatprep.subr.mxu0 0.0
    %4108 = vmatpush1.msra.mxu0 0.0
    %4109 = vmatprep.subr.mxu0 0.0
    %4110 = vmatpush1.msra.mxu0 0.0
    %4111 = vmatprep.subr.mxu0 0.0
    %4112 = vmatpush1.msra.mxu0 0.0
    %4113 = vmatprep.subr.mxu0 0.0
    %4114 = vmatpush1.msra.mxu0 0.0
    %4115 = vmatprep.subr.mxu0 0.0
    %4116 = vmatpush1.msra.mxu0 0.0
    %4117 = vmatprep.subr.mxu0 0.0
    %4118 = vmatpush1.msra.mxu0 0.0
    %4119 = vmatprep.subr.mxu0 0.0
    %4120 = vmatpush1.msra.mxu0 0.0
    %4121 = vmatprep.subr.mxu0 0.0
    %4122 = vmatpush1.msra.mxu0 0.0
    %4123 = vmatprep.subr.mxu0 0.0
    %4124 = vmatpush1.msra.mxu0 0.0
    %4125 = vmatprep.subr.mxu0 0.0
    %4126 = vmatpush1.msra.mxu0 0.0
    %4127 = vmatprep.subr.mxu0 0.0
    %4128 = vmatpush1.msra.mxu0 0.0
    %4129 = vmatprep.mubr.f32.mxu0 0.0
    %4130 = vmatmul.mubr.f32.gmra.mrb[0].mxu0 %v572
    %v4131 = vpop.f32.mrb[0].mxu0
    %v4132 = vadd.f32 %v84, %v4131
    %v4133 = vpop.f32.mrb[0].mxu0
    %4134 = vmatprep.mubr.f32.mxu0 0.0
    %4135 = vmatmul.mubr.f32.gmra.mrb[0].mxu0 %v575
    %v4136 = vpop.f32.mrb[0].mxu0
    %v4137 = vadd.f32 %v89, %v4136
    %v4138 = vpop.f32.mrb[0].mxu0
    %4139 = vdwg.mxu0
    %v4140 = vtanh.pop %v4132
    %v4141 = vtanh.pop %v4137
    %4142 = vmatprep.subr.mxu0 0.0
    %4143 = vmatpush1.msra.mxu0 %v4140
    %4144 = vmatprep.subr.mxu0 0.0
    %4145 = vmatpush1.msra.mxu0 %v4141
    %4146 = vmatprep.subr.mxu0 0.0
    %4147 = vmatpush1.msra.mxu0 0.0
    %4148 = vmatprep.subr.mxu0 0.0
    %4149 = vmatpush1.msra.mxu0 0.0
    %4150 = vmatprep.subr.mxu0 0.0
    %4151 = vmatpush1.msra.mxu0 0.0
    %4152 = vmatprep.subr.mxu0 0.0
    %4153 = vmatpush1.msra.mxu0 0.0
    %4154 = vmatprep.subr.mxu0 0.0
    %4155 = vmatpush1.msra.mxu0 0.0
    %4156 = vmatprep.subr.mxu0 0.0
    %4157 = vmatpush1.msra.mxu0 0.0
    %4158 = vmatprep.subr.mxu0 0.0
    %4159 = vmatpush1.msra.mxu0 0.0
    %4160 = vmatprep.subr.mxu0 0.0
    %4161 = vmatpush1.msra.mxu0 0.0
    %4162 = vmatprep.subr.mxu0 0.0
    %4163 = vmatpush1.msra.mxu0 0.0
    %4164 = vmatprep.subr.mxu0 0.0
    %4165 = vmatpush1.msra.mxu0 0.0
    %4166 = vmatprep.subr.mxu0 0.0
    %4167 = vmatpush1.msra.mxu0 0.0
    %4168 = vmatprep.subr.mxu0 0.0
    %4169 = vmatpush1.msra.mxu0 0.0
    %4170 = vmatprep.subr.mxu0 0.0
    %4171 = vmatpush1.msra.mxu0 0.0
    %4172 = vmatprep.subr.mxu0 0.0
    %4173 = vmatpush1.msra.mxu0 0.0
    %4174 = vmatprep.subr.mxu0 0.0
    %4175 = vmatpush1.msra.mxu0 0.0
    %4176 = vmatprep.subr.mxu0 0.0
    %4177 = vmatpush1.msra.mxu0 0.0
    %4178 = vmatprep.subr.mxu0 0.0
    %4179 = vmatpush1.msra.mxu0 0.0
    %4180 = vmatprep.subr.mxu0 0.0
    %4181 = vmatpush1.msra.mxu0 0.0
    %4182 = vmatprep.subr.mxu0 0.0
    %4183 = vmatpush1.msra.mxu0 0.0
    %4184 = vmatprep.subr.mxu0 0.0
    %4185 = vmatpush1.msra.mxu0 0.0
    %4186 = vmatprep.subr.mxu0 0.0
    %4187 = vmatpush1.msra.mxu0 0.0
    %4188 = vmatprep.subr.mxu0 0.0
    %4189 = vmatpush1.msra.mxu0 0.0
    %4190 = vmatprep.subr.mxu0 0.0
    %4191 = vmatpush1.msra.mxu0 0.0
    %4192 = vmatprep.subr.mxu0 0.0
    %4193 = vmatpush1.msra.mxu0 0.0
    %4194 = vmatprep.subr.mxu0 0.0
    %4195 = vmatpush1.msra.mxu0 0.0
    %4196 = vmatprep.subr.mxu0 0.0
    %4197 = vmatpush1.msra.mxu0 0.0
    %4198 = vmatprep.subr.mxu0 0.0
    %4199 = vmatpush1.msra.mxu0 0.0
    %4200 = vmatprep.subr.mxu0 0.0
    %4201 = vmatpush1.msra.mxu0 0.0
    %4202 = vmatprep.subr.mxu0 0.0
    %4203 = vmatpush1.msra.mxu0 0.0
    %4204 = vmatprep.subr.mxu0 0.0
    %4205 = vmatpush1.msra.mxu0 0.0
    %4206 = vmatprep.mubr.f32.mxu0 0.0
    %4207 = vmatmul.mubr.f32.gmra.mrb[0].mxu0 %v655
    %v4208 = vpop.f32.mrb[0].mxu0
    %v4209 = vadd.f32 %v96, %v4208
    %v4210 = vpop.f32.mrb[0].mxu0
    %4211 = vmatprep.mubr.f32.mxu0 0.0
    %4212 = vmatmul.mubr.f32.gmra.mrb[0].mxu0 %v658
    %v4213 = vpop.f32.mrb[0].mxu0
    %v4214 = vadd.f32 %v101, %v4213
    %v4215 = vpop.f32.mrb[0].mxu0
    %4216 = vdwg.mxu0
    %v4217 = vmul.f32 %v4209, 0.125
    %v4218 = vmul.f32 %v4214, 0.125
    %v4219 = vadd.f32 %v3751, %v4217
    %v4220 = vadd.f32 %v3752, %v4218
    %4221 = vmatprep.subr.mxu0 0.0
    %4222 = vmatpush1.msra.mxu0 %v4219
    %4223 = vmatprep.subr.mxu0 0.0
    %4224 = vmatpush1.msra.mxu0 %v4220
    %4225 = vmatprep.subr.mxu0 0.0
    %4226 = vmatpush1.msra.mxu0 0.0
    %4227 = vmatprep.subr.mxu0 0.0
    %4228 = vmatpush1.msra.mxu0 0.0
    %4229 = vmatprep.subr.mxu0 0.0
    %4230 = vmatpush1.msra.mxu0 0.0
    %4231 = vmatprep.subr.mxu0 0.0
    %4232 = vmatpush1.msra.mxu0 0.0
    %4233 = vmatprep.subr.mxu0 0.0
    %4234 = vmatpush1.msra.mxu0 0.0
    %4235 = vmatprep.subr.mxu0 0.0
    %4236 = vmatpush1.msra.mxu0 0.0
    %4237 = vmatprep.subr.mxu0 0.0
    %4238 = vmatpush1.msra.mxu0 0.0
    %4239 = vmatprep.subr.mxu0 0.0
    %4240 = vmatpush1.msra.mxu0 0.0
    %4241 = vmatprep.subr.mxu0 0.0
    %4242 = vmatpush1.msra.mxu0 0.0
    %4243 = vmatprep.subr.mxu0 0.0
    %4244 = vmatpush1.msra.mxu0 0.0
    %4245 = vmatprep.subr.mxu0 0.0
    %4246 = vmatpush1.msra.mxu0 0.0
    %4247 = vmatprep.subr.mxu0 0.0
    %4248 = vmatpush1.msra.mxu0 0.0
    %4249 = vmatprep.subr.mxu0 0.0
    %4250 = vmatpush1.msra.mxu0 0.0
    %4251 = vmatprep.subr.mxu0 0.0
    %4252 = vmatpush1.msra.mxu0 0.0
    %4253 = vmatprep.subr.mxu0 0.0
    %4254 = vmatpush1.msra.mxu0 0.0
    %4255 = vmatprep.subr.mxu0 0.0
    %4256 = vmatpush1.msra.mxu0 0.0
    %4257 = vmatprep.subr.mxu0 0.0
    %4258 = vmatpush1.msra.mxu0 0.0
    %4259 = vmatprep.subr.mxu0 0.0
    %4260 = vmatpush1.msra.mxu0 0.0
    %4261 = vmatprep.subr.mxu0 0.0
    %4262 = vmatpush1.msra.mxu0 0.0
    %4263 = vmatprep.subr.mxu0 0.0
    %4264 = vmatpush1.msra.mxu0 0.0
    %4265 = vmatprep.subr.mxu0 0.0
    %4266 = vmatpush1.msra.mxu0 0.0
    %4267 = vmatprep.subr.mxu0 0.0
    %4268 = vmatpush1.msra.mxu0 0.0
    %4269 = vmatprep.subr.mxu0 0.0
    %4270 = vmatpush1.msra.mxu0 0.0
    %4271 = vmatprep.subr.mxu0 0.0
    %4272 = vmatpush1.msra.mxu0 0.0
    %4273 = vmatprep.subr.mxu0 0.0
    %4274 = vmatpush1.msra.mxu0 0.0
    %4275 = vmatprep.subr.mxu0 0.0
    %4276 = vmatpush1.msra.mxu0 0.0
    %4277 = vmatprep.subr.mxu0 0.0
    %4278 = vmatpush1.msra.mxu0 0.0
    %4279 = vmatprep.subr.mxu0 0.0
    %4280 = vmatpush1.msra.mxu0 0.0
    %4281 = vmatprep.subr.mxu0 0.0
    %4282 = vmatpush1.msra.mxu0 0.0
    %4283 = vmatprep.subr.mxu0 0.0
    %4284 = vmatpush1.msra.mxu0 0.0
    %4285 = vmatprep.mubr.f32.mxu0 0.0
    %4286 = vmatmul.mubr.f32.gmra.mrb[0].mxu0 %v572
    %v4287 = vpop.f32.mrb[0].mxu0
    %v4288 = vadd.f32 %v84, %v4287
    %v4289 = vpop.f32.mrb[0].mxu0
    %4290 = vmatprep.mubr.f32.mxu0 0.0
    %4291 = vmatmul.mubr.f32.gmra.mrb[0].mxu0 %v575
    %v4292 = vpop.f32.mrb[0].mxu0
    %v4293 = vadd.f32 %v89, %v4292
    %v4294 = vpop.f32.mrb[0].mxu0
    %4295 = vdwg.mxu0
    %v4296 = vtanh.pop %v4288
    %v4297 = vtanh.pop %v4293
    %4298 = vmatprep.subr.mxu0 0.0
    %4299 = vmatpush1.msra.mxu0 %v4296
    %4300 = vmatprep.subr.mxu0 0.0
    %4301 = vmatpush1.msra.mxu0 %v4297
    %4302 = vmatprep.subr.mxu0 0.0
    %4303 = vmatpush1.msra.mxu0 0.0
    %4304 = vmatprep.subr.mxu0 0.0
    %4305 = vmatpush1.msra.mxu0 0.0
    %4306 = vmatprep.subr.mxu0 0.0
    %4307 = vmatpush1.msra.mxu0 0.0
    %4308 = vmatprep.subr.mxu0 0.0
    %4309 = vmatpush1.msra.mxu0 0.0
    %4310 = vmatprep.subr.mxu0 0.0
    %4311 = vmatpush1.msra.mxu0 0.0
    %4312 = vmatprep.subr.mxu0 0.0
    %4313 = vmatpush1.msra.mxu0 0.0
    %4314 = vmatprep.subr.mxu0 0.0
    %4315 = vmatpush1.msra.mxu0 0.0
    %4316 = vmatprep.subr.mxu0 0.0
    %4317 = vmatpush1.msra.mxu0 0.0
    %4318 = vmatprep.subr.mxu0 0.0
    %4319 = vmatpush1.msra.mxu0 0.0
    %4320 = vmatprep.subr.mxu0 0.0
    %4321 = vmatpush1.msra.mxu0 0.0
    %4322 = vmatprep.subr.mxu0 0.0
    %4323 = vmatpush1.msra.mxu0 0.0
    %4324 = vmatprep.subr.mxu0 0.0
    %4325 = vmatpush1.msra.mxu0 0.0
    %4326 = vmatprep.subr.mxu0 0.0
    %4327 = vmatpush1.msra.mxu0 0.0
    %4328 = vmatprep.subr.mxu0 0.0
    %4329 = vmatpush1.msra.mxu0 0.0
    %4330 = vmatprep.subr.mxu0 0.0
    %4331 = vmatpush1.msra.mxu0 0.0
    %4332 = vmatprep.subr.mxu0 0.0
    %4333 = vmatpush1.msra.mxu0 0.0
    %4334 = vmatprep.subr.mxu0 0.0
    %4335 = vmatpush1.msra.mxu0 0.0
    %4336 = vmatprep.subr.mxu0 0.0
    %4337 = vmatpush1.msra.mxu0 0.0
    %4338 = vmatprep.subr.mxu0 0.0
    %4339 = vmatpush1.msra.mxu0 0.0
    %4340 = vmatprep.subr.mxu0 0.0
    %4341 = vmatpush1.msra.mxu0 0.0
    %4342 = vmatprep.subr.mxu0 0.0
    %4343 = vmatpush1.msra.mxu0 0.0
    %4344 = vmatprep.subr.mxu0 0.0
    %4345 = vmatpush1.msra.mxu0 0.0
    %4346 = vmatprep.subr.mxu0 0.0
    %4347 = vmatpush1.msra.mxu0 0.0
    %4348 = vmatprep.subr.mxu0 0.0
    %4349 = vmatpush1.msra.mxu0 0.0
    %4350 = vmatprep.subr.mxu0 0.0
    %4351 = vmatpush1.msra.mxu0 0.0
    %4352 = vmatprep.subr.mxu0 0.0
    %4353 = vmatpush1.msra.mxu0 0.0
    %4354 = vmatprep.subr.mxu0 0.0
    %4355 = vmatpush1.msra.mxu0 0.0
    %4356 = vmatprep.subr.mxu0 0.0
    %4357 = vmatpush1.msra.mxu0 0.0
    %4358 = vmatprep.subr.mxu0 0.0
    %4359 = vmatpush1.msra.mxu0 0.0
    %4360 = vmatprep.subr.mxu0 0.0
    %4361 = vmatpush1.msra.mxu0 0.0
    %4362 = vmatprep.mubr.f32.mxu0 0.0
    %4363 = vmatmul.mubr.f32.gmra.mrb[0].mxu0 %v655
    %v4364 = vpop.f32.mrb[0].mxu0
    %v4365 = vadd.f32 %v96, %v4364
    %v4366 = vpop.f32.mrb[0].mxu0
    %4367 = vmatprep.mubr.f32.mxu0 0.0
    %4368 = vmatmul.mubr.f32.gmra.mrb[0].mxu0 %v658
    %v4369 = vpop.f32.mrb[0].mxu0
    %v4370 = vadd.f32 %v101, %v4369
    %v4371 = vpop.f32.mrb[0].mxu0
    %4372 = vdwg.mxu0
    %v4373 = vmul.f32 %v4053, 2.0
    %v4374 = vmul.f32 %v4058, 2.0
    %v4375 = vadd.f32 %v3897, %v4373
    %v4376 = vadd.f32 %v3902, %v4374
    %v4377 = vmul.f32 %v4209, 2.0
    %v4378 = vmul.f32 %v4214, 2.0
    %v4379 = vadd.f32 %v4375, %v4377
    %v4380 = vadd.f32 %v4376, %v4378
    %v4381 = vadd.f32 %v4379, %v4365
    %v4382 = vadd.f32 %v4380, %v4370
    %v4383 = vmul.f32 %v4381, 0.020833334
    %v4384 = vmul.f32 %v4382, 0.020833334
    %v4385 = vadd.f32 %v3751, %v4383
    %v4386 = vadd.f32 %v3752, %v4384
    %4387 = vmatprep.subr.mxu0 0.0
    %4388 = vmatpush1.msra.mxu0 %v4385
    %4389 = vmatprep.subr.mxu0 0.0
    %4390 = vmatpush1.msra.mxu0 %v4386
    %4391 = vmatprep.subr.mxu0 0.0
    %4392 = vmatpush1.msra.mxu0 0.0
    %4393 = vmatprep.subr.mxu0 0.0
    %4394 = vmatpush1.msra.mxu0 0.0
    %4395 = vmatprep.subr.mxu0 0.0
    %4396 = vmatpush1.msra.mxu0 0.0
    %4397 = vmatprep.subr.mxu0 0.0
    %4398 = vmatpush1.msra.mxu0 0.0
    %4399 = vmatprep.subr.mxu0 0.0
    %4400 = vmatpush1.msra.mxu0 0.0
    %4401 = vmatprep.subr.mxu0 0.0
    %4402 = vmatpush1.msra.mxu0 0.0
    %4403 = vmatprep.subr.mxu0 0.0
    %4404 = vmatpush1.msra.mxu0 0.0
    %4405 = vmatprep.subr.mxu0 0.0
    %4406 = vmatpush1.msra.mxu0 0.0
    %4407 = vmatprep.subr.mxu0 0.0
    %4408 = vmatpush1.msra.mxu0 0.0
    %4409 = vmatprep.subr.mxu0 0.0
    %4410 = vmatpush1.msra.mxu0 0.0
    %4411 = vmatprep.subr.mxu0 0.0
    %4412 = vmatpush1.msra.mxu0 0.0
    %4413 = vmatprep.subr.mxu0 0.0
    %4414 = vmatpush1.msra.mxu0 0.0
    %4415 = vmatprep.subr.mxu0 0.0
    %4416 = vmatpush1.msra.mxu0 0.0
    %4417 = vmatprep.subr.mxu0 0.0
    %4418 = vmatpush1.msra.mxu0 0.0
    %4419 = vmatprep.subr.mxu0 0.0
    %4420 = vmatpush1.msra.mxu0 0.0
    %4421 = vmatprep.subr.mxu0 0.0
    %4422 = vmatpush1.msra.mxu0 0.0
    %4423 = vmatprep.subr.mxu0 0.0
    %4424 = vmatpush1.msra.mxu0 0.0
    %4425 = vmatprep.subr.mxu0 0.0
    %4426 = vmatpush1.msra.mxu0 0.0
    %4427 = vmatprep.subr.mxu0 0.0
    %4428 = vmatpush1.msra.mxu0 0.0
    %4429 = vmatprep.subr.mxu0 0.0
    %4430 = vmatpush1.msra.mxu0 0.0
    %4431 = vmatprep.subr.mxu0 0.0
    %4432 = vmatpush1.msra.mxu0 0.0
    %4433 = vmatprep.subr.mxu0 0.0
    %4434 = vmatpush1.msra.mxu0 0.0
    %4435 = vmatprep.subr.mxu0 0.0
    %4436 = vmatpush1.msra.mxu0 0.0
    %4437 = vmatprep.subr.mxu0 0.0
    %4438 = vmatpush1.msra.mxu0 0.0
    %4439 = vmatprep.subr.mxu0 0.0
    %4440 = vmatpush1.msra.mxu0 0.0
    %4441 = vmatprep.subr.mxu0 0.0
    %4442 = vmatpush1.msra.mxu0 0.0
    %4443 = vmatprep.subr.mxu0 0.0
    %4444 = vmatpush1.msra.mxu0 0.0
    %4445 = vmatprep.subr.mxu0 0.0
    %4446 = vmatpush1.msra.mxu0 0.0
    %4447 = vmatprep.subr.mxu0 0.0
    %4448 = vmatpush1.msra.mxu0 0.0
    %4449 = vmatprep.subr.mxu0 0.0
    %4450 = vmatpush1.msra.mxu0 0.0
    %4451 = vmatprep.mubr.f32.mxu0 0.0
    %4452 = vmatmul.mubr.f32.gmra.mrb[0].mxu0 %v572
    %v4453 = vpop.f32.mrb[0].mxu0
    %v4454 = vadd.f32 %v84, %v4453
    %v4455 = vpop.f32.mrb[0].mxu0
    %4456 = vmatprep.mubr.f32.mxu0 0.0
    %4457 = vmatmul.mubr.f32.gmra.mrb[0].mxu0 %v575
    %v4458 = vpop.f32.mrb[0].mxu0
    %v4459 = vadd.f32 %v89, %v4458
    %v4460 = vpop.f32.mrb[0].mxu0
    %4461 = vdwg.mxu0
    %v4462 = vtanh.pop %v4454
    %v4463 = vtanh.pop %v4459
    %4464 = vmatprep.subr.mxu0 0.0
    %4465 = vmatpush1.msra.mxu0 %v4462
    %4466 = vmatprep.subr.mxu0 0.0
    %4467 = vmatpush1.msra.mxu0 %v4463
    %4468 = vmatprep.subr.mxu0 0.0
    %4469 = vmatpush1.msra.mxu0 0.0
    %4470 = vmatprep.subr.mxu0 0.0
    %4471 = vmatpush1.msra.mxu0 0.0
    %4472 = vmatprep.subr.mxu0 0.0
    %4473 = vmatpush1.msra.mxu0 0.0
    %4474 = vmatprep.subr.mxu0 0.0
    %4475 = vmatpush1.msra.mxu0 0.0
    %4476 = vmatprep.subr.mxu0 0.0
    %4477 = vmatpush1.msra.mxu0 0.0
    %4478 = vmatprep.subr.mxu0 0.0
    %4479 = vmatpush1.msra.mxu0 0.0
    %4480 = vmatprep.subr.mxu0 0.0
    %4481 = vmatpush1.msra.mxu0 0.0
    %4482 = vmatprep.subr.mxu0 0.0
    %4483 = vmatpush1.msra.mxu0 0.0
    %4484 = vmatprep.subr.mxu0 0.0
    %4485 = vmatpush1.msra.mxu0 0.0
    %4486 = vmatprep.subr.mxu0 0.0
    %4487 = vmatpush1.msra.mxu0 0.0
    %4488 = vmatprep.subr.mxu0 0.0
    %4489 = vmatpush1.msra.mxu0 0.0
    %4490 = vmatprep.subr.mxu0 0.0
    %4491 = vmatpush1.msra.mxu0 0.0
    %4492 = vmatprep.subr.mxu0 0.0
    %4493 = vmatpush1.msra.mxu0 0.0
    %4494 = vmatprep.subr.mxu0 0.0
    %4495 = vmatpush1.msra.mxu0 0.0
    %4496 = vmatprep.subr.mxu0 0.0
    %4497 = vmatpush1.msra.mxu0 0.0
    %4498 = vmatprep.subr.mxu0 0.0
    %4499 = vmatpush1.msra.mxu0 0.0
    %4500 = vmatprep.subr.mxu0 0.0
    %4501 = vmatpush1.msra.mxu0 0.0
    %4502 = vmatprep.subr.mxu0 0.0
    %4503 = vmatpush1.msra.mxu0 0.0
    %4504 = vmatprep.subr.mxu0 0.0
    %4505 = vmatpush1.msra.mxu0 0.0
    %4506 = vmatprep.subr.mxu0 0.0
    %4507 = vmatpush1.msra.mxu0 0.0
    %4508 = vmatprep.subr.mxu0 0.0
    %4509 = vmatpush1.msra.mxu0 0.0
    %4510 = vmatprep.subr.mxu0 0.0
    %4511 = vmatpush1.msra.mxu0 0.0
    %4512 = vmatprep.subr.mxu0 0.0
    %4513 = vmatpush1.msra.mxu0 0.0
    %4514 = vmatprep.subr.mxu0 0.0
    %4515 = vmatpush1.msra.mxu0 0.0
    %4516 = vmatprep.subr.mxu0 0.0
    %4517 = vmatpush1.msra.mxu0 0.0
    %4518 = vmatprep.subr.mxu0 0.0
    %4519 = vmatpush1.msra.mxu0 0.0
    %4520 = vmatprep.subr.mxu0 0.0
    %4521 = vmatpush1.msra.mxu0 0.0
    %4522 = vmatprep.subr.mxu0 0.0
    %4523 = vmatpush1.msra.mxu0 0.0
    %4524 = vmatprep.subr.mxu0 0.0
    %4525 = vmatpush1.msra.mxu0 0.0
    %4526 = vmatprep.subr.mxu0 0.0
    %4527 = vmatpush1.msra.mxu0 0.0
    %4528 = vmatprep.mubr.f32.mxu0 0.0
    %4529 = vmatmul.mubr.f32.gmra.mrb[0].mxu0 %v655
    %v4530 = vpop.f32.mrb[0].mxu0
    %v4531 = vadd.f32 %v96, %v4530
    %v4532 = vpop.f32.mrb[0].mxu0
    %4533 = vmatprep.mubr.f32.mxu0 0.0
    %4534 = vmatmul.mubr.f32.gmra.mrb[0].mxu0 %v658
    %v4535 = vpop.f32.mrb[0].mxu0
    %v4536 = vadd.f32 %v101, %v4535
    %v4537 = vpop.f32.mrb[0].mxu0
    %4538 = vdwg.mxu0
    %v4539 = vmul.f32 %v4531, 0.0625
    %v4540 = vmul.f32 %v4536, 0.0625
    %v4541 = vadd.f32 %v4385, %v4539
    %v4542 = vadd.f32 %v4386, %v4540
    %4543 = vmatprep.subr.mxu0 0.0
    %4544 = vmatpush1.msra.mxu0 %v4541
    %4545 = vmatprep.subr.mxu0 0.0
    %4546 = vmatpush1.msra.mxu0 %v4542
    %4547 = vmatprep.subr.mxu0 0.0
    %4548 = vmatpush1.msra.mxu0 0.0
    %4549 = vmatprep.subr.mxu0 0.0
    %4550 = vmatpush1.msra.mxu0 0.0
    %4551 = vmatprep.subr.mxu0 0.0
    %4552 = vmatpush1.msra.mxu0 0.0
    %4553 = vmatprep.subr.mxu0 0.0
    %4554 = vmatpush1.msra.mxu0 0.0
    %4555 = vmatprep.subr.mxu0 0.0
    %4556 = vmatpush1.msra.mxu0 0.0
    %4557 = vmatprep.subr.mxu0 0.0
    %4558 = vmatpush1.msra.mxu0 0.0
    %4559 = vmatprep.subr.mxu0 0.0
    %4560 = vmatpush1.msra.mxu0 0.0
    %4561 = vmatprep.subr.mxu0 0.0
    %4562 = vmatpush1.msra.mxu0 0.0
    %4563 = vmatprep.subr.mxu0 0.0
    %4564 = vmatpush1.msra.mxu0 0.0
    %4565 = vmatprep.subr.mxu0 0.0
    %4566 = vmatpush1.msra.mxu0 0.0
    %4567 = vmatprep.subr.mxu0 0.0
    %4568 = vmatpush1.msra.mxu0 0.0
    %4569 = vmatprep.subr.mxu0 0.0
    %4570 = vmatpush1.msra.mxu0 0.0
    %4571 = vmatprep.subr.mxu0 0.0
    %4572 = vmatpush1.msra.mxu0 0.0
    %4573 = vmatprep.subr.mxu0 0.0
    %4574 = vmatpush1.msra.mxu0 0.0
    %4575 = vmatprep.subr.mxu0 0.0
    %4576 = vmatpush1.msra.mxu0 0.0
    %4577 = vmatprep.subr.mxu0 0.0
    %4578 = vmatpush1.msra.mxu0 0.0
    %4579 = vmatprep.subr.mxu0 0.0
    %4580 = vmatpush1.msra.mxu0 0.0
    %4581 = vmatprep.subr.mxu0 0.0
    %4582 = vmatpush1.msra.mxu0 0.0
    %4583 = vmatprep.subr.mxu0 0.0
    %4584 = vmatpush1.msra.mxu0 0.0
    %4585 = vmatprep.subr.mxu0 0.0
    %4586 = vmatpush1.msra.mxu0 0.0
    %4587 = vmatprep.subr.mxu0 0.0
    %4588 = vmatpush1.msra.mxu0 0.0
    %4589 = vmatprep.subr.mxu0 0.0
    %4590 = vmatpush1.msra.mxu0 0.0
    %4591 = vmatprep.subr.mxu0 0.0
    %4592 = vmatpush1.msra.mxu0 0.0
    %4593 = vmatprep.subr.mxu0 0.0
    %4594 = vmatpush1.msra.mxu0 0.0
    %4595 = vmatprep.subr.mxu0 0.0
    %4596 = vmatpush1.msra.mxu0 0.0
    %4597 = vmatprep.subr.mxu0 0.0
    %4598 = vmatpush1.msra.mxu0 0.0
    %4599 = vmatprep.subr.mxu0 0.0
    %4600 = vmatpush1.msra.mxu0 0.0
    %4601 = vmatprep.subr.mxu0 0.0
    %4602 = vmatpush1.msra.mxu0 0.0
    %4603 = vmatprep.subr.mxu0 0.0
    %4604 = vmatpush1.msra.mxu0 0.0
    %4605 = vmatprep.subr.mxu0 0.0
    %4606 = vmatpush1.msra.mxu0 0.0
    %4607 = vmatprep.mubr.f32.mxu0 0.0
    %4608 = vmatmul.mubr.f32.gmra.mrb[0].mxu0 %v572
    %v4609 = vpop.f32.mrb[0].mxu0
    %v4610 = vadd.f32 %v84, %v4609
    %v4611 = vpop.f32.mrb[0].mxu0
    %4612 = vmatprep.mubr.f32.mxu0 0.0
    %4613 = vmatmul.mubr.f32.gmra.mrb[0].mxu0 %v575
    %v4614 = vpop.f32.mrb[0].mxu0
    %v4615 = vadd.f32 %v89, %v4614
    %v4616 = vpop.f32.mrb[0].mxu0
    %4617 = vdwg.mxu0
    %v4618 = vtanh.pop %v4610
    %v4619 = vtanh.pop %v4615
    %4620 = vmatprep.subr.mxu0 0.0
    %4621 = vmatpush1.msra.mxu0 %v4618
    %4622 = vmatprep.subr.mxu0 0.0
    %4623 = vmatpush1.msra.mxu0 %v4619
    %4624 = vmatprep.subr.mxu0 0.0
    %4625 = vmatpush1.msra.mxu0 0.0
    %4626 = vmatprep.subr.mxu0 0.0
    %4627 = vmatpush1.msra.mxu0 0.0
    %4628 = vmatprep.subr.mxu0 0.0
    %4629 = vmatpush1.msra.mxu0 0.0
    %4630 = vmatprep.subr.mxu0 0.0
    %4631 = vmatpush1.msra.mxu0 0.0
    %4632 = vmatprep.subr.mxu0 0.0
    %4633 = vmatpush1.msra.mxu0 0.0
    %4634 = vmatprep.subr.mxu0 0.0
    %4635 = vmatpush1.msra.mxu0 0.0
    %4636 = vmatprep.subr.mxu0 0.0
    %4637 = vmatpush1.msra.mxu0 0.0
    %4638 = vmatprep.subr.mxu0 0.0
    %4639 = vmatpush1.msra.mxu0 0.0
    %4640 = vmatprep.subr.mxu0 0.0
    %4641 = vmatpush1.msra.mxu0 0.0
    %4642 = vmatprep.subr.mxu0 0.0
    %4643 = vmatpush1.msra.mxu0 0.0
    %4644 = vmatprep.subr.mxu0 0.0
    %4645 = vmatpush1.msra.mxu0 0.0
    %4646 = vmatprep.subr.mxu0 0.0
    %4647 = vmatpush1.msra.mxu0 0.0
    %4648 = vmatprep.subr.mxu0 0.0
    %4649 = vmatpush1.msra.mxu0 0.0
    %4650 = vmatprep.subr.mxu0 0.0
    %4651 = vmatpush1.msra.mxu0 0.0
    %4652 = vmatprep.subr.mxu0 0.0
    %4653 = vmatpush1.msra.mxu0 0.0
    %4654 = vmatprep.subr.mxu0 0.0
    %4655 = vmatpush1.msra.mxu0 0.0
    %4656 = vmatprep.subr.mxu0 0.0
    %4657 = vmatpush1.msra.mxu0 0.0
    %4658 = vmatprep.subr.mxu0 0.0
    %4659 = vmatpush1.msra.mxu0 0.0
    %4660 = vmatprep.subr.mxu0 0.0
    %4661 = vmatpush1.msra.mxu0 0.0
    %4662 = vmatprep.subr.mxu0 0.0
    %4663 = vmatpush1.msra.mxu0 0.0
    %4664 = vmatprep.subr.mxu0 0.0
    %4665 = vmatpush1.msra.mxu0 0.0
    %4666 = vmatprep.subr.mxu0 0.0
    %4667 = vmatpush1.msra.mxu0 0.0
    %4668 = vmatprep.subr.mxu0 0.0
    %4669 = vmatpush1.msra.mxu0 0.0
    %4670 = vmatprep.subr.mxu0 0.0
    %4671 = vmatpush1.msra.mxu0 0.0
    %4672 = vmatprep.subr.mxu0 0.0
    %4673 = vmatpush1.msra.mxu0 0.0
    %4674 = vmatprep.subr.mxu0 0.0
    %4675 = vmatpush1.msra.mxu0 0.0
    %4676 = vmatprep.subr.mxu0 0.0
    %4677 = vmatpush1.msra.mxu0 0.0
    %4678 = vmatprep.subr.mxu0 0.0
    %4679 = vmatpush1.msra.mxu0 0.0
    %4680 = vmatprep.subr.mxu0 0.0
    %4681 = vmatpush1.msra.mxu0 0.0
    %4682 = vmatprep.subr.mxu0 0.0
    %4683 = vmatpush1.msra.mxu0 0.0
    %4684 = vmatprep.mubr.f32.mxu0 0.0
    %4685 = vmatmul.mubr.f32.gmra.mrb[0].mxu0 %v655
    %v4686 = vpop.f32.mrb[0].mxu0
    %v4687 = vadd.f32 %v96, %v4686
    %v4688 = vpop.f32.mrb[0].mxu0
    %4689 = vmatprep.mubr.f32.mxu0 0.0
    %4690 = vmatmul.mubr.f32.gmra.mrb[0].mxu0 %v658
    %v4691 = vpop.f32.mrb[0].mxu0
    %v4692 = vadd.f32 %v101, %v4691
    %v4693 = vpop.f32.mrb[0].mxu0
    %4694 = vdwg.mxu0
    %v4695 = vmul.f32 %v4687, 0.0625
    %v4696 = vmul.f32 %v4692, 0.0625
    %v4697 = vadd.f32 %v4385, %v4695
    %v4698 = vadd.f32 %v4386, %v4696
    %4699 = vmatprep.subr.mxu0 0.0
    %4700 = vmatpush1.msra.mxu0 %v4697
    %4701 = vmatprep.subr.mxu0 0.0
    %4702 = vmatpush1.msra.mxu0 %v4698
    %4703 = vmatprep.subr.mxu0 0.0
    %4704 = vmatpush1.msra.mxu0 0.0
    %4705 = vmatprep.subr.mxu0 0.0
    %4706 = vmatpush1.msra.mxu0 0.0
    %4707 = vmatprep.subr.mxu0 0.0
    %4708 = vmatpush1.msra.mxu0 0.0
    %4709 = vmatprep.subr.mxu0 0.0
    %4710 = vmatpush1.msra.mxu0 0.0
    %4711 = vmatprep.subr.mxu0 0.0
    %4712 = vmatpush1.msra.mxu0 0.0
    %4713 = vmatprep.subr.mxu0 0.0
    %4714 = vmatpush1.msra.mxu0 0.0
    %4715 = vmatprep.subr.mxu0 0.0
    %4716 = vmatpush1.msra.mxu0 0.0
    %4717 = vmatprep.subr.mxu0 0.0
    %4718 = vmatpush1.msra.mxu0 0.0
    %4719 = vmatprep.subr.mxu0 0.0
    %4720 = vmatpush1.msra.mxu0 0.0
    %4721 = vmatprep.subr.mxu0 0.0
    %4722 = vmatpush1.msra.mxu0 0.0
    %4723 = vmatprep.subr.mxu0 0.0
    %4724 = vmatpush1.msra.mxu0 0.0
    %4725 = vmatprep.subr.mxu0 0.0
    %4726 = vmatpush1.msra.mxu0 0.0
    %4727 = vmatprep.subr.mxu0 0.0
    %4728 = vmatpush1.msra.mxu0 0.0
    %4729 = vmatprep.subr.mxu0 0.0
    %4730 = vmatpush1.msra.mxu0 0.0
    %4731 = vmatprep.subr.mxu0 0.0
    %4732 = vmatpush1.msra.mxu0 0.0
    %4733 = vmatprep.subr.mxu0 0.0
    %4734 = vmatpush1.msra.mxu0 0.0
    %4735 = vmatprep.subr.mxu0 0.0
    %4736 = vmatpush1.msra.mxu0 0.0
    %4737 = vmatprep.subr.mxu0 0.0
    %4738 = vmatpush1.msra.mxu0 0.0
    %4739 = vmatprep.subr.mxu0 0.0
    %4740 = vmatpush1.msra.mxu0 0.0
    %4741 = vmatprep.subr.mxu0 0.0
    %4742 = vmatpush1.msra.mxu0 0.0
    %4743 = vmatprep.subr.mxu0 0.0
    %4744 = vmatpush1.msra.mxu0 0.0
    %4745 = vmatprep.subr.mxu0 0.0
    %4746 = vmatpush1.msra.mxu0 0.0
    %4747 = vmatprep.subr.mxu0 0.0
    %4748 = vmatpush1.msra.mxu0 0.0
    %4749 = vmatprep.subr.mxu0 0.0
    %4750 = vmatpush1.msra.mxu0 0.0
    %4751 = vmatprep.subr.mxu0 0.0
    %4752 = vmatpush1.msra.mxu0 0.0
    %4753 = vmatprep.subr.mxu0 0.0
    %4754 = vmatpush1.msra.mxu0 0.0
    %4755 = vmatprep.subr.mxu0 0.0
    %4756 = vmatpush1.msra.mxu0 0.0
    %4757 = vmatprep.subr.mxu0 0.0
    %4758 = vmatpush1.msra.mxu0 0.0
    %4759 = vmatprep.subr.mxu0 0.0
    %4760 = vmatpush1.msra.mxu0 0.0
    %4761 = vmatprep.subr.mxu0 0.0
    %4762 = vmatpush1.msra.mxu0 0.0
    %4763 = vmatprep.mubr.f32.mxu0 0.0
    %4764 = vmatmul.mubr.f32.gmra.mrb[0].mxu0 %v572
    %v4765 = vpop.f32.mrb[0].mxu0
    %v4766 = vadd.f32 %v84, %v4765
    %v4767 = vpop.f32.mrb[0].mxu0
    %4768 = vmatprep.mubr.f32.mxu0 0.0
    %4769 = vmatmul.mubr.f32.gmra.mrb[0].mxu0 %v575
    %v4770 = vpop.f32.mrb[0].mxu0
    %v4771 = vadd.f32 %v89, %v4770
    %v4772 = vpop.f32.mrb[0].mxu0
    %4773 = vdwg.mxu0
    %v4774 = vtanh.pop %v4766
    %v4775 = vtanh.pop %v4771
    %4776 = vmatprep.subr.mxu0 0.0
    %4777 = vmatpush1.msra.mxu0 %v4774
    %4778 = vmatprep.subr.mxu0 0.0
    %4779 = vmatpush1.msra.mxu0 %v4775
    %4780 = vmatprep.subr.mxu0 0.0
    %4781 = vmatpush1.msra.mxu0 0.0
    %4782 = vmatprep.subr.mxu0 0.0
    %4783 = vmatpush1.msra.mxu0 0.0
    %4784 = vmatprep.subr.mxu0 0.0
    %4785 = vmatpush1.msra.mxu0 0.0
    %4786 = vmatprep.subr.mxu0 0.0
    %4787 = vmatpush1.msra.mxu0 0.0
    %4788 = vmatprep.subr.mxu0 0.0
    %4789 = vmatpush1.msra.mxu0 0.0
    %4790 = vmatprep.subr.mxu0 0.0
    %4791 = vmatpush1.msra.mxu0 0.0
    %4792 = vmatprep.subr.mxu0 0.0
    %4793 = vmatpush1.msra.mxu0 0.0
    %4794 = vmatprep.subr.mxu0 0.0
    %4795 = vmatpush1.msra.mxu0 0.0
    %4796 = vmatprep.subr.mxu0 0.0
    %4797 = vmatpush1.msra.mxu0 0.0
    %4798 = vmatprep.subr.mxu0 0.0
    %4799 = vmatpush1.msra.mxu0 0.0
    %4800 = vmatprep.subr.mxu0 0.0
    %4801 = vmatpush1.msra.mxu0 0.0
    %4802 = vmatprep.subr.mxu0 0.0
    %4803 = vmatpush1.msra.mxu0 0.0
    %4804 = vmatprep.subr.mxu0 0.0
    %4805 = vmatpush1.msra.mxu0 0.0
    %4806 = vmatprep.subr.mxu0 0.0
    %4807 = vmatpush1.msra.mxu0 0.0
    %4808 = vmatprep.subr.mxu0 0.0
    %4809 = vmatpush1.msra.mxu0 0.0
    %4810 = vmatprep.subr.mxu0 0.0
    %4811 = vmatpush1.msra.mxu0 0.0
    %4812 = vmatprep.subr.mxu0 0.0
    %4813 = vmatpush1.msra.mxu0 0.0
    %4814 = vmatprep.subr.mxu0 0.0
    %4815 = vmatpush1.msra.mxu0 0.0
    %4816 = vmatprep.subr.mxu0 0.0
    %4817 = vmatpush1.msra.mxu0 0.0
    %4818 = vmatprep.subr.mxu0 0.0
    %4819 = vmatpush1.msra.mxu0 0.0
    %4820 = vmatprep.subr.mxu0 0.0
    %4821 = vmatpush1.msra.mxu0 0.0
    %4822 = vmatprep.subr.mxu0 0.0
    %4823 = vmatpush1.msra.mxu0 0.0
    %4824 = vmatprep.subr.mxu0 0.0
    %4825 = vmatpush1.msra.mxu0 0.0
    %4826 = vmatprep.subr.mxu0 0.0
    %4827 = vmatpush1.msra.mxu0 0.0
    %4828 = vmatprep.subr.mxu0 0.0
    %4829 = vmatpush1.msra.mxu0 0.0
    %4830 = vmatprep.subr.mxu0 0.0
    %4831 = vmatpush1.msra.mxu0 0.0
    %4832 = vmatprep.subr.mxu0 0.0
    %4833 = vmatpush1.msra.mxu0 0.0
    %4834 = vmatprep.subr.mxu0 0.0
    %4835 = vmatpush1.msra.mxu0 0.0
    %4836 = vmatprep.subr.mxu0 0.0
    %4837 = vmatpush1.msra.mxu0 0.0
    %4838 = vmatprep.subr.mxu0 0.0
    %4839 = vmatpush1.msra.mxu0 0.0
    %4840 = vmatprep.mubr.f32.mxu0 0.0
    %4841 = vmatmul.mubr.f32.gmra.mrb[0].mxu0 %v655
    %v4842 = vpop.f32.mrb[0].mxu0
    %v4843 = vadd.f32 %v96, %v4842
    %v4844 = vpop.f32.mrb[0].mxu0
    %4845 = vmatprep.mubr.f32.mxu0 0.0
    %4846 = vmatmul.mubr.f32.gmra.mrb[0].mxu0 %v658
    %v4847 = vpop.f32.mrb[0].mxu0
    %v4848 = vadd.f32 %v101, %v4847
    %v4849 = vpop.f32.mrb[0].mxu0
    %4850 = vdwg.mxu0
    %v4851 = vmul.f32 %v4843, 0.125
    %v4852 = vmul.f32 %v4848, 0.125
    %v4853 = vadd.f32 %v4385, %v4851
    %v4854 = vadd.f32 %v4386, %v4852
    %4855 = vmatprep.subr.mxu0 0.0
    %4856 = vmatpush1.msra.mxu0 %v4853
    %4857 = vmatprep.subr.mxu0 0.0
    %4858 = vmatpush1.msra.mxu0 %v4854
    %4859 = vmatprep.subr.mxu0 0.0
    %4860 = vmatpush1.msra.mxu0 0.0
    %4861 = vmatprep.subr.mxu0 0.0
    %4862 = vmatpush1.msra.mxu0 0.0
    %4863 = vmatprep.subr.mxu0 0.0
    %4864 = vmatpush1.msra.mxu0 0.0
    %4865 = vmatprep.subr.mxu0 0.0
    %4866 = vmatpush1.msra.mxu0 0.0
    %4867 = vmatprep.subr.mxu0 0.0
    %4868 = vmatpush1.msra.mxu0 0.0
    %4869 = vmatprep.subr.mxu0 0.0
    %4870 = vmatpush1.msra.mxu0 0.0
    %4871 = vmatprep.subr.mxu0 0.0
    %4872 = vmatpush1.msra.mxu0 0.0
    %4873 = vmatprep.subr.mxu0 0.0
    %4874 = vmatpush1.msra.mxu0 0.0
    %4875 = vmatprep.subr.mxu0 0.0
    %4876 = vmatpush1.msra.mxu0 0.0
    %4877 = vmatprep.subr.mxu0 0.0
    %4878 = vmatpush1.msra.mxu0 0.0
    %4879 = vmatprep.subr.mxu0 0.0
    %4880 = vmatpush1.msra.mxu0 0.0
    %4881 = vmatprep.subr.mxu0 0.0
    %4882 = vmatpush1.msra.mxu0 0.0
    %4883 = vmatprep.subr.mxu0 0.0
    %4884 = vmatpush1.msra.mxu0 0.0
    %4885 = vmatprep.subr.mxu0 0.0
    %4886 = vmatpush1.msra.mxu0 0.0
    %4887 = vmatprep.subr.mxu0 0.0
    %4888 = vmatpush1.msra.mxu0 0.0
    %4889 = vmatprep.subr.mxu0 0.0
    %4890 = vmatpush1.msra.mxu0 0.0
    %4891 = vmatprep.subr.mxu0 0.0
    %4892 = vmatpush1.msra.mxu0 0.0
    %4893 = vmatprep.subr.mxu0 0.0
    %4894 = vmatpush1.msra.mxu0 0.0
    %4895 = vmatprep.subr.mxu0 0.0
    %4896 = vmatpush1.msra.mxu0 0.0
    %4897 = vmatprep.subr.mxu0 0.0
    %4898 = vmatpush1.msra.mxu0 0.0
    %4899 = vmatprep.subr.mxu0 0.0
    %4900 = vmatpush1.msra.mxu0 0.0
    %4901 = vmatprep.subr.mxu0 0.0
    %4902 = vmatpush1.msra.mxu0 0.0
    %4903 = vmatprep.subr.mxu0 0.0
    %4904 = vmatpush1.msra.mxu0 0.0
    %4905 = vmatprep.subr.mxu0 0.0
    %4906 = vmatpush1.msra.mxu0 0.0
    %4907 = vmatprep.subr.mxu0 0.0
    %4908 = vmatpush1.msra.mxu0 0.0
    %4909 = vmatprep.subr.mxu0 0.0
    %4910 = vmatpush1.msra.mxu0 0.0
    %4911 = vmatprep.subr.mxu0 0.0
    %4912 = vmatpush1.msra.mxu0 0.0
    %4913 = vmatprep.subr.mxu0 0.0
    %4914 = vmatpush1.msra.mxu0 0.0
    %4915 = vmatprep.subr.mxu0 0.0
    %4916 = vmatpush1.msra.mxu0 0.0
    %4917 = vmatprep.subr.mxu0 0.0
    %4918 = vmatpush1.msra.mxu0 0.0
    %4919 = vmatprep.mubr.f32.mxu0 0.0
    %4920 = vmatmul.mubr.f32.gmra.mrb[0].mxu0 %v572
    %v4921 = vpop.f32.mrb[0].mxu0
    %v4922 = vadd.f32 %v84, %v4921
    %v4923 = vpop.f32.mrb[0].mxu0
    %4924 = vmatprep.mubr.f32.mxu0 0.0
    %4925 = vmatmul.mubr.f32.gmra.mrb[0].mxu0 %v575
    %v4926 = vpop.f32.mrb[0].mxu0
    %v4927 = vadd.f32 %v89, %v4926
    %v4928 = vpop.f32.mrb[0].mxu0
    %4929 = vdwg.mxu0
    %v4930 = vtanh.pop %v4922
    %v4931 = vtanh.pop %v4927
    %4932 = vmatprep.subr.mxu0 0.0
    %4933 = vmatpush1.msra.mxu0 %v4930
    %4934 = vmatprep.subr.mxu0 0.0
    %4935 = vmatpush1.msra.mxu0 %v4931
    %4936 = vmatprep.subr.mxu0 0.0
    %4937 = vmatpush1.msra.mxu0 0.0
    %4938 = vmatprep.subr.mxu0 0.0
    %4939 = vmatpush1.msra.mxu0 0.0
    %4940 = vmatprep.subr.mxu0 0.0
    %4941 = vmatpush1.msra.mxu0 0.0
    %4942 = vmatprep.subr.mxu0 0.0
    %4943 = vmatpush1.msra.mxu0 0.0
    %4944 = vmatprep.subr.mxu0 0.0
    %4945 = vmatpush1.msra.mxu0 0.0
    %4946 = vmatprep.subr.mxu0 0.0
    %4947 = vmatpush1.msra.mxu0 0.0
    %4948 = vmatprep.subr.mxu0 0.0
    %4949 = vmatpush1.msra.mxu0 0.0
    %4950 = vmatprep.subr.mxu0 0.0
    %4951 = vmatpush1.msra.mxu0 0.0
    %4952 = vmatprep.subr.mxu0 0.0
    %4953 = vmatpush1.msra.mxu0 0.0
    %4954 = vmatprep.subr.mxu0 0.0
    %4955 = vmatpush1.msra.mxu0 0.0
    %4956 = vmatprep.subr.mxu0 0.0
    %4957 = vmatpush1.msra.mxu0 0.0
    %4958 = vmatprep.subr.mxu0 0.0
    %4959 = vmatpush1.msra.mxu0 0.0
    %4960 = vmatprep.subr.mxu0 0.0
    %4961 = vmatpush1.msra.mxu0 0.0
    %4962 = vmatprep.subr.mxu0 0.0
    %4963 = vmatpush1.msra.mxu0 0.0
    %4964 = vmatprep.subr.mxu0 0.0
    %4965 = vmatpush1.msra.mxu0 0.0
    %4966 = vmatprep.subr.mxu0 0.0
    %4967 = vmatpush1.msra.mxu0 0.0
    %4968 = vmatprep.subr.mxu0 0.0
    %4969 = vmatpush1.msra.mxu0 0.0
    %4970 = vmatprep.subr.mxu0 0.0
    %4971 = vmatpush1.msra.mxu0 0.0
    %4972 = vmatprep.subr.mxu0 0.0
    %4973 = vmatpush1.msra.mxu0 0.0
    %4974 = vmatprep.subr.mxu0 0.0
    %4975 = vmatpush1.msra.mxu0 0.0
    %4976 = vmatprep.subr.mxu0 0.0
    %4977 = vmatpush1.msra.mxu0 0.0
    %4978 = vmatprep.subr.mxu0 0.0
    %4979 = vmatpush1.msra.mxu0 0.0
    %4980 = vmatprep.subr.mxu0 0.0
    %4981 = vmatpush1.msra.mxu0 0.0
    %4982 = vmatprep.subr.mxu0 0.0
    %4983 = vmatpush1.msra.mxu0 0.0
    %4984 = vmatprep.subr.mxu0 0.0
    %4985 = vmatpush1.msra.mxu0 0.0
    %4986 = vmatprep.subr.mxu0 0.0
    %4987 = vmatpush1.msra.mxu0 0.0
    %4988 = vmatprep.subr.mxu0 0.0
    %4989 = vmatpush1.msra.mxu0 0.0
    %4990 = vmatprep.subr.mxu0 0.0
    %4991 = vmatpush1.msra.mxu0 0.0
    %4992 = vmatprep.subr.mxu0 0.0
    %4993 = vmatpush1.msra.mxu0 0.0
    %4994 = vmatprep.subr.mxu0 0.0
    %4995 = vmatpush1.msra.mxu0 0.0
    %4996 = vmatprep.mubr.f32.mxu0 0.0
    %4997 = vmatmul.mubr.f32.gmra.mrb[0].mxu0 %v655
    %v4998 = vpop.f32.mrb[0].mxu0
    %v4999 = vadd.f32 %v96, %v4998
    %v5000 = vpop.f32.mrb[0].mxu0
    %5001 = vmatprep.mubr.f32.mxu0 0.0
    %5002 = vmatmul.mubr.f32.gmra.mrb[0].mxu0 %v658
    %v5003 = vpop.f32.mrb[0].mxu0
    %v5004 = vadd.f32 %v101, %v5003
    %v5005 = vpop.f32.mrb[0].mxu0
    %5006 = vdwg.mxu0
    %v5007 = vmul.f32 %v4687, 2.0
    %v5008 = vmul.f32 %v4692, 2.0
    %v5009 = vadd.f32 %v4531, %v5007
    %v5010 = vadd.f32 %v4536, %v5008
    %v5011 = vmul.f32 %v4843, 2.0
    %v5012 = vmul.f32 %v4848, 2.0
    %v5013 = vadd.f32 %v5009, %v5011
    %v5014 = vadd.f32 %v5010, %v5012
    %v5015 = vadd.f32 %v5013, %v4999
    %v5016 = vadd.f32 %v5014, %v5004
    %v5017 = vmul.f32 %v5015, 0.020833334
    %v5018 = vmul.f32 %v5016, 0.020833334
    %v5019 = vadd.f32 %v4385, %v5017
    %v5020 = vadd.f32 %v4386, %v5018
    %5021 = vmatprep.subr.mxu0 0.0
    %5022 = vmatpush1.msra.mxu0 %v5019
    %5023 = vmatprep.subr.mxu0 0.0
    %5024 = vmatpush1.msra.mxu0 %v5020
    %5025 = vmatprep.subr.mxu0 0.0
    %5026 = vmatpush1.msra.mxu0 0.0
    %5027 = vmatprep.subr.mxu0 0.0
    %5028 = vmatpush1.msra.mxu0 0.0
    %5029 = vmatprep.subr.mxu0 0.0
    %5030 = vmatpush1.msra.mxu0 0.0
    %5031 = vmatprep.subr.mxu0 0.0
    %5032 = vmatpush1.msra.mxu0 0.0
    %5033 = vmatprep.subr.mxu0 0.0
    %5034 = vmatpush1.msra.mxu0 0.0
    %5035 = vmatprep.subr.mxu0 0.0
    %5036 = vmatpush1.msra.mxu0 0.0
    %5037 = vmatprep.subr.mxu0 0.0
    %5038 = vmatpush1.msra.mxu0 0.0
    %5039 = vmatprep.subr.mxu0 0.0
    %5040 = vmatpush1.msra.mxu0 0.0
    %5041 = vmatprep.subr.mxu0 0.0
    %5042 = vmatpush1.msra.mxu0 0.0
    %5043 = vmatprep.subr.mxu0 0.0
    %5044 = vmatpush1.msra.mxu0 0.0
    %5045 = vmatprep.subr.mxu0 0.0
    %5046 = vmatpush1.msra.mxu0 0.0
    %5047 = vmatprep.subr.mxu0 0.0
    %5048 = vmatpush1.msra.mxu0 0.0
    %5049 = vmatprep.subr.mxu0 0.0
    %5050 = vmatpush1.msra.mxu0 0.0
    %5051 = vmatprep.subr.mxu0 0.0
    %5052 = vmatpush1.msra.mxu0 0.0
    %5053 = vmatprep.subr.mxu0 0.0
    %5054 = vmatpush1.msra.mxu0 0.0
    %5055 = vmatprep.subr.mxu0 0.0
    %5056 = vmatpush1.msra.mxu0 0.0
    %5057 = vmatprep.subr.mxu0 0.0
    %5058 = vmatpush1.msra.mxu0 0.0
    %5059 = vmatprep.subr.mxu0 0.0
    %5060 = vmatpush1.msra.mxu0 0.0
    %5061 = vmatprep.subr.mxu0 0.0
    %5062 = vmatpush1.msra.mxu0 0.0
    %5063 = vmatprep.subr.mxu0 0.0
    %5064 = vmatpush1.msra.mxu0 0.0
    %5065 = vmatprep.subr.mxu0 0.0
    %5066 = vmatpush1.msra.mxu0 0.0
    %5067 = vmatprep.subr.mxu0 0.0
    %5068 = vmatpush1.msra.mxu0 0.0
    %5069 = vmatprep.subr.mxu0 0.0
    %5070 = vmatpush1.msra.mxu0 0.0
    %5071 = vmatprep.subr.mxu0 0.0
    %5072 = vmatpush1.msra.mxu0 0.0
    %5073 = vmatprep.subr.mxu0 0.0
    %5074 = vmatpush1.msra.mxu0 0.0
    %5075 = vmatprep.subr.mxu0 0.0
    %5076 = vmatpush1.msra.mxu0 0.0
    %5077 = vmatprep.subr.mxu0 0.0
    %5078 = vmatpush1.msra.mxu0 0.0
    %5079 = vmatprep.subr.mxu0 0.0
    %5080 = vmatpush1.msra.mxu0 0.0
    %5081 = vmatprep.subr.mxu0 0.0
    %5082 = vmatpush1.msra.mxu0 0.0
    %5083 = vmatprep.subr.mxu0 0.0
    %5084 = vmatpush1.msra.mxu0 0.0
    %5085 = vmatprep.mubr.f32.mxu0 0.0
    %5086 = vmatmul.mubr.f32.gmra.mrb[0].mxu0 %v572
    %v5087 = vpop.f32.mrb[0].mxu0
    %v5088 = vadd.f32 %v84, %v5087
    %v5089 = vpop.f32.mrb[0].mxu0
    %5090 = vmatprep.mubr.f32.mxu0 0.0
    %5091 = vmatmul.mubr.f32.gmra.mrb[0].mxu0 %v575
    %v5092 = vpop.f32.mrb[0].mxu0
    %v5093 = vadd.f32 %v89, %v5092
    %v5094 = vpop.f32.mrb[0].mxu0
    %5095 = vdwg.mxu0
    %v5096 = vtanh.pop %v5088
    %v5097 = vtanh.pop %v5093
    %5098 = vmatprep.subr.mxu0 0.0
    %5099 = vmatpush1.msra.mxu0 %v5096
    %5100 = vmatprep.subr.mxu0 0.0
    %5101 = vmatpush1.msra.mxu0 %v5097
    %5102 = vmatprep.subr.mxu0 0.0
    %5103 = vmatpush1.msra.mxu0 0.0
    %5104 = vmatprep.subr.mxu0 0.0
    %5105 = vmatpush1.msra.mxu0 0.0
    %5106 = vmatprep.subr.mxu0 0.0
    %5107 = vmatpush1.msra.mxu0 0.0
    %5108 = vmatprep.subr.mxu0 0.0
    %5109 = vmatpush1.msra.mxu0 0.0
    %5110 = vmatprep.subr.mxu0 0.0
    %5111 = vmatpush1.msra.mxu0 0.0
    %5112 = vmatprep.subr.mxu0 0.0
    %5113 = vmatpush1.msra.mxu0 0.0
    %5114 = vmatprep.subr.mxu0 0.0
    %5115 = vmatpush1.msra.mxu0 0.0
    %5116 = vmatprep.subr.mxu0 0.0
    %5117 = vmatpush1.msra.mxu0 0.0
    %5118 = vmatprep.subr.mxu0 0.0
    %5119 = vmatpush1.msra.mxu0 0.0
    %5120 = vmatprep.subr.mxu0 0.0
    %5121 = vmatpush1.msra.mxu0 0.0
    %5122 = vmatprep.subr.mxu0 0.0
    %5123 = vmatpush1.msra.mxu0 0.0
    %5124 = vmatprep.subr.mxu0 0.0
    %5125 = vmatpush1.msra.mxu0 0.0
    %5126 = vmatprep.subr.mxu0 0.0
    %5127 = vmatpush1.msra.mxu0 0.0
    %5128 = vmatprep.subr.mxu0 0.0
    %5129 = vmatpush1.msra.mxu0 0.0
    %5130 = vmatprep.subr.mxu0 0.0
    %5131 = vmatpush1.msra.mxu0 0.0
    %5132 = vmatprep.subr.mxu0 0.0
    %5133 = vmatpush1.msra.mxu0 0.0
    %5134 = vmatprep.subr.mxu0 0.0
    %5135 = vmatpush1.msra.mxu0 0.0
    %5136 = vmatprep.subr.mxu0 0.0
    %5137 = vmatpush1.msra.mxu0 0.0
    %5138 = vmatprep.subr.mxu0 0.0
    %5139 = vmatpush1.msra.mxu0 0.0
    %5140 = vmatprep.subr.mxu0 0.0
    %5141 = vmatpush1.msra.mxu0 0.0
    %5142 = vmatprep.subr.mxu0 0.0
    %5143 = vmatpush1.msra.mxu0 0.0
    %5144 = vmatprep.subr.mxu0 0.0
    %5145 = vmatpush1.msra.mxu0 0.0
    %5146 = vmatprep.subr.mxu0 0.0
    %5147 = vmatpush1.msra.mxu0 0.0
    %5148 = vmatprep.subr.mxu0 0.0
    %5149 = vmatpush1.msra.mxu0 0.0
    %5150 = vmatprep.subr.mxu0 0.0
    %5151 = vmatpush1.msra.mxu0 0.0
    %5152 = vmatprep.subr.mxu0 0.0
    %5153 = vmatpush1.msra.mxu0 0.0
    %5154 = vmatprep.subr.mxu0 0.0
    %5155 = vmatpush1.msra.mxu0 0.0
    %5156 = vmatprep.subr.mxu0 0.0
    %5157 = vmatpush1.msra.mxu0 0.0
    %5158 = vmatprep.subr.mxu0 0.0
    %5159 = vmatpush1.msra.mxu0 0.0
    %5160 = vmatprep.subr.mxu0 0.0
    %5161 = vmatpush1.msra.mxu0 0.0
    %5162 = vmatprep.mubr.f32.mxu0 0.0
    %5163 = vmatmul.mubr.f32.gmra.mrb[0].mxu0 %v655
    %v5164 = vpop.f32.mrb[0].mxu0
    %v5165 = vadd.f32 %v96, %v5164
    %v5166 = vpop.f32.mrb[0].mxu0
    %5167 = vmatprep.mubr.f32.mxu0 0.0
    %5168 = vmatmul.mubr.f32.gmra.mrb[0].mxu0 %v658
    %v5169 = vpop.f32.mrb[0].mxu0
    %v5170 = vadd.f32 %v101, %v5169
    %v5171 = vpop.f32.mrb[0].mxu0
    %5172 = vdwg.mxu0
    %v5173 = vmul.f32 %v5165, 0.0625
    %v5174 = vmul.f32 %v5170, 0.0625
    %v5175 = vadd.f32 %v5019, %v5173
    %v5176 = vadd.f32 %v5020, %v5174
    %5177 = vmatprep.subr.mxu0 0.0
    %5178 = vmatpush1.msra.mxu0 %v5175
    %5179 = vmatprep.subr.mxu0 0.0
    %5180 = vmatpush1.msra.mxu0 %v5176
    %5181 = vmatprep.subr.mxu0 0.0
    %5182 = vmatpush1.msra.mxu0 0.0
    %5183 = vmatprep.subr.mxu0 0.0
    %5184 = vmatpush1.msra.mxu0 0.0
    %5185 = vmatprep.subr.mxu0 0.0
    %5186 = vmatpush1.msra.mxu0 0.0
    %5187 = vmatprep.subr.mxu0 0.0
    %5188 = vmatpush1.msra.mxu0 0.0
    %5189 = vmatprep.subr.mxu0 0.0
    %5190 = vmatpush1.msra.mxu0 0.0
    %5191 = vmatprep.subr.mxu0 0.0
    %5192 = vmatpush1.msra.mxu0 0.0
    %5193 = vmatprep.subr.mxu0 0.0
    %5194 = vmatpush1.msra.mxu0 0.0
    %5195 = vmatprep.subr.mxu0 0.0
    %5196 = vmatpush1.msra.mxu0 0.0
    %5197 = vmatprep.subr.mxu0 0.0
    %5198 = vmatpush1.msra.mxu0 0.0
    %5199 = vmatprep.subr.mxu0 0.0
    %5200 = vmatpush1.msra.mxu0 0.0
    %5201 = vmatprep.subr.mxu0 0.0
    %5202 = vmatpush1.msra.mxu0 0.0
    %5203 = vmatprep.subr.mxu0 0.0
    %5204 = vmatpush1.msra.mxu0 0.0
    %5205 = vmatprep.subr.mxu0 0.0
    %5206 = vmatpush1.msra.mxu0 0.0
    %5207 = vmatprep.subr.mxu0 0.0
    %5208 = vmatpush1.msra.mxu0 0.0
    %5209 = vmatprep.subr.mxu0 0.0
    %5210 = vmatpush1.msra.mxu0 0.0
    %5211 = vmatprep.subr.mxu0 0.0
    %5212 = vmatpush1.msra.mxu0 0.0
    %5213 = vmatprep.subr.mxu0 0.0
    %5214 = vmatpush1.msra.mxu0 0.0
    %5215 = vmatprep.subr.mxu0 0.0
    %5216 = vmatpush1.msra.mxu0 0.0
    %5217 = vmatprep.subr.mxu0 0.0
    %5218 = vmatpush1.msra.mxu0 0.0
    %5219 = vmatprep.subr.mxu0 0.0
    %5220 = vmatpush1.msra.mxu0 0.0
    %5221 = vmatprep.subr.mxu0 0.0
    %5222 = vmatpush1.msra.mxu0 0.0
    %5223 = vmatprep.subr.mxu0 0.0
    %5224 = vmatpush1.msra.mxu0 0.0
    %5225 = vmatprep.subr.mxu0 0.0
    %5226 = vmatpush1.msra.mxu0 0.0
    %5227 = vmatprep.subr.mxu0 0.0
    %5228 = vmatpush1.msra.mxu0 0.0
    %5229 = vmatprep.subr.mxu0 0.0
    %5230 = vmatpush1.msra.mxu0 0.0
    %5231 = vmatprep.subr.mxu0 0.0
    %5232 = vmatpush1.msra.mxu0 0.0
    %5233 = vmatprep.subr.mxu0 0.0
    %5234 = vmatpush1.msra.mxu0 0.0
    %5235 = vmatprep.subr.mxu0 0.0
    %5236 = vmatpush1.msra.mxu0 0.0
    %5237 = vmatprep.subr.mxu0 0.0
    %5238 = vmatpush1.msra.mxu0 0.0
    %5239 = vmatprep.subr.mxu0 0.0
    %5240 = vmatpush1.msra.mxu0 0.0
    %5241 = vmatprep.mubr.f32.mxu0 0.0
    %5242 = vmatmul.mubr.f32.gmra.mrb[0].mxu0 %v572
    %v5243 = vpop.f32.mrb[0].mxu0
    %v5244 = vadd.f32 %v84, %v5243
    %v5245 = vpop.f32.mrb[0].mxu0
    %5246 = vmatprep.mubr.f32.mxu0 0.0
    %5247 = vmatmul.mubr.f32.gmra.mrb[0].mxu0 %v575
    %v5248 = vpop.f32.mrb[0].mxu0
    %v5249 = vadd.f32 %v89, %v5248
    %v5250 = vpop.f32.mrb[0].mxu0
    %5251 = vdwg.mxu0
    %v5252 = vtanh.pop %v5244
    %v5253 = vtanh.pop %v5249
    %5254 = vmatprep.subr.mxu0 0.0
    %5255 = vmatpush1.msra.mxu0 %v5252
    %5256 = vmatprep.subr.mxu0 0.0
    %5257 = vmatpush1.msra.mxu0 %v5253
    %5258 = vmatprep.subr.mxu0 0.0
    %5259 = vmatpush1.msra.mxu0 0.0
    %5260 = vmatprep.subr.mxu0 0.0
    %5261 = vmatpush1.msra.mxu0 0.0
    %5262 = vmatprep.subr.mxu0 0.0
    %5263 = vmatpush1.msra.mxu0 0.0
    %5264 = vmatprep.subr.mxu0 0.0
    %5265 = vmatpush1.msra.mxu0 0.0
    %5266 = vmatprep.subr.mxu0 0.0
    %5267 = vmatpush1.msra.mxu0 0.0
    %5268 = vmatprep.subr.mxu0 0.0
    %5269 = vmatpush1.msra.mxu0 0.0
    %5270 = vmatprep.subr.mxu0 0.0
    %5271 = vmatpush1.msra.mxu0 0.0
    %5272 = vmatprep.subr.mxu0 0.0
    %5273 = vmatpush1.msra.mxu0 0.0
    %5274 = vmatprep.subr.mxu0 0.0
    %5275 = vmatpush1.msra.mxu0 0.0
    %5276 = vmatprep.subr.mxu0 0.0
    %5277 = vmatpush1.msra.mxu0 0.0
    %5278 = vmatprep.subr.mxu0 0.0
    %5279 = vmatpush1.msra.mxu0 0.0
    %5280 = vmatprep.subr.mxu0 0.0
    %5281 = vmatpush1.msra.mxu0 0.0
    %5282 = vmatprep.subr.mxu0 0.0
    %5283 = vmatpush1.msra.mxu0 0.0
    %5284 = vmatprep.subr.mxu0 0.0
    %5285 = vmatpush1.msra.mxu0 0.0
    %5286 = vmatprep.subr.mxu0 0.0
    %5287 = vmatpush1.msra.mxu0 0.0
    %5288 = vmatprep.subr.mxu0 0.0
    %5289 = vmatpush1.msra.mxu0 0.0
    %5290 = vmatprep.subr.mxu0 0.0
    %5291 = vmatpush1.msra.mxu0 0.0
    %5292 = vmatprep.subr.mxu0 0.0
    %5293 = vmatpush1.msra.mxu0 0.0
    %5294 = vmatprep.subr.mxu0 0.0
    %5295 = vmatpush1.msra.mxu0 0.0
    %5296 = vmatprep.subr.mxu0 0.0
    %5297 = vmatpush1.msra.mxu0 0.0
    %5298 = vmatprep.subr.mxu0 0.0
    %5299 = vmatpush1.msra.mxu0 0.0
    %5300 = vmatprep.subr.mxu0 0.0
    %5301 = vmatpush1.msra.mxu0 0.0
    %5302 = vmatprep.subr.mxu0 0.0
    %5303 = vmatpush1.msra.mxu0 0.0
    %5304 = vmatprep.subr.mxu0 0.0
    %5305 = vmatpush1.msra.mxu0 0.0
    %5306 = vmatprep.subr.mxu0 0.0
    %5307 = vmatpush1.msra.mxu0 0.0
    %5308 = vmatprep.subr.mxu0 0.0
    %5309 = vmatpush1.msra.mxu0 0.0
    %5310 = vmatprep.subr.mxu0 0.0
    %5311 = vmatpush1.msra.mxu0 0.0
    %5312 = vmatprep.subr.mxu0 0.0
    %5313 = vmatpush1.msra.mxu0 0.0
    %5314 = vmatprep.subr.mxu0 0.0
    %5315 = vmatpush1.msra.mxu0 0.0
    %5316 = vmatprep.subr.mxu0 0.0
    %5317 = vmatpush1.msra.mxu0 0.0
    %5318 = vmatprep.mubr.f32.mxu0 0.0
    %5319 = vmatmul.mubr.f32.gmra.mrb[0].mxu0 %v655
    %v5320 = vpop.f32.mrb[0].mxu0
    %v5321 = vadd.f32 %v96, %v5320
    %v5322 = vpop.f32.mrb[0].mxu0
    %5323 = vmatprep.mubr.f32.mxu0 0.0
    %5324 = vmatmul.mubr.f32.gmra.mrb[0].mxu0 %v658
    %v5325 = vpop.f32.mrb[0].mxu0
    %v5326 = vadd.f32 %v101, %v5325
    %v5327 = vpop.f32.mrb[0].mxu0
    %5328 = vdwg.mxu0
    %v5329 = vmul.f32 %v5321, 0.0625
    %v5330 = vmul.f32 %v5326, 0.0625
    %v5331 = vadd.f32 %v5019, %v5329
    %v5332 = vadd.f32 %v5020, %v5330
    %5333 = vmatprep.subr.mxu0 0.0
    %5334 = vmatpush1.msra.mxu0 %v5331
    %5335 = vmatprep.subr.mxu0 0.0
    %5336 = vmatpush1.msra.mxu0 %v5332
    %5337 = vmatprep.subr.mxu0 0.0
    %5338 = vmatpush1.msra.mxu0 0.0
    %5339 = vmatprep.subr.mxu0 0.0
    %5340 = vmatpush1.msra.mxu0 0.0
    %5341 = vmatprep.subr.mxu0 0.0
    %5342 = vmatpush1.msra.mxu0 0.0
    %5343 = vmatprep.subr.mxu0 0.0
    %5344 = vmatpush1.msra.mxu0 0.0
    %5345 = vmatprep.subr.mxu0 0.0
    %5346 = vmatpush1.msra.mxu0 0.0
    %5347 = vmatprep.subr.mxu0 0.0
    %5348 = vmatpush1.msra.mxu0 0.0
    %5349 = vmatprep.subr.mxu0 0.0
    %5350 = vmatpush1.msra.mxu0 0.0
    %5351 = vmatprep.subr.mxu0 0.0
    %5352 = vmatpush1.msra.mxu0 0.0
    %5353 = vmatprep.subr.mxu0 0.0
    %5354 = vmatpush1.msra.mxu0 0.0
    %5355 = vmatprep.subr.mxu0 0.0
    %5356 = vmatpush1.msra.mxu0 0.0
    %5357 = vmatprep.subr.mxu0 0.0
    %5358 = vmatpush1.msra.mxu0 0.0
    %5359 = vmatprep.subr.mxu0 0.0
    %5360 = vmatpush1.msra.mxu0 0.0
    %5361 = vmatprep.subr.mxu0 0.0
    %5362 = vmatpush1.msra.mxu0 0.0
    %5363 = vmatprep.subr.mxu0 0.0
    %5364 = vmatpush1.msra.mxu0 0.0
    %5365 = vmatprep.subr.mxu0 0.0
    %5366 = vmatpush1.msra.mxu0 0.0
    %5367 = vmatprep.subr.mxu0 0.0
    %5368 = vmatpush1.msra.mxu0 0.0
    %5369 = vmatprep.subr.mxu0 0.0
    %5370 = vmatpush1.msra.mxu0 0.0
    %5371 = vmatprep.subr.mxu0 0.0
    %5372 = vmatpush1.msra.mxu0 0.0
    %5373 = vmatprep.subr.mxu0 0.0
    %5374 = vmatpush1.msra.mxu0 0.0
    %5375 = vmatprep.subr.mxu0 0.0
    %5376 = vmatpush1.msra.mxu0 0.0
    %5377 = vmatprep.subr.mxu0 0.0
    %5378 = vmatpush1.msra.mxu0 0.0
    %5379 = vmatprep.subr.mxu0 0.0
    %5380 = vmatpush1.msra.mxu0 0.0
    %5381 = vmatprep.subr.mxu0 0.0
    %5382 = vmatpush1.msra.mxu0 0.0
    %5383 = vmatprep.subr.mxu0 0.0
    %5384 = vmatpush1.msra.mxu0 0.0
    %5385 = vmatprep.subr.mxu0 0.0
    %5386 = vmatpush1.msra.mxu0 0.0
    %5387 = vmatprep.subr.mxu0 0.0
    %5388 = vmatpush1.msra.mxu0 0.0
    %5389 = vmatprep.subr.mxu0 0.0
    %5390 = vmatpush1.msra.mxu0 0.0
    %5391 = vmatprep.subr.mxu0 0.0
    %5392 = vmatpush1.msra.mxu0 0.0
    %5393 = vmatprep.subr.mxu0 0.0
    %5394 = vmatpush1.msra.mxu0 0.0
    %5395 = vmatprep.subr.mxu0 0.0
    %5396 = vmatpush1.msra.mxu0 0.0
    %5397 = vmatprep.mubr.f32.mxu0 0.0
    %5398 = vmatmul.mubr.f32.gmra.mrb[0].mxu0 %v572
    %v5399 = vpop.f32.mrb[0].mxu0
    %v5400 = vadd.f32 %v84, %v5399
    %v5401 = vpop.f32.mrb[0].mxu0
    %5402 = vmatprep.mubr.f32.mxu0 0.0
    %5403 = vmatmul.mubr.f32.gmra.mrb[0].mxu0 %v575
    %v5404 = vpop.f32.mrb[0].mxu0
    %v5405 = vadd.f32 %v89, %v5404
    %v5406 = vpop.f32.mrb[0].mxu0
    %5407 = vdwg.mxu0
    %v5408 = vtanh.pop %v5400
    %v5409 = vtanh.pop %v5405
    %5410 = vmatprep.subr.mxu0 0.0
    %5411 = vmatpush1.msra.mxu0 %v5408
    %5412 = vmatprep.subr.mxu0 0.0
    %5413 = vmatpush1.msra.mxu0 %v5409
    %5414 = vmatprep.subr.mxu0 0.0
    %5415 = vmatpush1.msra.mxu0 0.0
    %5416 = vmatprep.subr.mxu0 0.0
    %5417 = vmatpush1.msra.mxu0 0.0
    %5418 = vmatprep.subr.mxu0 0.0
    %5419 = vmatpush1.msra.mxu0 0.0
    %5420 = vmatprep.subr.mxu0 0.0
    %5421 = vmatpush1.msra.mxu0 0.0
    %5422 = vmatprep.subr.mxu0 0.0
    %5423 = vmatpush1.msra.mxu0 0.0
    %5424 = vmatprep.subr.mxu0 0.0
    %5425 = vmatpush1.msra.mxu0 0.0
    %5426 = vmatprep.subr.mxu0 0.0
    %5427 = vmatpush1.msra.mxu0 0.0
    %5428 = vmatprep.subr.mxu0 0.0
    %5429 = vmatpush1.msra.mxu0 0.0
    %5430 = vmatprep.subr.mxu0 0.0
    %5431 = vmatpush1.msra.mxu0 0.0
    %5432 = vmatprep.subr.mxu0 0.0
    %5433 = vmatpush1.msra.mxu0 0.0
    %5434 = vmatprep.subr.mxu0 0.0
    %5435 = vmatpush1.msra.mxu0 0.0
    %5436 = vmatprep.subr.mxu0 0.0
    %5437 = vmatpush1.msra.mxu0 0.0
    %5438 = vmatprep.subr.mxu0 0.0
    %5439 = vmatpush1.msra.mxu0 0.0
    %5440 = vmatprep.subr.mxu0 0.0
    %5441 = vmatpush1.msra.mxu0 0.0
    %5442 = vmatprep.subr.mxu0 0.0
    %5443 = vmatpush1.msra.mxu0 0.0
    %5444 = vmatprep.subr.mxu0 0.0
    %5445 = vmatpush1.msra.mxu0 0.0
    %5446 = vmatprep.subr.mxu0 0.0
    %5447 = vmatpush1.msra.mxu0 0.0
    %5448 = vmatprep.subr.mxu0 0.0
    %5449 = vmatpush1.msra.mxu0 0.0
    %5450 = vmatprep.subr.mxu0 0.0
    %5451 = vmatpush1.msra.mxu0 0.0
    %5452 = vmatprep.subr.mxu0 0.0
    %5453 = vmatpush1.msra.mxu0 0.0
    %5454 = vmatprep.subr.mxu0 0.0
    %5455 = vmatpush1.msra.mxu0 0.0
    %5456 = vmatprep.subr.mxu0 0.0
    %5457 = vmatpush1.msra.mxu0 0.0
    %5458 = vmatprep.subr.mxu0 0.0
    %5459 = vmatpush1.msra.mxu0 0.0
    %5460 = vmatprep.subr.mxu0 0.0
    %5461 = vmatpush1.msra.mxu0 0.0
    %5462 = vmatprep.subr.mxu0 0.0
    %5463 = vmatpush1.msra.mxu0 0.0
    %5464 = vmatprep.subr.mxu0 0.0
    %5465 = vmatpush1.msra.mxu0 0.0
    %5466 = vmatprep.subr.mxu0 0.0
    %5467 = vmatpush1.msra.mxu0 0.0
    %5468 = vmatprep.subr.mxu0 0.0
    %5469 = vmatpush1.msra.mxu0 0.0
    %5470 = vmatprep.subr.mxu0 0.0
    %5471 = vmatpush1.msra.mxu0 0.0
    %5472 = vmatprep.subr.mxu0 0.0
    %5473 = vmatpush1.msra.mxu0 0.0
    %5474 = vmatprep.mubr.f32.mxu0 0.0
    %5475 = vmatmul.mubr.f32.gmra.mrb[0].mxu0 %v655
    %v5476 = vpop.f32.mrb[0].mxu0
    %v5477 = vadd.f32 %v96, %v5476
    %v5478 = vpop.f32.mrb[0].mxu0
    %5479 = vmatprep.mubr.f32.mxu0 0.0
    %5480 = vmatmul.mubr.f32.gmra.mrb[0].mxu0 %v658
    %v5481 = vpop.f32.mrb[0].mxu0
    %v5482 = vadd.f32 %v101, %v5481
    %v5483 = vpop.f32.mrb[0].mxu0
    %5484 = vdwg.mxu0
    %v5485 = vmul.f32 %v5477, 0.125
    %v5486 = vmul.f32 %v5482, 0.125
    %v5487 = vadd.f32 %v5019, %v5485
    %v5488 = vadd.f32 %v5020, %v5486
    %5489 = vmatprep.subr.mxu0 0.0
    %5490 = vmatpush1.msra.mxu0 %v5487
    %5491 = vmatprep.subr.mxu0 0.0
    %5492 = vmatpush1.msra.mxu0 %v5488
    %5493 = vmatprep.subr.mxu0 0.0
    %5494 = vmatpush1.msra.mxu0 0.0
    %5495 = vmatprep.subr.mxu0 0.0
    %5496 = vmatpush1.msra.mxu0 0.0
    %5497 = vmatprep.subr.mxu0 0.0
    %5498 = vmatpush1.msra.mxu0 0.0
    %5499 = vmatprep.subr.mxu0 0.0
    %5500 = vmatpush1.msra.mxu0 0.0
    %5501 = vmatprep.subr.mxu0 0.0
    %5502 = vmatpush1.msra.mxu0 0.0
    %5503 = vmatprep.subr.mxu0 0.0
    %5504 = vmatpush1.msra.mxu0 0.0
    %5505 = vmatprep.subr.mxu0 0.0
    %5506 = vmatpush1.msra.mxu0 0.0
    %5507 = vmatprep.subr.mxu0 0.0
    %5508 = vmatpush1.msra.mxu0 0.0
    %5509 = vmatprep.subr.mxu0 0.0
    %5510 = vmatpush1.msra.mxu0 0.0
    %5511 = vmatprep.subr.mxu0 0.0
    %5512 = vmatpush1.msra.mxu0 0.0
    %5513 = vmatprep.subr.mxu0 0.0
    %5514 = vmatpush1.msra.mxu0 0.0
    %5515 = vmatprep.subr.mxu0 0.0
    %5516 = vmatpush1.msra.mxu0 0.0
    %5517 = vmatprep.subr.mxu0 0.0
    %5518 = vmatpush1.msra.mxu0 0.0
    %5519 = vmatprep.subr.mxu0 0.0
    %5520 = vmatpush1.msra.mxu0 0.0
    %5521 = vmatprep.subr.mxu0 0.0
    %5522 = vmatpush1.msra.mxu0 0.0
    %5523 = vmatprep.subr.mxu0 0.0
    %5524 = vmatpush1.msra.mxu0 0.0
    %5525 = vmatprep.subr.mxu0 0.0
    %5526 = vmatpush1.msra.mxu0 0.0
    %5527 = vmatprep.subr.mxu0 0.0
    %5528 = vmatpush1.msra.mxu0 0.0
    %5529 = vmatprep.subr.mxu0 0.0
    %5530 = vmatpush1.msra.mxu0 0.0
    %5531 = vmatprep.subr.mxu0 0.0
    %5532 = vmatpush1.msra.mxu0 0.0
    %5533 = vmatprep.subr.mxu0 0.0
    %5534 = vmatpush1.msra.mxu0 0.0
    %5535 = vmatprep.subr.mxu0 0.0
    %5536 = vmatpush1.msra.mxu0 0.0
    %5537 = vmatprep.subr.mxu0 0.0
    %5538 = vmatpush1.msra.mxu0 0.0
    %5539 = vmatprep.subr.mxu0 0.0
    %5540 = vmatpush1.msra.mxu0 0.0
    %5541 = vmatprep.subr.mxu0 0.0
    %5542 = vmatpush1.msra.mxu0 0.0
    %5543 = vmatprep.subr.mxu0 0.0
    %5544 = vmatpush1.msra.mxu0 0.0
    %5545 = vmatprep.subr.mxu0 0.0
    %5546 = vmatpush1.msra.mxu0 0.0
    %5547 = vmatprep.subr.mxu0 0.0
    %5548 = vmatpush1.msra.mxu0 0.0
    %5549 = vmatprep.subr.mxu0 0.0
    %5550 = vmatpush1.msra.mxu0 0.0
    %5551 = vmatprep.subr.mxu0 0.0
    %5552 = vmatpush1.msra.mxu0 0.0
    %5553 = vmatprep.mubr.f32.mxu0 0.0
    %5554 = vmatmul.mubr.f32.gmra.mrb[0].mxu0 %v572
    %v5555 = vpop.f32.mrb[0].mxu0
    %v5556 = vadd.f32 %v84, %v5555
    %v5557 = vpop.f32.mrb[0].mxu0
    %5558 = vmatprep.mubr.f32.mxu0 0.0
    %5559 = vmatmul.mubr.f32.gmra.mrb[0].mxu0 %v575
    %v5560 = vpop.f32.mrb[0].mxu0
    %v5561 = vadd.f32 %v89, %v5560
    %v5562 = vpop.f32.mrb[0].mxu0
    %5563 = vdwg.mxu0
    %v5564 = vtanh.pop %v5556
    %v5565 = vtanh.pop %v5561
    %5566 = vmatprep.subr.mxu0 0.0
    %5567 = vmatpush1.msra.mxu0 %v5564
    %5568 = vmatprep.subr.mxu0 0.0
    %5569 = vmatpush1.msra.mxu0 %v5565
    %5570 = vmatprep.subr.mxu0 0.0
    %5571 = vmatpush1.msra.mxu0 0.0
    %5572 = vmatprep.subr.mxu0 0.0
    %5573 = vmatpush1.msra.mxu0 0.0
    %5574 = vmatprep.subr.mxu0 0.0
    %5575 = vmatpush1.msra.mxu0 0.0
    %5576 = vmatprep.subr.mxu0 0.0
    %5577 = vmatpush1.msra.mxu0 0.0
    %5578 = vmatprep.subr.mxu0 0.0
    %5579 = vmatpush1.msra.mxu0 0.0
    %5580 = vmatprep.subr.mxu0 0.0
    %5581 = vmatpush1.msra.mxu0 0.0
    %5582 = vmatprep.subr.mxu0 0.0
    %5583 = vmatpush1.msra.mxu0 0.0
    %5584 = vmatprep.subr.mxu0 0.0
    %5585 = vmatpush1.msra.mxu0 0.0
    %5586 = vmatprep.subr.mxu0 0.0
    %5587 = vmatpush1.msra.mxu0 0.0
    %5588 = vmatprep.subr.mxu0 0.0
    %5589 = vmatpush1.msra.mxu0 0.0
    %5590 = vmatprep.subr.mxu0 0.0
    %5591 = vmatpush1.msra.mxu0 0.0
    %5592 = vmatprep.subr.mxu0 0.0
    %5593 = vmatpush1.msra.mxu0 0.0
    %5594 = vmatprep.subr.mxu0 0.0
    %5595 = vmatpush1.msra.mxu0 0.0
    %5596 = vmatprep.subr.mxu0 0.0
    %5597 = vmatpush1.msra.mxu0 0.0
    %5598 = vmatprep.subr.mxu0 0.0
    %5599 = vmatpush1.msra.mxu0 0.0
    %5600 = vmatprep.subr.mxu0 0.0
    %5601 = vmatpush1.msra.mxu0 0.0
    %5602 = vmatprep.subr.mxu0 0.0
    %5603 = vmatpush1.msra.mxu0 0.0
    %5604 = vmatprep.subr.mxu0 0.0
    %5605 = vmatpush1.msra.mxu0 0.0
    %5606 = vmatprep.subr.mxu0 0.0
    %5607 = vmatpush1.msra.mxu0 0.0
    %5608 = vmatprep.subr.mxu0 0.0
    %5609 = vmatpush1.msra.mxu0 0.0
    %5610 = vmatprep.subr.mxu0 0.0
    %5611 = vmatpush1.msra.mxu0 0.0
    %5612 = vmatprep.subr.mxu0 0.0
    %5613 = vmatpush1.msra.mxu0 0.0
    %5614 = vmatprep.subr.mxu0 0.0
    %5615 = vmatpush1.msra.mxu0 0.0
    %5616 = vmatprep.subr.mxu0 0.0
    %5617 = vmatpush1.msra.mxu0 0.0
    %5618 = vmatprep.subr.mxu0 0.0
    %5619 = vmatpush1.msra.mxu0 0.0
    %5620 = vmatprep.subr.mxu0 0.0
    %5621 = vmatpush1.msra.mxu0 0.0
    %5622 = vmatprep.subr.mxu0 0.0
    %5623 = vmatpush1.msra.mxu0 0.0
    %5624 = vmatprep.subr.mxu0 0.0
    %5625 = vmatpush1.msra.mxu0 0.0
    %5626 = vmatprep.subr.mxu0 0.0
    %5627 = vmatpush1.msra.mxu0 0.0
    %5628 = vmatprep.subr.mxu0 0.0
    %5629 = vmatpush1.msra.mxu0 0.0
    %5630 = vmatprep.mubr.f32.mxu0 0.0
    %5631 = vmatmul.mubr.f32.gmra.mrb[0].mxu0 %v655
    %v5632 = vpop.f32.mrb[0].mxu0
    %v5633 = vadd.f32 %v96, %v5632
    %v5634 = vpop.f32.mrb[0].mxu0
    %5635 = vmatprep.mubr.f32.mxu0 0.0
    %5636 = vmatmul.mubr.f32.gmra.mrb[0].mxu0 %v658
    %v5637 = vpop.f32.mrb[0].mxu0
    %v5638 = vpop.f32.mrb[0].mxu0
    %5639 = vdwg.mxu0
    %v5640 = vmul.f32 %v5321, 2.0
    %v5641 = vadd.f32 %v5165, %v5640
    %v5642 = vmul.f32 %v5477, 2.0
    %v5643 = vadd.f32 %v5641, %v5642
    %v5644 = vadd.f32 %v5643, %v5633
    %v5645 = vmul.f32 %v5644, 0.020833334
    %v5646 = vadd.f32 %v5019, %v5645
    %v5647 = vld [vmem:[%s11] sm:$0xff]
    %5649 = vset.pattern.permute.xlu0 0
    %5650 = vperm.xlu0 %5649, %v5647
    %v5651 = vpop.permute.xlu0 %5650
    %v5653 = vmul.f32 %v5651, %v60
    %v5654 = vld [vmem:[%s12] sm:$0xff]
    %5656 = vset.pattern.permute.xlu0 0
    %5657 = vperm.xlu0 %5656, %v5654
    %v5658 = vpop.permute.xlu0 %5657
    %v5660 = vadd.f32 %v5653, %v5658
    %v5661 = vsub.f32 %v5646, %v5660
    %5662 = vst [vmem:[#allocation5] sm:$0xff] %v5661
    // Predicated region
    $region58: #{tpu_custom_call.1} parent=1 // pred_check
      _
    $region59: #{tpu_custom_call.1} parent=1 // pred_check_branch
      %5664 = sbr.rel (0) target = $region61
    $region60: #{tpu_custom_call.1} parent=1 // pred_region
      %s5666 = ssub.s32 128, 128
      %5667 = vsyncadd [#allocation4], %s5666
      %s5669 = sshll.u32 [#allocation5], 4
      %s5670 = int_to_ptr.vmem [resolvable:$true] %s5669
      %5672 = dma.vmem_to_hbm [thread:$0]  %s5670, 128, %s13, [#allocation4]
    $region61: #{tpu_custom_call.1} parent=1 // pred_fallthru
      _
    // Predicated region
    $region62: #{tpu_custom_call.1} parent=1 // pred_check
      _
    $region63: #{tpu_custom_call.1} parent=1 // pred_check_branch
      %5674 = sbr.rel (0) target = $region65
    $region64: #{tpu_custom_call.1} parent=1 // pred_region
      %5675 = dma.done [#allocation4], 128
    $region65: #{tpu_custom_call.1} parent=1 // pred_fallthru
      _
    %5676 = vsyncpa [#allocation3], 1
    %5677 = vsyncpa [#allocation4], 1

</llo_original>
